<compile_context>
chip_gen: v7x
topology: tpu7x:2x2x1
jax: 0.10.0
libtpu: 0.0.40
codegen_flags: <defaults>
</compile_context>

<pallas_src>
import jax
import jax.numpy as jnp
from jax import lax
from jax.experimental import pallas as pl
from jax.experimental.pallas import tpu as pltpu

LANE = 128  # TPU lane width: channel dims are padded up to a multiple of this.


def _round_up(x, m):
    return (x + m - 1) // m * m


def _make_wrn_block_kernel(nb, H, W, Cin, Cout, stride, equal_in_out, mm_dtype):
    """Builds the fused kernel for one batch tile of `nb` images (channels pre-padded)."""
    Ho = (H - 1) // stride + 1
    Wo = (W - 1) // stride + 1
    M = nb * Ho * Wo

    def zero_halo(pad_ref, Hp, Wp, C):
        # 1-px border of the padded conv input.  Re-zeroed every grid step (see header
        # comment); the interior is fully overwritten each step.
        z_row = jnp.zeros((nb, 1, Wp, C), mm_dtype)
        z_col = jnp.zeros((nb, Hp, 1, C), mm_dtype)
        pad_ref[:, 0:1, :, :] = z_row
        pad_ref[:, Hp - 1:Hp, :, :] = z_row
        pad_ref[:, :, 0:1, :] = z_col
        pad_ref[:, :, Wp - 1:Wp, :] = z_col

    def im2col(pad_ref, col_ref, C, s):
        """Scatter the 9 taps of a 3x3/pad-1 conv into the im2col scratch.

        Tap t = kh*3 + kw lands in lanes [t*C, (t+1)*C) (lane-aligned since C % 128 == 0),
        matching the (kh, kw, cin)-major flattening of the HWIO weights, so the conv
        becomes a single MXU matmul with K = 9*C.
        """
        for kh in range(3):
            for kw in range(3):
                t = kh * 3 + kw
                if s == 1:
                    patch = pad_ref[:, kh:kh + Ho, kw:kw + Wo, :]
                else:
                    # W stride: sublane-strided ref read.  H stride: load s*Ho
                    # contiguous rows and keep every s-th via a free leading-dim
                    # reshape (only dims above the (sublane, lane) tile change).
                    rows = pad_ref[:, kh:kh + s * Ho, pl.ds(kw, Wo, stride=s), :]
                    patch = rows.reshape(nb * Ho, s, Wo, C)[:, 0, :, :]
                    patch = patch.reshape(nb, Ho, Wo, C)
                col_ref[:, :, :, t * C:(t + 1) * C] = patch

    def kernel(*refs):
        if equal_in_out:
            (x_ref, w1_ref, w2_ref, s_ref, out_ref,
             pad1_ref, col1_ref, pad2_ref, col2_ref) = refs
            wsc_ref = None
        else:
            (x_ref, w1_ref, w2_ref, wsc_ref, s_ref, out_ref,
             pad1_ref, col1_ref, pad2_ref, col2_ref) = refs

        # Fixup scalars, read once per grid step from SMEM.
        b1 = s_ref[0]
        b2 = s_ref[1]
        b3 = s_ref[2]
        b4 = s_ref[3]
        scale = s_ref[4]

        # ---- conv1 input: zero 1-px halo, interior = relu(x + b1) -------------------
        zero_halo(pad1_ref, H + 2, W + 2, Cin)
        u = jnp.maximum(x_ref[...] + b1, 0.0)                     # f32 elementwise
        pad1_ref[:, 1:H + 1, 1:W + 1, :] = u.astype(mm_dtype)

        # ---- conv1 (3x3, stride `stride`, pad 1) as one im2col matmul ---------------
        im2col(pad1_ref, col1_ref, Cin, stride)
        o1 = jnp.dot(col1_ref[...].reshape(M, 9 * Cin), w1_ref[...],
                     preferred_element_type=jnp.float32)          # (M, Cout) f32

        # ---- bias3(relu2(bias2(conv1))) -> conv2 input -------------------------------
        v = jnp.maximum(o1 + b2, 0.0) + b3                        # f32
        zero_halo(pad2_ref, Ho + 2, Wo + 2, Cout)
        pad2_ref[:, 1:Ho + 1, 1:Wo + 1, :] = (
            v.reshape(nb, Ho, Wo, Cout).astype(mm_dtype))

        # ---- conv2 (3x3, stride 1, pad 1) as one im2col matmul -----------------------
        im2col(pad2_ref, col2_ref, Cout, 1)
        o2 = jnp.dot(col2_ref[...].reshape(M, 9 * Cout), w2_ref[...],
                     preferred_element_type=jnp.float32)

        out2d = o2 * scale + b4                                   # bias4(scale1(conv2))

        if equal_in_out:
            # identity shortcut on the ORIGINAL x (equalInOut => stride == 1).
            out2d = out2d + x_ref[...].reshape(M, Cin)
        else:
            # convShortcut: 1x1 conv, stride `stride`, on u = relu(bias1(x));
            # u is re-read (already in mm_dtype) from the pad1 interior.
            if stride == 1:
                us = pad1_ref[:, 1:H + 1, 1:W + 1, :]
                us2d = us.reshape(M, Cin)
            else:
                rows = pad1_ref[:, 1:1 + stride * Ho, pl.ds(1, Wo, stride=stride), :]
                us2d = rows.reshape(nb * Ho, stride, Wo, Cin)[:, 0, :, :].reshape(M, Cin)
            out2d = out2d + jnp.dot(us2d, wsc_ref[...],
                                    preferred_element_type=jnp.float32)

        out_ref[...] = out2d.reshape(nb, Ho, Wo, Cout).astype(out_ref.dtype)

    return kernel, Ho, Wo


def _vmem_capacity_bytes():
    try:
        return int(pltpu.get_tpu_info().vmem_capacity_bytes)
    except Exception:
        return 64 << 20  # v7x per-TensorCore VMEM: safe lower bound across generations


def _plan_vmem_bytes(H, W, Ho, Wo, Cin_p, Cout_p, mm_bytes, equal):
    """Honest per-image / weight VMEM accounting: pipelined tiles, scratch, temporaries."""
    act_in = H * W * Cin_p
    act_out = Ho * Wo * Cout_p
    per_img = (
        2 * act_in * 4 + 2 * act_out * 4                               # double-buffered x / out tiles
        + ((H + 2) * (W + 2) * Cin_p                                    # pad1 scratch
           + (Ho + 2) * (Wo + 2) * Cout_p                               # pad2 scratch
           + 9 * Ho * Wo * (Cin_p + Cout_p)) * mm_bytes                 # im2col scratch (conv1+conv2)
        + (act_in + 4 * act_out) * 4)                                   # f32 value temporaries (u, o1, v, o2, out)
    weight_bytes = (9 * Cin_p * Cout_p + 9 * Cout_p * Cout_p
                    + (0 if equal else Cin_p * Cout_p)) * mm_bytes      # single-buffered, resident
    return per_img, weight_bytes


def _pick_batch_tile(N, Ho, Wo, per_img, weight_bytes, budget):
    """Largest-fitting divisor of N, preferring >=2 grid steps, an even step count
    (v7x 2-TC split) and MXU-shaped matmuls (M = nb*Ho*Wo >= 512)."""
    divs = [d for d in range(1, N + 1) if N % d == 0]
    fits = [d for d in divs if weight_bytes + d * per_img <= budget]
    if not fits:
        # TODO(synk): add a Cout-tiling grid axis for stages whose resident weights
        # alone exceed the budget (e.g. 640-channel stage on v5e).
        fits = [1]

    def score(d):
        steps = N // d
        return (steps >= 2,           # pipelining / both v7x TensorCores busy
                steps % 2 == 0,       # even split across the 2 v7x TensorCores
                d * Ho * Wo >= 512,   # MXU-shaped matmul M (256-row MXU on v6e/v7x)
                d)                    # otherwise: largest tile
    return max(fits, key=score)


def wrn_fixup_basic_block(x_nchw, params, *, stride, mm_dtype=jnp.bfloat16,
                          vmem_budget_bytes=None):
    """Pallas implementation. x_nchw: (N, Cin, H, W) float32 (PyTorch layout)."""
    N, Cin, H, W = x_nchw.shape
    w1 = jnp.asarray(params["w1"], jnp.float32)          # (3, 3, Cin, Cout)
    w2 = jnp.asarray(params["w2"], jnp.float32)          # (3, 3, Cout, Cout)
    Cout = w1.shape[-1]
    equal = (Cin == Cout)
    if equal:
        assert stride == 1, "equalInOut residual requires stride == 1"
    if stride != 1:
        assert H % stride == 0 and W % stride == 0, "strided path assumes divisible spatial dims"

    # ---- lane-dense channel padding (zero-padded channels/weight rows are inert) ----
    Cin_p = _round_up(Cin, LANE)
    Cout_p = _round_up(Cout, LANE)

    # TODO(synk): when chaining blocks, keep activations NHWC / channel-padded between
    # blocks instead of paying NCHW<->NHWC transposes + channel slices per call.
    x_nhwc = jnp.transpose(x_nchw, (0, 2, 3, 1)).astype(jnp.float32)
    x_p = jnp.pad(x_nhwc, ((0, 0), (0, 0), (0, 0), (0, Cin_p - Cin)))

    # Weights: pad channels, flatten HWIO -> (9*C, Cout) tap-major to match im2col.
    w1_p = jnp.pad(w1, ((0, 0), (0, 0), (0, Cin_p - Cin), (0, Cout_p - Cout))
                   ).reshape(9 * Cin_p, Cout_p).astype(mm_dtype)
    w2_p = jnp.pad(w2, ((0, 0), (0, 0), (0, Cout_p - Cout), (0, Cout_p - Cout))
                   ).reshape(9 * Cout_p, Cout_p).astype(mm_dtype)
    if not equal:
        wsc = jnp.asarray(params["wsc"], jnp.float32)     # (1, 1, Cin, Cout)
        wsc_p = jnp.pad(wsc, ((0, 0), (0, 0), (0, Cin_p - Cin), (0, Cout_p - Cout))
                        ).reshape(Cin_p, Cout_p).astype(mm_dtype)

    scalars = jnp.asarray(
        [params["b1"], params["b2"], params["b3"], params["b4"], params["scale"]],
        jnp.float32)

    Ho = (H - 1) // stride + 1
    Wo = (W - 1) // stride + 1
    mm_bytes = jnp.dtype(mm_dtype).itemsize

    # ---- generation-aware VMEM budgeting / batch tiling -----------------------------
    vmem_cap = _vmem_capacity_bytes()
    if vmem_budget_bytes is None:
        vmem_budget_bytes = min(int(0.65 * vmem_cap), 80 << 20)
    per_img, weight_bytes = _plan_vmem_bytes(H, W, Ho, Wo, Cin_p, Cout_p, mm_bytes, equal)
    nb = _pick_batch_tile(N, Ho, Wo, per_img, weight_bytes, vmem_budget_bytes)
    plan_bytes = weight_bytes + nb * per_img
    vmem_limit = int(min(vmem_cap - (8 << 20),
                         max(32 << 20, int(1.2 * plan_bytes) + (2 << 20))))
    grid = (N // nb,)

    kernel, Ho, Wo = _make_wrn_block_kernel(nb, H, W, Cin_p, Cout_p, stride, equal,
                                            mm_dtype)

    # Weights live once in VMEM for the whole grid (single-buffered, not pipelined).
    resident = pl.BlockSpec(memory_space=pltpu.MemorySpace.VMEM)
    in_specs = [
        pl.BlockSpec((nb, H, W, Cin_p), lambda n: (n, 0, 0, 0)),   # x tile (pipelined)
        resident,                                                  # w1 (9*Cin_p, Cout_p)
        resident,                                                  # w2 (9*Cout_p, Cout_p)
    ]
    args = [x_p, w1_p, w2_p]
    if not equal:
        in_specs.append(resident)                                  # wsc (Cin_p, Cout_p)
        args.append(wsc_p)
    in_specs.append(pl.BlockSpec(memory_space=pltpu.MemorySpace.SMEM))  # 5 fixup scalars
    args.append(scalars)

    # Cost estimate (what the kernel actually computes, padded dims).
    flops = 2 * N * Ho * Wo * (9 * Cin_p * Cout_p + 9 * Cout_p * Cout_p
                               + (0 if equal else Cin_p * Cout_p))
    bytes_accessed = int(x_p.size * 4 + N * Ho * Wo * Cout_p * 4
                         + w1_p.size * mm_bytes + w2_p.size * mm_bytes
                         + (0 if equal else wsc_p.size * mm_bytes) + scalars.size * 4)

    out_p = pl.pallas_call(
        kernel,
        grid=grid,
        out_shape=jax.ShapeDtypeStruct((N, Ho, Wo, Cout_p), jnp.float32),
        in_specs=in_specs,
        out_specs=pl.BlockSpec((nb, Ho, Wo, Cout_p), lambda n: (n, 0, 0, 0)),
        scratch_shapes=[
            pltpu.VMEM((nb, H + 2, W + 2, Cin_p), mm_dtype),       # padded conv1 input
            pltpu.VMEM((nb, Ho, Wo, 9 * Cin_p), mm_dtype),         # im2col for conv1
            pltpu.VMEM((nb, Ho + 2, Wo + 2, Cout_p), mm_dtype),    # padded conv2 input
            pltpu.VMEM((nb, Ho, Wo, 9 * Cout_p), mm_dtype),        # im2col for conv2
        ],
        compiler_params=pltpu.CompilerParams(
            dimension_semantics=("parallel",),
            vmem_limit_bytes=vmem_limit),
        cost_estimate=pl.CostEstimate(flops=flops, transcendentals=0,
                                      bytes_accessed=bytes_accessed),
    )(*args)

    # Padded output channels carry b4 (inert for real channels); drop them here.
    out_nhwc = out_p[..., :Cout]
    return jnp.transpose(out_nhwc, (0, 3, 1, 2))          # back to NCHW


def wrn_fixup_basic_block_ref(x_nchw, params, *, stride, mm_dtype=jnp.float32):
    """Plain-JAX reference mirroring the PyTorch forward. `mm_dtype` optionally casts
    the conv operands (to compare against the kernel's bf16-MXU / f32-accumulate path)."""
    x = jnp.transpose(x_nchw, (0, 2, 3, 1)).astype(jnp.float32)
    w1 = jnp.asarray(params["w1"], jnp.float32)
    w2 = jnp.asarray(params["w2"], jnp.float32)
    equal = x.shape[-1] == w1.shape[-1]

    def conv(a, w, s, p):
        return lax.conv_general_dilated(
            a.astype(mm_dtype), w.astype(mm_dtype), (s, s), ((p, p), (p, p)),
            dimension_numbers=("NHWC", "HWIO", "NHWC"),
            preferred_element_type=jnp.float32)

    u = jax.nn.relu(x + params["b1"])
    out = conv(u, w1, stride, 1)
    out = jax.nn.relu(out + params["b2"]) + params["b3"]
    out = conv(out, w2, 1, 1) * params["scale"] + params["b4"]
    if equal:
        out = out + x
    else:
        out = out + conv(u, jnp.asarray(params["wsc"], jnp.float32), stride, 0)
    return jnp.transpose(out, (0, 3, 1, 2))


def init_params(key, in_planes, out_planes):
    """Deterministic synthetic parameters (shapes match the nn.Module __init__)."""
    k1, k2, k3 = jax.random.split(key, 3)
    params = dict(
        w1=0.1 * jax.random.normal(k1, (3, 3, in_planes, out_planes), jnp.float32),
        w2=0.1 * jax.random.normal(k2, (3, 3, out_planes, out_planes), jnp.float32),
        b1=0.10, b2=-0.20, b3=0.05, b4=0.03, scale=1.5,   # Fixup Bias()/Scale() scalars
    )
    if in_planes != out_planes:
        params["wsc"] = 0.1 * jax.random.normal(
            k3, (1, 1, in_planes, out_planes), jnp.float32)
    return params


# TODO(synk): dropout (dropRate > 0) and the augmented=True (Conv2dAug) variant of the
# module are not implemented; the defaults (dropRate=0.0, augmented=False) are covered.

if __name__ == "__main__":
    key = jax.random.PRNGKey(0)
    kx, kp1, kp2, kp3 = jax.random.split(key, 4)
    x = jax.random.normal(kx, (2, 4, 16, 16), jnp.float32)   # NCHW, like the PyTorch module

    # Case 1: equalInOut (identity shortcut), stride=1.
    p1 = init_params(kp1, 4, 4)
    y1 = jax.block_until_ready(wrn_fixup_basic_block(x, p1, stride=1,
                                                     mm_dtype=jnp.float32))
    r1 = wrn_fixup_basic_block_ref(x, p1, stride=1)
    assert y1.shape == (2, 4, 16, 16)
    assert jnp.allclose(y1, r1, atol=1e-4, rtol=1e-4), float(jnp.max(jnp.abs(y1 - r1)))
    y1b = jax.block_until_ready(wrn_fixup_basic_block(x, p1, stride=1))
    r1b = wrn_fixup_basic_block_ref(x, p1, stride=1, mm_dtype=jnp.bfloat16)
    assert jnp.allclose(y1b, r1b, atol=5e-3, rtol=5e-3), float(jnp.max(jnp.abs(y1b - r1b)))

    # Case 2: in_planes != out_planes (1x1 convShortcut), stride=1.
    p2 = init_params(kp2, 4, 8)
    y2 = jax.block_until_ready(wrn_fixup_basic_block(x, p2, stride=1,
                                                     mm_dtype=jnp.float32))
    r2 = wrn_fixup_basic_block_ref(x, p2, stride=1)
    assert y2.shape == (2, 8, 16, 16)
    assert jnp.allclose(y2, r2, atol=1e-4, rtol=1e-4), float(jnp.max(jnp.abs(y2 - r2)))

    # Case 3: downsampling block (in != out, stride=2) -- validates the strided-tap path.
    p3 = init_params(kp3, 4, 8)
    y3 = jax.block_until_ready(wrn_fixup_basic_block(x, p3, stride=2,
                                                     mm_dtype=jnp.float32))
    r3 = wrn_fixup_basic_block_ref(x, p3, stride=2)
    assert y3.shape == (2, 8, 8, 8)
    assert jnp.allclose(y3, r3, atol=1e-4, rtol=1e-4), float(jnp.max(jnp.abs(y3 - r3)))
    y3b = jax.block_until_ready(wrn_fixup_basic_block(x, p3, stride=2))
    r3b = wrn_fixup_basic_block_ref(x, p3, stride=2, mm_dtype=jnp.bfloat16)
    assert jnp.allclose(y3b, r3b, atol=5e-3, rtol=5e-3), float(jnp.max(jnp.abs(y3b - r3b)))

    print("KERNEL_OK")
</pallas_src>

<mosaic_0001>
module attributes {stable_mosaic.version = 11 : i64} {
  func.func @kernel(%arg0: i32, %arg1: memref<1x16x16x128xf32, #tpu.memory_space<vmem>>, %arg2: memref<1152x128xf32, #tpu.memory_space<vmem>>, %arg3: memref<1152x128xf32, #tpu.memory_space<vmem>>, %arg4: memref<5xf32, #tpu.memory_space<smem>>, %arg5: memref<1x16x16x128xf32, #tpu.memory_space<vmem>>, %arg6: memref<1x18x18x128xf32, #tpu.memory_space<vmem>>, %arg7: memref<1x16x16x1152xf32, #tpu.memory_space<vmem>>, %arg8: memref<1x18x18x128xf32, #tpu.memory_space<vmem>>, %arg9: memref<1x16x16x1152xf32, #tpu.memory_space<vmem>>) attributes {dimension_semantics = [#tpu.dimension_semantics<parallel>], iteration_bounds = array<i64: 2>, scalar_prefetch = 0 : i64, scratch_operands = 4 : i64, tpu.core_type = #tpu.core_type<tc>, window_params = [{transform_indices = @transform_0, window_bounds = array<i64: 1, 16, 16, 128>}, {pipeline_mode = #tpu.pipeline_mode<synchronous>, transform_indices = @transform_1, window_bounds = array<i64: 1152, 128>}, {pipeline_mode = #tpu.pipeline_mode<synchronous>, transform_indices = @transform_2, window_bounds = array<i64: 1152, 128>}, {transform_indices = @transform_3, window_bounds = array<i64: 5>}, {transform_indices = @transform_4, window_bounds = array<i64: 1, 16, 16, 128>}]} {
    %c0 = arith.constant 0 : index
    %0 = memref.load %arg4[%c0] : memref<5xf32, #tpu.memory_space<smem>>
    %c1 = arith.constant 1 : index
    %1 = memref.load %arg4[%c1] : memref<5xf32, #tpu.memory_space<smem>>
    %c2 = arith.constant 2 : index
    %2 = memref.load %arg4[%c2] : memref<5xf32, #tpu.memory_space<smem>>
    %c3 = arith.constant 3 : index
    %3 = memref.load %arg4[%c3] : memref<5xf32, #tpu.memory_space<smem>>
    %c4 = arith.constant 4 : index
    %4 = memref.load %arg4[%c4] : memref<5xf32, #tpu.memory_space<smem>>
    %cst = arith.constant 0.000000e+00 : f32
    %5 = vector.broadcast %cst : f32 to vector<1x1x18x128xf32>
    %cst_0 = arith.constant 0.000000e+00 : f32
    %6 = vector.broadcast %cst_0 : f32 to vector<1x18x1x128xf32>
    %c0_1 = arith.constant 0 : index
    %c0_2 = arith.constant 0 : index
    %c0_3 = arith.constant 0 : index
    %c0_4 = arith.constant 0 : index
    %7 = vector.load %arg6[%c0_1, %c0_2, %c0_3, %c0_4] : memref<1x18x18x128xf32, #tpu.memory_space<vmem>>, vector<1x1x18x128xf32>
    tpu.vector_store %arg6[%c0_1, %c0_2, %c0_3, %c0_4], %5 {strides = array<i32>} : memref<1x18x18x128xf32, #tpu.memory_space<vmem>>, vector<1x1x18x128xf32>,
    %c0_5 = arith.constant 0 : index
    %c17 = arith.constant 17 : index
    %c0_6 = arith.constant 0 : index
    %c0_7 = arith.constant 0 : index
    %8 = vector.load %arg6[%c0_5, %c17, %c0_6, %c0_7] : memref<1x18x18x128xf32, #tpu.memory_space<vmem>>, vector<1x1x18x128xf32>
    tpu.vector_store %arg6[%c0_5, %c17, %c0_6, %c0_7], %5 {strides = array<i32>} : memref<1x18x18x128xf32, #tpu.memory_space<vmem>>, vector<1x1x18x128xf32>,
    %c0_8 = arith.constant 0 : index
    %c0_9 = arith.constant 0 : index
    %c0_10 = arith.constant 0 : index
    %c0_11 = arith.constant 0 : index
    %9 = vector.load %arg6[%c0_8, %c0_9, %c0_10, %c0_11] : memref<1x18x18x128xf32, #tpu.memory_space<vmem>>, vector<1x18x1x128xf32>
    tpu.vector_store %arg6[%c0_8, %c0_9, %c0_10, %c0_11], %6 {strides = array<i32>} : memref<1x18x18x128xf32, #tpu.memory_space<vmem>>, vector<1x18x1x128xf32>,
    %c0_12 = arith.constant 0 : index
    %c0_13 = arith.constant 0 : index
    %c17_14 = arith.constant 17 : index
    %c0_15 = arith.constant 0 : index
    %10 = vector.load %arg6[%c0_12, %c0_13, %c17_14, %c0_15] : memref<1x18x18x128xf32, #tpu.memory_space<vmem>>, vector<1x18x1x128xf32>
    tpu.vector_store %arg6[%c0_12, %c0_13, %c17_14, %c0_15], %6 {strides = array<i32>} : memref<1x18x18x128xf32, #tpu.memory_space<vmem>>, vector<1x18x1x128xf32>,
    %c0_16 = arith.constant 0 : index
    %c0_17 = arith.constant 0 : index
    %c0_18 = arith.constant 0 : index
    %c0_19 = arith.constant 0 : index
    %11 = vector.load %arg1[%c0_16, %c0_17, %c0_18, %c0_19] : memref<1x16x16x128xf32, #tpu.memory_space<vmem>>, vector<1x16x16x128xf32>
    %12 = vector.broadcast %0 : f32 to vector<1x16x16x128xf32>
    %13 = arith.addf %11, %12 : vector<1x16x16x128xf32>
    %cst_20 = arith.constant 0.000000e+00 : f32
    %14 = vector.broadcast %cst_20 : f32 to vector<1x16x16x128xf32>
    %15 = arith.maximumf %13, %14 : vector<1x16x16x128xf32>
    %c0_21 = arith.constant 0 : index
    %c1_22 = arith.constant 1 : index
    %c1_23 = arith.constant 1 : index
    %c0_24 = arith.constant 0 : index
    %16 = vector.load %arg6[%c0_21, %c1_22, %c1_23, %c0_24] : memref<1x18x18x128xf32, #tpu.memory_space<vmem>>, vector<1x16x16x128xf32>
    tpu.vector_store %arg6[%c0_21, %c1_22, %c1_23, %c0_24], %15 {strides = array<i32>} : memref<1x18x18x128xf32, #tpu.memory_space<vmem>>, vector<1x16x16x128xf32>,
    %c0_25 = arith.constant 0 : index
    %c0_26 = arith.constant 0 : index
    %c0_27 = arith.constant 0 : index
    %c0_28 = arith.constant 0 : index
    %17 = vector.load %arg6[%c0_25, %c0_26, %c0_27, %c0_28] : memref<1x18x18x128xf32, #tpu.memory_space<vmem>>, vector<1x16x16x128xf32>
    %c0_29 = arith.constant 0 : index
    %c0_30 = arith.constant 0 : index
    %c0_31 = arith.constant 0 : index
    %c0_32 = arith.constant 0 : index
    %18 = vector.load %arg7[%c0_29, %c0_30, %c0_31, %c0_32] : memref<1x16x16x1152xf32, #tpu.memory_space<vmem>>, vector<1x16x16x128xf32>
    tpu.vector_store %arg7[%c0_29, %c0_30, %c0_31, %c0_32], %17 {strides = array<i32>} : memref<1x16x16x1152xf32, #tpu.memory_space<vmem>>, vector<1x16x16x128xf32>,
    %c0_33 = arith.constant 0 : index
    %c0_34 = arith.constant 0 : index
    %c1_35 = arith.constant 1 : index
    %c0_36 = arith.constant 0 : index
    %19 = vector.load %arg6[%c0_33, %c0_34, %c1_35, %c0_36] : memref<1x18x18x128xf32, #tpu.memory_space<vmem>>, vector<1x16x16x128xf32>
    %c0_37 = arith.constant 0 : index
    %c0_38 = arith.constant 0 : index
    %c0_39 = arith.constant 0 : index
    %c128 = arith.constant 128 : index
    %20 = vector.load %arg7[%c0_37, %c0_38, %c0_39, %c128] : memref<1x16x16x1152xf32, #tpu.memory_space<vmem>>, vector<1x16x16x128xf32>
    tpu.vector_store %arg7[%c0_37, %c0_38, %c0_39, %c128], %19 {strides = array<i32>} : memref<1x16x16x1152xf32, #tpu.memory_space<vmem>>, vector<1x16x16x128xf32>,
    %c0_40 = arith.constant 0 : index
    %c0_41 = arith.constant 0 : index
    %c2_42 = arith.constant 2 : index
    %c0_43 = arith.constant 0 : index
    %21 = vector.load %arg6[%c0_40, %c0_41, %c2_42, %c0_43] : memref<1x18x18x128xf32, #tpu.memory_space<vmem>>, vector<1x16x16x128xf32>
    %c0_44 = arith.constant 0 : index
    %c0_45 = arith.constant 0 : index
    %c0_46 = arith.constant 0 : index
    %c256 = arith.constant 256 : index
    %22 = vector.load %arg7[%c0_44, %c0_45, %c0_46, %c256] : memref<1x16x16x1152xf32, #tpu.memory_space<vmem>>, vector<1x16x16x128xf32>
    tpu.vector_store %arg7[%c0_44, %c0_45, %c0_46, %c256], %21 {strides = array<i32>} : memref<1x16x16x1152xf32, #tpu.memory_space<vmem>>, vector<1x16x16x128xf32>,
    %c0_47 = arith.constant 0 : index
    %c1_48 = arith.constant 1 : index
    %c0_49 = arith.constant 0 : index
    %c0_50 = arith.constant 0 : index
    %23 = vector.load %arg6[%c0_47, %c1_48, %c0_49, %c0_50] : memref<1x18x18x128xf32, #tpu.memory_space<vmem>>, vector<1x16x16x128xf32>
    %c0_51 = arith.constant 0 : index
    %c0_52 = arith.constant 0 : index
    %c0_53 = arith.constant 0 : index
    %c384 = arith.constant 384 : index
    %24 = vector.load %arg7[%c0_51, %c0_52, %c0_53, %c384] : memref<1x16x16x1152xf32, #tpu.memory_space<vmem>>, vector<1x16x16x128xf32>
    tpu.vector_store %arg7[%c0_51, %c0_52, %c0_53, %c384], %23 {strides = array<i32>} : memref<1x16x16x1152xf32, #tpu.memory_space<vmem>>, vector<1x16x16x128xf32>,
    %c0_54 = arith.constant 0 : index
    %c1_55 = arith.constant 1 : index
    %c1_56 = arith.constant 1 : index
    %c0_57 = arith.constant 0 : index
    %25 = vector.load %arg6[%c0_54, %c1_55, %c1_56, %c0_57] : memref<1x18x18x128xf32, #tpu.memory_space<vmem>>, vector<1x16x16x128xf32>
    %c0_58 = arith.constant 0 : index
    %c0_59 = arith.constant 0 : index
    %c0_60 = arith.constant 0 : index
    %c512 = arith.constant 512 : index
    %26 = vector.load %arg7[%c0_58, %c0_59, %c0_60, %c512] : memref<1x16x16x1152xf32, #tpu.memory_space<vmem>>, vector<1x16x16x128xf32>
    tpu.vector_store %arg7[%c0_58, %c0_59, %c0_60, %c512], %25 {strides = array<i32>} : memref<1x16x16x1152xf32, #tpu.memory_space<vmem>>, vector<1x16x16x128xf32>,
    %c0_61 = arith.constant 0 : index
    %c1_62 = arith.constant 1 : index
    %c2_63 = arith.constant 2 : index
    %c0_64 = arith.constant 0 : index
    %27 = vector.load %arg6[%c0_61, %c1_62, %c2_63, %c0_64] : memref<1x18x18x128xf32, #tpu.memory_space<vmem>>, vector<1x16x16x128xf32>
    %c0_65 = arith.constant 0 : index
    %c0_66 = arith.constant 0 : index
    %c0_67 = arith.constant 0 : index
    %c640 = arith.constant 640 : index
    %28 = vector.load %arg7[%c0_65, %c0_66, %c0_67, %c640] : memref<1x16x16x1152xf32, #tpu.memory_space<vmem>>, vector<1x16x16x128xf32>
    tpu.vector_store %arg7[%c0_65, %c0_66, %c0_67, %c640], %27 {strides = array<i32>} : memref<1x16x16x1152xf32, #tpu.memory_space<vmem>>, vector<1x16x16x128xf32>,
    %c0_68 = arith.constant 0 : index
    %c2_69 = arith.constant 2 : index
    %c0_70 = arith.constant 0 : index
    %c0_71 = arith.constant 0 : index
    %29 = vector.load %arg6[%c0_68, %c2_69, %c0_70, %c0_71] : memref<1x18x18x128xf32, #tpu.memory_space<vmem>>, vector<1x16x16x128xf32>
    %c0_72 = arith.constant 0 : index
    %c0_73 = arith.constant 0 : index
    %c0_74 = arith.constant 0 : index
    %c768 = arith.constant 768 : index
    %30 = vector.load %arg7[%c0_72, %c0_73, %c0_74, %c768] : memref<1x16x16x1152xf32, #tpu.memory_space<vmem>>, vector<1x16x16x128xf32>
    tpu.vector_store %arg7[%c0_72, %c0_73, %c0_74, %c768], %29 {strides = array<i32>} : memref<1x16x16x1152xf32, #tpu.memory_space<vmem>>, vector<1x16x16x128xf32>,
    %c0_75 = arith.constant 0 : index
    %c2_76 = arith.constant 2 : index
    %c1_77 = arith.constant 1 : index
    %c0_78 = arith.constant 0 : index
    %31 = vector.load %arg6[%c0_75, %c2_76, %c1_77, %c0_78] : memref<1x18x18x128xf32, #tpu.memory_space<vmem>>, vector<1x16x16x128xf32>
    %c0_79 = arith.constant 0 : index
    %c0_80 = arith.constant 0 : index
    %c0_81 = arith.constant 0 : index
    %c896 = arith.constant 896 : index
    %32 = vector.load %arg7[%c0_79, %c0_80, %c0_81, %c896] : memref<1x16x16x1152xf32, #tpu.memory_space<vmem>>, vector<1x16x16x128xf32>
    tpu.vector_store %arg7[%c0_79, %c0_80, %c0_81, %c896], %31 {strides = array<i32>} : memref<1x16x16x1152xf32, #tpu.memory_space<vmem>>, vector<1x16x16x128xf32>,
    %c0_82 = arith.constant 0 : index
    %c2_83 = arith.constant 2 : index
    %c2_84 = arith.constant 2 : index
    %c0_85 = arith.constant 0 : index
    %33 = vector.load %arg6[%c0_82, %c2_83, %c2_84, %c0_85] : memref<1x18x18x128xf32, #tpu.memory_space<vmem>>, vector<1x16x16x128xf32>
    %c0_86 = arith.constant 0 : index
    %c0_87 = arith.constant 0 : index
    %c0_88 = arith.constant 0 : index
    %c1024 = arith.constant 1024 : index
    %34 = vector.load %arg7[%c0_86, %c0_87, %c0_88, %c1024] : memref<1x16x16x1152xf32, #tpu.memory_space<vmem>>, vector<1x16x16x128xf32>
    tpu.vector_store %arg7[%c0_86, %c0_87, %c0_88, %c1024], %33 {strides = array<i32>} : memref<1x16x16x1152xf32, #tpu.memory_space<vmem>>, vector<1x16x16x128xf32>,
    %c0_89 = arith.constant 0 : index
    %c0_90 = arith.constant 0 : index
    %c0_91 = arith.constant 0 : index
    %c0_92 = arith.constant 0 : index
    %35 = vector.load %arg7[%c0_89, %c0_90, %c0_91, %c0_92] : memref<1x16x16x1152xf32, #tpu.memory_space<vmem>>, vector<1x16x16x1152xf32>
    %36 = vector.shape_cast %35 : vector<1x16x16x1152xf32> to vector<256x1152xf32>
    %c0_93 = arith.constant 0 : index
    %c0_94 = arith.constant 0 : index
    %37 = vector.load %arg2[%c0_93, %c0_94] : memref<1152x128xf32, #tpu.memory_space<vmem>>, vector<1152x128xf32>
    %cst_95 = arith.constant dense<0.000000e+00> : vector<256x128xf32>
    %38 = tpu.matmul %36, %37, %cst_95 {dimension_numbers = #tpu.dot_dimension_numbers<[1], [0], [0], [1], [0, 0, 1, 1], [], []>} : vector<256x1152xf32>, vector<1152x128xf32>, vector<256x128xf32> -> vector<256x128xf32>
    %39 = vector.broadcast %1 : f32 to vector<256x128xf32>
    %40 = arith.addf %38, %39 : vector<256x128xf32>
    %cst_96 = arith.constant 0.000000e+00 : f32
    %41 = vector.broadcast %cst_96 : f32 to vector<256x128xf32>
    %42 = arith.maximumf %40, %41 : vector<256x128xf32>
    %43 = vector.broadcast %2 : f32 to vector<256x128xf32>
    %44 = arith.addf %42, %43 : vector<256x128xf32>
    %cst_97 = arith.constant 0.000000e+00 : f32
    %45 = vector.broadcast %cst_97 : f32 to vector<1x1x18x128xf32>
    %cst_98 = arith.constant 0.000000e+00 : f32
    %46 = vector.broadcast %cst_98 : f32 to vector<1x18x1x128xf32>
    %c0_99 = arith.constant 0 : index
    %c0_100 = arith.constant 0 : index
    %c0_101 = arith.constant 0 : index
    %c0_102 = arith.constant 0 : index
    %47 = vector.load %arg8[%c0_99, %c0_100, %c0_101, %c0_102] : memref<1x18x18x128xf32, #tpu.memory_space<vmem>>, vector<1x1x18x128xf32>
    tpu.vector_store %arg8[%c0_99, %c0_100, %c0_101, %c0_102], %45 {strides = array<i32>} : memref<1x18x18x128xf32, #tpu.memory_space<vmem>>, vector<1x1x18x128xf32>,
    %c0_103 = arith.constant 0 : index
    %c17_104 = arith.constant 17 : index
    %c0_105 = arith.constant 0 : index
    %c0_106 = arith.constant 0 : index
    %48 = vector.load %arg8[%c0_103, %c17_104, %c0_105, %c0_106] : memref<1x18x18x128xf32, #tpu.memory_space<vmem>>, vector<1x1x18x128xf32>
    tpu.vector_store %arg8[%c0_103, %c17_104, %c0_105, %c0_106], %45 {strides = array<i32>} : memref<1x18x18x128xf32, #tpu.memory_space<vmem>>, vector<1x1x18x128xf32>,
    %c0_107 = arith.constant 0 : index
    %c0_108 = arith.constant 0 : index
    %c0_109 = arith.constant 0 : index
    %c0_110 = arith.constant 0 : index
    %49 = vector.load %arg8[%c0_107, %c0_108, %c0_109, %c0_110] : memref<1x18x18x128xf32, #tpu.memory_space<vmem>>, vector<1x18x1x128xf32>
    tpu.vector_store %arg8[%c0_107, %c0_108, %c0_109, %c0_110], %46 {strides = array<i32>} : memref<1x18x18x128xf32, #tpu.memory_space<vmem>>, vector<1x18x1x128xf32>,
    %c0_111 = arith.constant 0 : index
    %c0_112 = arith.constant 0 : index
    %c17_113 = arith.constant 17 : index
    %c0_114 = arith.constant 0 : index
    %50 = vector.load %arg8[%c0_111, %c0_112, %c17_113, %c0_114] : memref<1x18x18x128xf32, #tpu.memory_space<vmem>>, vector<1x18x1x128xf32>
    tpu.vector_store %arg8[%c0_111, %c0_112, %c17_113, %c0_114], %46 {strides = array<i32>} : memref<1x18x18x128xf32, #tpu.memory_space<vmem>>, vector<1x18x1x128xf32>,
    %51 = vector.shape_cast %44 : vector<256x128xf32> to vector<1x16x16x128xf32>
    %c0_115 = arith.constant 0 : index
    %c1_116 = arith.constant 1 : index
    %c1_117 = arith.constant 1 : index
    %c0_118 = arith.constant 0 : index
    %52 = vector.load %arg8[%c0_115, %c1_116, %c1_117, %c0_118] : memref<1x18x18x128xf32, #tpu.memory_space<vmem>>, vector<1x16x16x128xf32>
    tpu.vector_store %arg8[%c0_115, %c1_116, %c1_117, %c0_118], %51 {strides = array<i32>} : memref<1x18x18x128xf32, #tpu.memory_space<vmem>>, vector<1x16x16x128xf32>,
    %c0_119 = arith.constant 0 : index
    %c0_120 = arith.constant 0 : index
    %c0_121 = arith.constant 0 : index
    %c0_122 = arith.constant 0 : index
    %53 = vector.load %arg8[%c0_119, %c0_120, %c0_121, %c0_122] : memref<1x18x18x128xf32, #tpu.memory_space<vmem>>, vector<1x16x16x128xf32>
    %c0_123 = arith.constant 0 : index
    %c0_124 = arith.constant 0 : index
    %c0_125 = arith.constant 0 : index
    %c0_126 = arith.constant 0 : index
    %54 = vector.load %arg9[%c0_123, %c0_124, %c0_125, %c0_126] : memref<1x16x16x1152xf32, #tpu.memory_space<vmem>>, vector<1x16x16x128xf32>
    tpu.vector_store %arg9[%c0_123, %c0_124, %c0_125, %c0_126], %53 {strides = array<i32>} : memref<1x16x16x1152xf32, #tpu.memory_space<vmem>>, vector<1x16x16x128xf32>,
    %c0_127 = arith.constant 0 : index
    %c0_128 = arith.constant 0 : index
    %c1_129 = arith.constant 1 : index
    %c0_130 = arith.constant 0 : index
    %55 = vector.load %arg8[%c0_127, %c0_128, %c1_129, %c0_130] : memref<1x18x18x128xf32, #tpu.memory_space<vmem>>, vector<1x16x16x128xf32>
    %c0_131 = arith.constant 0 : index
    %c0_132 = arith.constant 0 : index
    %c0_133 = arith.constant 0 : index
    %c128_134 = arith.constant 128 : index
    %56 = vector.load %arg9[%c0_131, %c0_132, %c0_133, %c128_134] : memref<1x16x16x1152xf32, #tpu.memory_space<vmem>>, vector<1x16x16x128xf32>
    tpu.vector_store %arg9[%c0_131, %c0_132, %c0_133, %c128_134], %55 {strides = array<i32>} : memref<1x16x16x1152xf32, #tpu.memory_space<vmem>>, vector<1x16x16x128xf32>,
    %c0_135 = arith.constant 0 : index
    %c0_136 = arith.constant 0 : index
    %c2_137 = arith.constant 2 : index
    %c0_138 = arith.constant 0 : index
    %57 = vector.load %arg8[%c0_135, %c0_136, %c2_137, %c0_138] : memref<1x18x18x128xf32, #tpu.memory_space<vmem>>, vector<1x16x16x128xf32>
    %c0_139 = arith.constant 0 : index
    %c0_140 = arith.constant 0 : index
    %c0_141 = arith.constant 0 : index
    %c256_142 = arith.constant 256 : index
    %58 = vector.load %arg9[%c0_139, %c0_140, %c0_141, %c256_142] : memref<1x16x16x1152xf32, #tpu.memory_space<vmem>>, vector<1x16x16x128xf32>
    tpu.vector_store %arg9[%c0_139, %c0_140, %c0_141, %c256_142], %57 {strides = array<i32>} : memref<1x16x16x1152xf32, #tpu.memory_space<vmem>>, vector<1x16x16x128xf32>,
    %c0_143 = arith.constant 0 : index
    %c1_144 = arith.constant 1 : index
    %c0_145 = arith.constant 0 : index
    %c0_146 = arith.constant 0 : index
    %59 = vector.load %arg8[%c0_143, %c1_144, %c0_145, %c0_146] : memref<1x18x18x128xf32, #tpu.memory_space<vmem>>, vector<1x16x16x128xf32>
    %c0_147 = arith.constant 0 : index
    %c0_148 = arith.constant 0 : index
    %c0_149 = arith.constant 0 : index
    %c384_150 = arith.constant 384 : index
    %60 = vector.load %arg9[%c0_147, %c0_148, %c0_149, %c384_150] : memref<1x16x16x1152xf32, #tpu.memory_space<vmem>>, vector<1x16x16x128xf32>
    tpu.vector_store %arg9[%c0_147, %c0_148, %c0_149, %c384_150], %59 {strides = array<i32>} : memref<1x16x16x1152xf32, #tpu.memory_space<vmem>>, vector<1x16x16x128xf32>,
    %c0_151 = arith.constant 0 : index
    %c1_152 = arith.constant 1 : index
    %c1_153 = arith.constant 1 : index
    %c0_154 = arith.constant 0 : index
    %61 = vector.load %arg8[%c0_151, %c1_152, %c1_153, %c0_154] : memref<1x18x18x128xf32, #tpu.memory_space<vmem>>, vector<1x16x16x128xf32>
    %c0_155 = arith.constant 0 : index
    %c0_156 = arith.constant 0 : index
    %c0_157 = arith.constant 0 : index
    %c512_158 = arith.constant 512 : index
    %62 = vector.load %arg9[%c0_155, %c0_156, %c0_157, %c512_158] : memref<1x16x16x1152xf32, #tpu.memory_space<vmem>>, vector<1x16x16x128xf32>
    tpu.vector_store %arg9[%c0_155, %c0_156, %c0_157, %c512_158], %61 {strides = array<i32>} : memref<1x16x16x1152xf32, #tpu.memory_space<vmem>>, vector<1x16x16x128xf32>,
    %c0_159 = arith.constant 0 : index
    %c1_160 = arith.constant 1 : index
    %c2_161 = arith.constant 2 : index
    %c0_162 = arith.constant 0 : index
    %63 = vector.load %arg8[%c0_159, %c1_160, %c2_161, %c0_162] : memref<1x18x18x128xf32, #tpu.memory_space<vmem>>, vector<1x16x16x128xf32>
    %c0_163 = arith.constant 0 : index
    %c0_164 = arith.constant 0 : index
    %c0_165 = arith.constant 0 : index
    %c640_166 = arith.constant 640 : index
    %64 = vector.load %arg9[%c0_163, %c0_164, %c0_165, %c640_166] : memref<1x16x16x1152xf32, #tpu.memory_space<vmem>>, vector<1x16x16x128xf32>
    tpu.vector_store %arg9[%c0_163, %c0_164, %c0_165, %c640_166], %63 {strides = array<i32>} : memref<1x16x16x1152xf32, #tpu.memory_space<vmem>>, vector<1x16x16x128xf32>,
    %c0_167 = arith.constant 0 : index
    %c2_168 = arith.constant 2 : index
    %c0_169 = arith.constant 0 : index
    %c0_170 = arith.constant 0 : index
    %65 = vector.load %arg8[%c0_167, %c2_168, %c0_169, %c0_170] : memref<1x18x18x128xf32, #tpu.memory_space<vmem>>, vector<1x16x16x128xf32>
    %c0_171 = arith.constant 0 : index
    %c0_172 = arith.constant 0 : index
    %c0_173 = arith.constant 0 : index
    %c768_174 = arith.constant 768 : index
    %66 = vector.load %arg9[%c0_171, %c0_172, %c0_173, %c768_174] : memref<1x16x16x1152xf32, #tpu.memory_space<vmem>>, vector<1x16x16x128xf32>
    tpu.vector_store %arg9[%c0_171, %c0_172, %c0_173, %c768_174], %65 {strides = array<i32>} : memref<1x16x16x1152xf32, #tpu.memory_space<vmem>>, vector<1x16x16x128xf32>,
    %c0_175 = arith.constant 0 : index
    %c2_176 = arith.constant 2 : index
    %c1_177 = arith.constant 1 : index
    %c0_178 = arith.constant 0 : index
    %67 = vector.load %arg8[%c0_175, %c2_176, %c1_177, %c0_178] : memref<1x18x18x128xf32, #tpu.memory_space<vmem>>, vector<1x16x16x128xf32>
    %c0_179 = arith.constant 0 : index
    %c0_180 = arith.constant 0 : index
    %c0_181 = arith.constant 0 : index
    %c896_182 = arith.constant 896 : index
    %68 = vector.load %arg9[%c0_179, %c0_180, %c0_181, %c896_182] : memref<1x16x16x1152xf32, #tpu.memory_space<vmem>>, vector<1x16x16x128xf32>
    tpu.vector_store %arg9[%c0_179, %c0_180, %c0_181, %c896_182], %67 {strides = array<i32>} : memref<1x16x16x1152xf32, #tpu.memory_space<vmem>>, vector<1x16x16x128xf32>,
    %c0_183 = arith.constant 0 : index
    %c2_184 = arith.constant 2 : index
    %c2_185 = arith.constant 2 : index
    %c0_186 = arith.constant 0 : index
    %69 = vector.load %arg8[%c0_183, %c2_184, %c2_185, %c0_186] : memref<1x18x18x128xf32, #tpu.memory_space<vmem>>, vector<1x16x16x128xf32>
    %c0_187 = arith.constant 0 : index
    %c0_188 = arith.constant 0 : index
    %c0_189 = arith.constant 0 : index
    %c1024_190 = arith.constant 1024 : index
    %70 = vector.load %arg9[%c0_187, %c0_188, %c0_189, %c1024_190] : memref<1x16x16x1152xf32, #tpu.memory_space<vmem>>, vector<1x16x16x128xf32>
    tpu.vector_store %arg9[%c0_187, %c0_188, %c0_189, %c1024_190], %69 {strides = array<i32>} : memref<1x16x16x1152xf32, #tpu.memory_space<vmem>>, vector<1x16x16x128xf32>,
    %c0_191 = arith.constant 0 : index
    %c0_192 = arith.constant 0 : index
    %c0_193 = arith.constant 0 : index
    %c0_194 = arith.constant 0 : index
    %71 = vector.load %arg9[%c0_191, %c0_192, %c0_193, %c0_194] : memref<1x16x16x1152xf32, #tpu.memory_space<vmem>>, vector<1x16x16x1152xf32>
    %72 = vector.shape_cast %71 : vector<1x16x16x1152xf32> to vector<256x1152xf32>
    %c0_195 = arith.constant 0 : index
    %c0_196 = arith.constant 0 : index
    %73 = vector.load %arg3[%c0_195, %c0_196] : memref<1152x128xf32, #tpu.memory_space<vmem>>, vector<1152x128xf32>
    %cst_197 = arith.constant dense<0.000000e+00> : vector<256x128xf32>
    %74 = tpu.matmul %72, %73, %cst_197 {dimension_numbers = #tpu.dot_dimension_numbers<[1], [0], [0], [1], [0, 0, 1, 1], [], []>} : vector<256x1152xf32>, vector<1152x128xf32>, vector<256x128xf32> -> vector<256x128xf32>
    %75 = vector.broadcast %4 : f32 to vector<256x128xf32>
    %76 = arith.mulf %74, %75 : vector<256x128xf32>
    %77 = vector.broadcast %3 : f32 to vector<256x128xf32>
    %78 = arith.addf %76, %77 : vector<256x128xf32>
    %c0_198 = arith.constant 0 : index
    %c0_199 = arith.constant 0 : index
    %c0_200 = arith.constant 0 : index
    %c0_201 = arith.constant 0 : index
    %79 = vector.load %arg1[%c0_198, %c0_199, %c0_200, %c0_201] : memref<1x16x16x128xf32, #tpu.memory_space<vmem>>, vector<1x16x16x128xf32>
    %80 = vector.shape_cast %79 : vector<1x16x16x128xf32> to vector<256x128xf32>
    %81 = arith.addf %78, %80 : vector<256x128xf32>
    %82 = vector.shape_cast %81 : vector<256x128xf32> to vector<1x16x16x128xf32>
    %c0_202 = arith.constant 0 : index
    %c0_203 = arith.constant 0 : index
    %c0_204 = arith.constant 0 : index
    %c0_205 = arith.constant 0 : index
    %83 = vector.load %arg5[%c0_202, %c0_203, %c0_204, %c0_205] : memref<1x16x16x128xf32, #tpu.memory_space<vmem>>, vector<1x16x16x128xf32>
    tpu.vector_store %arg5[%c0_202, %c0_203, %c0_204, %c0_205], %82 {strides = array<i32>} : memref<1x16x16x128xf32, #tpu.memory_space<vmem>>, vector<1x16x16x128xf32>,
    return
  }
  func.func @transform_0(%arg0: i32) -> (i32, i32, i32, i32) {
    %c0_i32 = arith.constant 0 : i32
    %c0_i32_0 = arith.constant 0 : i32
    %c0_i32_1 = arith.constant 0 : i32
    %c0_i32_2 = arith.constant 0 : i32
    return %arg0, %c0_i32, %c0_i32_0, %c0_i32_1 : i32, i32, i32, i32
  }
  func.func @transform_1(%arg0: i32) -> (i32, i32) {
    %c0_i32 = arith.constant 0 : i32
    %c0_i32_0 = arith.constant 0 : i32
    %c0_i32_1 = arith.constant 0 : i32
    return %c0_i32, %c0_i32_0 : i32, i32
  }
  func.func @transform_2(%arg0: i32) -> (i32, i32) {
    %c0_i32 = arith.constant 0 : i32
    %c0_i32_0 = arith.constant 0 : i32
    %c0_i32_1 = arith.constant 0 : i32
    return %c0_i32, %c0_i32_0 : i32, i32
  }
  func.func @transform_3(%arg0: i32) -> i32 {
    %c0_i32 = arith.constant 0 : i32
    %c0_i32_0 = arith.constant 0 : i32
    return %c0_i32 : i32
  }
  func.func @transform_4(%arg0: i32) -> (i32, i32, i32, i32) {
    %c0_i32 = arith.constant 0 : i32
    %c0_i32_0 = arith.constant 0 : i32
    %c0_i32_1 = arith.constant 0 : i32
    %c0_i32_2 = arith.constant 0 : i32
    return %arg0, %c0_i32, %c0_i32_0, %c0_i32_1 : i32, i32, i32, i32
  }
}

</mosaic_0001>

<llo_original>
// kernel: tpu_custom_call.1
$region0: #{tpu_custom_call.1}
  #allocation0 [shape = 'u32[]', space=smem, size = 0x4, offset = 0x4, fixed_abs, tag = 'smem constant byte address 0x4 - core index']
  #allocation1 [shape = 'u32[144,128]{1,0:T(1,128)}', space=vmem, size = 0x12000, scoped, tag = 'internal scratch']
  #allocation2 [shape = 'f32[1,18,18,128]{3,2,1,0:T(8,128)}', space=vmem, size = 0x36000, scoped, tag = 'scratch operand']
  #allocation3 [shape = 'f32[1,16,16,1152]{3,2,1,0:T(8,128)}', space=vmem, size = 0x120000, scoped, tag = 'scratch operand']
  #allocation4 [shape = 'f32[1,18,18,128]{3,2,1,0:T(8,128)}', space=vmem, size = 0x36000, scoped, tag = 'scratch operand']
  #allocation5 [shape = 'f32[1,16,16,1152]{3,2,1,0:T(8,128)}', space=vmem, size = 0x120000, scoped, tag = 'scratch operand']
  %s0 = inlined_call_operand.hbm [shape: f32[2,16,16,128], index: 0, kind: input, shape index: {}]
  %s1 = inlined_call_operand.hbm [shape: f32[1152,128], index: 1, kind: input, shape index: {}]
  %s2 = inlined_call_operand.hbm [shape: f32[1152,128], index: 2, kind: input, shape index: {}]
  %s3 = inlined_call_operand.vmem [shape: f32[5], index: 3, kind: input, shape index: {}]
  %s4 = inlined_call_operand.hbm [shape: f32[2,16,16,128], index: 4, kind: output, shape index: {}]
  %s5 = sld [smem:[#allocation0]]
  $region65: #{tpu_custom_call.1} parent=0
    _
  %s7 = ssub.s32 1, %s5
  %s8 = scalar_select 0, %s7, %s5
  $region1: #{tpu_custom_call.1} parent=0
    #allocation6 [shape = 'u8[262144]{0}', space=vmem, size = 0x40000, scoped, tag = 'input window, operand 0']
    #allocation7 [shape = 's32[2]{0}', space=sflag, size = 0x8, scoped, tag = 'scoped memory for tpu_custom_call.1']
    #allocation8 [shape = 's32[2]{0}', space=sflag, size = 0x8, scoped, tag = 'scoped memory for tpu_custom_call.1']
    #allocation9 [shape = 's32[2]{0}', space=sflag, size = 0x8, scoped, tag = 'scoped memory for tpu_custom_call.1']
    #allocation10 [shape = 'u8[589824]{0}', space=vmem, size = 0x90000, scoped, tag = 'input window, operand 1, single buffered']
    #allocation11 [shape = 's32[1]{0}', space=sflag, size = 0x4, scoped, tag = 'scoped memory for tpu_custom_call.1']
    #allocation12 [shape = 'u8[589824]{0}', space=vmem, size = 0x90000, scoped, tag = 'input window, operand 2, single buffered']
    #allocation13 [shape = 'u8[512]{0}', space=smem, size = 0x200, scoped, tag = 'input window, operand 3, single buffered']
    #allocation14 [shape = 'u8[262144]{0}', space=vmem, size = 0x40000, scoped, tag = 'output window, operand 0']
    %9 = vsyncpa [#allocation7], 0
    %s10 = scalar_lea.sflag [#allocation7], 1
    %11 = vsyncpa %s10, 0
    %12 = vsyncpa [#allocation11], 0
    %13 = vsyncpa [#allocation9], 0
    %14 = vsyncpa [#allocation8], 0
    %s15 = scalar_lea.sflag [#allocation8], 1
    %16 = vsyncpa %s15, 0
    loop: start=0, step=1, limit=4
    $region2: #{tpu_custom_call.1} parent=1 // loop_pre_header
      _
    $region3: #{tpu_custom_call.1} parent=1 // loop_header
      %s18 = sphi 0, %s22
      %p19 = scmp.ge.s32.totalorder %s18, 4
      %s28 = sphi 0, %s30
      %s31 = sphi 0, %s28
      %s32 = sphi 0, %s31
      %s48 = sphi 0, %s32
      %s52 = sphi 0, %s52
      %s54 = sphi 0, %s52
      %s55 = sphi 0, %s54
      %s69 = sphi 0, %s55
      %s73 = sphi 0, %s73
      %s75 = sphi 0, %s73
      %s76 = sphi 0, %s75
      %s90 = sphi 0, %s76
      %s94 = sphi 0, %s94
      %s96 = sphi 0, %s94
      %s97 = sphi 0, %s96
      %s111 = sphi 0, %s97
      %s117 = sphi 0, %s119
      %s120 = sphi 0, %s117
      %s121 = sphi 0, %s120
      %s137 = sphi 0, %s121
    $region4: #{tpu_custom_call.1} parent=1 // loop_header_branch
      %21 = sbr.rel (%p19) target = $region8
    $region5: #{tpu_custom_call.1} parent=1 // loop_body
      %s23 = ssub.s32 %s18, 1
      %s24 = ssub.s32 %s18, 2
      %s25 = sadd.s32 %s18, 1
      %s26 = ssub.s32 %s18, %s25
      %p27 = scmp.eq.s32.totalorder %s26, 0
      %s29 = sadd.s32 %s28, 1
      %s30 = scalar_select %p27, %s28, %s29
      %p33 = pneg %p27
      %p34 = scmp.eq.s32.totalorder %s18, 1
      %p35 = por %p33, %p34
      %p36 = scmp.ne.s32.totalorder %s28, %s31
      %p37 = scmp.eq.s32.totalorder %s18, 0
      %p38 = por %p36, %p37
      %p39 = scmp.ne.s32.totalorder %s28, %s31
      %p40 = scmp.eq.s32.totalorder %s23, 1
      %p41 = por %p39, %p40
      %p42 = scmp.ne.s32.totalorder %s31, %s32
      %p43 = scmp.eq.s32.totalorder %s23, 0
      %p44 = por %p42, %p43
      %p45 = scmp.ne.s32.totalorder %s31, %s32
      %p46 = scmp.eq.s32.totalorder %s24, 1
      %p47 = por %p45, %p46
      %p49 = scmp.ne.s32.totalorder %s32, %s48
      %p50 = scmp.eq.s32.totalorder %s24, 0
      %p51 = por %p49, %p50
      %s53 = sadd.s32 %s52, 1
      %p56 = scmp.eq.s32.totalorder %s18, 1
      %p57 = scmp.ne.s32.totalorder %s52, %s54
      %p58 = scmp.eq.s32.totalorder %s18, 0
      %p59 = por %p57, %p58
      %p60 = scmp.ne.s32.totalorder %s52, %s54
      %p61 = scmp.eq.s32.totalorder %s23, 1
      %p62 = por %p60, %p61
      %p63 = scmp.ne.s32.totalorder %s54, %s55
      %p64 = scmp.eq.s32.totalorder %s23, 0
      %p65 = por %p63, %p64
      %p66 = scmp.ne.s32.totalorder %s54, %s55
      %p67 = scmp.eq.s32.totalorder %s24, 1
      %p68 = por %p66, %p67
      %p70 = scmp.ne.s32.totalorder %s55, %s69
      %p71 = scmp.eq.s32.totalorder %s24, 0
      %p72 = por %p70, %p71
      %s74 = sadd.s32 %s73, 1
      %p77 = scmp.eq.s32.totalorder %s18, 1
      %p78 = scmp.ne.s32.totalorder %s73, %s75
      %p79 = scmp.eq.s32.totalorder %s18, 0
      %p80 = por %p78, %p79
      %p81 = scmp.ne.s32.totalorder %s73, %s75
      %p82 = scmp.eq.s32.totalorder %s23, 1
      %p83 = por %p81, %p82
      %p84 = scmp.ne.s32.totalorder %s75, %s76
      %p85 = scmp.eq.s32.totalorder %s23, 0
      %p86 = por %p84, %p85
      %p87 = scmp.ne.s32.totalorder %s75, %s76
      %p88 = scmp.eq.s32.totalorder %s24, 1
      %p89 = por %p87, %p88
      %p91 = scmp.ne.s32.totalorder %s76, %s90
      %p92 = scmp.eq.s32.totalorder %s24, 0
      %p93 = por %p91, %p92
      %s95 = sadd.s32 %s94, 1
      %p98 = scmp.eq.s32.totalorder %s18, 1
      %p99 = scmp.ne.s32.totalorder %s94, %s96
      %p100 = scmp.eq.s32.totalorder %s18, 0
      %p101 = por %p99, %p100
      %p102 = scmp.ne.s32.totalorder %s94, %s96
      %p103 = scmp.eq.s32.totalorder %s23, 1
      %p104 = por %p102, %p103
      %p105 = scmp.ne.s32.totalorder %s96, %s97
      %p106 = scmp.eq.s32.totalorder %s23, 0
      %p107 = por %p105, %p106
      %p108 = scmp.ne.s32.totalorder %s96, %s97
      %p109 = scmp.eq.s32.totalorder %s24, 1
      %p110 = por %p108, %p109
      %p112 = scmp.ne.s32.totalorder %s97, %s111
      %p113 = scmp.eq.s32.totalorder %s24, 0
      %p114 = por %p112, %p113
      %s115 = ssub.s32 %s18, %s25
      %p116 = scmp.eq.s32.totalorder %s115, 0
      %s118 = sadd.s32 %s117, 1
      %s119 = scalar_select %p116, %s117, %s118
      %p122 = pneg %p116
      %p123 = scmp.eq.s32.totalorder %s18, 1
      %p124 = por %p122, %p123
      %p125 = scmp.ne.s32.totalorder %s117, %s120
      %p126 = scmp.eq.s32.totalorder %s18, 0
      %p127 = por %p125, %p126
      %p128 = scmp.ne.s32.totalorder %s117, %s120
      %p129 = scmp.eq.s32.totalorder %s23, 1
      %p130 = por %p128, %p129
      %p131 = scmp.ne.s32.totalorder %s120, %s121
      %p132 = scmp.eq.s32.totalorder %s23, 0
      %p133 = por %p131, %p132
      %p134 = scmp.ne.s32.totalorder %s120, %s121
      %p135 = scmp.eq.s32.totalorder %s24, 1
      %p136 = por %p134, %p135
      %p138 = scmp.ne.s32.totalorder %s121, %s137
      %p139 = scmp.eq.s32.totalorder %s24, 0
      %p140 = por %p138, %p139
      %p141 = scmp.le.s32.totalorder 1, %s18
      %p142 = scmp.lt.s32.totalorder %s18, 3
      %p143 = pnand %p141, %p142
      %p144 = pneg %p143
      // Predicated region
      $region9: #{tpu_custom_call.1} parent=5 // pred_check
        _
      $region10: #{tpu_custom_call.1} parent=5 // pred_check_branch
        %146 = sbr.rel (%p143) target = $region12
      $region11: #{tpu_custom_call.1} parent=5 // pred_region
        %s147 = ssub.s32 %s18, 1
        // Predicated region
        $region13: #{tpu_custom_call.1} parent=11 // pred_check
          %p148 = pneg %p65
        $region14: #{tpu_custom_call.1} parent=11 // pred_check_branch
          %150 = sbr.rel (%p148) target = $region16
        $region15: #{tpu_custom_call.1} parent=11 // pred_region
          %s152 = ssub.s32 18432, 18432
          %153 = vsyncadd [#allocation11], %s152
          %s154 = sshll.u32 [#allocation10], 4
          %s155 = int_to_ptr.vmem [resolvable:$true] %s154
          %160 = dma.hbm_to_vmem [thread:$0]  %s1, 18432, %s155, [#allocation11], 128, 128, 8
        $region16: #{tpu_custom_call.1} parent=11 // pred_fallthru
          _
        // Predicated region
        $region17: #{tpu_custom_call.1} parent=11 // pred_check
          %p161 = pneg %p86
        $region18: #{tpu_custom_call.1} parent=11 // pred_check_branch
          %163 = sbr.rel (%p161) target = $region20
        $region19: #{tpu_custom_call.1} parent=11 // pred_region
          %s165 = ssub.s32 18432, 18432
          %166 = vsyncadd [#allocation11], %s165
          %s167 = sshll.u32 [#allocation12], 4
          %s168 = int_to_ptr.vmem [resolvable:$true] %s167
          %173 = dma.hbm_to_vmem [thread:$0]  %s2, 18432, %s168, [#allocation11], 128, 128, 8
        $region20: #{tpu_custom_call.1} parent=11 // pred_fallthru
          _
        // Predicated region
        $region21: #{tpu_custom_call.1} parent=11 // pred_check
          %p174 = pneg %p107
        $region22: #{tpu_custom_call.1} parent=11 // pred_check_branch
          %176 = sbr.rel (%p174) target = $region24
        $region23: #{tpu_custom_call.1} parent=11 // pred_region
          %s178 = ssub.s32 16, 16
          %179 = vsyncadd [#allocation9], %s178
          %s181 = sshll.u32 %s3, 4
          %s182 = int_to_ptr.vmem [resolvable:$true] %s181
          %184 = dma.vmem_to_smem %s182, 16, [#allocation13], [#allocation9]
        $region24: #{tpu_custom_call.1} parent=11 // pred_fallthru
          _
      $region12: #{tpu_custom_call.1} parent=5 // pred_fallthru
        _
      %p185 = scmp.lt.s32.totalorder %s18, 2
      // Predicated region
      $region25: #{tpu_custom_call.1} parent=5 // pred_check
        %p186 = pneg %p185
      $region26: #{tpu_custom_call.1} parent=5 // pred_check_branch
        %188 = sbr.rel (%p186) target = $region28
      $region27: #{tpu_custom_call.1} parent=5 // pred_region
        // Predicated region
        $region29: #{tpu_custom_call.1} parent=27 // pred_check
          %p189 = pneg %p38
        $region30: #{tpu_custom_call.1} parent=27 // pred_check_branch
          %191 = sbr.rel (%p189) target = $region32
        $region31: #{tpu_custom_call.1} parent=27 // pred_region
          %s192 = sand.u32 %s28, 1
          %s193 = scalar_lea.sflag [#allocation7], %s192
          %s194 = sand.u32 %s28, 1
          %s195 = smul.addr %s194, 256
          %s196 = scalar_lea.vmem [#allocation6], %s195
          %s198 = ssub.s32 4096, 4096
          %199 = vsyncadd %s193, %s198
          %s200 = smul.addr %s18, 32
          %s201 = smul.addr %s200, 128
          %s202 = scalar_lea.hbm %s0, %s201
          %s203 = sshll.u32 %s196, 4
          %s204 = int_to_ptr.vmem [resolvable:$true] %s203
          %209 = dma.hbm_to_vmem [thread:$0]  %s202, 4096, %s204, %s193, 128, 128, 8
        $region32: #{tpu_custom_call.1} parent=27 // pred_fallthru
          _
      $region28: #{tpu_custom_call.1} parent=5 // pred_fallthru
        _
      %p210 = scmp.le.s32.totalorder 1, %s18
      %p211 = scmp.lt.s32.totalorder %s18, 3
      %p212 = pnand %p210, %p211
      %p213 = pneg %p212
      // Predicated region
      $region33: #{tpu_custom_call.1} parent=5 // pred_check
        _
      $region34: #{tpu_custom_call.1} parent=5 // pred_check_branch
        %215 = sbr.rel (%p212) target = $region36
      $region35: #{tpu_custom_call.1} parent=5 // pred_region
        %s216 = ssub.s32 %s18, 1
        %s217 = sand.u32 %s31, 1
        %s218 = scalar_lea.sflag [#allocation7], %s217
        %s219 = sand.u32 %s31, 1
        %s220 = smul.addr %s219, 256
        %s221 = scalar_lea.vmem [#allocation6], %s220
        // Predicated region
        $region37: #{tpu_custom_call.1} parent=35 // pred_check
          %p222 = pneg %p44
        $region38: #{tpu_custom_call.1} parent=35 // pred_check_branch
          %224 = sbr.rel (%p222) target = $region40
        $region39: #{tpu_custom_call.1} parent=35 // pred_region
          %225 = dma.done %s218, 4096
        $region40: #{tpu_custom_call.1} parent=35 // pred_fallthru
          _
        // Predicated region
        $region41: #{tpu_custom_call.1} parent=35 // pred_check
          %p226 = pneg %p65
        $region42: #{tpu_custom_call.1} parent=35 // pred_check_branch
          %228 = sbr.rel (%p226) target = $region44
        $region43: #{tpu_custom_call.1} parent=35 // pred_region
          %229 = dma.done [#allocation11], 18432
        $region44: #{tpu_custom_call.1} parent=35 // pred_fallthru
          _
        // Predicated region
        $region45: #{tpu_custom_call.1} parent=35 // pred_check
          %p230 = pneg %p86
        $region46: #{tpu_custom_call.1} parent=35 // pred_check_branch
          %232 = sbr.rel (%p230) target = $region48
        $region47: #{tpu_custom_call.1} parent=35 // pred_region
          %233 = dma.done [#allocation11], 18432
        $region48: #{tpu_custom_call.1} parent=35 // pred_fallthru
          _
        // Predicated region
        $region49: #{tpu_custom_call.1} parent=35 // pred_check
          %p234 = pneg %p107
        $region50: #{tpu_custom_call.1} parent=35 // pred_check_branch
          %236 = sbr.rel (%p234) target = $region52
        $region51: #{tpu_custom_call.1} parent=35 // pred_region
          %237 = dma.done [#allocation9], 16
        $region52: #{tpu_custom_call.1} parent=35 // pred_fallthru
          _
        %238 = sfence
        %s239 = sand.u32 %s31, 1
        %s240 = scalar_lea.sflag [#allocation7], %s239
        %s241 = sand.u32 %s31, 1
        %s242 = smul.addr %s241, 256
        %s243 = scalar_lea.vmem [#allocation6], %s242
        %p244 = pneg %p44
        %p245 = pneg %p41
        %p246 = pneg %p65
        %p247 = pneg %p62
        %p248 = pneg %p86
        %p249 = pneg %p83
        %p250 = pneg %p107
        %p251 = pneg %p104
        %p252 = pneg %p133
        %p253 = pneg %p130
        %s254 = sand.u32 %s120, 1
        %s255 = scalar_lea.sflag [#allocation8], %s254
        %s256 = sand.u32 %s120, 1
        %s257 = smul.addr %s256, 256
        %s258 = scalar_lea.vmem [#allocation14], %s257
        %s259 = sld [smem:[#allocation13]]
        %s260 = sld [smem:[#allocation13 + $0x1]]
        %s261 = sld [smem:[#allocation13 + $0x2]]
        %s262 = sld [smem:[#allocation13 + $0x3]]
        %s263 = sld [smem:[#allocation13 + $0x4]]
        %264 = vst [vmem:[#allocation2] sm:$0xff] 0.0
        %265 = vst [vmem:[#allocation2 + $0x8] sm:$0xff] 0.0
        %266 = vst [vmem:[#allocation2 + $0x10] sm:$0x3] 0.0
        %s267 = scalar_lea.vmem [#allocation2], 408
        %268 = vst [vmem:[%s267] sm:$0xff] 0.0
        %269 = vst [vmem:[%s267 + $0x8] sm:$0xff] 0.0
        %270 = vst [vmem:[%s267 + $0x10] sm:$0x3] 0.0
        %271 = vst [vmem:[#allocation2] sm:$0x1] 0.0
        %272 = vst [vmem:[#allocation2 + $0x18] sm:$0x1] 0.0
        %273 = vst [vmem:[#allocation2 + $0x30] sm:$0x1] 0.0
        %274 = vst [vmem:[#allocation2 + $0x48] sm:$0x1] 0.0
        %275 = vst [vmem:[#allocation2 + $0x60] sm:$0x1] 0.0
        %276 = vst [vmem:[#allocation2 + $0x78] sm:$0x1] 0.0
        %277 = vst [vmem:[#allocation2 + $0x90] sm:$0x1] 0.0
        %278 = vst [vmem:[#allocation2 + $0xa8] sm:$0x1] 0.0
        %279 = vst [vmem:[#allocation2 + $0xc0] sm:$0x1] 0.0
        %280 = vst [vmem:[#allocation2 + $0xd8] sm:$0x1] 0.0
        %281 = vst [vmem:[#allocation2 + $0xf0] sm:$0x1] 0.0
        %282 = vst [vmem:[#allocation2 + $0x108] sm:$0x1] 0.0
        %283 = vst [vmem:[#allocation2 + $0x120] sm:$0x1] 0.0
        %284 = vst [vmem:[#allocation2 + $0x138] sm:$0x1] 0.0
        %285 = vst [vmem:[#allocation2 + $0x150] sm:$0x1] 0.0
        %286 = vst [vmem:[#allocation2 + $0x168] sm:$0x1] 0.0
        %287 = vst [vmem:[#allocation2 + $0x180] sm:$0x1] 0.0
        %288 = vst [vmem:[#allocation2 + $0x198] sm:$0x1] 0.0
        %289 = vst [vmem:[#allocation2 + $0x11] sm:$0x1] 0.0
        %290 = vst [vmem:[#allocation2 + $0x29] sm:$0x1] 0.0
        %291 = vst [vmem:[#allocation2 + $0x41] sm:$0x1] 0.0
        %292 = vst [vmem:[#allocation2 + $0x59] sm:$0x1] 0.0
        %293 = vst [vmem:[#allocation2 + $0x71] sm:$0x1] 0.0
        %294 = vst [vmem:[#allocation2 + $0x89] sm:$0x1] 0.0
        %295 = vst [vmem:[#allocation2 + $0xa1] sm:$0x1] 0.0
        %296 = vst [vmem:[#allocation2 + $0xb9] sm:$0x1] 0.0
        %297 = vst [vmem:[#allocation2 + $0xd1] sm:$0x1] 0.0
        %298 = vst [vmem:[#allocation2 + $0xe9] sm:$0x1] 0.0
        %299 = vst [vmem:[#allocation2 + $0x101] sm:$0x1] 0.0
        %300 = vst [vmem:[#allocation2 + $0x119] sm:$0x1] 0.0
        %301 = vst [vmem:[#allocation2 + $0x131] sm:$0x1] 0.0
        %302 = vst [vmem:[#allocation2 + $0x149] sm:$0x1] 0.0
        %303 = vst [vmem:[#allocation2 + $0x161] sm:$0x1] 0.0
        %304 = vst [vmem:[#allocation2 + $0x179] sm:$0x1] 0.0
        %305 = vst [vmem:[#allocation2 + $0x191] sm:$0x1] 0.0
        %306 = vst [vmem:[#allocation2 + $0x1a9] sm:$0x1] 0.0
        %v307 = vld [vmem:[%s221] sm:$0xff]
        %v308 = vld [vmem:[%s221 + $0x8] sm:$0xff]
        %v309 = vld [vmem:[%s221 + $0x10] sm:$0xff]
        %v310 = vld [vmem:[%s221 + $0x18] sm:$0xff]
        %v311 = vld [vmem:[%s221 + $0x20] sm:$0xff]
        %v312 = vld [vmem:[%s221 + $0x28] sm:$0xff]
        %v313 = vld [vmem:[%s221 + $0x30] sm:$0xff]
        %v314 = vld [vmem:[%s221 + $0x38] sm:$0xff]
        %v315 = vld [vmem:[%s221 + $0x40] sm:$0xff]
        %v316 = vld [vmem:[%s221 + $0x48] sm:$0xff]
        %v317 = vld [vmem:[%s221 + $0x50] sm:$0xff]
        %v318 = vld [vmem:[%s221 + $0x58] sm:$0xff]
        %v319 = vld [vmem:[%s221 + $0x60] sm:$0xff]
        %v320 = vld [vmem:[%s221 + $0x68] sm:$0xff]
        %v321 = vld [vmem:[%s221 + $0x70] sm:$0xff]
        %v322 = vld [vmem:[%s221 + $0x78] sm:$0xff]
        %v323 = vld [vmem:[%s221 + $0x80] sm:$0xff]
        %v324 = vld [vmem:[%s221 + $0x88] sm:$0xff]
        %v325 = vld [vmem:[%s221 + $0x90] sm:$0xff]
        %v326 = vld [vmem:[%s221 + $0x98] sm:$0xff]
        %v327 = vld [vmem:[%s221 + $0xa0] sm:$0xff]
        %v328 = vld [vmem:[%s221 + $0xa8] sm:$0xff]
        %v329 = vld [vmem:[%s221 + $0xb0] sm:$0xff]
        %v330 = vld [vmem:[%s221 + $0xb8] sm:$0xff]
        %v331 = vld [vmem:[%s221 + $0xc0] sm:$0xff]
        %v332 = vld [vmem:[%s221 + $0xc8] sm:$0xff]
        %v333 = vld [vmem:[%s221 + $0xd0] sm:$0xff]
        %v334 = vld [vmem:[%s221 + $0xd8] sm:$0xff]
        %v335 = vld [vmem:[%s221 + $0xe0] sm:$0xff]
        %v336 = vld [vmem:[%s221 + $0xe8] sm:$0xff]
        %v337 = vld [vmem:[%s221 + $0xf0] sm:$0xff]
        %v338 = vld [vmem:[%s221 + $0xf8] sm:$0xff]
        %v339 = vstv %s259
        %v340 = vadd.f32 %v307, %v339
        %v341 = vadd.f32 %v308, %v339
        %v342 = vadd.f32 %v309, %v339
        %v343 = vadd.f32 %v310, %v339
        %v344 = vadd.f32 %v311, %v339
        %v345 = vadd.f32 %v312, %v339
        %v346 = vadd.f32 %v313, %v339
        %v347 = vadd.f32 %v314, %v339
        %v348 = vadd.f32 %v315, %v339
        %v349 = vadd.f32 %v316, %v339
        %v350 = vadd.f32 %v317, %v339
        %v351 = vadd.f32 %v318, %v339
        %v352 = vadd.f32 %v319, %v339
        %v353 = vadd.f32 %v320, %v339
        %v354 = vadd.f32 %v321, %v339
        %v355 = vadd.f32 %v322, %v339
        %v356 = vadd.f32 %v323, %v339
        %v357 = vadd.f32 %v324, %v339
        %v358 = vadd.f32 %v325, %v339
        %v359 = vadd.f32 %v326, %v339
        %v360 = vadd.f32 %v327, %v339
        %v361 = vadd.f32 %v328, %v339
        %v362 = vadd.f32 %v329, %v339
        %v363 = vadd.f32 %v330, %v339
        %v364 = vadd.f32 %v331, %v339
        %v365 = vadd.f32 %v332, %v339
        %v366 = vadd.f32 %v333, %v339
        %v367 = vadd.f32 %v334, %v339
        %v368 = vadd.f32 %v335, %v339
        %v369 = vadd.f32 %v336, %v339
        %v370 = vadd.f32 %v337, %v339
        %v371 = vadd.f32 %v338, %v339
        %v372 = vmax.f32 %v340, 0.0
        %v373 = vmax.f32 %v341, 0.0
        %v374 = vmax.f32 %v342, 0.0
        %v375 = vmax.f32 %v343, 0.0
        %v376 = vmax.f32 %v344, 0.0
        %v377 = vmax.f32 %v345, 0.0
        %v378 = vmax.f32 %v346, 0.0
        %v379 = vmax.f32 %v347, 0.0
        %v380 = vmax.f32 %v348, 0.0
        %v381 = vmax.f32 %v349, 0.0
        %v382 = vmax.f32 %v350, 0.0
        %v383 = vmax.f32 %v351, 0.0
        %v384 = vmax.f32 %v352, 0.0
        %v385 = vmax.f32 %v353, 0.0
        %v386 = vmax.f32 %v354, 0.0
        %v387 = vmax.f32 %v355, 0.0
        %v388 = vmax.f32 %v356, 0.0
        %v389 = vmax.f32 %v357, 0.0
        %v390 = vmax.f32 %v358, 0.0
        %v391 = vmax.f32 %v359, 0.0
        %v392 = vmax.f32 %v360, 0.0
        %v393 = vmax.f32 %v361, 0.0
        %v394 = vmax.f32 %v362, 0.0
        %v395 = vmax.f32 %v363, 0.0
        %v396 = vmax.f32 %v364, 0.0
        %v397 = vmax.f32 %v365, 0.0
        %v398 = vmax.f32 %v366, 0.0
        %v399 = vmax.f32 %v367, 0.0
        %v400 = vmax.f32 %v368, 0.0
        %v401 = vmax.f32 %v369, 0.0
        %v402 = vmax.f32 %v370, 0.0
        %v403 = vmax.f32 %v371, 0.0
        %s404 = scalar_lea.vmem [#allocation2], 24
        %405 = vst [vmem:[%s404 + $0x1] sm:$0xff] %v372
        %406 = vst [vmem:[%s404 + $0x9] sm:$0xff] %v373
        %407 = vst [vmem:[%s404 + $0x19] sm:$0xff] %v374
        %408 = vst [vmem:[%s404 + $0x21] sm:$0xff] %v375
        %409 = vst [vmem:[%s404 + $0x31] sm:$0xff] %v376
        %410 = vst [vmem:[%s404 + $0x39] sm:$0xff] %v377
        %411 = vst [vmem:[%s404 + $0x49] sm:$0xff] %v378
        %412 = vst [vmem:[%s404 + $0x51] sm:$0xff] %v379
        %413 = vst [vmem:[%s404 + $0x61] sm:$0xff] %v380
        %414 = vst [vmem:[%s404 + $0x69] sm:$0xff] %v381
        %415 = vst [vmem:[%s404 + $0x79] sm:$0xff] %v382
        %416 = vst [vmem:[%s404 + $0x81] sm:$0xff] %v383
        %417 = vst [vmem:[%s404 + $0x91] sm:$0xff] %v384
        %418 = vst [vmem:[%s404 + $0x99] sm:$0xff] %v385
        %419 = vst [vmem:[%s404 + $0xa9] sm:$0xff] %v386
        %420 = vst [vmem:[%s404 + $0xb1] sm:$0xff] %v387
        %421 = vst [vmem:[%s404 + $0xc1] sm:$0xff] %v388
        %422 = vst [vmem:[%s404 + $0xc9] sm:$0xff] %v389
        %423 = vst [vmem:[%s404 + $0xd9] sm:$0xff] %v390
        %424 = vst [vmem:[%s404 + $0xe1] sm:$0xff] %v391
        %425 = vst [vmem:[%s404 + $0xf1] sm:$0xff] %v392
        %426 = vst [vmem:[%s404 + $0xf9] sm:$0xff] %v393
        %427 = vst [vmem:[%s404 + $0x109] sm:$0xff] %v394
        %428 = vst [vmem:[%s404 + $0x111] sm:$0xff] %v395
        %429 = vst [vmem:[%s404 + $0x121] sm:$0xff] %v396
        %430 = vst [vmem:[%s404 + $0x129] sm:$0xff] %v397
        %431 = vst [vmem:[%s404 + $0x139] sm:$0xff] %v398
        %432 = vst [vmem:[%s404 + $0x141] sm:$0xff] %v399
        %433 = vst [vmem:[%s404 + $0x151] sm:$0xff] %v400
        %434 = vst [vmem:[%s404 + $0x159] sm:$0xff] %v401
        %435 = vst [vmem:[%s404 + $0x169] sm:$0xff] %v402
        %436 = vst [vmem:[%s404 + $0x171] sm:$0xff] %v403
        %v437 = vld [vmem:[#allocation2] sm:$0xff]
        %v438 = vld [vmem:[#allocation2 + $0x8] sm:$0xff]
        %v439 = vld [vmem:[#allocation2 + $0x18] sm:$0xff]
        %v440 = vld [vmem:[#allocation2 + $0x20] sm:$0xff]
        %v441 = vld [vmem:[#allocation2 + $0x30] sm:$0xff]
        %v442 = vld [vmem:[#allocation2 + $0x38] sm:$0xff]
        %v443 = vld [vmem:[#allocation2 + $0x48] sm:$0xff]
        %v444 = vld [vmem:[#allocation2 + $0x50] sm:$0xff]
        %v445 = vld [vmem:[#allocation2 + $0x60] sm:$0xff]
        %v446 = vld [vmem:[#allocation2 + $0x68] sm:$0xff]
        %v447 = vld [vmem:[#allocation2 + $0x78] sm:$0xff]
        %v448 = vld [vmem:[#allocation2 + $0x80] sm:$0xff]
        %v449 = vld [vmem:[#allocation2 + $0x90] sm:$0xff]
        %v450 = vld [vmem:[#allocation2 + $0x98] sm:$0xff]
        %v451 = vld [vmem:[#allocation2 + $0xa8] sm:$0xff]
        %v452 = vld [vmem:[#allocation2 + $0xb0] sm:$0xff]
        %v453 = vld [vmem:[#allocation2 + $0xc0] sm:$0xff]
        %v454 = vld [vmem:[#allocation2 + $0xc8] sm:$0xff]
        %v455 = vld [vmem:[#allocation2 + $0xd8] sm:$0xff]
        %v456 = vld [vmem:[#allocation2 + $0xe0] sm:$0xff]
        %v457 = vld [vmem:[#allocation2 + $0xf0] sm:$0xff]
        %v458 = vld [vmem:[#allocation2 + $0xf8] sm:$0xff]
        %v459 = vld [vmem:[#allocation2 + $0x108] sm:$0xff]
        %v460 = vld [vmem:[#allocation2 + $0x110] sm:$0xff]
        %v461 = vld [vmem:[#allocation2 + $0x120] sm:$0xff]
        %v462 = vld [vmem:[#allocation2 + $0x128] sm:$0xff]
        %v463 = vld [vmem:[#allocation2 + $0x138] sm:$0xff]
        %v464 = vld [vmem:[#allocation2 + $0x140] sm:$0xff]
        %v465 = vld [vmem:[#allocation2 + $0x150] sm:$0xff]
        %v466 = vld [vmem:[#allocation2 + $0x158] sm:$0xff]
        %v467 = vld [vmem:[#allocation2 + $0x168] sm:$0xff]
        %v468 = vld [vmem:[#allocation2 + $0x170] sm:$0xff]
        %469 = vst [vmem:[#allocation3] sm:$0xff] %v437
        %470 = vst [vmem:[#allocation3 + $0x48] sm:$0xff] %v438
        %471 = vst [vmem:[#allocation3 + $0x90] sm:$0xff] %v439
        %472 = vst [vmem:[#allocation3 + $0xd8] sm:$0xff] %v440
        %473 = vst [vmem:[#allocation3 + $0x120] sm:$0xff] %v441
        %474 = vst [vmem:[#allocation3 + $0x168] sm:$0xff] %v442
        %475 = vst [vmem:[#allocation3 + $0x1b0] sm:$0xff] %v443
        %476 = vst [vmem:[#allocation3 + $0x1f8] sm:$0xff] %v444
        %477 = vst [vmem:[#allocation3 + $0x240] sm:$0xff] %v445
        %478 = vst [vmem:[#allocation3 + $0x288] sm:$0xff] %v446
        %479 = vst [vmem:[#allocation3 + $0x2d0] sm:$0xff] %v447
        %480 = vst [vmem:[#allocation3 + $0x318] sm:$0xff] %v448
        %481 = vst [vmem:[#allocation3 + $0x360] sm:$0xff] %v449
        %482 = vst [vmem:[#allocation3 + $0x3a8] sm:$0xff] %v450
        %483 = vst [vmem:[#allocation3 + $0x3f0] sm:$0xff] %v451
        %484 = vst [vmem:[#allocation3 + $0x438] sm:$0xff] %v452
        %485 = vst [vmem:[#allocation3 + $0x480] sm:$0xff] %v453
        %486 = vst [vmem:[#allocation3 + $0x4c8] sm:$0xff] %v454
        %487 = vst [vmem:[#allocation3 + $0x510] sm:$0xff] %v455
        %488 = vst [vmem:[#allocation3 + $0x558] sm:$0xff] %v456
        %489 = vst [vmem:[#allocation3 + $0x5a0] sm:$0xff] %v457
        %490 = vst [vmem:[#allocation3 + $0x5e8] sm:$0xff] %v458
        %491 = vst [vmem:[#allocation3 + $0x630] sm:$0xff] %v459
        %492 = vst [vmem:[#allocation3 + $0x678] sm:$0xff] %v460
        %493 = vst [vmem:[#allocation3 + $0x6c0] sm:$0xff] %v461
        %494 = vst [vmem:[#allocation3 + $0x708] sm:$0xff] %v462
        %495 = vst [vmem:[#allocation3 + $0x750] sm:$0xff] %v463
        %496 = vst [vmem:[#allocation3 + $0x798] sm:$0xff] %v464
        %497 = vst [vmem:[#allocation3 + $0x7e0] sm:$0xff] %v465
        %498 = vst [vmem:[#allocation3 + $0x828] sm:$0xff] %v466
        %499 = vst [vmem:[#allocation3 + $0x870] sm:$0xff] %v467
        %500 = vst [vmem:[#allocation3 + $0x8b8] sm:$0xff] %v468
        %v501 = vld [vmem:[#allocation2 + $0x1] sm:$0xff]
        %v502 = vld [vmem:[#allocation2 + $0x9] sm:$0xff]
        %v503 = vld [vmem:[#allocation2 + $0x19] sm:$0xff]
        %v504 = vld [vmem:[#allocation2 + $0x21] sm:$0xff]
        %v505 = vld [vmem:[#allocation2 + $0x31] sm:$0xff]
        %v506 = vld [vmem:[#allocation2 + $0x39] sm:$0xff]
        %v507 = vld [vmem:[#allocation2 + $0x49] sm:$0xff]
        %v508 = vld [vmem:[#allocation2 + $0x51] sm:$0xff]
        %v509 = vld [vmem:[#allocation2 + $0x61] sm:$0xff]
        %v510 = vld [vmem:[#allocation2 + $0x69] sm:$0xff]
        %v511 = vld [vmem:[#allocation2 + $0x79] sm:$0xff]
        %v512 = vld [vmem:[#allocation2 + $0x81] sm:$0xff]
        %v513 = vld [vmem:[#allocation2 + $0x91] sm:$0xff]
        %v514 = vld [vmem:[#allocation2 + $0x99] sm:$0xff]
        %v515 = vld [vmem:[#allocation2 + $0xa9] sm:$0xff]
        %v516 = vld [vmem:[#allocation2 + $0xb1] sm:$0xff]
        %v517 = vld [vmem:[#allocation2 + $0xc1] sm:$0xff]
        %v518 = vld [vmem:[#allocation2 + $0xc9] sm:$0xff]
        %v519 = vld [vmem:[#allocation2 + $0xd9] sm:$0xff]
        %v520 = vld [vmem:[#allocation2 + $0xe1] sm:$0xff]
        %v521 = vld [vmem:[#allocation2 + $0xf1] sm:$0xff]
        %v522 = vld [vmem:[#allocation2 + $0xf9] sm:$0xff]
        %v523 = vld [vmem:[#allocation2 + $0x109] sm:$0xff]
        %v524 = vld [vmem:[#allocation2 + $0x111] sm:$0xff]
        %v525 = vld [vmem:[#allocation2 + $0x121] sm:$0xff]
        %v526 = vld [vmem:[#allocation2 + $0x129] sm:$0xff]
        %v527 = vld [vmem:[#allocation2 + $0x139] sm:$0xff]
        %v528 = vld [vmem:[#allocation2 + $0x141] sm:$0xff]
        %v529 = vld [vmem:[#allocation2 + $0x151] sm:$0xff]
        %v530 = vld [vmem:[#allocation2 + $0x159] sm:$0xff]
        %v531 = vld [vmem:[#allocation2 + $0x169] sm:$0xff]
        %v532 = vld [vmem:[#allocation2 + $0x171] sm:$0xff]
        %533 = vst [vmem:[#allocation3 + $0x8] sm:$0xff] %v501
        %534 = vst [vmem:[#allocation3 + $0x50] sm:$0xff] %v502
        %535 = vst [vmem:[#allocation3 + $0x98] sm:$0xff] %v503
        %536 = vst [vmem:[#allocation3 + $0xe0] sm:$0xff] %v504
        %537 = vst [vmem:[#allocation3 + $0x128] sm:$0xff] %v505
        %538 = vst [vmem:[#allocation3 + $0x170] sm:$0xff] %v506
        %539 = vst [vmem:[#allocation3 + $0x1b8] sm:$0xff] %v507
        %540 = vst [vmem:[#allocation3 + $0x200] sm:$0xff] %v508
        %541 = vst [vmem:[#allocation3 + $0x248] sm:$0xff] %v509
        %542 = vst [vmem:[#allocation3 + $0x290] sm:$0xff] %v510
        %543 = vst [vmem:[#allocation3 + $0x2d8] sm:$0xff] %v511
        %544 = vst [vmem:[#allocation3 + $0x320] sm:$0xff] %v512
        %545 = vst [vmem:[#allocation3 + $0x368] sm:$0xff] %v513
        %546 = vst [vmem:[#allocation3 + $0x3b0] sm:$0xff] %v514
        %547 = vst [vmem:[#allocation3 + $0x3f8] sm:$0xff] %v515
        %548 = vst [vmem:[#allocation3 + $0x440] sm:$0xff] %v516
        %549 = vst [vmem:[#allocation3 + $0x488] sm:$0xff] %v517
        %550 = vst [vmem:[#allocation3 + $0x4d0] sm:$0xff] %v518
        %551 = vst [vmem:[#allocation3 + $0x518] sm:$0xff] %v519
        %552 = vst [vmem:[#allocation3 + $0x560] sm:$0xff] %v520
        %553 = vst [vmem:[#allocation3 + $0x5a8] sm:$0xff] %v521
        %554 = vst [vmem:[#allocation3 + $0x5f0] sm:$0xff] %v522
        %555 = vst [vmem:[#allocation3 + $0x638] sm:$0xff] %v523
        %556 = vst [vmem:[#allocation3 + $0x680] sm:$0xff] %v524
        %557 = vst [vmem:[#allocation3 + $0x6c8] sm:$0xff] %v525
        %558 = vst [vmem:[#allocation3 + $0x710] sm:$0xff] %v526
        %559 = vst [vmem:[#allocation3 + $0x758] sm:$0xff] %v527
        %560 = vst [vmem:[#allocation3 + $0x7a0] sm:$0xff] %v528
        %561 = vst [vmem:[#allocation3 + $0x7e8] sm:$0xff] %v529
        %562 = vst [vmem:[#allocation3 + $0x830] sm:$0xff] %v530
        %563 = vst [vmem:[#allocation3 + $0x878] sm:$0xff] %v531
        %564 = vst [vmem:[#allocation3 + $0x8c0] sm:$0xff] %v532
        %v565 = vld [vmem:[#allocation2 + $0x2] sm:$0xff]
        %v566 = vld [vmem:[#allocation2 + $0xa] sm:$0xff]
        %v567 = vld [vmem:[#allocation2 + $0x1a] sm:$0xff]
        %v568 = vld [vmem:[#allocation2 + $0x22] sm:$0xff]
        %v569 = vld [vmem:[#allocation2 + $0x32] sm:$0xff]
        %v570 = vld [vmem:[#allocation2 + $0x3a] sm:$0xff]
        %v571 = vld [vmem:[#allocation2 + $0x4a] sm:$0xff]
        %v572 = vld [vmem:[#allocation2 + $0x52] sm:$0xff]
        %v573 = vld [vmem:[#allocation2 + $0x62] sm:$0xff]
        %v574 = vld [vmem:[#allocation2 + $0x6a] sm:$0xff]
        %v575 = vld [vmem:[#allocation2 + $0x7a] sm:$0xff]
        %v576 = vld [vmem:[#allocation2 + $0x82] sm:$0xff]
        %v577 = vld [vmem:[#allocation2 + $0x92] sm:$0xff]
        %v578 = vld [vmem:[#allocation2 + $0x9a] sm:$0xff]
        %v579 = vld [vmem:[#allocation2 + $0xaa] sm:$0xff]
        %v580 = vld [vmem:[#allocation2 + $0xb2] sm:$0xff]
        %v581 = vld [vmem:[#allocation2 + $0xc2] sm:$0xff]
        %v582 = vld [vmem:[#allocation2 + $0xca] sm:$0xff]
        %v583 = vld [vmem:[#allocation2 + $0xda] sm:$0xff]
        %v584 = vld [vmem:[#allocation2 + $0xe2] sm:$0xff]
        %v585 = vld [vmem:[#allocation2 + $0xf2] sm:$0xff]
        %v586 = vld [vmem:[#allocation2 + $0xfa] sm:$0xff]
        %v587 = vld [vmem:[#allocation2 + $0x10a] sm:$0xff]
        %v588 = vld [vmem:[#allocation2 + $0x112] sm:$0xff]
        %v589 = vld [vmem:[#allocation2 + $0x122] sm:$0xff]
        %v590 = vld [vmem:[#allocation2 + $0x12a] sm:$0xff]
        %v591 = vld [vmem:[#allocation2 + $0x13a] sm:$0xff]
        %v592 = vld [vmem:[#allocation2 + $0x142] sm:$0xff]
        %v593 = vld [vmem:[#allocation2 + $0x152] sm:$0xff]
        %v594 = vld [vmem:[#allocation2 + $0x15a] sm:$0xff]
        %v595 = vld [vmem:[#allocation2 + $0x16a] sm:$0xff]
        %v596 = vld [vmem:[#allocation2 + $0x172] sm:$0xff]
        %597 = vst [vmem:[#allocation3 + $0x10] sm:$0xff] %v565
        %598 = vst [vmem:[#allocation3 + $0x58] sm:$0xff] %v566
        %599 = vst [vmem:[#allocation3 + $0xa0] sm:$0xff] %v567
        %600 = vst [vmem:[#allocation3 + $0xe8] sm:$0xff] %v568
        %601 = vst [vmem:[#allocation3 + $0x130] sm:$0xff] %v569
        %602 = vst [vmem:[#allocation3 + $0x178] sm:$0xff] %v570
        %603 = vst [vmem:[#allocation3 + $0x1c0] sm:$0xff] %v571
        %604 = vst [vmem:[#allocation3 + $0x208] sm:$0xff] %v572
        %605 = vst [vmem:[#allocation3 + $0x250] sm:$0xff] %v573
        %606 = vst [vmem:[#allocation3 + $0x298] sm:$0xff] %v574
        %607 = vst [vmem:[#allocation3 + $0x2e0] sm:$0xff] %v575
        %608 = vst [vmem:[#allocation3 + $0x328] sm:$0xff] %v576
        %609 = vst [vmem:[#allocation3 + $0x370] sm:$0xff] %v577
        %610 = vst [vmem:[#allocation3 + $0x3b8] sm:$0xff] %v578
        %611 = vst [vmem:[#allocation3 + $0x400] sm:$0xff] %v579
        %612 = vst [vmem:[#allocation3 + $0x448] sm:$0xff] %v580
        %613 = vst [vmem:[#allocation3 + $0x490] sm:$0xff] %v581
        %614 = vst [vmem:[#allocation3 + $0x4d8] sm:$0xff] %v582
        %615 = vst [vmem:[#allocation3 + $0x520] sm:$0xff] %v583
        %616 = vst [vmem:[#allocation3 + $0x568] sm:$0xff] %v584
        %617 = vst [vmem:[#allocation3 + $0x5b0] sm:$0xff] %v585
        %618 = vst [vmem:[#allocation3 + $0x5f8] sm:$0xff] %v586
        %619 = vst [vmem:[#allocation3 + $0x640] sm:$0xff] %v587
        %620 = vst [vmem:[#allocation3 + $0x688] sm:$0xff] %v588
        %621 = vst [vmem:[#allocation3 + $0x6d0] sm:$0xff] %v589
        %622 = vst [vmem:[#allocation3 + $0x718] sm:$0xff] %v590
        %623 = vst [vmem:[#allocation3 + $0x760] sm:$0xff] %v591
        %624 = vst [vmem:[#allocation3 + $0x7a8] sm:$0xff] %v592
        %625 = vst [vmem:[#allocation3 + $0x7f0] sm:$0xff] %v593
        %626 = vst [vmem:[#allocation3 + $0x838] sm:$0xff] %v594
        %627 = vst [vmem:[#allocation3 + $0x880] sm:$0xff] %v595
        %628 = vst [vmem:[#allocation3 + $0x8c8] sm:$0xff] %v596
        %v629 = vld [vmem:[%s404] sm:$0xff]
        %v630 = vld [vmem:[%s404 + $0x8] sm:$0xff]
        %v631 = vld [vmem:[%s404 + $0x18] sm:$0xff]
        %v632 = vld [vmem:[%s404 + $0x20] sm:$0xff]
        %v633 = vld [vmem:[%s404 + $0x30] sm:$0xff]
        %v634 = vld [vmem:[%s404 + $0x38] sm:$0xff]
        %v635 = vld [vmem:[%s404 + $0x48] sm:$0xff]
        %v636 = vld [vmem:[%s404 + $0x50] sm:$0xff]
        %v637 = vld [vmem:[%s404 + $0x60] sm:$0xff]
        %v638 = vld [vmem:[%s404 + $0x68] sm:$0xff]
        %v639 = vld [vmem:[%s404 + $0x78] sm:$0xff]
        %v640 = vld [vmem:[%s404 + $0x80] sm:$0xff]
        %v641 = vld [vmem:[%s404 + $0x90] sm:$0xff]
        %v642 = vld [vmem:[%s404 + $0x98] sm:$0xff]
        %v643 = vld [vmem:[%s404 + $0xa8] sm:$0xff]
        %v644 = vld [vmem:[%s404 + $0xb0] sm:$0xff]
        %v645 = vld [vmem:[%s404 + $0xc0] sm:$0xff]
        %v646 = vld [vmem:[%s404 + $0xc8] sm:$0xff]
        %v647 = vld [vmem:[%s404 + $0xd8] sm:$0xff]
        %v648 = vld [vmem:[%s404 + $0xe0] sm:$0xff]
        %v649 = vld [vmem:[%s404 + $0xf0] sm:$0xff]
        %v650 = vld [vmem:[%s404 + $0xf8] sm:$0xff]
        %v651 = vld [vmem:[%s404 + $0x108] sm:$0xff]
        %v652 = vld [vmem:[%s404 + $0x110] sm:$0xff]
        %v653 = vld [vmem:[%s404 + $0x120] sm:$0xff]
        %v654 = vld [vmem:[%s404 + $0x128] sm:$0xff]
        %v655 = vld [vmem:[%s404 + $0x138] sm:$0xff]
        %v656 = vld [vmem:[%s404 + $0x140] sm:$0xff]
        %v657 = vld [vmem:[%s404 + $0x150] sm:$0xff]
        %v658 = vld [vmem:[%s404 + $0x158] sm:$0xff]
        %v659 = vld [vmem:[%s404 + $0x168] sm:$0xff]
        %v660 = vld [vmem:[%s404 + $0x170] sm:$0xff]
        %661 = vst [vmem:[#allocation3 + $0x18] sm:$0xff] %v629
        %662 = vst [vmem:[#allocation3 + $0x60] sm:$0xff] %v630
        %663 = vst [vmem:[#allocation3 + $0xa8] sm:$0xff] %v631
        %664 = vst [vmem:[#allocation3 + $0xf0] sm:$0xff] %v632
        %665 = vst [vmem:[#allocation3 + $0x138] sm:$0xff] %v633
        %666 = vst [vmem:[#allocation3 + $0x180] sm:$0xff] %v634
        %667 = vst [vmem:[#allocation3 + $0x1c8] sm:$0xff] %v635
        %668 = vst [vmem:[#allocation3 + $0x210] sm:$0xff] %v636
        %669 = vst [vmem:[#allocation3 + $0x258] sm:$0xff] %v637
        %670 = vst [vmem:[#allocation3 + $0x2a0] sm:$0xff] %v638
        %671 = vst [vmem:[#allocation3 + $0x2e8] sm:$0xff] %v639
        %672 = vst [vmem:[#allocation3 + $0x330] sm:$0xff] %v640
        %673 = vst [vmem:[#allocation3 + $0x378] sm:$0xff] %v641
        %674 = vst [vmem:[#allocation3 + $0x3c0] sm:$0xff] %v642
        %675 = vst [vmem:[#allocation3 + $0x408] sm:$0xff] %v643
        %676 = vst [vmem:[#allocation3 + $0x450] sm:$0xff] %v644
        %677 = vst [vmem:[#allocation3 + $0x498] sm:$0xff] %v645
        %678 = vst [vmem:[#allocation3 + $0x4e0] sm:$0xff] %v646
        %679 = vst [vmem:[#allocation3 + $0x528] sm:$0xff] %v647
        %680 = vst [vmem:[#allocation3 + $0x570] sm:$0xff] %v648
        %681 = vst [vmem:[#allocation3 + $0x5b8] sm:$0xff] %v649
        %682 = vst [vmem:[#allocation3 + $0x600] sm:$0xff] %v650
        %683 = vst [vmem:[#allocation3 + $0x648] sm:$0xff] %v651
        %684 = vst [vmem:[#allocation3 + $0x690] sm:$0xff] %v652
        %685 = vst [vmem:[#allocation3 + $0x6d8] sm:$0xff] %v653
        %686 = vst [vmem:[#allocation3 + $0x720] sm:$0xff] %v654
        %687 = vst [vmem:[#allocation3 + $0x768] sm:$0xff] %v655
        %688 = vst [vmem:[#allocation3 + $0x7b0] sm:$0xff] %v656
        %689 = vst [vmem:[#allocation3 + $0x7f8] sm:$0xff] %v657
        %690 = vst [vmem:[#allocation3 + $0x840] sm:$0xff] %v658
        %691 = vst [vmem:[#allocation3 + $0x888] sm:$0xff] %v659
        %692 = vst [vmem:[#allocation3 + $0x8d0] sm:$0xff] %v660
        %v693 = vld [vmem:[%s404 + $0x1] sm:$0xff]
        %v694 = vld [vmem:[%s404 + $0x9] sm:$0xff]
        %v695 = vld [vmem:[%s404 + $0x19] sm:$0xff]
        %v696 = vld [vmem:[%s404 + $0x21] sm:$0xff]
        %v697 = vld [vmem:[%s404 + $0x31] sm:$0xff]
        %v698 = vld [vmem:[%s404 + $0x39] sm:$0xff]
        %v699 = vld [vmem:[%s404 + $0x49] sm:$0xff]
        %v700 = vld [vmem:[%s404 + $0x51] sm:$0xff]
        %v701 = vld [vmem:[%s404 + $0x61] sm:$0xff]
        %v702 = vld [vmem:[%s404 + $0x69] sm:$0xff]
        %v703 = vld [vmem:[%s404 + $0x79] sm:$0xff]
        %v704 = vld [vmem:[%s404 + $0x81] sm:$0xff]
        %v705 = vld [vmem:[%s404 + $0x91] sm:$0xff]
        %v706 = vld [vmem:[%s404 + $0x99] sm:$0xff]
        %v707 = vld [vmem:[%s404 + $0xa9] sm:$0xff]
        %v708 = vld [vmem:[%s404 + $0xb1] sm:$0xff]
        %v709 = vld [vmem:[%s404 + $0xc1] sm:$0xff]
        %v710 = vld [vmem:[%s404 + $0xc9] sm:$0xff]
        %v711 = vld [vmem:[%s404 + $0xd9] sm:$0xff]
        %v712 = vld [vmem:[%s404 + $0xe1] sm:$0xff]
        %v713 = vld [vmem:[%s404 + $0xf1] sm:$0xff]
        %v714 = vld [vmem:[%s404 + $0xf9] sm:$0xff]
        %v715 = vld [vmem:[%s404 + $0x109] sm:$0xff]
        %v716 = vld [vmem:[%s404 + $0x111] sm:$0xff]
        %v717 = vld [vmem:[%s404 + $0x121] sm:$0xff]
        %v718 = vld [vmem:[%s404 + $0x129] sm:$0xff]
        %v719 = vld [vmem:[%s404 + $0x139] sm:$0xff]
        %v720 = vld [vmem:[%s404 + $0x141] sm:$0xff]
        %v721 = vld [vmem:[%s404 + $0x151] sm:$0xff]
        %v722 = vld [vmem:[%s404 + $0x159] sm:$0xff]
        %v723 = vld [vmem:[%s404 + $0x169] sm:$0xff]
        %v724 = vld [vmem:[%s404 + $0x171] sm:$0xff]
        %725 = vst [vmem:[#allocation3 + $0x20] sm:$0xff] %v693
        %726 = vst [vmem:[#allocation3 + $0x68] sm:$0xff] %v694
        %727 = vst [vmem:[#allocation3 + $0xb0] sm:$0xff] %v695
        %728 = vst [vmem:[#allocation3 + $0xf8] sm:$0xff] %v696
        %729 = vst [vmem:[#allocation3 + $0x140] sm:$0xff] %v697
        %730 = vst [vmem:[#allocation3 + $0x188] sm:$0xff] %v698
        %731 = vst [vmem:[#allocation3 + $0x1d0] sm:$0xff] %v699
        %732 = vst [vmem:[#allocation3 + $0x218] sm:$0xff] %v700
        %733 = vst [vmem:[#allocation3 + $0x260] sm:$0xff] %v701
        %734 = vst [vmem:[#allocation3 + $0x2a8] sm:$0xff] %v702
        %735 = vst [vmem:[#allocation3 + $0x2f0] sm:$0xff] %v703
        %736 = vst [vmem:[#allocation3 + $0x338] sm:$0xff] %v704
        %737 = vst [vmem:[#allocation3 + $0x380] sm:$0xff] %v705
        %738 = vst [vmem:[#allocation3 + $0x3c8] sm:$0xff] %v706
        %739 = vst [vmem:[#allocation3 + $0x410] sm:$0xff] %v707
        %740 = vst [vmem:[#allocation3 + $0x458] sm:$0xff] %v708
        %741 = vst [vmem:[#allocation3 + $0x4a0] sm:$0xff] %v709
        %742 = vst [vmem:[#allocation3 + $0x4e8] sm:$0xff] %v710
        %743 = vst [vmem:[#allocation3 + $0x530] sm:$0xff] %v711
        %744 = vst [vmem:[#allocation3 + $0x578] sm:$0xff] %v712
        %745 = vst [vmem:[#allocation3 + $0x5c0] sm:$0xff] %v713
        %746 = vst [vmem:[#allocation3 + $0x608] sm:$0xff] %v714
        %747 = vst [vmem:[#allocation3 + $0x650] sm:$0xff] %v715
        %748 = vst [vmem:[#allocation3 + $0x698] sm:$0xff] %v716
        %749 = vst [vmem:[#allocation3 + $0x6e0] sm:$0xff] %v717
        %750 = vst [vmem:[#allocation3 + $0x728] sm:$0xff] %v718
        %751 = vst [vmem:[#allocation3 + $0x770] sm:$0xff] %v719
        %752 = vst [vmem:[#allocation3 + $0x7b8] sm:$0xff] %v720
        %753 = vst [vmem:[#allocation3 + $0x800] sm:$0xff] %v721
        %754 = vst [vmem:[#allocation3 + $0x848] sm:$0xff] %v722
        %755 = vst [vmem:[#allocation3 + $0x890] sm:$0xff] %v723
        %756 = vst [vmem:[#allocation3 + $0x8d8] sm:$0xff] %v724
        %v757 = vld [vmem:[%s404 + $0x2] sm:$0xff]
        %v758 = vld [vmem:[%s404 + $0xa] sm:$0xff]
        %v759 = vld [vmem:[%s404 + $0x1a] sm:$0xff]
        %v760 = vld [vmem:[%s404 + $0x22] sm:$0xff]
        %v761 = vld [vmem:[%s404 + $0x32] sm:$0xff]
        %v762 = vld [vmem:[%s404 + $0x3a] sm:$0xff]
        %v763 = vld [vmem:[%s404 + $0x4a] sm:$0xff]
        %v764 = vld [vmem:[%s404 + $0x52] sm:$0xff]
        %v765 = vld [vmem:[%s404 + $0x62] sm:$0xff]
        %v766 = vld [vmem:[%s404 + $0x6a] sm:$0xff]
        %v767 = vld [vmem:[%s404 + $0x7a] sm:$0xff]
        %v768 = vld [vmem:[%s404 + $0x82] sm:$0xff]
        %v769 = vld [vmem:[%s404 + $0x92] sm:$0xff]
        %v770 = vld [vmem:[%s404 + $0x9a] sm:$0xff]
        %v771 = vld [vmem:[%s404 + $0xaa] sm:$0xff]
        %v772 = vld [vmem:[%s404 + $0xb2] sm:$0xff]
        %v773 = vld [vmem:[%s404 + $0xc2] sm:$0xff]
        %v774 = vld [vmem:[%s404 + $0xca] sm:$0xff]
        %v775 = vld [vmem:[%s404 + $0xda] sm:$0xff]
        %v776 = vld [vmem:[%s404 + $0xe2] sm:$0xff]
        %v777 = vld [vmem:[%s404 + $0xf2] sm:$0xff]
        %v778 = vld [vmem:[%s404 + $0xfa] sm:$0xff]
        %v779 = vld [vmem:[%s404 + $0x10a] sm:$0xff]
        %v780 = vld [vmem:[%s404 + $0x112] sm:$0xff]
        %v781 = vld [vmem:[%s404 + $0x122] sm:$0xff]
        %v782 = vld [vmem:[%s404 + $0x12a] sm:$0xff]
        %v783 = vld [vmem:[%s404 + $0x13a] sm:$0xff]
        %v784 = vld [vmem:[%s404 + $0x142] sm:$0xff]
        %v785 = vld [vmem:[%s404 + $0x152] sm:$0xff]
        %v786 = vld [vmem:[%s404 + $0x15a] sm:$0xff]
        %v787 = vld [vmem:[%s404 + $0x16a] sm:$0xff]
        %v788 = vld [vmem:[%s404 + $0x172] sm:$0xff]
        %789 = vst [vmem:[#allocation3 + $0x28] sm:$0xff] %v757
        %790 = vst [vmem:[#allocation3 + $0x70] sm:$0xff] %v758
        %791 = vst [vmem:[#allocation3 + $0xb8] sm:$0xff] %v759
        %792 = vst [vmem:[#allocation3 + $0x100] sm:$0xff] %v760
        %793 = vst [vmem:[#allocation3 + $0x148] sm:$0xff] %v761
        %794 = vst [vmem:[#allocation3 + $0x190] sm:$0xff] %v762
        %795 = vst [vmem:[#allocation3 + $0x1d8] sm:$0xff] %v763
        %796 = vst [vmem:[#allocation3 + $0x220] sm:$0xff] %v764
        %797 = vst [vmem:[#allocation3 + $0x268] sm:$0xff] %v765
        %798 = vst [vmem:[#allocation3 + $0x2b0] sm:$0xff] %v766
        %799 = vst [vmem:[#allocation3 + $0x2f8] sm:$0xff] %v767
        %800 = vst [vmem:[#allocation3 + $0x340] sm:$0xff] %v768
        %801 = vst [vmem:[#allocation3 + $0x388] sm:$0xff] %v769
        %802 = vst [vmem:[#allocation3 + $0x3d0] sm:$0xff] %v770
        %803 = vst [vmem:[#allocation3 + $0x418] sm:$0xff] %v771
        %804 = vst [vmem:[#allocation3 + $0x460] sm:$0xff] %v772
        %805 = vst [vmem:[#allocation3 + $0x4a8] sm:$0xff] %v773
        %806 = vst [vmem:[#allocation3 + $0x4f0] sm:$0xff] %v774
        %807 = vst [vmem:[#allocation3 + $0x538] sm:$0xff] %v775
        %808 = vst [vmem:[#allocation3 + $0x580] sm:$0xff] %v776
        %809 = vst [vmem:[#allocation3 + $0x5c8] sm:$0xff] %v777
        %810 = vst [vmem:[#allocation3 + $0x610] sm:$0xff] %v778
        %811 = vst [vmem:[#allocation3 + $0x658] sm:$0xff] %v779
        %812 = vst [vmem:[#allocation3 + $0x6a0] sm:$0xff] %v780
        %813 = vst [vmem:[#allocation3 + $0x6e8] sm:$0xff] %v781
        %814 = vst [vmem:[#allocation3 + $0x730] sm:$0xff] %v782
        %815 = vst [vmem:[#allocation3 + $0x778] sm:$0xff] %v783
        %816 = vst [vmem:[#allocation3 + $0x7c0] sm:$0xff] %v784
        %817 = vst [vmem:[#allocation3 + $0x808] sm:$0xff] %v785
        %818 = vst [vmem:[#allocation3 + $0x850] sm:$0xff] %v786
        %819 = vst [vmem:[#allocation3 + $0x898] sm:$0xff] %v787
        %820 = vst [vmem:[#allocation3 + $0x8e0] sm:$0xff] %v788
        %s821 = scalar_lea.vmem [#allocation2], 48
        %v822 = vld [vmem:[%s821] sm:$0xff]
        %v823 = vld [vmem:[%s821 + $0x8] sm:$0xff]
        %v824 = vld [vmem:[%s821 + $0x18] sm:$0xff]
        %v825 = vld [vmem:[%s821 + $0x20] sm:$0xff]
        %v826 = vld [vmem:[%s821 + $0x30] sm:$0xff]
        %v827 = vld [vmem:[%s821 + $0x38] sm:$0xff]
        %v828 = vld [vmem:[%s821 + $0x48] sm:$0xff]
        %v829 = vld [vmem:[%s821 + $0x50] sm:$0xff]
        %v830 = vld [vmem:[%s821 + $0x60] sm:$0xff]
        %v831 = vld [vmem:[%s821 + $0x68] sm:$0xff]
        %v832 = vld [vmem:[%s821 + $0x78] sm:$0xff]
        %v833 = vld [vmem:[%s821 + $0x80] sm:$0xff]
        %v834 = vld [vmem:[%s821 + $0x90] sm:$0xff]
        %v835 = vld [vmem:[%s821 + $0x98] sm:$0xff]
        %v836 = vld [vmem:[%s821 + $0xa8] sm:$0xff]
        %v837 = vld [vmem:[%s821 + $0xb0] sm:$0xff]
        %v838 = vld [vmem:[%s821 + $0xc0] sm:$0xff]
        %v839 = vld [vmem:[%s821 + $0xc8] sm:$0xff]
        %v840 = vld [vmem:[%s821 + $0xd8] sm:$0xff]
        %v841 = vld [vmem:[%s821 + $0xe0] sm:$0xff]
        %v842 = vld [vmem:[%s821 + $0xf0] sm:$0xff]
        %v843 = vld [vmem:[%s821 + $0xf8] sm:$0xff]
        %v844 = vld [vmem:[%s821 + $0x108] sm:$0xff]
        %v845 = vld [vmem:[%s821 + $0x110] sm:$0xff]
        %v846 = vld [vmem:[%s821 + $0x120] sm:$0xff]
        %v847 = vld [vmem:[%s821 + $0x128] sm:$0xff]
        %v848 = vld [vmem:[%s821 + $0x138] sm:$0xff]
        %v849 = vld [vmem:[%s821 + $0x140] sm:$0xff]
        %v850 = vld [vmem:[%s821 + $0x150] sm:$0xff]
        %v851 = vld [vmem:[%s821 + $0x158] sm:$0xff]
        %v852 = vld [vmem:[%s821 + $0x168] sm:$0xff]
        %v853 = vld [vmem:[%s821 + $0x170] sm:$0xff]
        %854 = vst [vmem:[#allocation3 + $0x30] sm:$0xff] %v822
        %855 = vst [vmem:[#allocation3 + $0x78] sm:$0xff] %v823
        %856 = vst [vmem:[#allocation3 + $0xc0] sm:$0xff] %v824
        %857 = vst [vmem:[#allocation3 + $0x108] sm:$0xff] %v825
        %858 = vst [vmem:[#allocation3 + $0x150] sm:$0xff] %v826
        %859 = vst [vmem:[#allocation3 + $0x198] sm:$0xff] %v827
        %860 = vst [vmem:[#allocation3 + $0x1e0] sm:$0xff] %v828
        %861 = vst [vmem:[#allocation3 + $0x228] sm:$0xff] %v829
        %862 = vst [vmem:[#allocation3 + $0x270] sm:$0xff] %v830
        %863 = vst [vmem:[#allocation3 + $0x2b8] sm:$0xff] %v831
        %864 = vst [vmem:[#allocation3 + $0x300] sm:$0xff] %v832
        %865 = vst [vmem:[#allocation3 + $0x348] sm:$0xff] %v833
        %866 = vst [vmem:[#allocation3 + $0x390] sm:$0xff] %v834
        %867 = vst [vmem:[#allocation3 + $0x3d8] sm:$0xff] %v835
        %868 = vst [vmem:[#allocation3 + $0x420] sm:$0xff] %v836
        %869 = vst [vmem:[#allocation3 + $0x468] sm:$0xff] %v837
        %870 = vst [vmem:[#allocation3 + $0x4b0] sm:$0xff] %v838
        %871 = vst [vmem:[#allocation3 + $0x4f8] sm:$0xff] %v839
        %872 = vst [vmem:[#allocation3 + $0x540] sm:$0xff] %v840
        %873 = vst [vmem:[#allocation3 + $0x588] sm:$0xff] %v841
        %874 = vst [vmem:[#allocation3 + $0x5d0] sm:$0xff] %v842
        %875 = vst [vmem:[#allocation3 + $0x618] sm:$0xff] %v843
        %876 = vst [vmem:[#allocation3 + $0x660] sm:$0xff] %v844
        %877 = vst [vmem:[#allocation3 + $0x6a8] sm:$0xff] %v845
        %878 = vst [vmem:[#allocation3 + $0x6f0] sm:$0xff] %v846
        %879 = vst [vmem:[#allocation3 + $0x738] sm:$0xff] %v847
        %880 = vst [vmem:[#allocation3 + $0x780] sm:$0xff] %v848
        %881 = vst [vmem:[#allocation3 + $0x7c8] sm:$0xff] %v849
        %882 = vst [vmem:[#allocation3 + $0x810] sm:$0xff] %v850
        %883 = vst [vmem:[#allocation3 + $0x858] sm:$0xff] %v851
        %884 = vst [vmem:[#allocation3 + $0x8a0] sm:$0xff] %v852
        %885 = vst [vmem:[#allocation3 + $0x8e8] sm:$0xff] %v853
        %v886 = vld [vmem:[%s821 + $0x1] sm:$0xff]
        %v887 = vld [vmem:[%s821 + $0x9] sm:$0xff]
        %v888 = vld [vmem:[%s821 + $0x19] sm:$0xff]
        %v889 = vld [vmem:[%s821 + $0x21] sm:$0xff]
        %v890 = vld [vmem:[%s821 + $0x31] sm:$0xff]
        %v891 = vld [vmem:[%s821 + $0x39] sm:$0xff]
        %v892 = vld [vmem:[%s821 + $0x49] sm:$0xff]
        %v893 = vld [vmem:[%s821 + $0x51] sm:$0xff]
        %v894 = vld [vmem:[%s821 + $0x61] sm:$0xff]
        %v895 = vld [vmem:[%s821 + $0x69] sm:$0xff]
        %v896 = vld [vmem:[%s821 + $0x79] sm:$0xff]
        %v897 = vld [vmem:[%s821 + $0x81] sm:$0xff]
        %v898 = vld [vmem:[%s821 + $0x91] sm:$0xff]
        %v899 = vld [vmem:[%s821 + $0x99] sm:$0xff]
        %v900 = vld [vmem:[%s821 + $0xa9] sm:$0xff]
        %v901 = vld [vmem:[%s821 + $0xb1] sm:$0xff]
        %v902 = vld [vmem:[%s821 + $0xc1] sm:$0xff]
        %v903 = vld [vmem:[%s821 + $0xc9] sm:$0xff]
        %v904 = vld [vmem:[%s821 + $0xd9] sm:$0xff]
        %v905 = vld [vmem:[%s821 + $0xe1] sm:$0xff]
        %v906 = vld [vmem:[%s821 + $0xf1] sm:$0xff]
        %v907 = vld [vmem:[%s821 + $0xf9] sm:$0xff]
        %v908 = vld [vmem:[%s821 + $0x109] sm:$0xff]
        %v909 = vld [vmem:[%s821 + $0x111] sm:$0xff]
        %v910 = vld [vmem:[%s821 + $0x121] sm:$0xff]
        %v911 = vld [vmem:[%s821 + $0x129] sm:$0xff]
        %v912 = vld [vmem:[%s821 + $0x139] sm:$0xff]
        %v913 = vld [vmem:[%s821 + $0x141] sm:$0xff]
        %v914 = vld [vmem:[%s821 + $0x151] sm:$0xff]
        %v915 = vld [vmem:[%s821 + $0x159] sm:$0xff]
        %v916 = vld [vmem:[%s821 + $0x169] sm:$0xff]
        %v917 = vld [vmem:[%s821 + $0x171] sm:$0xff]
        %918 = vst [vmem:[#allocation3 + $0x38] sm:$0xff] %v886
        %919 = vst [vmem:[#allocation3 + $0x80] sm:$0xff] %v887
        %920 = vst [vmem:[#allocation3 + $0xc8] sm:$0xff] %v888
        %921 = vst [vmem:[#allocation3 + $0x110] sm:$0xff] %v889
        %922 = vst [vmem:[#allocation3 + $0x158] sm:$0xff] %v890
        %923 = vst [vmem:[#allocation3 + $0x1a0] sm:$0xff] %v891
        %924 = vst [vmem:[#allocation3 + $0x1e8] sm:$0xff] %v892
        %925 = vst [vmem:[#allocation3 + $0x230] sm:$0xff] %v893
        %926 = vst [vmem:[#allocation3 + $0x278] sm:$0xff] %v894
        %927 = vst [vmem:[#allocation3 + $0x2c0] sm:$0xff] %v895
        %928 = vst [vmem:[#allocation3 + $0x308] sm:$0xff] %v896
        %929 = vst [vmem:[#allocation3 + $0x350] sm:$0xff] %v897
        %930 = vst [vmem:[#allocation3 + $0x398] sm:$0xff] %v898
        %931 = vst [vmem:[#allocation3 + $0x3e0] sm:$0xff] %v899
        %932 = vst [vmem:[#allocation3 + $0x428] sm:$0xff] %v900
        %933 = vst [vmem:[#allocation3 + $0x470] sm:$0xff] %v901
        %934 = vst [vmem:[#allocation3 + $0x4b8] sm:$0xff] %v902
        %935 = vst [vmem:[#allocation3 + $0x500] sm:$0xff] %v903
        %936 = vst [vmem:[#allocation3 + $0x548] sm:$0xff] %v904
        %937 = vst [vmem:[#allocation3 + $0x590] sm:$0xff] %v905
        %938 = vst [vmem:[#allocation3 + $0x5d8] sm:$0xff] %v906
        %939 = vst [vmem:[#allocation3 + $0x620] sm:$0xff] %v907
        %940 = vst [vmem:[#allocation3 + $0x668] sm:$0xff] %v908
        %941 = vst [vmem:[#allocation3 + $0x6b0] sm:$0xff] %v909
        %942 = vst [vmem:[#allocation3 + $0x6f8] sm:$0xff] %v910
        %943 = vst [vmem:[#allocation3 + $0x740] sm:$0xff] %v911
        %944 = vst [vmem:[#allocation3 + $0x788] sm:$0xff] %v912
        %945 = vst [vmem:[#allocation3 + $0x7d0] sm:$0xff] %v913
        %946 = vst [vmem:[#allocation3 + $0x818] sm:$0xff] %v914
        %947 = vst [vmem:[#allocation3 + $0x860] sm:$0xff] %v915
        %948 = vst [vmem:[#allocation3 + $0x8a8] sm:$0xff] %v916
        %949 = vst [vmem:[#allocation3 + $0x8f0] sm:$0xff] %v917
        %v950 = vld [vmem:[%s821 + $0x2] sm:$0xff]
        %v951 = vld [vmem:[%s821 + $0xa] sm:$0xff]
        %v952 = vld [vmem:[%s821 + $0x1a] sm:$0xff]
        %v953 = vld [vmem:[%s821 + $0x22] sm:$0xff]
        %v954 = vld [vmem:[%s821 + $0x32] sm:$0xff]
        %v955 = vld [vmem:[%s821 + $0x3a] sm:$0xff]
        %v956 = vld [vmem:[%s821 + $0x4a] sm:$0xff]
        %v957 = vld [vmem:[%s821 + $0x52] sm:$0xff]
        %v958 = vld [vmem:[%s821 + $0x62] sm:$0xff]
        %v959 = vld [vmem:[%s821 + $0x6a] sm:$0xff]
        %v960 = vld [vmem:[%s821 + $0x7a] sm:$0xff]
        %v961 = vld [vmem:[%s821 + $0x82] sm:$0xff]
        %v962 = vld [vmem:[%s821 + $0x92] sm:$0xff]
        %v963 = vld [vmem:[%s821 + $0x9a] sm:$0xff]
        %v964 = vld [vmem:[%s821 + $0xaa] sm:$0xff]
        %v965 = vld [vmem:[%s821 + $0xb2] sm:$0xff]
        %v966 = vld [vmem:[%s821 + $0xc2] sm:$0xff]
        %v967 = vld [vmem:[%s821 + $0xca] sm:$0xff]
        %v968 = vld [vmem:[%s821 + $0xda] sm:$0xff]
        %v969 = vld [vmem:[%s821 + $0xe2] sm:$0xff]
        %v970 = vld [vmem:[%s821 + $0xf2] sm:$0xff]
        %v971 = vld [vmem:[%s821 + $0xfa] sm:$0xff]
        %v972 = vld [vmem:[%s821 + $0x10a] sm:$0xff]
        %v973 = vld [vmem:[%s821 + $0x112] sm:$0xff]
        %v974 = vld [vmem:[%s821 + $0x122] sm:$0xff]
        %v975 = vld [vmem:[%s821 + $0x12a] sm:$0xff]
        %v976 = vld [vmem:[%s821 + $0x13a] sm:$0xff]
        %v977 = vld [vmem:[%s821 + $0x142] sm:$0xff]
        %v978 = vld [vmem:[%s821 + $0x152] sm:$0xff]
        %v979 = vld [vmem:[%s821 + $0x15a] sm:$0xff]
        %v980 = vld [vmem:[%s821 + $0x16a] sm:$0xff]
        %v981 = vld [vmem:[%s821 + $0x172] sm:$0xff]
        %982 = vst [vmem:[#allocation3 + $0x40] sm:$0xff] %v950
        %983 = vst [vmem:[#allocation3 + $0x88] sm:$0xff] %v951
        %984 = vst [vmem:[#allocation3 + $0xd0] sm:$0xff] %v952
        %985 = vst [vmem:[#allocation3 + $0x118] sm:$0xff] %v953
        %986 = vst [vmem:[#allocation3 + $0x160] sm:$0xff] %v954
        %987 = vst [vmem:[#allocation3 + $0x1a8] sm:$0xff] %v955
        %988 = vst [vmem:[#allocation3 + $0x1f0] sm:$0xff] %v956
        %989 = vst [vmem:[#allocation3 + $0x238] sm:$0xff] %v957
        %990 = vst [vmem:[#allocation3 + $0x280] sm:$0xff] %v958
        %991 = vst [vmem:[#allocation3 + $0x2c8] sm:$0xff] %v959
        %992 = vst [vmem:[#allocation3 + $0x310] sm:$0xff] %v960
        %993 = vst [vmem:[#allocation3 + $0x358] sm:$0xff] %v961
        %994 = vst [vmem:[#allocation3 + $0x3a0] sm:$0xff] %v962
        %995 = vst [vmem:[#allocation3 + $0x3e8] sm:$0xff] %v963
        %996 = vst [vmem:[#allocation3 + $0x430] sm:$0xff] %v964
        %997 = vst [vmem:[#allocation3 + $0x478] sm:$0xff] %v965
        %998 = vst [vmem:[#allocation3 + $0x4c0] sm:$0xff] %v966
        %999 = vst [vmem:[#allocation3 + $0x508] sm:$0xff] %v967
        %1000 = vst [vmem:[#allocation3 + $0x550] sm:$0xff] %v968
        %1001 = vst [vmem:[#allocation3 + $0x598] sm:$0xff] %v969
        %1002 = vst [vmem:[#allocation3 + $0x5e0] sm:$0xff] %v970
        %1003 = vst [vmem:[#allocation3 + $0x628] sm:$0xff] %v971
        %1004 = vst [vmem:[#allocation3 + $0x670] sm:$0xff] %v972
        %1005 = vst [vmem:[#allocation3 + $0x6b8] sm:$0xff] %v973
        %1006 = vst [vmem:[#allocation3 + $0x700] sm:$0xff] %v974
        %1007 = vst [vmem:[#allocation3 + $0x748] sm:$0xff] %v975
        %1008 = vst [vmem:[#allocation3 + $0x790] sm:$0xff] %v976
        %1009 = vst [vmem:[#allocation3 + $0x7d8] sm:$0xff] %v977
        %1010 = vst [vmem:[#allocation3 + $0x820] sm:$0xff] %v978
        %1011 = vst [vmem:[#allocation3 + $0x868] sm:$0xff] %v979
        %1012 = vst [vmem:[#allocation3 + $0x8b0] sm:$0xff] %v980
        %1013 = vst [vmem:[#allocation3 + $0x8f8] sm:$0xff] %v981
        %v1014 = vld [vmem:[#allocation3] sm:$0xff]
        %v1015 = vld [vmem:[#allocation3 + $0x8] sm:$0xff]
        %v1016 = vld [vmem:[#allocation3 + $0x10] sm:$0xff]
        %v1017 = vld [vmem:[#allocation3 + $0x18] sm:$0xff]
        %v1018 = vld [vmem:[#allocation3 + $0x20] sm:$0xff]
        %v1019 = vld [vmem:[#allocation3 + $0x28] sm:$0xff]
        %v1020 = vld [vmem:[#allocation3 + $0x30] sm:$0xff]
        %v1021 = vld [vmem:[#allocation3 + $0x38] sm:$0xff]
        %v1022 = vld [vmem:[#allocation3 + $0x40] sm:$0xff]
        %v1023 = vld [vmem:[#allocation3 + $0x48] sm:$0xff]
        %v1024 = vld [vmem:[#allocation3 + $0x50] sm:$0xff]
        %v1025 = vld [vmem:[#allocation3 + $0x58] sm:$0xff]
        %v1026 = vld [vmem:[#allocation3 + $0x60] sm:$0xff]
        %v1027 = vld [vmem:[#allocation3 + $0x68] sm:$0xff]
        %v1028 = vld [vmem:[#allocation3 + $0x70] sm:$0xff]
        %v1029 = vld [vmem:[#allocation3 + $0x78] sm:$0xff]
        %v1030 = vld [vmem:[#allocation3 + $0x80] sm:$0xff]
        %v1031 = vld [vmem:[#allocation3 + $0x88] sm:$0xff]
        %v1032 = vld [vmem:[#allocation3 + $0x90] sm:$0xff]
        %v1033 = vld [vmem:[#allocation3 + $0x98] sm:$0xff]
        %v1034 = vld [vmem:[#allocation3 + $0xa0] sm:$0xff]
        %v1035 = vld [vmem:[#allocation3 + $0xa8] sm:$0xff]
        %v1036 = vld [vmem:[#allocation3 + $0xb0] sm:$0xff]
        %v1037 = vld [vmem:[#allocation3 + $0xb8] sm:$0xff]
        %v1038 = vld [vmem:[#allocation3 + $0xc0] sm:$0xff]
        %v1039 = vld [vmem:[#allocation3 + $0xc8] sm:$0xff]
        %v1040 = vld [vmem:[#allocation3 + $0xd0] sm:$0xff]
        %v1041 = vld [vmem:[#allocation3 + $0xd8] sm:$0xff]
        %v1042 = vld [vmem:[#allocation3 + $0xe0] sm:$0xff]
        %v1043 = vld [vmem:[#allocation3 + $0xe8] sm:$0xff]
        %v1044 = vld [vmem:[#allocation3 + $0xf0] sm:$0xff]
        %v1045 = vld [vmem:[#allocation3 + $0xf8] sm:$0xff]
        %v1046 = vld [vmem:[#allocation3 + $0x100] sm:$0xff]
        %v1047 = vld [vmem:[#allocation3 + $0x108] sm:$0xff]
        %v1048 = vld [vmem:[#allocation3 + $0x110] sm:$0xff]
        %v1049 = vld [vmem:[#allocation3 + $0x118] sm:$0xff]
        %v1050 = vld [vmem:[#allocation3 + $0x120] sm:$0xff]
        %v1051 = vld [vmem:[#allocation3 + $0x128] sm:$0xff]
        %v1052 = vld [vmem:[#allocation3 + $0x130] sm:$0xff]
        %v1053 = vld [vmem:[#allocation3 + $0x138] sm:$0xff]
        %v1054 = vld [vmem:[#allocation3 + $0x140] sm:$0xff]
        %v1055 = vld [vmem:[#allocation3 + $0x148] sm:$0xff]
        %v1056 = vld [vmem:[#allocation3 + $0x150] sm:$0xff]
        %v1057 = vld [vmem:[#allocation3 + $0x158] sm:$0xff]
        %v1058 = vld [vmem:[#allocation3 + $0x160] sm:$0xff]
        %v1059 = vld [vmem:[#allocation3 + $0x168] sm:$0xff]
        %v1060 = vld [vmem:[#allocation3 + $0x170] sm:$0xff]
        %v1061 = vld [vmem:[#allocation3 + $0x178] sm:$0xff]
        %v1062 = vld [vmem:[#allocation3 + $0x180] sm:$0xff]
        %v1063 = vld [vmem:[#allocation3 + $0x188] sm:$0xff]
        %v1064 = vld [vmem:[#allocation3 + $0x190] sm:$0xff]
        %v1065 = vld [vmem:[#allocation3 + $0x198] sm:$0xff]
        %v1066 = vld [vmem:[#allocation3 + $0x1a0] sm:$0xff]
        %v1067 = vld [vmem:[#allocation3 + $0x1a8] sm:$0xff]
        %v1068 = vld [vmem:[#allocation3 + $0x1b0] sm:$0xff]
        %v1069 = vld [vmem:[#allocation3 + $0x1b8] sm:$0xff]
        %v1070 = vld [vmem:[#allocation3 + $0x1c0] sm:$0xff]
        %v1071 = vld [vmem:[#allocation3 + $0x1c8] sm:$0xff]
        %v1072 = vld [vmem:[#allocation3 + $0x1d0] sm:$0xff]
        %v1073 = vld [vmem:[#allocation3 + $0x1d8] sm:$0xff]
        %v1074 = vld [vmem:[#allocation3 + $0x1e0] sm:$0xff]
        %v1075 = vld [vmem:[#allocation3 + $0x1e8] sm:$0xff]
        %v1076 = vld [vmem:[#allocation3 + $0x1f0] sm:$0xff]
        %v1077 = vld [vmem:[#allocation3 + $0x1f8] sm:$0xff]
        %v1078 = vld [vmem:[#allocation3 + $0x200] sm:$0xff]
        %v1079 = vld [vmem:[#allocation3 + $0x208] sm:$0xff]
        %v1080 = vld [vmem:[#allocation3 + $0x210] sm:$0xff]
        %v1081 = vld [vmem:[#allocation3 + $0x218] sm:$0xff]
        %v1082 = vld [vmem:[#allocation3 + $0x220] sm:$0xff]
        %v1083 = vld [vmem:[#allocation3 + $0x228] sm:$0xff]
        %v1084 = vld [vmem:[#allocation3 + $0x230] sm:$0xff]
        %v1085 = vld [vmem:[#allocation3 + $0x238] sm:$0xff]
        %v1086 = vld [vmem:[#allocation3 + $0x240] sm:$0xff]
        %v1087 = vld [vmem:[#allocation3 + $0x248] sm:$0xff]
        %v1088 = vld [vmem:[#allocation3 + $0x250] sm:$0xff]
        %v1089 = vld [vmem:[#allocation3 + $0x258] sm:$0xff]
        %v1090 = vld [vmem:[#allocation3 + $0x260] sm:$0xff]
        %v1091 = vld [vmem:[#allocation3 + $0x268] sm:$0xff]
        %v1092 = vld [vmem:[#allocation3 + $0x270] sm:$0xff]
        %v1093 = vld [vmem:[#allocation3 + $0x278] sm:$0xff]
        %v1094 = vld [vmem:[#allocation3 + $0x280] sm:$0xff]
        %v1095 = vld [vmem:[#allocation3 + $0x288] sm:$0xff]
        %v1096 = vld [vmem:[#allocation3 + $0x290] sm:$0xff]
        %v1097 = vld [vmem:[#allocation3 + $0x298] sm:$0xff]
        %v1098 = vld [vmem:[#allocation3 + $0x2a0] sm:$0xff]
        %v1099 = vld [vmem:[#allocation3 + $0x2a8] sm:$0xff]
        %v1100 = vld [vmem:[#allocation3 + $0x2b0] sm:$0xff]
        %v1101 = vld [vmem:[#allocation3 + $0x2b8] sm:$0xff]
        %v1102 = vld [vmem:[#allocation3 + $0x2c0] sm:$0xff]
        %v1103 = vld [vmem:[#allocation3 + $0x2c8] sm:$0xff]
        %v1104 = vld [vmem:[#allocation3 + $0x2d0] sm:$0xff]
        %v1105 = vld [vmem:[#allocation3 + $0x2d8] sm:$0xff]
        %v1106 = vld [vmem:[#allocation3 + $0x2e0] sm:$0xff]
        %v1107 = vld [vmem:[#allocation3 + $0x2e8] sm:$0xff]
        %v1108 = vld [vmem:[#allocation3 + $0x2f0] sm:$0xff]
        %v1109 = vld [vmem:[#allocation3 + $0x2f8] sm:$0xff]
        %v1110 = vld [vmem:[#allocation3 + $0x300] sm:$0xff]
        %v1111 = vld [vmem:[#allocation3 + $0x308] sm:$0xff]
        %v1112 = vld [vmem:[#allocation3 + $0x310] sm:$0xff]
        %v1113 = vld [vmem:[#allocation3 + $0x318] sm:$0xff]
        %v1114 = vld [vmem:[#allocation3 + $0x320] sm:$0xff]
        %v1115 = vld [vmem:[#allocation3 + $0x328] sm:$0xff]
        %v1116 = vld [vmem:[#allocation3 + $0x330] sm:$0xff]
        %v1117 = vld [vmem:[#allocation3 + $0x338] sm:$0xff]
        %v1118 = vld [vmem:[#allocation3 + $0x340] sm:$0xff]
        %v1119 = vld [vmem:[#allocation3 + $0x348] sm:$0xff]
        %v1120 = vld [vmem:[#allocation3 + $0x350] sm:$0xff]
        %v1121 = vld [vmem:[#allocation3 + $0x358] sm:$0xff]
        %v1122 = vld [vmem:[#allocation3 + $0x360] sm:$0xff]
        %v1123 = vld [vmem:[#allocation3 + $0x368] sm:$0xff]
        %v1124 = vld [vmem:[#allocation3 + $0x370] sm:$0xff]
        %v1125 = vld [vmem:[#allocation3 + $0x378] sm:$0xff]
        %v1126 = vld [vmem:[#allocation3 + $0x380] sm:$0xff]
        %v1127 = vld [vmem:[#allocation3 + $0x388] sm:$0xff]
        %v1128 = vld [vmem:[#allocation3 + $0x390] sm:$0xff]
        %v1129 = vld [vmem:[#allocation3 + $0x398] sm:$0xff]
        %v1130 = vld [vmem:[#allocation3 + $0x3a0] sm:$0xff]
        %v1131 = vld [vmem:[#allocation3 + $0x3a8] sm:$0xff]
        %v1132 = vld [vmem:[#allocation3 + $0x3b0] sm:$0xff]
        %v1133 = vld [vmem:[#allocation3 + $0x3b8] sm:$0xff]
        %v1134 = vld [vmem:[#allocation3 + $0x3c0] sm:$0xff]
        %v1135 = vld [vmem:[#allocation3 + $0x3c8] sm:$0xff]
        %v1136 = vld [vmem:[#allocation3 + $0x3d0] sm:$0xff]
        %v1137 = vld [vmem:[#allocation3 + $0x3d8] sm:$0xff]
        %v1138 = vld [vmem:[#allocation3 + $0x3e0] sm:$0xff]
        %v1139 = vld [vmem:[#allocation3 + $0x3e8] sm:$0xff]
        %v1140 = vld [vmem:[#allocation3 + $0x3f0] sm:$0xff]
        %v1141 = vld [vmem:[#allocation3 + $0x3f8] sm:$0xff]
        %v1142 = vld [vmem:[#allocation3 + $0x400] sm:$0xff]
        %v1143 = vld [vmem:[#allocation3 + $0x408] sm:$0xff]
        %v1144 = vld [vmem:[#allocation3 + $0x410] sm:$0xff]
        %v1145 = vld [vmem:[#allocation3 + $0x418] sm:$0xff]
        %v1146 = vld [vmem:[#allocation3 + $0x420] sm:$0xff]
        %v1147 = vld [vmem:[#allocation3 + $0x428] sm:$0xff]
        %v1148 = vld [vmem:[#allocation3 + $0x430] sm:$0xff]
        %v1149 = vld [vmem:[#allocation3 + $0x438] sm:$0xff]
        %v1150 = vld [vmem:[#allocation3 + $0x440] sm:$0xff]
        %v1151 = vld [vmem:[#allocation3 + $0x448] sm:$0xff]
        %v1152 = vld [vmem:[#allocation3 + $0x450] sm:$0xff]
        %v1153 = vld [vmem:[#allocation3 + $0x458] sm:$0xff]
        %v1154 = vld [vmem:[#allocation3 + $0x460] sm:$0xff]
        %v1155 = vld [vmem:[#allocation3 + $0x468] sm:$0xff]
        %v1156 = vld [vmem:[#allocation3 + $0x470] sm:$0xff]
        %v1157 = vld [vmem:[#allocation3 + $0x478] sm:$0xff]
        %v1158 = vld [vmem:[#allocation3 + $0x480] sm:$0xff]
        %v1159 = vld [vmem:[#allocation3 + $0x488] sm:$0xff]
        %v1160 = vld [vmem:[#allocation3 + $0x490] sm:$0xff]
        %v1161 = vld [vmem:[#allocation3 + $0x498] sm:$0xff]
        %v1162 = vld [vmem:[#allocation3 + $0x4a0] sm:$0xff]
        %v1163 = vld [vmem:[#allocation3 + $0x4a8] sm:$0xff]
        %v1164 = vld [vmem:[#allocation3 + $0x4b0] sm:$0xff]
        %v1165 = vld [vmem:[#allocation3 + $0x4b8] sm:$0xff]
        %v1166 = vld [vmem:[#allocation3 + $0x4c0] sm:$0xff]
        %v1167 = vld [vmem:[#allocation3 + $0x4c8] sm:$0xff]
        %v1168 = vld [vmem:[#allocation3 + $0x4d0] sm:$0xff]
        %v1169 = vld [vmem:[#allocation3 + $0x4d8] sm:$0xff]
        %v1170 = vld [vmem:[#allocation3 + $0x4e0] sm:$0xff]
        %v1171 = vld [vmem:[#allocation3 + $0x4e8] sm:$0xff]
        %v1172 = vld [vmem:[#allocation3 + $0x4f0] sm:$0xff]
        %v1173 = vld [vmem:[#allocation3 + $0x4f8] sm:$0xff]
        %v1174 = vld [vmem:[#allocation3 + $0x500] sm:$0xff]
        %v1175 = vld [vmem:[#allocation3 + $0x508] sm:$0xff]
        %v1176 = vld [vmem:[#allocation3 + $0x510] sm:$0xff]
        %v1177 = vld [vmem:[#allocation3 + $0x518] sm:$0xff]
        %v1178 = vld [vmem:[#allocation3 + $0x520] sm:$0xff]
        %v1179 = vld [vmem:[#allocation3 + $0x528] sm:$0xff]
        %v1180 = vld [vmem:[#allocation3 + $0x530] sm:$0xff]
        %v1181 = vld [vmem:[#allocation3 + $0x538] sm:$0xff]
        %v1182 = vld [vmem:[#allocation3 + $0x540] sm:$0xff]
        %v1183 = vld [vmem:[#allocation3 + $0x548] sm:$0xff]
        %v1184 = vld [vmem:[#allocation3 + $0x550] sm:$0xff]
        %v1185 = vld [vmem:[#allocation3 + $0x558] sm:$0xff]
        %v1186 = vld [vmem:[#allocation3 + $0x560] sm:$0xff]
        %v1187 = vld [vmem:[#allocation3 + $0x568] sm:$0xff]
        %v1188 = vld [vmem:[#allocation3 + $0x570] sm:$0xff]
        %v1189 = vld [vmem:[#allocation3 + $0x578] sm:$0xff]
        %v1190 = vld [vmem:[#allocation3 + $0x580] sm:$0xff]
        %v1191 = vld [vmem:[#allocation3 + $0x588] sm:$0xff]
        %v1192 = vld [vmem:[#allocation3 + $0x590] sm:$0xff]
        %v1193 = vld [vmem:[#allocation3 + $0x598] sm:$0xff]
        %v1194 = vld [vmem:[#allocation3 + $0x5a0] sm:$0xff]
        %v1195 = vld [vmem:[#allocation3 + $0x5a8] sm:$0xff]
        %v1196 = vld [vmem:[#allocation3 + $0x5b0] sm:$0xff]
        %v1197 = vld [vmem:[#allocation3 + $0x5b8] sm:$0xff]
        %v1198 = vld [vmem:[#allocation3 + $0x5c0] sm:$0xff]
        %v1199 = vld [vmem:[#allocation3 + $0x5c8] sm:$0xff]
        %v1200 = vld [vmem:[#allocation3 + $0x5d0] sm:$0xff]
        %v1201 = vld [vmem:[#allocation3 + $0x5d8] sm:$0xff]
        %v1202 = vld [vmem:[#allocation3 + $0x5e0] sm:$0xff]
        %v1203 = vld [vmem:[#allocation3 + $0x5e8] sm:$0xff]
        %v1204 = vld [vmem:[#allocation3 + $0x5f0] sm:$0xff]
        %v1205 = vld [vmem:[#allocation3 + $0x5f8] sm:$0xff]
        %v1206 = vld [vmem:[#allocation3 + $0x600] sm:$0xff]
        %v1207 = vld [vmem:[#allocation3 + $0x608] sm:$0xff]
        %v1208 = vld [vmem:[#allocation3 + $0x610] sm:$0xff]
        %v1209 = vld [vmem:[#allocation3 + $0x618] sm:$0xff]
        %v1210 = vld [vmem:[#allocation3 + $0x620] sm:$0xff]
        %v1211 = vld [vmem:[#allocation3 + $0x628] sm:$0xff]
        %v1212 = vld [vmem:[#allocation3 + $0x630] sm:$0xff]
        %v1213 = vld [vmem:[#allocation3 + $0x638] sm:$0xff]
        %v1214 = vld [vmem:[#allocation3 + $0x640] sm:$0xff]
        %v1215 = vld [vmem:[#allocation3 + $0x648] sm:$0xff]
        %v1216 = vld [vmem:[#allocation3 + $0x650] sm:$0xff]
        %v1217 = vld [vmem:[#allocation3 + $0x658] sm:$0xff]
        %v1218 = vld [vmem:[#allocation3 + $0x660] sm:$0xff]
        %v1219 = vld [vmem:[#allocation3 + $0x668] sm:$0xff]
        %v1220 = vld [vmem:[#allocation3 + $0x670] sm:$0xff]
        %v1221 = vld [vmem:[#allocation3 + $0x678] sm:$0xff]
        %v1222 = vld [vmem:[#allocation3 + $0x680] sm:$0xff]
        %v1223 = vld [vmem:[#allocation3 + $0x688] sm:$0xff]
        %v1224 = vld [vmem:[#allocation3 + $0x690] sm:$0xff]
        %v1225 = vld [vmem:[#allocation3 + $0x698] sm:$0xff]
        %v1226 = vld [vmem:[#allocation3 + $0x6a0] sm:$0xff]
        %v1227 = vld [vmem:[#allocation3 + $0x6a8] sm:$0xff]
        %v1228 = vld [vmem:[#allocation3 + $0x6b0] sm:$0xff]
        %v1229 = vld [vmem:[#allocation3 + $0x6b8] sm:$0xff]
        %v1230 = vld [vmem:[#allocation3 + $0x6c0] sm:$0xff]
        %v1231 = vld [vmem:[#allocation3 + $0x6c8] sm:$0xff]
        %v1232 = vld [vmem:[#allocation3 + $0x6d0] sm:$0xff]
        %v1233 = vld [vmem:[#allocation3 + $0x6d8] sm:$0xff]
        %v1234 = vld [vmem:[#allocation3 + $0x6e0] sm:$0xff]
        %v1235 = vld [vmem:[#allocation3 + $0x6e8] sm:$0xff]
        %v1236 = vld [vmem:[#allocation3 + $0x6f0] sm:$0xff]
        %v1237 = vld [vmem:[#allocation3 + $0x6f8] sm:$0xff]
        %v1238 = vld [vmem:[#allocation3 + $0x700] sm:$0xff]
        %v1239 = vld [vmem:[#allocation3 + $0x708] sm:$0xff]
        %v1240 = vld [vmem:[#allocation3 + $0x710] sm:$0xff]
        %v1241 = vld [vmem:[#allocation3 + $0x718] sm:$0xff]
        %v1242 = vld [vmem:[#allocation3 + $0x720] sm:$0xff]
        %v1243 = vld [vmem:[#allocation3 + $0x728] sm:$0xff]
        %v1244 = vld [vmem:[#allocation3 + $0x730] sm:$0xff]
        %v1245 = vld [vmem:[#allocation3 + $0x738] sm:$0xff]
        %v1246 = vld [vmem:[#allocation3 + $0x740] sm:$0xff]
        %v1247 = vld [vmem:[#allocation3 + $0x748] sm:$0xff]
        %v1248 = vld [vmem:[#allocation3 + $0x750] sm:$0xff]
        %v1249 = vld [vmem:[#allocation3 + $0x758] sm:$0xff]
        %v1250 = vld [vmem:[#allocation3 + $0x760] sm:$0xff]
        %v1251 = vld [vmem:[#allocation3 + $0x768] sm:$0xff]
        %v1252 = vld [vmem:[#allocation3 + $0x770] sm:$0xff]
        %v1253 = vld [vmem:[#allocation3 + $0x778] sm:$0xff]
        %v1254 = vld [vmem:[#allocation3 + $0x780] sm:$0xff]
        %v1255 = vld [vmem:[#allocation3 + $0x788] sm:$0xff]
        %v1256 = vld [vmem:[#allocation3 + $0x790] sm:$0xff]
        %v1257 = vld [vmem:[#allocation3 + $0x798] sm:$0xff]
        %v1258 = vld [vmem:[#allocation3 + $0x7a0] sm:$0xff]
        %v1259 = vld [vmem:[#allocation3 + $0x7a8] sm:$0xff]
        %v1260 = vld [vmem:[#allocation3 + $0x7b0] sm:$0xff]
        %v1261 = vld [vmem:[#allocation3 + $0x7b8] sm:$0xff]
        %v1262 = vld [vmem:[#allocation3 + $0x7c0] sm:$0xff]
        %v1263 = vld [vmem:[#allocation3 + $0x7c8] sm:$0xff]
        %v1264 = vld [vmem:[#allocation3 + $0x7d0] sm:$0xff]
        %v1265 = vld [vmem:[#allocation3 + $0x7d8] sm:$0xff]
        %v1266 = vld [vmem:[#allocation3 + $0x7e0] sm:$0xff]
        %v1267 = vld [vmem:[#allocation3 + $0x7e8] sm:$0xff]
        %v1268 = vld [vmem:[#allocation3 + $0x7f0] sm:$0xff]
        %v1269 = vld [vmem:[#allocation3 + $0x7f8] sm:$0xff]
        %v1270 = vld [vmem:[#allocation3 + $0x800] sm:$0xff]
        %v1271 = vld [vmem:[#allocation3 + $0x808] sm:$0xff]
        %v1272 = vld [vmem:[#allocation3 + $0x810] sm:$0xff]
        %v1273 = vld [vmem:[#allocation3 + $0x818] sm:$0xff]
        %v1274 = vld [vmem:[#allocation3 + $0x820] sm:$0xff]
        %v1275 = vld [vmem:[#allocation3 + $0x828] sm:$0xff]
        %v1276 = vld [vmem:[#allocation3 + $0x830] sm:$0xff]
        %v1277 = vld [vmem:[#allocation3 + $0x838] sm:$0xff]
        %v1278 = vld [vmem:[#allocation3 + $0x840] sm:$0xff]
        %v1279 = vld [vmem:[#allocation3 + $0x848] sm:$0xff]
        %v1280 = vld [vmem:[#allocation3 + $0x850] sm:$0xff]
        %v1281 = vld [vmem:[#allocation3 + $0x858] sm:$0xff]
        %v1282 = vld [vmem:[#allocation3 + $0x860] sm:$0xff]
        %v1283 = vld [vmem:[#allocation3 + $0x868] sm:$0xff]
        %v1284 = vld [vmem:[#allocation3 + $0x870] sm:$0xff]
        %v1285 = vld [vmem:[#allocation3 + $0x878] sm:$0xff]
        %v1286 = vld [vmem:[#allocation3 + $0x880] sm:$0xff]
        %v1287 = vld [vmem:[#allocation3 + $0x888] sm:$0xff]
        %v1288 = vld [vmem:[#allocation3 + $0x890] sm:$0xff]
        %v1289 = vld [vmem:[#allocation3 + $0x898] sm:$0xff]
        %v1290 = vld [vmem:[#allocation3 + $0x8a0] sm:$0xff]
        %v1291 = vld [vmem:[#allocation3 + $0x8a8] sm:$0xff]
        %v1292 = vld [vmem:[#allocation3 + $0x8b0] sm:$0xff]
        %v1293 = vld [vmem:[#allocation3 + $0x8b8] sm:$0xff]
        %v1294 = vld [vmem:[#allocation3 + $0x8c0] sm:$0xff]
        %v1295 = vld [vmem:[#allocation3 + $0x8c8] sm:$0xff]
        %v1296 = vld [vmem:[#allocation3 + $0x8d0] sm:$0xff]
        %v1297 = vld [vmem:[#allocation3 + $0x8d8] sm:$0xff]
        %v1298 = vld [vmem:[#allocation3 + $0x8e0] sm:$0xff]
        %v1299 = vld [vmem:[#allocation3 + $0x8e8] sm:$0xff]
        %v1300 = vld [vmem:[#allocation3 + $0x8f0] sm:$0xff]
        %v1301 = vld [vmem:[#allocation3 + $0x8f8] sm:$0xff]
        %v1302 = vld [vmem:[#allocation10] sm:$0xff]
        %v1303 = vld [vmem:[#allocation10 + $0x8] sm:$0xff]
        %v1304 = vld [vmem:[#allocation10 + $0x10] sm:$0xff]
        %v1305 = vld [vmem:[#allocation10 + $0x18] sm:$0xff]
        %v1306 = vld [vmem:[#allocation10 + $0x20] sm:$0xff]
        %v1307 = vld [vmem:[#allocation10 + $0x28] sm:$0xff]
        %v1308 = vld [vmem:[#allocation10 + $0x30] sm:$0xff]
        %v1309 = vld [vmem:[#allocation10 + $0x38] sm:$0xff]
        %v1310 = vld [vmem:[#allocation10 + $0x40] sm:$0xff]
        %v1311 = vld [vmem:[#allocation10 + $0x48] sm:$0xff]
        %v1312 = vld [vmem:[#allocation10 + $0x50] sm:$0xff]
        %v1313 = vld [vmem:[#allocation10 + $0x58] sm:$0xff]
        %v1314 = vld [vmem:[#allocation10 + $0x60] sm:$0xff]
        %v1315 = vld [vmem:[#allocation10 + $0x68] sm:$0xff]
        %v1316 = vld [vmem:[#allocation10 + $0x70] sm:$0xff]
        %v1317 = vld [vmem:[#allocation10 + $0x78] sm:$0xff]
        %v1318 = vld [vmem:[#allocation10 + $0x80] sm:$0xff]
        %v1319 = vld [vmem:[#allocation10 + $0x88] sm:$0xff]
        %v1320 = vld [vmem:[#allocation10 + $0x90] sm:$0xff]
        %v1321 = vld [vmem:[#allocation10 + $0x98] sm:$0xff]
        %v1322 = vld [vmem:[#allocation10 + $0xa0] sm:$0xff]
        %v1323 = vld [vmem:[#allocation10 + $0xa8] sm:$0xff]
        %v1324 = vld [vmem:[#allocation10 + $0xb0] sm:$0xff]
        %v1325 = vld [vmem:[#allocation10 + $0xb8] sm:$0xff]
        %v1326 = vld [vmem:[#allocation10 + $0xc0] sm:$0xff]
        %v1327 = vld [vmem:[#allocation10 + $0xc8] sm:$0xff]
        %v1328 = vld [vmem:[#allocation10 + $0xd0] sm:$0xff]
        %v1329 = vld [vmem:[#allocation10 + $0xd8] sm:$0xff]
        %v1330 = vld [vmem:[#allocation10 + $0xe0] sm:$0xff]
        %v1331 = vld [vmem:[#allocation10 + $0xe8] sm:$0xff]
        %v1332 = vld [vmem:[#allocation10 + $0xf0] sm:$0xff]
        %v1333 = vld [vmem:[#allocation10 + $0xf8] sm:$0xff]
        %v1334 = vld [vmem:[#allocation10 + $0x100] sm:$0xff]
        %v1335 = vld [vmem:[#allocation10 + $0x108] sm:$0xff]
        %v1336 = vld [vmem:[#allocation10 + $0x110] sm:$0xff]
        %v1337 = vld [vmem:[#allocation10 + $0x118] sm:$0xff]
        %v1338 = vld [vmem:[#allocation10 + $0x120] sm:$0xff]
        %v1339 = vld [vmem:[#allocation10 + $0x128] sm:$0xff]
        %v1340 = vld [vmem:[#allocation10 + $0x130] sm:$0xff]
        %v1341 = vld [vmem:[#allocation10 + $0x138] sm:$0xff]
        %v1342 = vld [vmem:[#allocation10 + $0x140] sm:$0xff]
        %v1343 = vld [vmem:[#allocation10 + $0x148] sm:$0xff]
        %v1344 = vld [vmem:[#allocation10 + $0x150] sm:$0xff]
        %v1345 = vld [vmem:[#allocation10 + $0x158] sm:$0xff]
        %v1346 = vld [vmem:[#allocation10 + $0x160] sm:$0xff]
        %v1347 = vld [vmem:[#allocation10 + $0x168] sm:$0xff]
        %v1348 = vld [vmem:[#allocation10 + $0x170] sm:$0xff]
        %v1349 = vld [vmem:[#allocation10 + $0x178] sm:$0xff]
        %v1350 = vld [vmem:[#allocation10 + $0x180] sm:$0xff]
        %v1351 = vld [vmem:[#allocation10 + $0x188] sm:$0xff]
        %v1352 = vld [vmem:[#allocation10 + $0x190] sm:$0xff]
        %v1353 = vld [vmem:[#allocation10 + $0x198] sm:$0xff]
        %v1354 = vld [vmem:[#allocation10 + $0x1a0] sm:$0xff]
        %v1355 = vld [vmem:[#allocation10 + $0x1a8] sm:$0xff]
        %v1356 = vld [vmem:[#allocation10 + $0x1b0] sm:$0xff]
        %v1357 = vld [vmem:[#allocation10 + $0x1b8] sm:$0xff]
        %v1358 = vld [vmem:[#allocation10 + $0x1c0] sm:$0xff]
        %v1359 = vld [vmem:[#allocation10 + $0x1c8] sm:$0xff]
        %v1360 = vld [vmem:[#allocation10 + $0x1d0] sm:$0xff]
        %v1361 = vld [vmem:[#allocation10 + $0x1d8] sm:$0xff]
        %v1362 = vld [vmem:[#allocation10 + $0x1e0] sm:$0xff]
        %v1363 = vld [vmem:[#allocation10 + $0x1e8] sm:$0xff]
        %v1364 = vld [vmem:[#allocation10 + $0x1f0] sm:$0xff]
        %v1365 = vld [vmem:[#allocation10 + $0x1f8] sm:$0xff]
        %v1366 = vld [vmem:[#allocation10 + $0x200] sm:$0xff]
        %v1367 = vld [vmem:[#allocation10 + $0x208] sm:$0xff]
        %v1368 = vld [vmem:[#allocation10 + $0x210] sm:$0xff]
        %v1369 = vld [vmem:[#allocation10 + $0x218] sm:$0xff]
        %v1370 = vld [vmem:[#allocation10 + $0x220] sm:$0xff]
        %v1371 = vld [vmem:[#allocation10 + $0x228] sm:$0xff]
        %v1372 = vld [vmem:[#allocation10 + $0x230] sm:$0xff]
        %v1373 = vld [vmem:[#allocation10 + $0x238] sm:$0xff]
        %v1374 = vld [vmem:[#allocation10 + $0x240] sm:$0xff]
        %v1375 = vld [vmem:[#allocation10 + $0x248] sm:$0xff]
        %v1376 = vld [vmem:[#allocation10 + $0x250] sm:$0xff]
        %v1377 = vld [vmem:[#allocation10 + $0x258] sm:$0xff]
        %v1378 = vld [vmem:[#allocation10 + $0x260] sm:$0xff]
        %v1379 = vld [vmem:[#allocation10 + $0x268] sm:$0xff]
        %v1380 = vld [vmem:[#allocation10 + $0x270] sm:$0xff]
        %v1381 = vld [vmem:[#allocation10 + $0x278] sm:$0xff]
        %v1382 = vld [vmem:[#allocation10 + $0x280] sm:$0xff]
        %v1383 = vld [vmem:[#allocation10 + $0x288] sm:$0xff]
        %v1384 = vld [vmem:[#allocation10 + $0x290] sm:$0xff]
        %v1385 = vld [vmem:[#allocation10 + $0x298] sm:$0xff]
        %v1386 = vld [vmem:[#allocation10 + $0x2a0] sm:$0xff]
        %v1387 = vld [vmem:[#allocation10 + $0x2a8] sm:$0xff]
        %v1388 = vld [vmem:[#allocation10 + $0x2b0] sm:$0xff]
        %v1389 = vld [vmem:[#allocation10 + $0x2b8] sm:$0xff]
        %v1390 = vld [vmem:[#allocation10 + $0x2c0] sm:$0xff]
        %v1391 = vld [vmem:[#allocation10 + $0x2c8] sm:$0xff]
        %v1392 = vld [vmem:[#allocation10 + $0x2d0] sm:$0xff]
        %v1393 = vld [vmem:[#allocation10 + $0x2d8] sm:$0xff]
        %v1394 = vld [vmem:[#allocation10 + $0x2e0] sm:$0xff]
        %v1395 = vld [vmem:[#allocation10 + $0x2e8] sm:$0xff]
        %v1396 = vld [vmem:[#allocation10 + $0x2f0] sm:$0xff]
        %v1397 = vld [vmem:[#allocation10 + $0x2f8] sm:$0xff]
        %v1398 = vld [vmem:[#allocation10 + $0x300] sm:$0xff]
        %v1399 = vld [vmem:[#allocation10 + $0x308] sm:$0xff]
        %v1400 = vld [vmem:[#allocation10 + $0x310] sm:$0xff]
        %v1401 = vld [vmem:[#allocation10 + $0x318] sm:$0xff]
        %v1402 = vld [vmem:[#allocation10 + $0x320] sm:$0xff]
        %v1403 = vld [vmem:[#allocation10 + $0x328] sm:$0xff]
        %v1404 = vld [vmem:[#allocation10 + $0x330] sm:$0xff]
        %v1405 = vld [vmem:[#allocation10 + $0x338] sm:$0xff]
        %v1406 = vld [vmem:[#allocation10 + $0x340] sm:$0xff]
        %v1407 = vld [vmem:[#allocation10 + $0x348] sm:$0xff]
        %v1408 = vld [vmem:[#allocation10 + $0x350] sm:$0xff]
        %v1409 = vld [vmem:[#allocation10 + $0x358] sm:$0xff]
        %v1410 = vld [vmem:[#allocation10 + $0x360] sm:$0xff]
        %v1411 = vld [vmem:[#allocation10 + $0x368] sm:$0xff]
        %v1412 = vld [vmem:[#allocation10 + $0x370] sm:$0xff]
        %v1413 = vld [vmem:[#allocation10 + $0x378] sm:$0xff]
        %v1414 = vld [vmem:[#allocation10 + $0x380] sm:$0xff]
        %v1415 = vld [vmem:[#allocation10 + $0x388] sm:$0xff]
        %v1416 = vld [vmem:[#allocation10 + $0x390] sm:$0xff]
        %v1417 = vld [vmem:[#allocation10 + $0x398] sm:$0xff]
        %v1418 = vld [vmem:[#allocation10 + $0x3a0] sm:$0xff]
        %v1419 = vld [vmem:[#allocation10 + $0x3a8] sm:$0xff]
        %v1420 = vld [vmem:[#allocation10 + $0x3b0] sm:$0xff]
        %v1421 = vld [vmem:[#allocation10 + $0x3b8] sm:$0xff]
        %v1422 = vld [vmem:[#allocation10 + $0x3c0] sm:$0xff]
        %v1423 = vld [vmem:[#allocation10 + $0x3c8] sm:$0xff]
        %v1424 = vld [vmem:[#allocation10 + $0x3d0] sm:$0xff]
        %v1425 = vld [vmem:[#allocation10 + $0x3d8] sm:$0xff]
        %v1426 = vld [vmem:[#allocation10 + $0x3e0] sm:$0xff]
        %v1427 = vld [vmem:[#allocation10 + $0x3e8] sm:$0xff]
        %v1428 = vld [vmem:[#allocation10 + $0x3f0] sm:$0xff]
        %v1429 = vld [vmem:[#allocation10 + $0x3f8] sm:$0xff]
        %v1430 = vld [vmem:[#allocation10 + $0x400] sm:$0xff]
        %v1431 = vld [vmem:[#allocation10 + $0x408] sm:$0xff]
        %v1432 = vld [vmem:[#allocation10 + $0x410] sm:$0xff]
        %v1433 = vld [vmem:[#allocation10 + $0x418] sm:$0xff]
        %v1434 = vld [vmem:[#allocation10 + $0x420] sm:$0xff]
        %v1435 = vld [vmem:[#allocation10 + $0x428] sm:$0xff]
        %v1436 = vld [vmem:[#allocation10 + $0x430] sm:$0xff]
        %v1437 = vld [vmem:[#allocation10 + $0x438] sm:$0xff]
        %v1438 = vld [vmem:[#allocation10 + $0x440] sm:$0xff]
        %v1439 = vld [vmem:[#allocation10 + $0x448] sm:$0xff]
        %v1440 = vld [vmem:[#allocation10 + $0x450] sm:$0xff]
        %v1441 = vld [vmem:[#allocation10 + $0x458] sm:$0xff]
        %v1442 = vld [vmem:[#allocation10 + $0x460] sm:$0xff]
        %v1443 = vld [vmem:[#allocation10 + $0x468] sm:$0xff]
        %v1444 = vld [vmem:[#allocation10 + $0x470] sm:$0xff]
        %v1445 = vld [vmem:[#allocation10 + $0x478] sm:$0xff]
        %v1446 = vstv %s260
        %1447 = vmatprep.subr.mxu0 0.0
        %1448 = vmatpush1.msra.mxu0 %v1302
        %1449 = vmatprep.subr.mxu0 0.0
        %1450 = vmatpush1.msra.mxu0 %v1303
        %1451 = vmatprep.subr.mxu0 0.0
        %1452 = vmatpush1.msra.mxu0 %v1304
        %1453 = vmatprep.subr.mxu0 0.0
        %1454 = vmatpush1.msra.mxu0 %v1305
        %1455 = vmatprep.subr.mxu0 0.0
        %1456 = vmatpush1.msra.mxu0 %v1306
        %1457 = vmatprep.subr.mxu0 0.0
        %1458 = vmatpush1.msra.mxu0 %v1307
        %1459 = vmatprep.subr.mxu0 0.0
        %1460 = vmatpush1.msra.mxu0 %v1308
        %1461 = vmatprep.subr.mxu0 0.0
        %1462 = vmatpush1.msra.mxu0 %v1309
        %1463 = vmatprep.subr.mxu0 0.0
        %1464 = vmatpush1.msra.mxu0 %v1310
        %1465 = vmatprep.subr.mxu0 0.0
        %1466 = vmatpush1.msra.mxu0 %v1311
        %1467 = vmatprep.subr.mxu0 0.0
        %1468 = vmatpush1.msra.mxu0 %v1312
        %1469 = vmatprep.subr.mxu0 0.0
        %1470 = vmatpush1.msra.mxu0 %v1313
        %1471 = vmatprep.subr.mxu0 0.0
        %1472 = vmatpush1.msra.mxu0 %v1314
        %1473 = vmatprep.subr.mxu0 0.0
        %1474 = vmatpush1.msra.mxu0 %v1315
        %1475 = vmatprep.subr.mxu0 0.0
        %1476 = vmatpush1.msra.mxu0 %v1316
        %1477 = vmatprep.subr.mxu0 0.0
        %1478 = vmatpush1.msra.mxu0 %v1317
        %1479 = vmatprep.subr.mxu0 0.0
        %1480 = vmatpush1.msra.mxu0 %v1318
        %1481 = vmatprep.subr.mxu0 0.0
        %1482 = vmatpush1.msra.mxu0 %v1319
        %1483 = vmatprep.subr.mxu0 0.0
        %1484 = vmatpush1.msra.mxu0 %v1320
        %1485 = vmatprep.subr.mxu0 0.0
        %1486 = vmatpush1.msra.mxu0 %v1321
        %1487 = vmatprep.subr.mxu0 0.0
        %1488 = vmatpush1.msra.mxu0 %v1322
        %1489 = vmatprep.subr.mxu0 0.0
        %1490 = vmatpush1.msra.mxu0 %v1323
        %1491 = vmatprep.subr.mxu0 0.0
        %1492 = vmatpush1.msra.mxu0 %v1324
        %1493 = vmatprep.subr.mxu0 0.0
        %1494 = vmatpush1.msra.mxu0 %v1325
        %1495 = vmatprep.subr.mxu0 0.0
        %1496 = vmatpush1.msra.mxu0 %v1326
        %1497 = vmatprep.subr.mxu0 0.0
        %1498 = vmatpush1.msra.mxu0 %v1327
        %1499 = vmatprep.subr.mxu0 0.0
        %1500 = vmatpush1.msra.mxu0 %v1328
        %1501 = vmatprep.subr.mxu0 0.0
        %1502 = vmatpush1.msra.mxu0 %v1329
        %1503 = vmatprep.subr.mxu0 0.0
        %1504 = vmatpush1.msra.mxu0 %v1330
        %1505 = vmatprep.subr.mxu0 0.0
        %1506 = vmatpush1.msra.mxu0 %v1331
        %1507 = vmatprep.subr.mxu0 0.0
        %1508 = vmatpush1.msra.mxu0 %v1332
        %1509 = vmatprep.subr.mxu0 0.0
        %1510 = vmatpush1.msra.mxu0 %v1333
        %1511 = vmatprep.mubr.f32.mxu0 %v1015
        %1512 = vmatmul.mubr.f32.gmra.mrb[0].mxu0 %v1014
        %v1513 = vpop.f32.mrb[0].mxu0
        %v1514 = vadd.f32 %v1446, %v1513
        %v1515 = vpop.f32.mrb[0].mxu0
        %1516 = vmatprep.mubr.f32.mxu0 %v1024
        %1517 = vmatmul.mubr.f32.gmra.mrb[0].mxu0 %v1023
        %v1518 = vpop.f32.mrb[0].mxu0
        %v1519 = vadd.f32 %v1446, %v1518
        %v1520 = vpop.f32.mrb[0].mxu0
        %1521 = vmatprep.mubr.f32.mxu0 %v1033
        %1522 = vmatmul.mubr.f32.gmra.mrb[0].mxu0 %v1032
        %v1523 = vpop.f32.mrb[0].mxu0
        %v1524 = vadd.f32 %v1446, %v1523
        %v1525 = vpop.f32.mrb[0].mxu0
        %1526 = vmatprep.mubr.f32.mxu0 %v1042
        %1527 = vmatmul.mubr.f32.gmra.mrb[0].mxu0 %v1041
        %v1528 = vpop.f32.mrb[0].mxu0
        %v1529 = vadd.f32 %v1446, %v1528
        %v1530 = vpop.f32.mrb[0].mxu0
        %1531 = vmatprep.mubr.f32.mxu0 %v1051
        %1532 = vmatmul.mubr.f32.gmra.mrb[0].mxu0 %v1050
        %v1533 = vpop.f32.mrb[0].mxu0
        %v1534 = vadd.f32 %v1446, %v1533
        %v1535 = vpop.f32.mrb[0].mxu0
        %1536 = vmatprep.mubr.f32.mxu0 %v1060
        %1537 = vmatmul.mubr.f32.gmra.mrb[0].mxu0 %v1059
        %v1538 = vpop.f32.mrb[0].mxu0
        %v1539 = vadd.f32 %v1446, %v1538
        %v1540 = vpop.f32.mrb[0].mxu0
        %1541 = vmatprep.mubr.f32.mxu0 %v1069
        %1542 = vmatmul.mubr.f32.gmra.mrb[0].mxu0 %v1068
        %v1543 = vpop.f32.mrb[0].mxu0
        %v1544 = vadd.f32 %v1446, %v1543
        %v1545 = vpop.f32.mrb[0].mxu0
        %1546 = vmatprep.mubr.f32.mxu0 %v1078
        %1547 = vmatmul.mubr.f32.gmra.mrb[0].mxu0 %v1077
        %v1548 = vpop.f32.mrb[0].mxu0
        %v1549 = vadd.f32 %v1446, %v1548
        %v1550 = vpop.f32.mrb[0].mxu0
        %1551 = vmatprep.mubr.f32.mxu0 %v1087
        %1552 = vmatmul.mubr.f32.gmra.mrb[0].mxu0 %v1086
        %v1553 = vpop.f32.mrb[0].mxu0
        %v1554 = vadd.f32 %v1446, %v1553
        %v1555 = vpop.f32.mrb[0].mxu0
        %1556 = vmatprep.mubr.f32.mxu0 %v1096
        %1557 = vmatmul.mubr.f32.gmra.mrb[0].mxu0 %v1095
        %v1558 = vpop.f32.mrb[0].mxu0
        %v1559 = vadd.f32 %v1446, %v1558
        %v1560 = vpop.f32.mrb[0].mxu0
        %1561 = vmatprep.mubr.f32.mxu0 %v1105
        %1562 = vmatmul.mubr.f32.gmra.mrb[0].mxu0 %v1104
        %v1563 = vpop.f32.mrb[0].mxu0
        %v1564 = vadd.f32 %v1446, %v1563
        %v1565 = vpop.f32.mrb[0].mxu0
        %1566 = vmatprep.mubr.f32.mxu0 %v1114
        %1567 = vmatmul.mubr.f32.gmra.mrb[0].mxu0 %v1113
        %v1568 = vpop.f32.mrb[0].mxu0
        %v1569 = vadd.f32 %v1446, %v1568
        %v1570 = vpop.f32.mrb[0].mxu0
        %1571 = vmatprep.mubr.f32.mxu0 %v1123
        %1572 = vmatmul.mubr.f32.gmra.mrb[0].mxu0 %v1122
        %v1573 = vpop.f32.mrb[0].mxu0
        %v1574 = vadd.f32 %v1446, %v1573
        %v1575 = vpop.f32.mrb[0].mxu0
        %1576 = vmatprep.mubr.f32.mxu0 %v1132
        %1577 = vmatmul.mubr.f32.gmra.mrb[0].mxu0 %v1131
        %v1578 = vpop.f32.mrb[0].mxu0
        %v1579 = vadd.f32 %v1446, %v1578
        %v1580 = vpop.f32.mrb[0].mxu0
        %1581 = vmatprep.mubr.f32.mxu0 %v1141
        %1582 = vmatmul.mubr.f32.gmra.mrb[0].mxu0 %v1140
        %v1583 = vpop.f32.mrb[0].mxu0
        %v1584 = vadd.f32 %v1446, %v1583
        %v1585 = vpop.f32.mrb[0].mxu0
        %1586 = vmatprep.mubr.f32.mxu0 %v1150
        %1587 = vmatmul.mubr.f32.gmra.mrb[0].mxu0 %v1149
        %v1588 = vpop.f32.mrb[0].mxu0
        %v1589 = vadd.f32 %v1446, %v1588
        %v1590 = vpop.f32.mrb[0].mxu0
        %1591 = vmatprep.mubr.f32.mxu0 %v1159
        %1592 = vmatmul.mubr.f32.gmra.mrb[0].mxu0 %v1158
        %v1593 = vpop.f32.mrb[0].mxu0
        %v1594 = vadd.f32 %v1446, %v1593
        %v1595 = vpop.f32.mrb[0].mxu0
        %1596 = vmatprep.mubr.f32.mxu0 %v1168
        %1597 = vmatmul.mubr.f32.gmra.mrb[0].mxu0 %v1167
        %v1598 = vpop.f32.mrb[0].mxu0
        %v1599 = vadd.f32 %v1446, %v1598
        %v1600 = vpop.f32.mrb[0].mxu0
        %1601 = vmatprep.mubr.f32.mxu0 %v1177
        %1602 = vmatmul.mubr.f32.gmra.mrb[0].mxu0 %v1176
        %v1603 = vpop.f32.mrb[0].mxu0
        %v1604 = vadd.f32 %v1446, %v1603
        %v1605 = vpop.f32.mrb[0].mxu0
        %1606 = vmatprep.mubr.f32.mxu0 %v1186
        %1607 = vmatmul.mubr.f32.gmra.mrb[0].mxu0 %v1185
        %v1608 = vpop.f32.mrb[0].mxu0
        %v1609 = vadd.f32 %v1446, %v1608
        %v1610 = vpop.f32.mrb[0].mxu0
        %1611 = vmatprep.mubr.f32.mxu0 %v1195
        %1612 = vmatmul.mubr.f32.gmra.mrb[0].mxu0 %v1194
        %v1613 = vpop.f32.mrb[0].mxu0
        %v1614 = vadd.f32 %v1446, %v1613
        %v1615 = vpop.f32.mrb[0].mxu0
        %1616 = vmatprep.mubr.f32.mxu0 %v1204
        %1617 = vmatmul.mubr.f32.gmra.mrb[0].mxu0 %v1203
        %v1618 = vpop.f32.mrb[0].mxu0
        %v1619 = vadd.f32 %v1446, %v1618
        %v1620 = vpop.f32.mrb[0].mxu0
        %1621 = vmatprep.mubr.f32.mxu0 %v1213
        %1622 = vmatmul.mubr.f32.gmra.mrb[0].mxu0 %v1212
        %v1623 = vpop.f32.mrb[0].mxu0
        %v1624 = vadd.f32 %v1446, %v1623
        %v1625 = vpop.f32.mrb[0].mxu0
        %1626 = vmatprep.mubr.f32.mxu0 %v1222
        %1627 = vmatmul.mubr.f32.gmra.mrb[0].mxu0 %v1221
        %v1628 = vpop.f32.mrb[0].mxu0
        %v1629 = vadd.f32 %v1446, %v1628
        %v1630 = vpop.f32.mrb[0].mxu0
        %1631 = vmatprep.mubr.f32.mxu0 %v1231
        %1632 = vmatmul.mubr.f32.gmra.mrb[0].mxu0 %v1230
        %v1633 = vpop.f32.mrb[0].mxu0
        %v1634 = vadd.f32 %v1446, %v1633
        %v1635 = vpop.f32.mrb[0].mxu0
        %1636 = vmatprep.mubr.f32.mxu0 %v1240
        %1637 = vmatmul.mubr.f32.gmra.mrb[0].mxu0 %v1239
        %v1638 = vpop.f32.mrb[0].mxu0
        %v1639 = vadd.f32 %v1446, %v1638
        %v1640 = vpop.f32.mrb[0].mxu0
        %1641 = vmatprep.mubr.f32.mxu0 %v1249
        %1642 = vmatmul.mubr.f32.gmra.mrb[0].mxu0 %v1248
        %v1643 = vpop.f32.mrb[0].mxu0
        %v1644 = vadd.f32 %v1446, %v1643
        %v1645 = vpop.f32.mrb[0].mxu0
        %1646 = vmatprep.mubr.f32.mxu0 %v1258
        %1647 = vmatmul.mubr.f32.gmra.mrb[0].mxu0 %v1257
        %v1648 = vpop.f32.mrb[0].mxu0
        %v1649 = vadd.f32 %v1446, %v1648
        %v1650 = vpop.f32.mrb[0].mxu0
        %1651 = vmatprep.mubr.f32.mxu0 %v1267
        %1652 = vmatmul.mubr.f32.gmra.mrb[0].mxu0 %v1266
        %v1653 = vpop.f32.mrb[0].mxu0
        %v1654 = vadd.f32 %v1446, %v1653
        %v1655 = vpop.f32.mrb[0].mxu0
        %1656 = vmatprep.mubr.f32.mxu0 %v1276
        %1657 = vmatmul.mubr.f32.gmra.mrb[0].mxu0 %v1275
        %v1658 = vpop.f32.mrb[0].mxu0
        %v1659 = vadd.f32 %v1446, %v1658
        %v1660 = vpop.f32.mrb[0].mxu0
        %1661 = vmatprep.mubr.f32.mxu0 %v1285
        %1662 = vmatmul.mubr.f32.gmra.mrb[0].mxu0 %v1284
        %v1663 = vpop.f32.mrb[0].mxu0
        %v1664 = vadd.f32 %v1446, %v1663
        %v1665 = vpop.f32.mrb[0].mxu0
        %1666 = vmatprep.mubr.f32.mxu0 %v1294
        %1667 = vmatmul.mubr.f32.gmra.mrb[0].mxu0 %v1293
        %v1668 = vpop.f32.mrb[0].mxu0
        %v1669 = vadd.f32 %v1446, %v1668
        %v1670 = vpop.f32.mrb[0].mxu0
        %1671 = vdwg.mxu0
        %1672 = vmatprep.subr.mxu0 0.0
        %1673 = vmatpush1.msra.mxu0 %v1334
        %1674 = vmatprep.subr.mxu0 0.0
        %1675 = vmatpush1.msra.mxu0 %v1335
        %1676 = vmatprep.subr.mxu0 0.0
        %1677 = vmatpush1.msra.mxu0 %v1336
        %1678 = vmatprep.subr.mxu0 0.0
        %1679 = vmatpush1.msra.mxu0 %v1337
        %1680 = vmatprep.subr.mxu0 0.0
        %1681 = vmatpush1.msra.mxu0 %v1338
        %1682 = vmatprep.subr.mxu0 0.0
        %1683 = vmatpush1.msra.mxu0 %v1339
        %1684 = vmatprep.subr.mxu0 0.0
        %1685 = vmatpush1.msra.mxu0 %v1340
        %1686 = vmatprep.subr.mxu0 0.0
        %1687 = vmatpush1.msra.mxu0 %v1341
        %1688 = vmatprep.subr.mxu0 0.0
        %1689 = vmatpush1.msra.mxu0 %v1342
        %1690 = vmatprep.subr.mxu0 0.0
        %1691 = vmatpush1.msra.mxu0 %v1343
        %1692 = vmatprep.subr.mxu0 0.0
        %1693 = vmatpush1.msra.mxu0 %v1344
        %1694 = vmatprep.subr.mxu0 0.0
        %1695 = vmatpush1.msra.mxu0 %v1345
        %1696 = vmatprep.subr.mxu0 0.0
        %1697 = vmatpush1.msra.mxu0 %v1346
        %1698 = vmatprep.subr.mxu0 0.0
        %1699 = vmatpush1.msra.mxu0 %v1347
        %1700 = vmatprep.subr.mxu0 0.0
        %1701 = vmatpush1.msra.mxu0 %v1348
        %1702 = vmatprep.subr.mxu0 0.0
        %1703 = vmatpush1.msra.mxu0 %v1349
        %1704 = vmatprep.subr.mxu0 0.0
        %1705 = vmatpush1.msra.mxu0 %v1350
        %1706 = vmatprep.subr.mxu0 0.0
        %1707 = vmatpush1.msra.mxu0 %v1351
        %1708 = vmatprep.subr.mxu0 0.0
        %1709 = vmatpush1.msra.mxu0 %v1352
        %1710 = vmatprep.subr.mxu0 0.0
        %1711 = vmatpush1.msra.mxu0 %v1353
        %1712 = vmatprep.subr.mxu0 0.0
        %1713 = vmatpush1.msra.mxu0 %v1354
        %1714 = vmatprep.subr.mxu0 0.0
        %1715 = vmatpush1.msra.mxu0 %v1355
        %1716 = vmatprep.subr.mxu0 0.0
        %1717 = vmatpush1.msra.mxu0 %v1356
        %1718 = vmatprep.subr.mxu0 0.0
        %1719 = vmatpush1.msra.mxu0 %v1357
        %1720 = vmatprep.subr.mxu0 0.0
        %1721 = vmatpush1.msra.mxu0 %v1358
        %1722 = vmatprep.subr.mxu0 0.0
        %1723 = vmatpush1.msra.mxu0 %v1359
        %1724 = vmatprep.subr.mxu0 0.0
        %1725 = vmatpush1.msra.mxu0 %v1360
        %1726 = vmatprep.subr.mxu0 0.0
        %1727 = vmatpush1.msra.mxu0 %v1361
        %1728 = vmatprep.subr.mxu0 0.0
        %1729 = vmatpush1.msra.mxu0 %v1362
        %1730 = vmatprep.subr.mxu0 0.0
        %1731 = vmatpush1.msra.mxu0 %v1363
        %1732 = vmatprep.subr.mxu0 0.0
        %1733 = vmatpush1.msra.mxu0 %v1364
        %1734 = vmatprep.subr.mxu0 0.0
        %1735 = vmatpush1.msra.mxu0 %v1365
        %1736 = vmatprep.mubr.f32.mxu0 %v1017
        %1737 = vmatmul.mubr.f32.gmra.mrb[0].mxu0 %v1016
        %v1738 = vpop.f32.mrb[0].mxu0
        %v1739 = vadd.f32 %v1514, %v1738
        %v1740 = vpop.f32.mrb[0].mxu0
        %1741 = vmatprep.mubr.f32.mxu0 %v1026
        %1742 = vmatmul.mubr.f32.gmra.mrb[0].mxu0 %v1025
        %v1743 = vpop.f32.mrb[0].mxu0
        %v1744 = vadd.f32 %v1519, %v1743
        %v1745 = vpop.f32.mrb[0].mxu0
        %1746 = vmatprep.mubr.f32.mxu0 %v1035
        %1747 = vmatmul.mubr.f32.gmra.mrb[0].mxu0 %v1034
        %v1748 = vpop.f32.mrb[0].mxu0
        %v1749 = vadd.f32 %v1524, %v1748
        %v1750 = vpop.f32.mrb[0].mxu0
        %1751 = vmatprep.mubr.f32.mxu0 %v1044
        %1752 = vmatmul.mubr.f32.gmra.mrb[0].mxu0 %v1043
        %v1753 = vpop.f32.mrb[0].mxu0
        %v1754 = vadd.f32 %v1529, %v1753
        %v1755 = vpop.f32.mrb[0].mxu0
        %1756 = vmatprep.mubr.f32.mxu0 %v1053
        %1757 = vmatmul.mubr.f32.gmra.mrb[0].mxu0 %v1052
        %v1758 = vpop.f32.mrb[0].mxu0
        %v1759 = vadd.f32 %v1534, %v1758
        %v1760 = vpop.f32.mrb[0].mxu0
        %1761 = vmatprep.mubr.f32.mxu0 %v1062
        %1762 = vmatmul.mubr.f32.gmra.mrb[0].mxu0 %v1061
        %v1763 = vpop.f32.mrb[0].mxu0
        %v1764 = vadd.f32 %v1539, %v1763
        %v1765 = vpop.f32.mrb[0].mxu0
        %1766 = vmatprep.mubr.f32.mxu0 %v1071
        %1767 = vmatmul.mubr.f32.gmra.mrb[0].mxu0 %v1070
        %v1768 = vpop.f32.mrb[0].mxu0
        %v1769 = vadd.f32 %v1544, %v1768
        %v1770 = vpop.f32.mrb[0].mxu0
        %1771 = vmatprep.mubr.f32.mxu0 %v1080
        %1772 = vmatmul.mubr.f32.gmra.mrb[0].mxu0 %v1079
        %v1773 = vpop.f32.mrb[0].mxu0
        %v1774 = vadd.f32 %v1549, %v1773
        %v1775 = vpop.f32.mrb[0].mxu0
        %1776 = vmatprep.mubr.f32.mxu0 %v1089
        %1777 = vmatmul.mubr.f32.gmra.mrb[0].mxu0 %v1088
        %v1778 = vpop.f32.mrb[0].mxu0
        %v1779 = vadd.f32 %v1554, %v1778
        %v1780 = vpop.f32.mrb[0].mxu0
        %1781 = vmatprep.mubr.f32.mxu0 %v1098
        %1782 = vmatmul.mubr.f32.gmra.mrb[0].mxu0 %v1097
        %v1783 = vpop.f32.mrb[0].mxu0
        %v1784 = vadd.f32 %v1559, %v1783
        %v1785 = vpop.f32.mrb[0].mxu0
        %1786 = vmatprep.mubr.f32.mxu0 %v1107
        %1787 = vmatmul.mubr.f32.gmra.mrb[0].mxu0 %v1106
        %v1788 = vpop.f32.mrb[0].mxu0
        %v1789 = vadd.f32 %v1564, %v1788
        %v1790 = vpop.f32.mrb[0].mxu0
        %1791 = vmatprep.mubr.f32.mxu0 %v1116
        %1792 = vmatmul.mubr.f32.gmra.mrb[0].mxu0 %v1115
        %v1793 = vpop.f32.mrb[0].mxu0
        %v1794 = vadd.f32 %v1569, %v1793
        %v1795 = vpop.f32.mrb[0].mxu0
        %1796 = vmatprep.mubr.f32.mxu0 %v1125
        %1797 = vmatmul.mubr.f32.gmra.mrb[0].mxu0 %v1124
        %v1798 = vpop.f32.mrb[0].mxu0
        %v1799 = vadd.f32 %v1574, %v1798
        %v1800 = vpop.f32.mrb[0].mxu0
        %1801 = vmatprep.mubr.f32.mxu0 %v1134
        %1802 = vmatmul.mubr.f32.gmra.mrb[0].mxu0 %v1133
        %v1803 = vpop.f32.mrb[0].mxu0
        %v1804 = vadd.f32 %v1579, %v1803
        %v1805 = vpop.f32.mrb[0].mxu0
        %1806 = vmatprep.mubr.f32.mxu0 %v1143
        %1807 = vmatmul.mubr.f32.gmra.mrb[0].mxu0 %v1142
        %v1808 = vpop.f32.mrb[0].mxu0
        %v1809 = vadd.f32 %v1584, %v1808
        %v1810 = vpop.f32.mrb[0].mxu0
        %1811 = vmatprep.mubr.f32.mxu0 %v1152
        %1812 = vmatmul.mubr.f32.gmra.mrb[0].mxu0 %v1151
        %v1813 = vpop.f32.mrb[0].mxu0
        %v1814 = vadd.f32 %v1589, %v1813
        %v1815 = vpop.f32.mrb[0].mxu0
        %1816 = vmatprep.mubr.f32.mxu0 %v1161
        %1817 = vmatmul.mubr.f32.gmra.mrb[0].mxu0 %v1160
        %v1818 = vpop.f32.mrb[0].mxu0
        %v1819 = vadd.f32 %v1594, %v1818
        %v1820 = vpop.f32.mrb[0].mxu0
        %1821 = vmatprep.mubr.f32.mxu0 %v1170
        %1822 = vmatmul.mubr.f32.gmra.mrb[0].mxu0 %v1169
        %v1823 = vpop.f32.mrb[0].mxu0
        %v1824 = vadd.f32 %v1599, %v1823
        %v1825 = vpop.f32.mrb[0].mxu0
        %1826 = vmatprep.mubr.f32.mxu0 %v1179
        %1827 = vmatmul.mubr.f32.gmra.mrb[0].mxu0 %v1178
        %v1828 = vpop.f32.mrb[0].mxu0
        %v1829 = vadd.f32 %v1604, %v1828
        %v1830 = vpop.f32.mrb[0].mxu0
        %1831 = vmatprep.mubr.f32.mxu0 %v1188
        %1832 = vmatmul.mubr.f32.gmra.mrb[0].mxu0 %v1187
        %v1833 = vpop.f32.mrb[0].mxu0
        %v1834 = vadd.f32 %v1609, %v1833
        %v1835 = vpop.f32.mrb[0].mxu0
        %1836 = vmatprep.mubr.f32.mxu0 %v1197
        %1837 = vmatmul.mubr.f32.gmra.mrb[0].mxu0 %v1196
        %v1838 = vpop.f32.mrb[0].mxu0
        %v1839 = vadd.f32 %v1614, %v1838
        %v1840 = vpop.f32.mrb[0].mxu0
        %1841 = vmatprep.mubr.f32.mxu0 %v1206
        %1842 = vmatmul.mubr.f32.gmra.mrb[0].mxu0 %v1205
        %v1843 = vpop.f32.mrb[0].mxu0
        %v1844 = vadd.f32 %v1619, %v1843
        %v1845 = vpop.f32.mrb[0].mxu0
        %1846 = vmatprep.mubr.f32.mxu0 %v1215
        %1847 = vmatmul.mubr.f32.gmra.mrb[0].mxu0 %v1214
        %v1848 = vpop.f32.mrb[0].mxu0
        %v1849 = vadd.f32 %v1624, %v1848
        %v1850 = vpop.f32.mrb[0].mxu0
        %1851 = vmatprep.mubr.f32.mxu0 %v1224
        %1852 = vmatmul.mubr.f32.gmra.mrb[0].mxu0 %v1223
        %v1853 = vpop.f32.mrb[0].mxu0
        %v1854 = vadd.f32 %v1629, %v1853
        %v1855 = vpop.f32.mrb[0].mxu0
        %1856 = vmatprep.mubr.f32.mxu0 %v1233
        %1857 = vmatmul.mubr.f32.gmra.mrb[0].mxu0 %v1232
        %v1858 = vpop.f32.mrb[0].mxu0
        %v1859 = vadd.f32 %v1634, %v1858
        %v1860 = vpop.f32.mrb[0].mxu0
        %1861 = vmatprep.mubr.f32.mxu0 %v1242
        %1862 = vmatmul.mubr.f32.gmra.mrb[0].mxu0 %v1241
        %v1863 = vpop.f32.mrb[0].mxu0
        %v1864 = vadd.f32 %v1639, %v1863
        %v1865 = vpop.f32.mrb[0].mxu0
        %1866 = vmatprep.mubr.f32.mxu0 %v1251
        %1867 = vmatmul.mubr.f32.gmra.mrb[0].mxu0 %v1250
        %v1868 = vpop.f32.mrb[0].mxu0
        %v1869 = vadd.f32 %v1644, %v1868
        %v1870 = vpop.f32.mrb[0].mxu0
        %1871 = vmatprep.mubr.f32.mxu0 %v1260
        %1872 = vmatmul.mubr.f32.gmra.mrb[0].mxu0 %v1259
        %v1873 = vpop.f32.mrb[0].mxu0
        %v1874 = vadd.f32 %v1649, %v1873
        %v1875 = vpop.f32.mrb[0].mxu0
        %1876 = vmatprep.mubr.f32.mxu0 %v1269
        %1877 = vmatmul.mubr.f32.gmra.mrb[0].mxu0 %v1268
        %v1878 = vpop.f32.mrb[0].mxu0
        %v1879 = vadd.f32 %v1654, %v1878
        %v1880 = vpop.f32.mrb[0].mxu0
        %1881 = vmatprep.mubr.f32.mxu0 %v1278
        %1882 = vmatmul.mubr.f32.gmra.mrb[0].mxu0 %v1277
        %v1883 = vpop.f32.mrb[0].mxu0
        %v1884 = vadd.f32 %v1659, %v1883
        %v1885 = vpop.f32.mrb[0].mxu0
        %1886 = vmatprep.mubr.f32.mxu0 %v1287
        %1887 = vmatmul.mubr.f32.gmra.mrb[0].mxu0 %v1286
        %v1888 = vpop.f32.mrb[0].mxu0
        %v1889 = vadd.f32 %v1664, %v1888
        %v1890 = vpop.f32.mrb[0].mxu0
        %1891 = vmatprep.mubr.f32.mxu0 %v1296
        %1892 = vmatmul.mubr.f32.gmra.mrb[0].mxu0 %v1295
        %v1893 = vpop.f32.mrb[0].mxu0
        %v1894 = vadd.f32 %v1669, %v1893
        %v1895 = vpop.f32.mrb[0].mxu0
        %1896 = vdwg.mxu0
        %1897 = vmatprep.subr.mxu0 0.0
        %1898 = vmatpush1.msra.mxu0 %v1366
        %1899 = vmatprep.subr.mxu0 0.0
        %1900 = vmatpush1.msra.mxu0 %v1367
        %1901 = vmatprep.subr.mxu0 0.0
        %1902 = vmatpush1.msra.mxu0 %v1368
        %1903 = vmatprep.subr.mxu0 0.0
        %1904 = vmatpush1.msra.mxu0 %v1369
        %1905 = vmatprep.subr.mxu0 0.0
        %1906 = vmatpush1.msra.mxu0 %v1370
        %1907 = vmatprep.subr.mxu0 0.0
        %1908 = vmatpush1.msra.mxu0 %v1371
        %1909 = vmatprep.subr.mxu0 0.0
        %1910 = vmatpush1.msra.mxu0 %v1372
        %1911 = vmatprep.subr.mxu0 0.0
        %1912 = vmatpush1.msra.mxu0 %v1373
        %1913 = vmatprep.subr.mxu0 0.0
        %1914 = vmatpush1.msra.mxu0 %v1374
        %1915 = vmatprep.subr.mxu0 0.0
        %1916 = vmatpush1.msra.mxu0 %v1375
        %1917 = vmatprep.subr.mxu0 0.0
        %1918 = vmatpush1.msra.mxu0 %v1376
        %1919 = vmatprep.subr.mxu0 0.0
        %1920 = vmatpush1.msra.mxu0 %v1377
        %1921 = vmatprep.subr.mxu0 0.0
        %1922 = vmatpush1.msra.mxu0 %v1378
        %1923 = vmatprep.subr.mxu0 0.0
        %1924 = vmatpush1.msra.mxu0 %v1379
        %1925 = vmatprep.subr.mxu0 0.0
        %1926 = vmatpush1.msra.mxu0 %v1380
        %1927 = vmatprep.subr.mxu0 0.0
        %1928 = vmatpush1.msra.mxu0 %v1381
        %1929 = vmatprep.subr.mxu0 0.0
        %1930 = vmatpush1.msra.mxu0 %v1382
        %1931 = vmatprep.subr.mxu0 0.0
        %1932 = vmatpush1.msra.mxu0 %v1383
        %1933 = vmatprep.subr.mxu0 0.0
        %1934 = vmatpush1.msra.mxu0 %v1384
        %1935 = vmatprep.subr.mxu0 0.0
        %1936 = vmatpush1.msra.mxu0 %v1385
        %1937 = vmatprep.subr.mxu0 0.0
        %1938 = vmatpush1.msra.mxu0 %v1386
        %1939 = vmatprep.subr.mxu0 0.0
        %1940 = vmatpush1.msra.mxu0 %v1387
        %1941 = vmatprep.subr.mxu0 0.0
        %1942 = vmatpush1.msra.mxu0 %v1388
        %1943 = vmatprep.subr.mxu0 0.0
        %1944 = vmatpush1.msra.mxu0 %v1389
        %1945 = vmatprep.subr.mxu0 0.0
        %1946 = vmatpush1.msra.mxu0 %v1390
        %1947 = vmatprep.subr.mxu0 0.0
        %1948 = vmatpush1.msra.mxu0 %v1391
        %1949 = vmatprep.subr.mxu0 0.0
        %1950 = vmatpush1.msra.mxu0 %v1392
        %1951 = vmatprep.subr.mxu0 0.0
        %1952 = vmatpush1.msra.mxu0 %v1393
        %1953 = vmatprep.subr.mxu0 0.0
        %1954 = vmatpush1.msra.mxu0 %v1394
        %1955 = vmatprep.subr.mxu0 0.0
        %1956 = vmatpush1.msra.mxu0 %v1395
        %1957 = vmatprep.subr.mxu0 0.0
        %1958 = vmatpush1.msra.mxu0 %v1396
        %1959 = vmatprep.subr.mxu0 0.0
        %1960 = vmatpush1.msra.mxu0 %v1397
        %1961 = vmatprep.mubr.f32.mxu0 %v1019
        %1962 = vmatmul.mubr.f32.gmra.mrb[0].mxu0 %v1018
        %v1963 = vpop.f32.mrb[0].mxu0
        %v1964 = vadd.f32 %v1739, %v1963
        %v1965 = vpop.f32.mrb[0].mxu0
        %1966 = vmatprep.mubr.f32.mxu0 %v1028
        %1967 = vmatmul.mubr.f32.gmra.mrb[0].mxu0 %v1027
        %v1968 = vpop.f32.mrb[0].mxu0
        %v1969 = vadd.f32 %v1744, %v1968
        %v1970 = vpop.f32.mrb[0].mxu0
        %1971 = vmatprep.mubr.f32.mxu0 %v1037
        %1972 = vmatmul.mubr.f32.gmra.mrb[0].mxu0 %v1036
        %v1973 = vpop.f32.mrb[0].mxu0
        %v1974 = vadd.f32 %v1749, %v1973
        %v1975 = vpop.f32.mrb[0].mxu0
        %1976 = vmatprep.mubr.f32.mxu0 %v1046
        %1977 = vmatmul.mubr.f32.gmra.mrb[0].mxu0 %v1045
        %v1978 = vpop.f32.mrb[0].mxu0
        %v1979 = vadd.f32 %v1754, %v1978
        %v1980 = vpop.f32.mrb[0].mxu0
        %1981 = vmatprep.mubr.f32.mxu0 %v1055
        %1982 = vmatmul.mubr.f32.gmra.mrb[0].mxu0 %v1054
        %v1983 = vpop.f32.mrb[0].mxu0
        %v1984 = vadd.f32 %v1759, %v1983
        %v1985 = vpop.f32.mrb[0].mxu0
        %1986 = vmatprep.mubr.f32.mxu0 %v1064
        %1987 = vmatmul.mubr.f32.gmra.mrb[0].mxu0 %v1063
        %v1988 = vpop.f32.mrb[0].mxu0
        %v1989 = vadd.f32 %v1764, %v1988
        %v1990 = vpop.f32.mrb[0].mxu0
        %1991 = vmatprep.mubr.f32.mxu0 %v1073
        %1992 = vmatmul.mubr.f32.gmra.mrb[0].mxu0 %v1072
        %v1993 = vpop.f32.mrb[0].mxu0
        %v1994 = vadd.f32 %v1769, %v1993
        %v1995 = vpop.f32.mrb[0].mxu0
        %1996 = vmatprep.mubr.f32.mxu0 %v1082
        %1997 = vmatmul.mubr.f32.gmra.mrb[0].mxu0 %v1081
        %v1998 = vpop.f32.mrb[0].mxu0
        %v1999 = vadd.f32 %v1774, %v1998
        %v2000 = vpop.f32.mrb[0].mxu0
        %2001 = vmatprep.mubr.f32.mxu0 %v1091
        %2002 = vmatmul.mubr.f32.gmra.mrb[0].mxu0 %v1090
        %v2003 = vpop.f32.mrb[0].mxu0
        %v2004 = vadd.f32 %v1779, %v2003
        %v2005 = vpop.f32.mrb[0].mxu0
        %2006 = vmatprep.mubr.f32.mxu0 %v1100
        %2007 = vmatmul.mubr.f32.gmra.mrb[0].mxu0 %v1099
        %v2008 = vpop.f32.mrb[0].mxu0
        %v2009 = vadd.f32 %v1784, %v2008
        %v2010 = vpop.f32.mrb[0].mxu0
        %2011 = vmatprep.mubr.f32.mxu0 %v1109
        %2012 = vmatmul.mubr.f32.gmra.mrb[0].mxu0 %v1108
        %v2013 = vpop.f32.mrb[0].mxu0
        %v2014 = vadd.f32 %v1789, %v2013
        %v2015 = vpop.f32.mrb[0].mxu0
        %2016 = vmatprep.mubr.f32.mxu0 %v1118
        %2017 = vmatmul.mubr.f32.gmra.mrb[0].mxu0 %v1117
        %v2018 = vpop.f32.mrb[0].mxu0
        %v2019 = vadd.f32 %v1794, %v2018
        %v2020 = vpop.f32.mrb[0].mxu0
        %2021 = vmatprep.mubr.f32.mxu0 %v1127
        %2022 = vmatmul.mubr.f32.gmra.mrb[0].mxu0 %v1126
        %v2023 = vpop.f32.mrb[0].mxu0
        %v2024 = vadd.f32 %v1799, %v2023
        %v2025 = vpop.f32.mrb[0].mxu0
        %2026 = vmatprep.mubr.f32.mxu0 %v1136
        %2027 = vmatmul.mubr.f32.gmra.mrb[0].mxu0 %v1135
        %v2028 = vpop.f32.mrb[0].mxu0
        %v2029 = vadd.f32 %v1804, %v2028
        %v2030 = vpop.f32.mrb[0].mxu0
        %2031 = vmatprep.mubr.f32.mxu0 %v1145
        %2032 = vmatmul.mubr.f32.gmra.mrb[0].mxu0 %v1144
        %v2033 = vpop.f32.mrb[0].mxu0
        %v2034 = vadd.f32 %v1809, %v2033
        %v2035 = vpop.f32.mrb[0].mxu0
        %2036 = vmatprep.mubr.f32.mxu0 %v1154
        %2037 = vmatmul.mubr.f32.gmra.mrb[0].mxu0 %v1153
        %v2038 = vpop.f32.mrb[0].mxu0
        %v2039 = vadd.f32 %v1814, %v2038
        %v2040 = vpop.f32.mrb[0].mxu0
        %2041 = vmatprep.mubr.f32.mxu0 %v1163
        %2042 = vmatmul.mubr.f32.gmra.mrb[0].mxu0 %v1162
        %v2043 = vpop.f32.mrb[0].mxu0
        %v2044 = vadd.f32 %v1819, %v2043
        %v2045 = vpop.f32.mrb[0].mxu0
        %2046 = vmatprep.mubr.f32.mxu0 %v1172
        %2047 = vmatmul.mubr.f32.gmra.mrb[0].mxu0 %v1171
        %v2048 = vpop.f32.mrb[0].mxu0
        %v2049 = vadd.f32 %v1824, %v2048
        %v2050 = vpop.f32.mrb[0].mxu0
        %2051 = vmatprep.mubr.f32.mxu0 %v1181
        %2052 = vmatmul.mubr.f32.gmra.mrb[0].mxu0 %v1180
        %v2053 = vpop.f32.mrb[0].mxu0
        %v2054 = vadd.f32 %v1829, %v2053
        %v2055 = vpop.f32.mrb[0].mxu0
        %2056 = vmatprep.mubr.f32.mxu0 %v1190
        %2057 = vmatmul.mubr.f32.gmra.mrb[0].mxu0 %v1189
        %v2058 = vpop.f32.mrb[0].mxu0
        %v2059 = vadd.f32 %v1834, %v2058
        %v2060 = vpop.f32.mrb[0].mxu0
        %2061 = vmatprep.mubr.f32.mxu0 %v1199
        %2062 = vmatmul.mubr.f32.gmra.mrb[0].mxu0 %v1198
        %v2063 = vpop.f32.mrb[0].mxu0
        %v2064 = vadd.f32 %v1839, %v2063
        %v2065 = vpop.f32.mrb[0].mxu0
        %2066 = vmatprep.mubr.f32.mxu0 %v1208
        %2067 = vmatmul.mubr.f32.gmra.mrb[0].mxu0 %v1207
        %v2068 = vpop.f32.mrb[0].mxu0
        %v2069 = vadd.f32 %v1844, %v2068
        %v2070 = vpop.f32.mrb[0].mxu0
        %2071 = vmatprep.mubr.f32.mxu0 %v1217
        %2072 = vmatmul.mubr.f32.gmra.mrb[0].mxu0 %v1216
        %v2073 = vpop.f32.mrb[0].mxu0
        %v2074 = vadd.f32 %v1849, %v2073
        %v2075 = vpop.f32.mrb[0].mxu0
        %2076 = vmatprep.mubr.f32.mxu0 %v1226
        %2077 = vmatmul.mubr.f32.gmra.mrb[0].mxu0 %v1225
        %v2078 = vpop.f32.mrb[0].mxu0
        %v2079 = vadd.f32 %v1854, %v2078
        %v2080 = vpop.f32.mrb[0].mxu0
        %2081 = vmatprep.mubr.f32.mxu0 %v1235
        %2082 = vmatmul.mubr.f32.gmra.mrb[0].mxu0 %v1234
        %v2083 = vpop.f32.mrb[0].mxu0
        %v2084 = vadd.f32 %v1859, %v2083
        %v2085 = vpop.f32.mrb[0].mxu0
        %2086 = vmatprep.mubr.f32.mxu0 %v1244
        %2087 = vmatmul.mubr.f32.gmra.mrb[0].mxu0 %v1243
        %v2088 = vpop.f32.mrb[0].mxu0
        %v2089 = vadd.f32 %v1864, %v2088
        %v2090 = vpop.f32.mrb[0].mxu0
        %2091 = vmatprep.mubr.f32.mxu0 %v1253
        %2092 = vmatmul.mubr.f32.gmra.mrb[0].mxu0 %v1252
        %v2093 = vpop.f32.mrb[0].mxu0
        %v2094 = vadd.f32 %v1869, %v2093
        %v2095 = vpop.f32.mrb[0].mxu0
        %2096 = vmatprep.mubr.f32.mxu0 %v1262
        %2097 = vmatmul.mubr.f32.gmra.mrb[0].mxu0 %v1261
        %v2098 = vpop.f32.mrb[0].mxu0
        %v2099 = vadd.f32 %v1874, %v2098
        %v2100 = vpop.f32.mrb[0].mxu0
        %2101 = vmatprep.mubr.f32.mxu0 %v1271
        %2102 = vmatmul.mubr.f32.gmra.mrb[0].mxu0 %v1270
        %v2103 = vpop.f32.mrb[0].mxu0
        %v2104 = vadd.f32 %v1879, %v2103
        %v2105 = vpop.f32.mrb[0].mxu0
        %2106 = vmatprep.mubr.f32.mxu0 %v1280
        %2107 = vmatmul.mubr.f32.gmra.mrb[0].mxu0 %v1279
        %v2108 = vpop.f32.mrb[0].mxu0
        %v2109 = vadd.f32 %v1884, %v2108
        %v2110 = vpop.f32.mrb[0].mxu0
        %2111 = vmatprep.mubr.f32.mxu0 %v1289
        %2112 = vmatmul.mubr.f32.gmra.mrb[0].mxu0 %v1288
        %v2113 = vpop.f32.mrb[0].mxu0
        %v2114 = vadd.f32 %v1889, %v2113
        %v2115 = vpop.f32.mrb[0].mxu0
        %2116 = vmatprep.mubr.f32.mxu0 %v1298
        %2117 = vmatmul.mubr.f32.gmra.mrb[0].mxu0 %v1297
        %v2118 = vpop.f32.mrb[0].mxu0
        %v2119 = vadd.f32 %v1894, %v2118
        %v2120 = vpop.f32.mrb[0].mxu0
        %2121 = vdwg.mxu0
        %2122 = vmatprep.subr.mxu0 0.0
        %2123 = vmatpush1.msra.mxu0 %v1398
        %2124 = vmatprep.subr.mxu0 0.0
        %2125 = vmatpush1.msra.mxu0 %v1399
        %2126 = vmatprep.subr.mxu0 0.0
        %2127 = vmatpush1.msra.mxu0 %v1400
        %2128 = vmatprep.subr.mxu0 0.0
        %2129 = vmatpush1.msra.mxu0 %v1401
        %2130 = vmatprep.subr.mxu0 0.0
        %2131 = vmatpush1.msra.mxu0 %v1402
        %2132 = vmatprep.subr.mxu0 0.0
        %2133 = vmatpush1.msra.mxu0 %v1403
        %2134 = vmatprep.subr.mxu0 0.0
        %2135 = vmatpush1.msra.mxu0 %v1404
        %2136 = vmatprep.subr.mxu0 0.0
        %2137 = vmatpush1.msra.mxu0 %v1405
        %2138 = vmatprep.subr.mxu0 0.0
        %2139 = vmatpush1.msra.mxu0 %v1406
        %2140 = vmatprep.subr.mxu0 0.0
        %2141 = vmatpush1.msra.mxu0 %v1407
        %2142 = vmatprep.subr.mxu0 0.0
        %2143 = vmatpush1.msra.mxu0 %v1408
        %2144 = vmatprep.subr.mxu0 0.0
        %2145 = vmatpush1.msra.mxu0 %v1409
        %2146 = vmatprep.subr.mxu0 0.0
        %2147 = vmatpush1.msra.mxu0 %v1410
        %2148 = vmatprep.subr.mxu0 0.0
        %2149 = vmatpush1.msra.mxu0 %v1411
        %2150 = vmatprep.subr.mxu0 0.0
        %2151 = vmatpush1.msra.mxu0 %v1412
        %2152 = vmatprep.subr.mxu0 0.0
        %2153 = vmatpush1.msra.mxu0 %v1413
        %2154 = vmatprep.subr.mxu0 0.0
        %2155 = vmatpush1.msra.mxu0 %v1414
        %2156 = vmatprep.subr.mxu0 0.0
        %2157 = vmatpush1.msra.mxu0 %v1415
        %2158 = vmatprep.subr.mxu0 0.0
        %2159 = vmatpush1.msra.mxu0 %v1416
        %2160 = vmatprep.subr.mxu0 0.0
        %2161 = vmatpush1.msra.mxu0 %v1417
        %2162 = vmatprep.subr.mxu0 0.0
        %2163 = vmatpush1.msra.mxu0 %v1418
        %2164 = vmatprep.subr.mxu0 0.0
        %2165 = vmatpush1.msra.mxu0 %v1419
        %2166 = vmatprep.subr.mxu0 0.0
        %2167 = vmatpush1.msra.mxu0 %v1420
        %2168 = vmatprep.subr.mxu0 0.0
        %2169 = vmatpush1.msra.mxu0 %v1421
        %2170 = vmatprep.subr.mxu0 0.0
        %2171 = vmatpush1.msra.mxu0 %v1422
        %2172 = vmatprep.subr.mxu0 0.0
        %2173 = vmatpush1.msra.mxu0 %v1423
        %2174 = vmatprep.subr.mxu0 0.0
        %2175 = vmatpush1.msra.mxu0 %v1424
        %2176 = vmatprep.subr.mxu0 0.0
        %2177 = vmatpush1.msra.mxu0 %v1425
        %2178 = vmatprep.subr.mxu0 0.0
        %2179 = vmatpush1.msra.mxu0 %v1426
        %2180 = vmatprep.subr.mxu0 0.0
        %2181 = vmatpush1.msra.mxu0 %v1427
        %2182 = vmatprep.subr.mxu0 0.0
        %2183 = vmatpush1.msra.mxu0 %v1428
        %2184 = vmatprep.subr.mxu0 0.0
        %2185 = vmatpush1.msra.mxu0 %v1429
        %2186 = vmatprep.mubr.f32.mxu0 %v1021
        %2187 = vmatmul.mubr.f32.gmra.mrb[0].mxu0 %v1020
        %v2188 = vpop.f32.mrb[0].mxu0
        %v2189 = vadd.f32 %v1964, %v2188
        %v2190 = vpop.f32.mrb[0].mxu0
        %2191 = vmatprep.mubr.f32.mxu0 %v1030
        %2192 = vmatmul.mubr.f32.gmra.mrb[0].mxu0 %v1029
        %v2193 = vpop.f32.mrb[0].mxu0
        %v2194 = vadd.f32 %v1969, %v2193
        %v2195 = vpop.f32.mrb[0].mxu0
        %2196 = vmatprep.mubr.f32.mxu0 %v1039
        %2197 = vmatmul.mubr.f32.gmra.mrb[0].mxu0 %v1038
        %v2198 = vpop.f32.mrb[0].mxu0
        %v2199 = vadd.f32 %v1974, %v2198
        %v2200 = vpop.f32.mrb[0].mxu0
        %2201 = vmatprep.mubr.f32.mxu0 %v1048
        %2202 = vmatmul.mubr.f32.gmra.mrb[0].mxu0 %v1047
        %v2203 = vpop.f32.mrb[0].mxu0
        %v2204 = vadd.f32 %v1979, %v2203
        %v2205 = vpop.f32.mrb[0].mxu0
        %2206 = vmatprep.mubr.f32.mxu0 %v1057
        %2207 = vmatmul.mubr.f32.gmra.mrb[0].mxu0 %v1056
        %v2208 = vpop.f32.mrb[0].mxu0
        %v2209 = vadd.f32 %v1984, %v2208
        %v2210 = vpop.f32.mrb[0].mxu0
        %2211 = vmatprep.mubr.f32.mxu0 %v1066
        %2212 = vmatmul.mubr.f32.gmra.mrb[0].mxu0 %v1065
        %v2213 = vpop.f32.mrb[0].mxu0
        %v2214 = vadd.f32 %v1989, %v2213
        %v2215 = vpop.f32.mrb[0].mxu0
        %2216 = vmatprep.mubr.f32.mxu0 %v1075
        %2217 = vmatmul.mubr.f32.gmra.mrb[0].mxu0 %v1074
        %v2218 = vpop.f32.mrb[0].mxu0
        %v2219 = vadd.f32 %v1994, %v2218
        %v2220 = vpop.f32.mrb[0].mxu0
        %2221 = vmatprep.mubr.f32.mxu0 %v1084
        %2222 = vmatmul.mubr.f32.gmra.mrb[0].mxu0 %v1083
        %v2223 = vpop.f32.mrb[0].mxu0
        %v2224 = vadd.f32 %v1999, %v2223
        %v2225 = vpop.f32.mrb[0].mxu0
        %2226 = vmatprep.mubr.f32.mxu0 %v1093
        %2227 = vmatmul.mubr.f32.gmra.mrb[0].mxu0 %v1092
        %v2228 = vpop.f32.mrb[0].mxu0
        %v2229 = vadd.f32 %v2004, %v2228
        %v2230 = vpop.f32.mrb[0].mxu0
        %2231 = vmatprep.mubr.f32.mxu0 %v1102
        %2232 = vmatmul.mubr.f32.gmra.mrb[0].mxu0 %v1101
        %v2233 = vpop.f32.mrb[0].mxu0
        %v2234 = vadd.f32 %v2009, %v2233
        %v2235 = vpop.f32.mrb[0].mxu0
        %2236 = vmatprep.mubr.f32.mxu0 %v1111
        %2237 = vmatmul.mubr.f32.gmra.mrb[0].mxu0 %v1110
        %v2238 = vpop.f32.mrb[0].mxu0
        %v2239 = vadd.f32 %v2014, %v2238
        %v2240 = vpop.f32.mrb[0].mxu0
        %2241 = vmatprep.mubr.f32.mxu0 %v1120
        %2242 = vmatmul.mubr.f32.gmra.mrb[0].mxu0 %v1119
        %v2243 = vpop.f32.mrb[0].mxu0
        %v2244 = vadd.f32 %v2019, %v2243
        %v2245 = vpop.f32.mrb[0].mxu0
        %2246 = vmatprep.mubr.f32.mxu0 %v1129
        %2247 = vmatmul.mubr.f32.gmra.mrb[0].mxu0 %v1128
        %v2248 = vpop.f32.mrb[0].mxu0
        %v2249 = vadd.f32 %v2024, %v2248
        %v2250 = vpop.f32.mrb[0].mxu0
        %2251 = vmatprep.mubr.f32.mxu0 %v1138
        %2252 = vmatmul.mubr.f32.gmra.mrb[0].mxu0 %v1137
        %v2253 = vpop.f32.mrb[0].mxu0
        %v2254 = vadd.f32 %v2029, %v2253
        %v2255 = vpop.f32.mrb[0].mxu0
        %2256 = vmatprep.mubr.f32.mxu0 %v1147
        %2257 = vmatmul.mubr.f32.gmra.mrb[0].mxu0 %v1146
        %v2258 = vpop.f32.mrb[0].mxu0
        %v2259 = vadd.f32 %v2034, %v2258
        %v2260 = vpop.f32.mrb[0].mxu0
        %2261 = vmatprep.mubr.f32.mxu0 %v1156
        %2262 = vmatmul.mubr.f32.gmra.mrb[0].mxu0 %v1155
        %v2263 = vpop.f32.mrb[0].mxu0
        %v2264 = vadd.f32 %v2039, %v2263
        %v2265 = vpop.f32.mrb[0].mxu0
        %2266 = vmatprep.mubr.f32.mxu0 %v1165
        %2267 = vmatmul.mubr.f32.gmra.mrb[0].mxu0 %v1164
        %v2268 = vpop.f32.mrb[0].mxu0
        %v2269 = vadd.f32 %v2044, %v2268
        %v2270 = vpop.f32.mrb[0].mxu0
        %2271 = vmatprep.mubr.f32.mxu0 %v1174
        %2272 = vmatmul.mubr.f32.gmra.mrb[0].mxu0 %v1173
        %v2273 = vpop.f32.mrb[0].mxu0
        %v2274 = vadd.f32 %v2049, %v2273
        %v2275 = vpop.f32.mrb[0].mxu0
        %2276 = vmatprep.mubr.f32.mxu0 %v1183
        %2277 = vmatmul.mubr.f32.gmra.mrb[0].mxu0 %v1182
        %v2278 = vpop.f32.mrb[0].mxu0
        %v2279 = vadd.f32 %v2054, %v2278
        %v2280 = vpop.f32.mrb[0].mxu0
        %2281 = vmatprep.mubr.f32.mxu0 %v1192
        %2282 = vmatmul.mubr.f32.gmra.mrb[0].mxu0 %v1191
        %v2283 = vpop.f32.mrb[0].mxu0
        %v2284 = vadd.f32 %v2059, %v2283
        %v2285 = vpop.f32.mrb[0].mxu0
        %2286 = vmatprep.mubr.f32.mxu0 %v1201
        %2287 = vmatmul.mubr.f32.gmra.mrb[0].mxu0 %v1200
        %v2288 = vpop.f32.mrb[0].mxu0
        %v2289 = vadd.f32 %v2064, %v2288
        %v2290 = vpop.f32.mrb[0].mxu0
        %2291 = vmatprep.mubr.f32.mxu0 %v1210
        %2292 = vmatmul.mubr.f32.gmra.mrb[0].mxu0 %v1209
        %v2293 = vpop.f32.mrb[0].mxu0
        %v2294 = vadd.f32 %v2069, %v2293
        %v2295 = vpop.f32.mrb[0].mxu0
        %2296 = vmatprep.mubr.f32.mxu0 %v1219
        %2297 = vmatmul.mubr.f32.gmra.mrb[0].mxu0 %v1218
        %v2298 = vpop.f32.mrb[0].mxu0
        %v2299 = vadd.f32 %v2074, %v2298
        %v2300 = vpop.f32.mrb[0].mxu0
        %2301 = vmatprep.mubr.f32.mxu0 %v1228
        %2302 = vmatmul.mubr.f32.gmra.mrb[0].mxu0 %v1227
        %v2303 = vpop.f32.mrb[0].mxu0
        %v2304 = vadd.f32 %v2079, %v2303
        %v2305 = vpop.f32.mrb[0].mxu0
        %2306 = vmatprep.mubr.f32.mxu0 %v1237
        %2307 = vmatmul.mubr.f32.gmra.mrb[0].mxu0 %v1236
        %v2308 = vpop.f32.mrb[0].mxu0
        %v2309 = vadd.f32 %v2084, %v2308
        %v2310 = vpop.f32.mrb[0].mxu0
        %2311 = vmatprep.mubr.f32.mxu0 %v1246
        %2312 = vmatmul.mubr.f32.gmra.mrb[0].mxu0 %v1245
        %v2313 = vpop.f32.mrb[0].mxu0
        %v2314 = vadd.f32 %v2089, %v2313
        %v2315 = vpop.f32.mrb[0].mxu0
        %2316 = vmatprep.mubr.f32.mxu0 %v1255
        %2317 = vmatmul.mubr.f32.gmra.mrb[0].mxu0 %v1254
        %v2318 = vpop.f32.mrb[0].mxu0
        %v2319 = vadd.f32 %v2094, %v2318
        %v2320 = vpop.f32.mrb[0].mxu0
        %2321 = vmatprep.mubr.f32.mxu0 %v1264
        %2322 = vmatmul.mubr.f32.gmra.mrb[0].mxu0 %v1263
        %v2323 = vpop.f32.mrb[0].mxu0
        %v2324 = vadd.f32 %v2099, %v2323
        %v2325 = vpop.f32.mrb[0].mxu0
        %2326 = vmatprep.mubr.f32.mxu0 %v1273
        %2327 = vmatmul.mubr.f32.gmra.mrb[0].mxu0 %v1272
        %v2328 = vpop.f32.mrb[0].mxu0
        %v2329 = vadd.f32 %v2104, %v2328
        %v2330 = vpop.f32.mrb[0].mxu0
        %2331 = vmatprep.mubr.f32.mxu0 %v1282
        %2332 = vmatmul.mubr.f32.gmra.mrb[0].mxu0 %v1281
        %v2333 = vpop.f32.mrb[0].mxu0
        %v2334 = vadd.f32 %v2109, %v2333
        %v2335 = vpop.f32.mrb[0].mxu0
        %2336 = vmatprep.mubr.f32.mxu0 %v1291
        %2337 = vmatmul.mubr.f32.gmra.mrb[0].mxu0 %v1290
        %v2338 = vpop.f32.mrb[0].mxu0
        %v2339 = vadd.f32 %v2114, %v2338
        %v2340 = vpop.f32.mrb[0].mxu0
        %2341 = vmatprep.mubr.f32.mxu0 %v1300
        %2342 = vmatmul.mubr.f32.gmra.mrb[0].mxu0 %v1299
        %v2343 = vpop.f32.mrb[0].mxu0
        %v2344 = vadd.f32 %v2119, %v2343
        %v2345 = vpop.f32.mrb[0].mxu0
        %2346 = vdwg.mxu0
        %2347 = vmatprep.subr.mxu0 0.0
        %2348 = vmatpush1.msra.mxu0 %v1430
        %2349 = vmatprep.subr.mxu0 0.0
        %2350 = vmatpush1.msra.mxu0 %v1431
        %2351 = vmatprep.subr.mxu0 0.0
        %2352 = vmatpush1.msra.mxu0 %v1432
        %2353 = vmatprep.subr.mxu0 0.0
        %2354 = vmatpush1.msra.mxu0 %v1433
        %2355 = vmatprep.subr.mxu0 0.0
        %2356 = vmatpush1.msra.mxu0 %v1434
        %2357 = vmatprep.subr.mxu0 0.0
        %2358 = vmatpush1.msra.mxu0 %v1435
        %2359 = vmatprep.subr.mxu0 0.0
        %2360 = vmatpush1.msra.mxu0 %v1436
        %2361 = vmatprep.subr.mxu0 0.0
        %2362 = vmatpush1.msra.mxu0 %v1437
        %2363 = vmatprep.subr.mxu0 0.0
        %2364 = vmatpush1.msra.mxu0 %v1438
        %2365 = vmatprep.subr.mxu0 0.0
        %2366 = vmatpush1.msra.mxu0 %v1439
        %2367 = vmatprep.subr.mxu0 0.0
        %2368 = vmatpush1.msra.mxu0 %v1440
        %2369 = vmatprep.subr.mxu0 0.0
        %2370 = vmatpush1.msra.mxu0 %v1441
        %2371 = vmatprep.subr.mxu0 0.0
        %2372 = vmatpush1.msra.mxu0 %v1442
        %2373 = vmatprep.subr.mxu0 0.0
        %2374 = vmatpush1.msra.mxu0 %v1443
        %2375 = vmatprep.subr.mxu0 0.0
        %2376 = vmatpush1.msra.mxu0 %v1444
        %2377 = vmatprep.subr.mxu0 0.0
        %2378 = vmatpush1.msra.mxu0 %v1445
        %2379 = vmatprep.subr.mxu0 0.0
        %2380 = vmatpush1.msra.mxu0 0.0
        %2381 = vmatprep.subr.mxu0 0.0
        %2382 = vmatpush1.msra.mxu0 0.0
        %2383 = vmatprep.subr.mxu0 0.0
        %2384 = vmatpush1.msra.mxu0 0.0
        %2385 = vmatprep.subr.mxu0 0.0
        %2386 = vmatpush1.msra.mxu0 0.0
        %2387 = vmatprep.subr.mxu0 0.0
        %2388 = vmatpush1.msra.mxu0 0.0
        %2389 = vmatprep.subr.mxu0 0.0
        %2390 = vmatpush1.msra.mxu0 0.0
        %2391 = vmatprep.subr.mxu0 0.0
        %2392 = vmatpush1.msra.mxu0 0.0
        %2393 = vmatprep.subr.mxu0 0.0
        %2394 = vmatpush1.msra.mxu0 0.0
        %2395 = vmatprep.subr.mxu0 0.0
        %2396 = vmatpush1.msra.mxu0 0.0
        %2397 = vmatprep.subr.mxu0 0.0
        %2398 = vmatpush1.msra.mxu0 0.0
        %2399 = vmatprep.subr.mxu0 0.0
        %2400 = vmatpush1.msra.mxu0 0.0
        %2401 = vmatprep.subr.mxu0 0.0
        %2402 = vmatpush1.msra.mxu0 0.0
        %2403 = vmatprep.subr.mxu0 0.0
        %2404 = vmatpush1.msra.mxu0 0.0
        %2405 = vmatprep.subr.mxu0 0.0
        %2406 = vmatpush1.msra.mxu0 0.0
        %2407 = vmatprep.subr.mxu0 0.0
        %2408 = vmatpush1.msra.mxu0 0.0
        %2409 = vmatprep.subr.mxu0 0.0
        %2410 = vmatpush1.msra.mxu0 0.0
        %2411 = vmatprep.mubr.f32.mxu0 0.0
        %2412 = vmatmul.mubr.f32.gmra.mrb[0].mxu0 %v1022
        %v2413 = vpop.f32.mrb[0].mxu0
        %v2414 = vadd.f32 %v2189, %v2413
        %v2415 = vpop.f32.mrb[0].mxu0
        %2416 = vmatprep.mubr.f32.mxu0 0.0
        %2417 = vmatmul.mubr.f32.gmra.mrb[0].mxu0 %v1031
        %v2418 = vpop.f32.mrb[0].mxu0
        %v2419 = vadd.f32 %v2194, %v2418
        %v2420 = vpop.f32.mrb[0].mxu0
        %2421 = vmatprep.mubr.f32.mxu0 0.0
        %2422 = vmatmul.mubr.f32.gmra.mrb[0].mxu0 %v1040
        %v2423 = vpop.f32.mrb[0].mxu0
        %v2424 = vadd.f32 %v2199, %v2423
        %v2425 = vpop.f32.mrb[0].mxu0
        %2426 = vmatprep.mubr.f32.mxu0 0.0
        %2427 = vmatmul.mubr.f32.gmra.mrb[0].mxu0 %v1049
        %v2428 = vpop.f32.mrb[0].mxu0
        %v2429 = vadd.f32 %v2204, %v2428
        %v2430 = vpop.f32.mrb[0].mxu0
        %2431 = vmatprep.mubr.f32.mxu0 0.0
        %2432 = vmatmul.mubr.f32.gmra.mrb[0].mxu0 %v1058
        %v2433 = vpop.f32.mrb[0].mxu0
        %v2434 = vadd.f32 %v2209, %v2433
        %v2435 = vpop.f32.mrb[0].mxu0
        %2436 = vmatprep.mubr.f32.mxu0 0.0
        %2437 = vmatmul.mubr.f32.gmra.mrb[0].mxu0 %v1067
        %v2438 = vpop.f32.mrb[0].mxu0
        %v2439 = vadd.f32 %v2214, %v2438
        %v2440 = vpop.f32.mrb[0].mxu0
        %2441 = vmatprep.mubr.f32.mxu0 0.0
        %2442 = vmatmul.mubr.f32.gmra.mrb[0].mxu0 %v1076
        %v2443 = vpop.f32.mrb[0].mxu0
        %v2444 = vadd.f32 %v2219, %v2443
        %v2445 = vpop.f32.mrb[0].mxu0
        %2446 = vmatprep.mubr.f32.mxu0 0.0
        %2447 = vmatmul.mubr.f32.gmra.mrb[0].mxu0 %v1085
        %v2448 = vpop.f32.mrb[0].mxu0
        %v2449 = vadd.f32 %v2224, %v2448
        %v2450 = vpop.f32.mrb[0].mxu0
        %2451 = vmatprep.mubr.f32.mxu0 0.0
        %2452 = vmatmul.mubr.f32.gmra.mrb[0].mxu0 %v1094
        %v2453 = vpop.f32.mrb[0].mxu0
        %v2454 = vadd.f32 %v2229, %v2453
        %v2455 = vpop.f32.mrb[0].mxu0
        %2456 = vmatprep.mubr.f32.mxu0 0.0
        %2457 = vmatmul.mubr.f32.gmra.mrb[0].mxu0 %v1103
        %v2458 = vpop.f32.mrb[0].mxu0
        %v2459 = vadd.f32 %v2234, %v2458
        %v2460 = vpop.f32.mrb[0].mxu0
        %2461 = vmatprep.mubr.f32.mxu0 0.0
        %2462 = vmatmul.mubr.f32.gmra.mrb[0].mxu0 %v1112
        %v2463 = vpop.f32.mrb[0].mxu0
        %v2464 = vadd.f32 %v2239, %v2463
        %v2465 = vpop.f32.mrb[0].mxu0
        %2466 = vmatprep.mubr.f32.mxu0 0.0
        %2467 = vmatmul.mubr.f32.gmra.mrb[0].mxu0 %v1121
        %v2468 = vpop.f32.mrb[0].mxu0
        %v2469 = vadd.f32 %v2244, %v2468
        %v2470 = vpop.f32.mrb[0].mxu0
        %2471 = vmatprep.mubr.f32.mxu0 0.0
        %2472 = vmatmul.mubr.f32.gmra.mrb[0].mxu0 %v1130
        %v2473 = vpop.f32.mrb[0].mxu0
        %v2474 = vadd.f32 %v2249, %v2473
        %v2475 = vpop.f32.mrb[0].mxu0
        %2476 = vmatprep.mubr.f32.mxu0 0.0
        %2477 = vmatmul.mubr.f32.gmra.mrb[0].mxu0 %v1139
        %v2478 = vpop.f32.mrb[0].mxu0
        %v2479 = vadd.f32 %v2254, %v2478
        %v2480 = vpop.f32.mrb[0].mxu0
        %2481 = vmatprep.mubr.f32.mxu0 0.0
        %2482 = vmatmul.mubr.f32.gmra.mrb[0].mxu0 %v1148
        %v2483 = vpop.f32.mrb[0].mxu0
        %v2484 = vadd.f32 %v2259, %v2483
        %v2485 = vpop.f32.mrb[0].mxu0
        %2486 = vmatprep.mubr.f32.mxu0 0.0
        %2487 = vmatmul.mubr.f32.gmra.mrb[0].mxu0 %v1157
        %v2488 = vpop.f32.mrb[0].mxu0
        %v2489 = vadd.f32 %v2264, %v2488
        %v2490 = vpop.f32.mrb[0].mxu0
        %2491 = vmatprep.mubr.f32.mxu0 0.0
        %2492 = vmatmul.mubr.f32.gmra.mrb[0].mxu0 %v1166
        %v2493 = vpop.f32.mrb[0].mxu0
        %v2494 = vadd.f32 %v2269, %v2493
        %v2495 = vpop.f32.mrb[0].mxu0
        %2496 = vmatprep.mubr.f32.mxu0 0.0
        %2497 = vmatmul.mubr.f32.gmra.mrb[0].mxu0 %v1175
        %v2498 = vpop.f32.mrb[0].mxu0
        %v2499 = vadd.f32 %v2274, %v2498
        %v2500 = vpop.f32.mrb[0].mxu0
        %2501 = vmatprep.mubr.f32.mxu0 0.0
        %2502 = vmatmul.mubr.f32.gmra.mrb[0].mxu0 %v1184
        %v2503 = vpop.f32.mrb[0].mxu0
        %v2504 = vadd.f32 %v2279, %v2503
        %v2505 = vpop.f32.mrb[0].mxu0
        %2506 = vmatprep.mubr.f32.mxu0 0.0
        %2507 = vmatmul.mubr.f32.gmra.mrb[0].mxu0 %v1193
        %v2508 = vpop.f32.mrb[0].mxu0
        %v2509 = vadd.f32 %v2284, %v2508
        %v2510 = vpop.f32.mrb[0].mxu0
        %2511 = vmatprep.mubr.f32.mxu0 0.0
        %2512 = vmatmul.mubr.f32.gmra.mrb[0].mxu0 %v1202
        %v2513 = vpop.f32.mrb[0].mxu0
        %v2514 = vadd.f32 %v2289, %v2513
        %v2515 = vpop.f32.mrb[0].mxu0
        %2516 = vmatprep.mubr.f32.mxu0 0.0
        %2517 = vmatmul.mubr.f32.gmra.mrb[0].mxu0 %v1211
        %v2518 = vpop.f32.mrb[0].mxu0
        %v2519 = vadd.f32 %v2294, %v2518
        %v2520 = vpop.f32.mrb[0].mxu0
        %2521 = vmatprep.mubr.f32.mxu0 0.0
        %2522 = vmatmul.mubr.f32.gmra.mrb[0].mxu0 %v1220
        %v2523 = vpop.f32.mrb[0].mxu0
        %v2524 = vadd.f32 %v2299, %v2523
        %v2525 = vpop.f32.mrb[0].mxu0
        %2526 = vmatprep.mubr.f32.mxu0 0.0
        %2527 = vmatmul.mubr.f32.gmra.mrb[0].mxu0 %v1229
        %v2528 = vpop.f32.mrb[0].mxu0
        %v2529 = vadd.f32 %v2304, %v2528
        %v2530 = vpop.f32.mrb[0].mxu0
        %2531 = vmatprep.mubr.f32.mxu0 0.0
        %2532 = vmatmul.mubr.f32.gmra.mrb[0].mxu0 %v1238
        %v2533 = vpop.f32.mrb[0].mxu0
        %v2534 = vadd.f32 %v2309, %v2533
        %v2535 = vpop.f32.mrb[0].mxu0
        %2536 = vmatprep.mubr.f32.mxu0 0.0
        %2537 = vmatmul.mubr.f32.gmra.mrb[0].mxu0 %v1247
        %v2538 = vpop.f32.mrb[0].mxu0
        %v2539 = vadd.f32 %v2314, %v2538
        %v2540 = vpop.f32.mrb[0].mxu0
        %2541 = vmatprep.mubr.f32.mxu0 0.0
        %2542 = vmatmul.mubr.f32.gmra.mrb[0].mxu0 %v1256
        %v2543 = vpop.f32.mrb[0].mxu0
        %v2544 = vadd.f32 %v2319, %v2543
        %v2545 = vpop.f32.mrb[0].mxu0
        %2546 = vmatprep.mubr.f32.mxu0 0.0
        %2547 = vmatmul.mubr.f32.gmra.mrb[0].mxu0 %v1265
        %v2548 = vpop.f32.mrb[0].mxu0
        %v2549 = vadd.f32 %v2324, %v2548
        %v2550 = vpop.f32.mrb[0].mxu0
        %2551 = vmatprep.mubr.f32.mxu0 0.0
        %2552 = vmatmul.mubr.f32.gmra.mrb[0].mxu0 %v1274
        %v2553 = vpop.f32.mrb[0].mxu0
        %v2554 = vadd.f32 %v2329, %v2553
        %v2555 = vpop.f32.mrb[0].mxu0
        %2556 = vmatprep.mubr.f32.mxu0 0.0
        %2557 = vmatmul.mubr.f32.gmra.mrb[0].mxu0 %v1283
        %v2558 = vpop.f32.mrb[0].mxu0
        %v2559 = vadd.f32 %v2334, %v2558
        %v2560 = vpop.f32.mrb[0].mxu0
        %2561 = vmatprep.mubr.f32.mxu0 0.0
        %2562 = vmatmul.mubr.f32.gmra.mrb[0].mxu0 %v1292
        %v2563 = vpop.f32.mrb[0].mxu0
        %v2564 = vadd.f32 %v2339, %v2563
        %v2565 = vpop.f32.mrb[0].mxu0
        %2566 = vmatprep.mubr.f32.mxu0 0.0
        %2567 = vmatmul.mubr.f32.gmra.mrb[0].mxu0 %v1301
        %v2568 = vpop.f32.mrb[0].mxu0
        %v2569 = vadd.f32 %v2344, %v2568
        %v2570 = vpop.f32.mrb[0].mxu0
        %2571 = vdwg.mxu0
        %v2572 = vmax.f32 %v2414, 0.0
        %v2573 = vmax.f32 %v2419, 0.0
        %v2574 = vmax.f32 %v2424, 0.0
        %v2575 = vmax.f32 %v2429, 0.0
        %v2576 = vmax.f32 %v2434, 0.0
        %v2577 = vmax.f32 %v2439, 0.0
        %v2578 = vmax.f32 %v2444, 0.0
        %v2579 = vmax.f32 %v2449, 0.0
        %v2580 = vmax.f32 %v2454, 0.0
        %v2581 = vmax.f32 %v2459, 0.0
        %v2582 = vmax.f32 %v2464, 0.0
        %v2583 = vmax.f32 %v2469, 0.0
        %v2584 = vmax.f32 %v2474, 0.0
        %v2585 = vmax.f32 %v2479, 0.0
        %v2586 = vmax.f32 %v2484, 0.0
        %v2587 = vmax.f32 %v2489, 0.0
        %v2588 = vmax.f32 %v2494, 0.0
        %v2589 = vmax.f32 %v2499, 0.0
        %v2590 = vmax.f32 %v2504, 0.0
        %v2591 = vmax.f32 %v2509, 0.0
        %v2592 = vmax.f32 %v2514, 0.0
        %v2593 = vmax.f32 %v2519, 0.0
        %v2594 = vmax.f32 %v2524, 0.0
        %v2595 = vmax.f32 %v2529, 0.0
        %v2596 = vmax.f32 %v2534, 0.0
        %v2597 = vmax.f32 %v2539, 0.0
        %v2598 = vmax.f32 %v2544, 0.0
        %v2599 = vmax.f32 %v2549, 0.0
        %v2600 = vmax.f32 %v2554, 0.0
        %v2601 = vmax.f32 %v2559, 0.0
        %v2602 = vmax.f32 %v2564, 0.0
        %v2603 = vmax.f32 %v2569, 0.0
        %v2604 = vstv %s261
        %v2605 = vadd.f32 %v2572, %v2604
        %v2606 = vadd.f32 %v2573, %v2604
        %v2607 = vadd.f32 %v2574, %v2604
        %v2608 = vadd.f32 %v2575, %v2604
        %v2609 = vadd.f32 %v2576, %v2604
        %v2610 = vadd.f32 %v2577, %v2604
        %v2611 = vadd.f32 %v2578, %v2604
        %v2612 = vadd.f32 %v2579, %v2604
        %v2613 = vadd.f32 %v2580, %v2604
        %v2614 = vadd.f32 %v2581, %v2604
        %v2615 = vadd.f32 %v2582, %v2604
        %v2616 = vadd.f32 %v2583, %v2604
        %v2617 = vadd.f32 %v2584, %v2604
        %v2618 = vadd.f32 %v2585, %v2604
        %v2619 = vadd.f32 %v2586, %v2604
        %v2620 = vadd.f32 %v2587, %v2604
        %v2621 = vadd.f32 %v2588, %v2604
        %v2622 = vadd.f32 %v2589, %v2604
        %v2623 = vadd.f32 %v2590, %v2604
        %v2624 = vadd.f32 %v2591, %v2604
        %v2625 = vadd.f32 %v2592, %v2604
        %v2626 = vadd.f32 %v2593, %v2604
        %v2627 = vadd.f32 %v2594, %v2604
        %v2628 = vadd.f32 %v2595, %v2604
        %v2629 = vadd.f32 %v2596, %v2604
        %v2630 = vadd.f32 %v2597, %v2604
        %v2631 = vadd.f32 %v2598, %v2604
        %v2632 = vadd.f32 %v2599, %v2604
        %v2633 = vadd.f32 %v2600, %v2604
        %v2634 = vadd.f32 %v2601, %v2604
        %v2635 = vadd.f32 %v2602, %v2604
        %v2636 = vadd.f32 %v2603, %v2604
        %2637 = vst [vmem:[#allocation4] sm:$0xff] 0.0
        %2638 = vst [vmem:[#allocation4 + $0x8] sm:$0xff] 0.0
        %2639 = vst [vmem:[#allocation4 + $0x10] sm:$0x3] 0.0
        %s2640 = scalar_lea.vmem [#allocation4], 408
        %2641 = vst [vmem:[%s2640] sm:$0xff] 0.0
        %2642 = vst [vmem:[%s2640 + $0x8] sm:$0xff] 0.0
        %2643 = vst [vmem:[%s2640 + $0x10] sm:$0x3] 0.0
        %2644 = vst [vmem:[#allocation4] sm:$0x1] 0.0
        %2645 = vst [vmem:[#allocation4 + $0x18] sm:$0x1] 0.0
        %2646 = vst [vmem:[#allocation4 + $0x30] sm:$0x1] 0.0
        %2647 = vst [vmem:[#allocation4 + $0x48] sm:$0x1] 0.0
        %2648 = vst [vmem:[#allocation4 + $0x60] sm:$0x1] 0.0
        %2649 = vst [vmem:[#allocation4 + $0x78] sm:$0x1] 0.0
        %2650 = vst [vmem:[#allocation4 + $0x90] sm:$0x1] 0.0
        %2651 = vst [vmem:[#allocation4 + $0xa8] sm:$0x1] 0.0
        %2652 = vst [vmem:[#allocation4 + $0xc0] sm:$0x1] 0.0
        %2653 = vst [vmem:[#allocation4 + $0xd8] sm:$0x1] 0.0
        %2654 = vst [vmem:[#allocation4 + $0xf0] sm:$0x1] 0.0
        %2655 = vst [vmem:[#allocation4 + $0x108] sm:$0x1] 0.0
        %2656 = vst [vmem:[#allocation4 + $0x120] sm:$0x1] 0.0
        %2657 = vst [vmem:[#allocation4 + $0x138] sm:$0x1] 0.0
        %2658 = vst [vmem:[#allocation4 + $0x150] sm:$0x1] 0.0
        %2659 = vst [vmem:[#allocation4 + $0x168] sm:$0x1] 0.0
        %2660 = vst [vmem:[#allocation4 + $0x180] sm:$0x1] 0.0
        %2661 = vst [vmem:[#allocation4 + $0x198] sm:$0x1] 0.0
        %2662 = vst [vmem:[#allocation4 + $0x11] sm:$0x1] 0.0
        %2663 = vst [vmem:[#allocation4 + $0x29] sm:$0x1] 0.0
        %2664 = vst [vmem:[#allocation4 + $0x41] sm:$0x1] 0.0
        %2665 = vst [vmem:[#allocation4 + $0x59] sm:$0x1] 0.0
        %2666 = vst [vmem:[#allocation4 + $0x71] sm:$0x1] 0.0
        %2667 = vst [vmem:[#allocation4 + $0x89] sm:$0x1] 0.0
        %2668 = vst [vmem:[#allocation4 + $0xa1] sm:$0x1] 0.0
        %2669 = vst [vmem:[#allocation4 + $0xb9] sm:$0x1] 0.0
        %2670 = vst [vmem:[#allocation4 + $0xd1] sm:$0x1] 0.0
        %2671 = vst [vmem:[#allocation4 + $0xe9] sm:$0x1] 0.0
        %2672 = vst [vmem:[#allocation4 + $0x101] sm:$0x1] 0.0
        %2673 = vst [vmem:[#allocation4 + $0x119] sm:$0x1] 0.0
        %2674 = vst [vmem:[#allocation4 + $0x131] sm:$0x1] 0.0
        %2675 = vst [vmem:[#allocation4 + $0x149] sm:$0x1] 0.0
        %2676 = vst [vmem:[#allocation4 + $0x161] sm:$0x1] 0.0
        %2677 = vst [vmem:[#allocation4 + $0x179] sm:$0x1] 0.0
        %2678 = vst [vmem:[#allocation4 + $0x191] sm:$0x1] 0.0
        %2679 = vst [vmem:[#allocation4 + $0x1a9] sm:$0x1] 0.0
        %s2680 = scalar_lea.vmem [#allocation4], 24
        %2681 = vst [vmem:[%s2680 + $0x1] sm:$0xff] %v2605
        %2682 = vst [vmem:[%s2680 + $0x9] sm:$0xff] %v2606
        %2683 = vst [vmem:[%s2680 + $0x19] sm:$0xff] %v2607
        %2684 = vst [vmem:[%s2680 + $0x21] sm:$0xff] %v2608
        %2685 = vst [vmem:[%s2680 + $0x31] sm:$0xff] %v2609
        %2686 = vst [vmem:[%s2680 + $0x39] sm:$0xff] %v2610
        %2687 = vst [vmem:[%s2680 + $0x49] sm:$0xff] %v2611
        %2688 = vst [vmem:[%s2680 + $0x51] sm:$0xff] %v2612
        %2689 = vst [vmem:[%s2680 + $0x61] sm:$0xff] %v2613
        %2690 = vst [vmem:[%s2680 + $0x69] sm:$0xff] %v2614
        %2691 = vst [vmem:[%s2680 + $0x79] sm:$0xff] %v2615
        %2692 = vst [vmem:[%s2680 + $0x81] sm:$0xff] %v2616
        %2693 = vst [vmem:[%s2680 + $0x91] sm:$0xff] %v2617
        %2694 = vst [vmem:[%s2680 + $0x99] sm:$0xff] %v2618
        %2695 = vst [vmem:[%s2680 + $0xa9] sm:$0xff] %v2619
        %2696 = vst [vmem:[%s2680 + $0xb1] sm:$0xff] %v2620
        %2697 = vst [vmem:[%s2680 + $0xc1] sm:$0xff] %v2621
        %2698 = vst [vmem:[%s2680 + $0xc9] sm:$0xff] %v2622
        %2699 = vst [vmem:[%s2680 + $0xd9] sm:$0xff] %v2623
        %2700 = vst [vmem:[%s2680 + $0xe1] sm:$0xff] %v2624
        %2701 = vst [vmem:[%s2680 + $0xf1] sm:$0xff] %v2625
        %2702 = vst [vmem:[%s2680 + $0xf9] sm:$0xff] %v2626
        %2703 = vst [vmem:[%s2680 + $0x109] sm:$0xff] %v2627
        %2704 = vst [vmem:[%s2680 + $0x111] sm:$0xff] %v2628
        %2705 = vst [vmem:[%s2680 + $0x121] sm:$0xff] %v2629
        %2706 = vst [vmem:[%s2680 + $0x129] sm:$0xff] %v2630
        %2707 = vst [vmem:[%s2680 + $0x139] sm:$0xff] %v2631
        %2708 = vst [vmem:[%s2680 + $0x141] sm:$0xff] %v2632
        %2709 = vst [vmem:[%s2680 + $0x151] sm:$0xff] %v2633
        %2710 = vst [vmem:[%s2680 + $0x159] sm:$0xff] %v2634
        %2711 = vst [vmem:[%s2680 + $0x169] sm:$0xff] %v2635
        %2712 = vst [vmem:[%s2680 + $0x171] sm:$0xff] %v2636
        %v2713 = vld [vmem:[#allocation4] sm:$0xff]
        %v2714 = vld [vmem:[#allocation4 + $0x8] sm:$0xff]
        %v2715 = vld [vmem:[#allocation4 + $0x18] sm:$0xff]
        %v2716 = vld [vmem:[#allocation4 + $0x20] sm:$0xff]
        %v2717 = vld [vmem:[#allocation4 + $0x30] sm:$0xff]
        %v2718 = vld [vmem:[#allocation4 + $0x38] sm:$0xff]
        %v2719 = vld [vmem:[#allocation4 + $0x48] sm:$0xff]
        %v2720 = vld [vmem:[#allocation4 + $0x50] sm:$0xff]
        %v2721 = vld [vmem:[#allocation4 + $0x60] sm:$0xff]
        %v2722 = vld [vmem:[#allocation4 + $0x68] sm:$0xff]
        %v2723 = vld [vmem:[#allocation4 + $0x78] sm:$0xff]
        %v2724 = vld [vmem:[#allocation4 + $0x80] sm:$0xff]
        %v2725 = vld [vmem:[#allocation4 + $0x90] sm:$0xff]
        %v2726 = vld [vmem:[#allocation4 + $0x98] sm:$0xff]
        %v2727 = vld [vmem:[#allocation4 + $0xa8] sm:$0xff]
        %v2728 = vld [vmem:[#allocation4 + $0xb0] sm:$0xff]
        %v2729 = vld [vmem:[#allocation4 + $0xc0] sm:$0xff]
        %v2730 = vld [vmem:[#allocation4 + $0xc8] sm:$0xff]
        %v2731 = vld [vmem:[#allocation4 + $0xd8] sm:$0xff]
        %v2732 = vld [vmem:[#allocation4 + $0xe0] sm:$0xff]
        %v2733 = vld [vmem:[#allocation4 + $0xf0] sm:$0xff]
        %v2734 = vld [vmem:[#allocation4 + $0xf8] sm:$0xff]
        %v2735 = vld [vmem:[#allocation4 + $0x108] sm:$0xff]
        %v2736 = vld [vmem:[#allocation4 + $0x110] sm:$0xff]
        %v2737 = vld [vmem:[#allocation4 + $0x120] sm:$0xff]
        %v2738 = vld [vmem:[#allocation4 + $0x128] sm:$0xff]
        %v2739 = vld [vmem:[#allocation4 + $0x138] sm:$0xff]
        %v2740 = vld [vmem:[#allocation4 + $0x140] sm:$0xff]
        %v2741 = vld [vmem:[#allocation4 + $0x150] sm:$0xff]
        %v2742 = vld [vmem:[#allocation4 + $0x158] sm:$0xff]
        %v2743 = vld [vmem:[#allocation4 + $0x168] sm:$0xff]
        %v2744 = vld [vmem:[#allocation4 + $0x170] sm:$0xff]
        %2745 = vst [vmem:[#allocation5] sm:$0xff] %v2713
        %2746 = vst [vmem:[#allocation5 + $0x48] sm:$0xff] %v2714
        %2747 = vst [vmem:[#allocation5 + $0x90] sm:$0xff] %v2715
        %2748 = vst [vmem:[#allocation5 + $0xd8] sm:$0xff] %v2716
        %2749 = vst [vmem:[#allocation5 + $0x120] sm:$0xff] %v2717
        %2750 = vst [vmem:[#allocation5 + $0x168] sm:$0xff] %v2718
        %2751 = vst [vmem:[#allocation5 + $0x1b0] sm:$0xff] %v2719
        %2752 = vst [vmem:[#allocation5 + $0x1f8] sm:$0xff] %v2720
        %2753 = vst [vmem:[#allocation5 + $0x240] sm:$0xff] %v2721
        %2754 = vst [vmem:[#allocation5 + $0x288] sm:$0xff] %v2722
        %2755 = vst [vmem:[#allocation5 + $0x2d0] sm:$0xff] %v2723
        %2756 = vst [vmem:[#allocation5 + $0x318] sm:$0xff] %v2724
        %2757 = vst [vmem:[#allocation5 + $0x360] sm:$0xff] %v2725
        %2758 = vst [vmem:[#allocation5 + $0x3a8] sm:$0xff] %v2726
        %2759 = vst [vmem:[#allocation5 + $0x3f0] sm:$0xff] %v2727
        %2760 = vst [vmem:[#allocation5 + $0x438] sm:$0xff] %v2728
        %2761 = vst [vmem:[#allocation5 + $0x480] sm:$0xff] %v2729
        %2762 = vst [vmem:[#allocation5 + $0x4c8] sm:$0xff] %v2730
        %2763 = vst [vmem:[#allocation5 + $0x510] sm:$0xff] %v2731
        %2764 = vst [vmem:[#allocation5 + $0x558] sm:$0xff] %v2732
        %2765 = vst [vmem:[#allocation5 + $0x5a0] sm:$0xff] %v2733
        %2766 = vst [vmem:[#allocation5 + $0x5e8] sm:$0xff] %v2734
        %2767 = vst [vmem:[#allocation5 + $0x630] sm:$0xff] %v2735
        %2768 = vst [vmem:[#allocation5 + $0x678] sm:$0xff] %v2736
        %2769 = vst [vmem:[#allocation5 + $0x6c0] sm:$0xff] %v2737
        %2770 = vst [vmem:[#allocation5 + $0x708] sm:$0xff] %v2738
        %2771 = vst [vmem:[#allocation5 + $0x750] sm:$0xff] %v2739
        %2772 = vst [vmem:[#allocation5 + $0x798] sm:$0xff] %v2740
        %2773 = vst [vmem:[#allocation5 + $0x7e0] sm:$0xff] %v2741
        %2774 = vst [vmem:[#allocation5 + $0x828] sm:$0xff] %v2742
        %2775 = vst [vmem:[#allocation5 + $0x870] sm:$0xff] %v2743
        %2776 = vst [vmem:[#allocation5 + $0x8b8] sm:$0xff] %v2744
        %v2777 = vld [vmem:[#allocation4 + $0x1] sm:$0xff]
        %v2778 = vld [vmem:[#allocation4 + $0x9] sm:$0xff]
        %v2779 = vld [vmem:[#allocation4 + $0x19] sm:$0xff]
        %v2780 = vld [vmem:[#allocation4 + $0x21] sm:$0xff]
        %v2781 = vld [vmem:[#allocation4 + $0x31] sm:$0xff]
        %v2782 = vld [vmem:[#allocation4 + $0x39] sm:$0xff]
        %v2783 = vld [vmem:[#allocation4 + $0x49] sm:$0xff]
        %v2784 = vld [vmem:[#allocation4 + $0x51] sm:$0xff]
        %v2785 = vld [vmem:[#allocation4 + $0x61] sm:$0xff]
        %v2786 = vld [vmem:[#allocation4 + $0x69] sm:$0xff]
        %v2787 = vld [vmem:[#allocation4 + $0x79] sm:$0xff]
        %v2788 = vld [vmem:[#allocation4 + $0x81] sm:$0xff]
        %v2789 = vld [vmem:[#allocation4 + $0x91] sm:$0xff]
        %v2790 = vld [vmem:[#allocation4 + $0x99] sm:$0xff]
        %v2791 = vld [vmem:[#allocation4 + $0xa9] sm:$0xff]
        %v2792 = vld [vmem:[#allocation4 + $0xb1] sm:$0xff]
        %v2793 = vld [vmem:[#allocation4 + $0xc1] sm:$0xff]
        %v2794 = vld [vmem:[#allocation4 + $0xc9] sm:$0xff]
        %v2795 = vld [vmem:[#allocation4 + $0xd9] sm:$0xff]
        %v2796 = vld [vmem:[#allocation4 + $0xe1] sm:$0xff]
        %v2797 = vld [vmem:[#allocation4 + $0xf1] sm:$0xff]
        %v2798 = vld [vmem:[#allocation4 + $0xf9] sm:$0xff]
        %v2799 = vld [vmem:[#allocation4 + $0x109] sm:$0xff]
        %v2800 = vld [vmem:[#allocation4 + $0x111] sm:$0xff]
        %v2801 = vld [vmem:[#allocation4 + $0x121] sm:$0xff]
        %v2802 = vld [vmem:[#allocation4 + $0x129] sm:$0xff]
        %v2803 = vld [vmem:[#allocation4 + $0x139] sm:$0xff]
        %v2804 = vld [vmem:[#allocation4 + $0x141] sm:$0xff]
        %v2805 = vld [vmem:[#allocation4 + $0x151] sm:$0xff]
        %v2806 = vld [vmem:[#allocation4 + $0x159] sm:$0xff]
        %v2807 = vld [vmem:[#allocation4 + $0x169] sm:$0xff]
        %v2808 = vld [vmem:[#allocation4 + $0x171] sm:$0xff]
        %2809 = vst [vmem:[#allocation5 + $0x8] sm:$0xff] %v2777
        %2810 = vst [vmem:[#allocation5 + $0x50] sm:$0xff] %v2778
        %2811 = vst [vmem:[#allocation5 + $0x98] sm:$0xff] %v2779
        %2812 = vst [vmem:[#allocation5 + $0xe0] sm:$0xff] %v2780
        %2813 = vst [vmem:[#allocation5 + $0x128] sm:$0xff] %v2781
        %2814 = vst [vmem:[#allocation5 + $0x170] sm:$0xff] %v2782
        %2815 = vst [vmem:[#allocation5 + $0x1b8] sm:$0xff] %v2783
        %2816 = vst [vmem:[#allocation5 + $0x200] sm:$0xff] %v2784
        %2817 = vst [vmem:[#allocation5 + $0x248] sm:$0xff] %v2785
        %2818 = vst [vmem:[#allocation5 + $0x290] sm:$0xff] %v2786
        %2819 = vst [vmem:[#allocation5 + $0x2d8] sm:$0xff] %v2787
        %2820 = vst [vmem:[#allocation5 + $0x320] sm:$0xff] %v2788
        %2821 = vst [vmem:[#allocation5 + $0x368] sm:$0xff] %v2789
        %2822 = vst [vmem:[#allocation5 + $0x3b0] sm:$0xff] %v2790
        %2823 = vst [vmem:[#allocation5 + $0x3f8] sm:$0xff] %v2791
        %2824 = vst [vmem:[#allocation5 + $0x440] sm:$0xff] %v2792
        %2825 = vst [vmem:[#allocation5 + $0x488] sm:$0xff] %v2793
        %2826 = vst [vmem:[#allocation5 + $0x4d0] sm:$0xff] %v2794
        %2827 = vst [vmem:[#allocation5 + $0x518] sm:$0xff] %v2795
        %2828 = vst [vmem:[#allocation5 + $0x560] sm:$0xff] %v2796
        %2829 = vst [vmem:[#allocation5 + $0x5a8] sm:$0xff] %v2797
        %2830 = vst [vmem:[#allocation5 + $0x5f0] sm:$0xff] %v2798
        %2831 = vst [vmem:[#allocation5 + $0x638] sm:$0xff] %v2799
        %2832 = vst [vmem:[#allocation5 + $0x680] sm:$0xff] %v2800
        %2833 = vst [vmem:[#allocation5 + $0x6c8] sm:$0xff] %v2801
        %2834 = vst [vmem:[#allocation5 + $0x710] sm:$0xff] %v2802
        %2835 = vst [vmem:[#allocation5 + $0x758] sm:$0xff] %v2803
        %2836 = vst [vmem:[#allocation5 + $0x7a0] sm:$0xff] %v2804
        %2837 = vst [vmem:[#allocation5 + $0x7e8] sm:$0xff] %v2805
        %2838 = vst [vmem:[#allocation5 + $0x830] sm:$0xff] %v2806
        %2839 = vst [vmem:[#allocation5 + $0x878] sm:$0xff] %v2807
        %2840 = vst [vmem:[#allocation5 + $0x8c0] sm:$0xff] %v2808
        %v2841 = vld [vmem:[#allocation4 + $0x2] sm:$0xff]
        %v2842 = vld [vmem:[#allocation4 + $0xa] sm:$0xff]
        %v2843 = vld [vmem:[#allocation4 + $0x1a] sm:$0xff]
        %v2844 = vld [vmem:[#allocation4 + $0x22] sm:$0xff]
        %v2845 = vld [vmem:[#allocation4 + $0x32] sm:$0xff]
        %v2846 = vld [vmem:[#allocation4 + $0x3a] sm:$0xff]
        %v2847 = vld [vmem:[#allocation4 + $0x4a] sm:$0xff]
        %v2848 = vld [vmem:[#allocation4 + $0x52] sm:$0xff]
        %v2849 = vld [vmem:[#allocation4 + $0x62] sm:$0xff]
        %v2850 = vld [vmem:[#allocation4 + $0x6a] sm:$0xff]
        %v2851 = vld [vmem:[#allocation4 + $0x7a] sm:$0xff]
        %v2852 = vld [vmem:[#allocation4 + $0x82] sm:$0xff]
        %v2853 = vld [vmem:[#allocation4 + $0x92] sm:$0xff]
        %v2854 = vld [vmem:[#allocation4 + $0x9a] sm:$0xff]
        %v2855 = vld [vmem:[#allocation4 + $0xaa] sm:$0xff]
        %v2856 = vld [vmem:[#allocation4 + $0xb2] sm:$0xff]
        %v2857 = vld [vmem:[#allocation4 + $0xc2] sm:$0xff]
        %v2858 = vld [vmem:[#allocation4 + $0xca] sm:$0xff]
        %v2859 = vld [vmem:[#allocation4 + $0xda] sm:$0xff]
        %v2860 = vld [vmem:[#allocation4 + $0xe2] sm:$0xff]
        %v2861 = vld [vmem:[#allocation4 + $0xf2] sm:$0xff]
        %v2862 = vld [vmem:[#allocation4 + $0xfa] sm:$0xff]
        %v2863 = vld [vmem:[#allocation4 + $0x10a] sm:$0xff]
        %v2864 = vld [vmem:[#allocation4 + $0x112] sm:$0xff]
        %v2865 = vld [vmem:[#allocation4 + $0x122] sm:$0xff]
        %v2866 = vld [vmem:[#allocation4 + $0x12a] sm:$0xff]
        %v2867 = vld [vmem:[#allocation4 + $0x13a] sm:$0xff]
        %v2868 = vld [vmem:[#allocation4 + $0x142] sm:$0xff]
        %v2869 = vld [vmem:[#allocation4 + $0x152] sm:$0xff]
        %v2870 = vld [vmem:[#allocation4 + $0x15a] sm:$0xff]
        %v2871 = vld [vmem:[#allocation4 + $0x16a] sm:$0xff]
        %v2872 = vld [vmem:[#allocation4 + $0x172] sm:$0xff]
        %2873 = vst [vmem:[#allocation5 + $0x10] sm:$0xff] %v2841
        %2874 = vst [vmem:[#allocation5 + $0x58] sm:$0xff] %v2842
        %2875 = vst [vmem:[#allocation5 + $0xa0] sm:$0xff] %v2843
        %2876 = vst [vmem:[#allocation5 + $0xe8] sm:$0xff] %v2844
        %2877 = vst [vmem:[#allocation5 + $0x130] sm:$0xff] %v2845
        %2878 = vst [vmem:[#allocation5 + $0x178] sm:$0xff] %v2846
        %2879 = vst [vmem:[#allocation5 + $0x1c0] sm:$0xff] %v2847
        %2880 = vst [vmem:[#allocation5 + $0x208] sm:$0xff] %v2848
        %2881 = vst [vmem:[#allocation5 + $0x250] sm:$0xff] %v2849
        %2882 = vst [vmem:[#allocation5 + $0x298] sm:$0xff] %v2850
        %2883 = vst [vmem:[#allocation5 + $0x2e0] sm:$0xff] %v2851
        %2884 = vst [vmem:[#allocation5 + $0x328] sm:$0xff] %v2852
        %2885 = vst [vmem:[#allocation5 + $0x370] sm:$0xff] %v2853
        %2886 = vst [vmem:[#allocation5 + $0x3b8] sm:$0xff] %v2854
        %2887 = vst [vmem:[#allocation5 + $0x400] sm:$0xff] %v2855
        %2888 = vst [vmem:[#allocation5 + $0x448] sm:$0xff] %v2856
        %2889 = vst [vmem:[#allocation5 + $0x490] sm:$0xff] %v2857
        %2890 = vst [vmem:[#allocation5 + $0x4d8] sm:$0xff] %v2858
        %2891 = vst [vmem:[#allocation5 + $0x520] sm:$0xff] %v2859
        %2892 = vst [vmem:[#allocation5 + $0x568] sm:$0xff] %v2860
        %2893 = vst [vmem:[#allocation5 + $0x5b0] sm:$0xff] %v2861
        %2894 = vst [vmem:[#allocation5 + $0x5f8] sm:$0xff] %v2862
        %2895 = vst [vmem:[#allocation5 + $0x640] sm:$0xff] %v2863
        %2896 = vst [vmem:[#allocation5 + $0x688] sm:$0xff] %v2864
        %2897 = vst [vmem:[#allocation5 + $0x6d0] sm:$0xff] %v2865
        %2898 = vst [vmem:[#allocation5 + $0x718] sm:$0xff] %v2866
        %2899 = vst [vmem:[#allocation5 + $0x760] sm:$0xff] %v2867
        %2900 = vst [vmem:[#allocation5 + $0x7a8] sm:$0xff] %v2868
        %2901 = vst [vmem:[#allocation5 + $0x7f0] sm:$0xff] %v2869
        %2902 = vst [vmem:[#allocation5 + $0x838] sm:$0xff] %v2870
        %2903 = vst [vmem:[#allocation5 + $0x880] sm:$0xff] %v2871
        %2904 = vst [vmem:[#allocation5 + $0x8c8] sm:$0xff] %v2872
        %v2905 = vld [vmem:[%s2680] sm:$0xff]
        %v2906 = vld [vmem:[%s2680 + $0x8] sm:$0xff]
        %v2907 = vld [vmem:[%s2680 + $0x18] sm:$0xff]
        %v2908 = vld [vmem:[%s2680 + $0x20] sm:$0xff]
        %v2909 = vld [vmem:[%s2680 + $0x30] sm:$0xff]
        %v2910 = vld [vmem:[%s2680 + $0x38] sm:$0xff]
        %v2911 = vld [vmem:[%s2680 + $0x48] sm:$0xff]
        %v2912 = vld [vmem:[%s2680 + $0x50] sm:$0xff]
        %v2913 = vld [vmem:[%s2680 + $0x60] sm:$0xff]
        %v2914 = vld [vmem:[%s2680 + $0x68] sm:$0xff]
        %v2915 = vld [vmem:[%s2680 + $0x78] sm:$0xff]
        %v2916 = vld [vmem:[%s2680 + $0x80] sm:$0xff]
        %v2917 = vld [vmem:[%s2680 + $0x90] sm:$0xff]
        %v2918 = vld [vmem:[%s2680 + $0x98] sm:$0xff]
        %v2919 = vld [vmem:[%s2680 + $0xa8] sm:$0xff]
        %v2920 = vld [vmem:[%s2680 + $0xb0] sm:$0xff]
        %v2921 = vld [vmem:[%s2680 + $0xc0] sm:$0xff]
        %v2922 = vld [vmem:[%s2680 + $0xc8] sm:$0xff]
        %v2923 = vld [vmem:[%s2680 + $0xd8] sm:$0xff]
        %v2924 = vld [vmem:[%s2680 + $0xe0] sm:$0xff]
        %v2925 = vld [vmem:[%s2680 + $0xf0] sm:$0xff]
        %v2926 = vld [vmem:[%s2680 + $0xf8] sm:$0xff]
        %v2927 = vld [vmem:[%s2680 + $0x108] sm:$0xff]
        %v2928 = vld [vmem:[%s2680 + $0x110] sm:$0xff]
        %v2929 = vld [vmem:[%s2680 + $0x120] sm:$0xff]
        %v2930 = vld [vmem:[%s2680 + $0x128] sm:$0xff]
        %v2931 = vld [vmem:[%s2680 + $0x138] sm:$0xff]
        %v2932 = vld [vmem:[%s2680 + $0x140] sm:$0xff]
        %v2933 = vld [vmem:[%s2680 + $0x150] sm:$0xff]
        %v2934 = vld [vmem:[%s2680 + $0x158] sm:$0xff]
        %v2935 = vld [vmem:[%s2680 + $0x168] sm:$0xff]
        %v2936 = vld [vmem:[%s2680 + $0x170] sm:$0xff]
        %2937 = vst [vmem:[#allocation5 + $0x18] sm:$0xff] %v2905
        %2938 = vst [vmem:[#allocation5 + $0x60] sm:$0xff] %v2906
        %2939 = vst [vmem:[#allocation5 + $0xa8] sm:$0xff] %v2907
        %2940 = vst [vmem:[#allocation5 + $0xf0] sm:$0xff] %v2908
        %2941 = vst [vmem:[#allocation5 + $0x138] sm:$0xff] %v2909
        %2942 = vst [vmem:[#allocation5 + $0x180] sm:$0xff] %v2910
        %2943 = vst [vmem:[#allocation5 + $0x1c8] sm:$0xff] %v2911
        %2944 = vst [vmem:[#allocation5 + $0x210] sm:$0xff] %v2912
        %2945 = vst [vmem:[#allocation5 + $0x258] sm:$0xff] %v2913
        %2946 = vst [vmem:[#allocation5 + $0x2a0] sm:$0xff] %v2914
        %2947 = vst [vmem:[#allocation5 + $0x2e8] sm:$0xff] %v2915
        %2948 = vst [vmem:[#allocation5 + $0x330] sm:$0xff] %v2916
        %2949 = vst [vmem:[#allocation5 + $0x378] sm:$0xff] %v2917
        %2950 = vst [vmem:[#allocation5 + $0x3c0] sm:$0xff] %v2918
        %2951 = vst [vmem:[#allocation5 + $0x408] sm:$0xff] %v2919
        %2952 = vst [vmem:[#allocation5 + $0x450] sm:$0xff] %v2920
        %2953 = vst [vmem:[#allocation5 + $0x498] sm:$0xff] %v2921
        %2954 = vst [vmem:[#allocation5 + $0x4e0] sm:$0xff] %v2922
        %2955 = vst [vmem:[#allocation5 + $0x528] sm:$0xff] %v2923
        %2956 = vst [vmem:[#allocation5 + $0x570] sm:$0xff] %v2924
        %2957 = vst [vmem:[#allocation5 + $0x5b8] sm:$0xff] %v2925
        %2958 = vst [vmem:[#allocation5 + $0x600] sm:$0xff] %v2926
        %2959 = vst [vmem:[#allocation5 + $0x648] sm:$0xff] %v2927
        %2960 = vst [vmem:[#allocation5 + $0x690] sm:$0xff] %v2928
        %2961 = vst [vmem:[#allocation5 + $0x6d8] sm:$0xff] %v2929
        %2962 = vst [vmem:[#allocation5 + $0x720] sm:$0xff] %v2930
        %2963 = vst [vmem:[#allocation5 + $0x768] sm:$0xff] %v2931
        %2964 = vst [vmem:[#allocation5 + $0x7b0] sm:$0xff] %v2932
        %2965 = vst [vmem:[#allocation5 + $0x7f8] sm:$0xff] %v2933
        %2966 = vst [vmem:[#allocation5 + $0x840] sm:$0xff] %v2934
        %2967 = vst [vmem:[#allocation5 + $0x888] sm:$0xff] %v2935
        %2968 = vst [vmem:[#allocation5 + $0x8d0] sm:$0xff] %v2936
        %v2969 = vld [vmem:[%s2680 + $0x1] sm:$0xff]
        %v2970 = vld [vmem:[%s2680 + $0x9] sm:$0xff]
        %v2971 = vld [vmem:[%s2680 + $0x19] sm:$0xff]
        %v2972 = vld [vmem:[%s2680 + $0x21] sm:$0xff]
        %v2973 = vld [vmem:[%s2680 + $0x31] sm:$0xff]
        %v2974 = vld [vmem:[%s2680 + $0x39] sm:$0xff]
        %v2975 = vld [vmem:[%s2680 + $0x49] sm:$0xff]
        %v2976 = vld [vmem:[%s2680 + $0x51] sm:$0xff]
        %v2977 = vld [vmem:[%s2680 + $0x61] sm:$0xff]
        %v2978 = vld [vmem:[%s2680 + $0x69] sm:$0xff]
        %v2979 = vld [vmem:[%s2680 + $0x79] sm:$0xff]
        %v2980 = vld [vmem:[%s2680 + $0x81] sm:$0xff]
        %v2981 = vld [vmem:[%s2680 + $0x91] sm:$0xff]
        %v2982 = vld [vmem:[%s2680 + $0x99] sm:$0xff]
        %v2983 = vld [vmem:[%s2680 + $0xa9] sm:$0xff]
        %v2984 = vld [vmem:[%s2680 + $0xb1] sm:$0xff]
        %v2985 = vld [vmem:[%s2680 + $0xc1] sm:$0xff]
        %v2986 = vld [vmem:[%s2680 + $0xc9] sm:$0xff]
        %v2987 = vld [vmem:[%s2680 + $0xd9] sm:$0xff]
        %v2988 = vld [vmem:[%s2680 + $0xe1] sm:$0xff]
        %v2989 = vld [vmem:[%s2680 + $0xf1] sm:$0xff]
        %v2990 = vld [vmem:[%s2680 + $0xf9] sm:$0xff]
        %v2991 = vld [vmem:[%s2680 + $0x109] sm:$0xff]
        %v2992 = vld [vmem:[%s2680 + $0x111] sm:$0xff]
        %v2993 = vld [vmem:[%s2680 + $0x121] sm:$0xff]
        %v2994 = vld [vmem:[%s2680 + $0x129] sm:$0xff]
        %v2995 = vld [vmem:[%s2680 + $0x139] sm:$0xff]
        %v2996 = vld [vmem:[%s2680 + $0x141] sm:$0xff]
        %v2997 = vld [vmem:[%s2680 + $0x151] sm:$0xff]
        %v2998 = vld [vmem:[%s2680 + $0x159] sm:$0xff]
        %v2999 = vld [vmem:[%s2680 + $0x169] sm:$0xff]
        %v3000 = vld [vmem:[%s2680 + $0x171] sm:$0xff]
        %3001 = vst [vmem:[#allocation5 + $0x20] sm:$0xff] %v2969
        %3002 = vst [vmem:[#allocation5 + $0x68] sm:$0xff] %v2970
        %3003 = vst [vmem:[#allocation5 + $0xb0] sm:$0xff] %v2971
        %3004 = vst [vmem:[#allocation5 + $0xf8] sm:$0xff] %v2972
        %3005 = vst [vmem:[#allocation5 + $0x140] sm:$0xff] %v2973
        %3006 = vst [vmem:[#allocation5 + $0x188] sm:$0xff] %v2974
        %3007 = vst [vmem:[#allocation5 + $0x1d0] sm:$0xff] %v2975
        %3008 = vst [vmem:[#allocation5 + $0x218] sm:$0xff] %v2976
        %3009 = vst [vmem:[#allocation5 + $0x260] sm:$0xff] %v2977
        %3010 = vst [vmem:[#allocation5 + $0x2a8] sm:$0xff] %v2978
        %3011 = vst [vmem:[#allocation5 + $0x2f0] sm:$0xff] %v2979
        %3012 = vst [vmem:[#allocation5 + $0x338] sm:$0xff] %v2980
        %3013 = vst [vmem:[#allocation5 + $0x380] sm:$0xff] %v2981
        %3014 = vst [vmem:[#allocation5 + $0x3c8] sm:$0xff] %v2982
        %3015 = vst [vmem:[#allocation5 + $0x410] sm:$0xff] %v2983
        %3016 = vst [vmem:[#allocation5 + $0x458] sm:$0xff] %v2984
        %3017 = vst [vmem:[#allocation5 + $0x4a0] sm:$0xff] %v2985
        %3018 = vst [vmem:[#allocation5 + $0x4e8] sm:$0xff] %v2986
        %3019 = vst [vmem:[#allocation5 + $0x530] sm:$0xff] %v2987
        %3020 = vst [vmem:[#allocation5 + $0x578] sm:$0xff] %v2988
        %3021 = vst [vmem:[#allocation5 + $0x5c0] sm:$0xff] %v2989
        %3022 = vst [vmem:[#allocation5 + $0x608] sm:$0xff] %v2990
        %3023 = vst [vmem:[#allocation5 + $0x650] sm:$0xff] %v2991
        %3024 = vst [vmem:[#allocation5 + $0x698] sm:$0xff] %v2992
        %3025 = vst [vmem:[#allocation5 + $0x6e0] sm:$0xff] %v2993
        %3026 = vst [vmem:[#allocation5 + $0x728] sm:$0xff] %v2994
        %3027 = vst [vmem:[#allocation5 + $0x770] sm:$0xff] %v2995
        %3028 = vst [vmem:[#allocation5 + $0x7b8] sm:$0xff] %v2996
        %3029 = vst [vmem:[#allocation5 + $0x800] sm:$0xff] %v2997
        %3030 = vst [vmem:[#allocation5 + $0x848] sm:$0xff] %v2998
        %3031 = vst [vmem:[#allocation5 + $0x890] sm:$0xff] %v2999
        %3032 = vst [vmem:[#allocation5 + $0x8d8] sm:$0xff] %v3000
        %v3033 = vld [vmem:[%s2680 + $0x2] sm:$0xff]
        %v3034 = vld [vmem:[%s2680 + $0xa] sm:$0xff]
        %v3035 = vld [vmem:[%s2680 + $0x1a] sm:$0xff]
        %v3036 = vld [vmem:[%s2680 + $0x22] sm:$0xff]
        %v3037 = vld [vmem:[%s2680 + $0x32] sm:$0xff]
        %v3038 = vld [vmem:[%s2680 + $0x3a] sm:$0xff]
        %v3039 = vld [vmem:[%s2680 + $0x4a] sm:$0xff]
        %v3040 = vld [vmem:[%s2680 + $0x52] sm:$0xff]
        %v3041 = vld [vmem:[%s2680 + $0x62] sm:$0xff]
        %v3042 = vld [vmem:[%s2680 + $0x6a] sm:$0xff]
        %v3043 = vld [vmem:[%s2680 + $0x7a] sm:$0xff]
        %v3044 = vld [vmem:[%s2680 + $0x82] sm:$0xff]
        %v3045 = vld [vmem:[%s2680 + $0x92] sm:$0xff]
        %v3046 = vld [vmem:[%s2680 + $0x9a] sm:$0xff]
        %v3047 = vld [vmem:[%s2680 + $0xaa] sm:$0xff]
        %v3048 = vld [vmem:[%s2680 + $0xb2] sm:$0xff]
        %v3049 = vld [vmem:[%s2680 + $0xc2] sm:$0xff]
        %v3050 = vld [vmem:[%s2680 + $0xca] sm:$0xff]
        %v3051 = vld [vmem:[%s2680 + $0xda] sm:$0xff]
        %v3052 = vld [vmem:[%s2680 + $0xe2] sm:$0xff]
        %v3053 = vld [vmem:[%s2680 + $0xf2] sm:$0xff]
        %v3054 = vld [vmem:[%s2680 + $0xfa] sm:$0xff]
        %v3055 = vld [vmem:[%s2680 + $0x10a] sm:$0xff]
        %v3056 = vld [vmem:[%s2680 + $0x112] sm:$0xff]
        %v3057 = vld [vmem:[%s2680 + $0x122] sm:$0xff]
        %v3058 = vld [vmem:[%s2680 + $0x12a] sm:$0xff]
        %v3059 = vld [vmem:[%s2680 + $0x13a] sm:$0xff]
        %v3060 = vld [vmem:[%s2680 + $0x142] sm:$0xff]
        %v3061 = vld [vmem:[%s2680 + $0x152] sm:$0xff]
        %v3062 = vld [vmem:[%s2680 + $0x15a] sm:$0xff]
        %v3063 = vld [vmem:[%s2680 + $0x16a] sm:$0xff]
        %v3064 = vld [vmem:[%s2680 + $0x172] sm:$0xff]
        %3065 = vst [vmem:[#allocation5 + $0x28] sm:$0xff] %v3033
        %3066 = vst [vmem:[#allocation5 + $0x70] sm:$0xff] %v3034
        %3067 = vst [vmem:[#allocation5 + $0xb8] sm:$0xff] %v3035
        %3068 = vst [vmem:[#allocation5 + $0x100] sm:$0xff] %v3036
        %3069 = vst [vmem:[#allocation5 + $0x148] sm:$0xff] %v3037
        %3070 = vst [vmem:[#allocation5 + $0x190] sm:$0xff] %v3038
        %3071 = vst [vmem:[#allocation5 + $0x1d8] sm:$0xff] %v3039
        %3072 = vst [vmem:[#allocation5 + $0x220] sm:$0xff] %v3040
        %3073 = vst [vmem:[#allocation5 + $0x268] sm:$0xff] %v3041
        %3074 = vst [vmem:[#allocation5 + $0x2b0] sm:$0xff] %v3042
        %3075 = vst [vmem:[#allocation5 + $0x2f8] sm:$0xff] %v3043
        %3076 = vst [vmem:[#allocation5 + $0x340] sm:$0xff] %v3044
        %3077 = vst [vmem:[#allocation5 + $0x388] sm:$0xff] %v3045
        %3078 = vst [vmem:[#allocation5 + $0x3d0] sm:$0xff] %v3046
        %3079 = vst [vmem:[#allocation5 + $0x418] sm:$0xff] %v3047
        %3080 = vst [vmem:[#allocation5 + $0x460] sm:$0xff] %v3048
        %3081 = vst [vmem:[#allocation5 + $0x4a8] sm:$0xff] %v3049
        %3082 = vst [vmem:[#allocation5 + $0x4f0] sm:$0xff] %v3050
        %3083 = vst [vmem:[#allocation5 + $0x538] sm:$0xff] %v3051
        %3084 = vst [vmem:[#allocation5 + $0x580] sm:$0xff] %v3052
        %3085 = vst [vmem:[#allocation5 + $0x5c8] sm:$0xff] %v3053
        %3086 = vst [vmem:[#allocation5 + $0x610] sm:$0xff] %v3054
        %3087 = vst [vmem:[#allocation5 + $0x658] sm:$0xff] %v3055
        %3088 = vst [vmem:[#allocation5 + $0x6a0] sm:$0xff] %v3056
        %3089 = vst [vmem:[#allocation5 + $0x6e8] sm:$0xff] %v3057
        %3090 = vst [vmem:[#allocation5 + $0x730] sm:$0xff] %v3058
        %3091 = vst [vmem:[#allocation5 + $0x778] sm:$0xff] %v3059
        %3092 = vst [vmem:[#allocation5 + $0x7c0] sm:$0xff] %v3060
        %3093 = vst [vmem:[#allocation5 + $0x808] sm:$0xff] %v3061
        %3094 = vst [vmem:[#allocation5 + $0x850] sm:$0xff] %v3062
        %3095 = vst [vmem:[#allocation5 + $0x898] sm:$0xff] %v3063
        %3096 = vst [vmem:[#allocation5 + $0x8e0] sm:$0xff] %v3064
        %s3097 = scalar_lea.vmem [#allocation4], 48
        %v3098 = vld [vmem:[%s3097] sm:$0xff]
        %v3099 = vld [vmem:[%s3097 + $0x8] sm:$0xff]
        %v3100 = vld [vmem:[%s3097 + $0x18] sm:$0xff]
        %v3101 = vld [vmem:[%s3097 + $0x20] sm:$0xff]
        %v3102 = vld [vmem:[%s3097 + $0x30] sm:$0xff]
        %v3103 = vld [vmem:[%s3097 + $0x38] sm:$0xff]
        %v3104 = vld [vmem:[%s3097 + $0x48] sm:$0xff]
        %v3105 = vld [vmem:[%s3097 + $0x50] sm:$0xff]
        %v3106 = vld [vmem:[%s3097 + $0x60] sm:$0xff]
        %v3107 = vld [vmem:[%s3097 + $0x68] sm:$0xff]
        %v3108 = vld [vmem:[%s3097 + $0x78] sm:$0xff]
        %v3109 = vld [vmem:[%s3097 + $0x80] sm:$0xff]
        %v3110 = vld [vmem:[%s3097 + $0x90] sm:$0xff]
        %v3111 = vld [vmem:[%s3097 + $0x98] sm:$0xff]
        %v3112 = vld [vmem:[%s3097 + $0xa8] sm:$0xff]
        %v3113 = vld [vmem:[%s3097 + $0xb0] sm:$0xff]
        %v3114 = vld [vmem:[%s3097 + $0xc0] sm:$0xff]
        %v3115 = vld [vmem:[%s3097 + $0xc8] sm:$0xff]
        %v3116 = vld [vmem:[%s3097 + $0xd8] sm:$0xff]
        %v3117 = vld [vmem:[%s3097 + $0xe0] sm:$0xff]
        %v3118 = vld [vmem:[%s3097 + $0xf0] sm:$0xff]
        %v3119 = vld [vmem:[%s3097 + $0xf8] sm:$0xff]
        %v3120 = vld [vmem:[%s3097 + $0x108] sm:$0xff]
        %v3121 = vld [vmem:[%s3097 + $0x110] sm:$0xff]
        %v3122 = vld [vmem:[%s3097 + $0x120] sm:$0xff]
        %v3123 = vld [vmem:[%s3097 + $0x128] sm:$0xff]
        %v3124 = vld [vmem:[%s3097 + $0x138] sm:$0xff]
        %v3125 = vld [vmem:[%s3097 + $0x140] sm:$0xff]
        %v3126 = vld [vmem:[%s3097 + $0x150] sm:$0xff]
        %v3127 = vld [vmem:[%s3097 + $0x158] sm:$0xff]
        %v3128 = vld [vmem:[%s3097 + $0x168] sm:$0xff]
        %v3129 = vld [vmem:[%s3097 + $0x170] sm:$0xff]
        %3130 = vst [vmem:[#allocation5 + $0x30] sm:$0xff] %v3098
        %3131 = vst [vmem:[#allocation5 + $0x78] sm:$0xff] %v3099
        %3132 = vst [vmem:[#allocation5 + $0xc0] sm:$0xff] %v3100
        %3133 = vst [vmem:[#allocation5 + $0x108] sm:$0xff] %v3101
        %3134 = vst [vmem:[#allocation5 + $0x150] sm:$0xff] %v3102
        %3135 = vst [vmem:[#allocation5 + $0x198] sm:$0xff] %v3103
        %3136 = vst [vmem:[#allocation5 + $0x1e0] sm:$0xff] %v3104
        %3137 = vst [vmem:[#allocation5 + $0x228] sm:$0xff] %v3105
        %3138 = vst [vmem:[#allocation5 + $0x270] sm:$0xff] %v3106
        %3139 = vst [vmem:[#allocation5 + $0x2b8] sm:$0xff] %v3107
        %3140 = vst [vmem:[#allocation5 + $0x300] sm:$0xff] %v3108
        %3141 = vst [vmem:[#allocation5 + $0x348] sm:$0xff] %v3109
        %3142 = vst [vmem:[#allocation5 + $0x390] sm:$0xff] %v3110
        %3143 = vst [vmem:[#allocation5 + $0x3d8] sm:$0xff] %v3111
        %3144 = vst [vmem:[#allocation5 + $0x420] sm:$0xff] %v3112
        %3145 = vst [vmem:[#allocation5 + $0x468] sm:$0xff] %v3113
        %3146 = vst [vmem:[#allocation5 + $0x4b0] sm:$0xff] %v3114
        %3147 = vst [vmem:[#allocation5 + $0x4f8] sm:$0xff] %v3115
        %3148 = vst [vmem:[#allocation5 + $0x540] sm:$0xff] %v3116
        %3149 = vst [vmem:[#allocation5 + $0x588] sm:$0xff] %v3117
        %3150 = vst [vmem:[#allocation5 + $0x5d0] sm:$0xff] %v3118
        %3151 = vst [vmem:[#allocation5 + $0x618] sm:$0xff] %v3119
        %3152 = vst [vmem:[#allocation5 + $0x660] sm:$0xff] %v3120
        %3153 = vst [vmem:[#allocation5 + $0x6a8] sm:$0xff] %v3121
        %3154 = vst [vmem:[#allocation5 + $0x6f0] sm:$0xff] %v3122
        %3155 = vst [vmem:[#allocation5 + $0x738] sm:$0xff] %v3123
        %3156 = vst [vmem:[#allocation5 + $0x780] sm:$0xff] %v3124
        %3157 = vst [vmem:[#allocation5 + $0x7c8] sm:$0xff] %v3125
        %3158 = vst [vmem:[#allocation5 + $0x810] sm:$0xff] %v3126
        %3159 = vst [vmem:[#allocation5 + $0x858] sm:$0xff] %v3127
        %3160 = vst [vmem:[#allocation5 + $0x8a0] sm:$0xff] %v3128
        %3161 = vst [vmem:[#allocation5 + $0x8e8] sm:$0xff] %v3129
        %v3162 = vld [vmem:[%s3097 + $0x1] sm:$0xff]
        %v3163 = vld [vmem:[%s3097 + $0x9] sm:$0xff]
        %v3164 = vld [vmem:[%s3097 + $0x19] sm:$0xff]
        %v3165 = vld [vmem:[%s3097 + $0x21] sm:$0xff]
        %v3166 = vld [vmem:[%s3097 + $0x31] sm:$0xff]
        %v3167 = vld [vmem:[%s3097 + $0x39] sm:$0xff]
        %v3168 = vld [vmem:[%s3097 + $0x49] sm:$0xff]
        %v3169 = vld [vmem:[%s3097 + $0x51] sm:$0xff]
        %v3170 = vld [vmem:[%s3097 + $0x61] sm:$0xff]
        %v3171 = vld [vmem:[%s3097 + $0x69] sm:$0xff]
        %v3172 = vld [vmem:[%s3097 + $0x79] sm:$0xff]
        %v3173 = vld [vmem:[%s3097 + $0x81] sm:$0xff]
        %v3174 = vld [vmem:[%s3097 + $0x91] sm:$0xff]
        %v3175 = vld [vmem:[%s3097 + $0x99] sm:$0xff]
        %v3176 = vld [vmem:[%s3097 + $0xa9] sm:$0xff]
        %v3177 = vld [vmem:[%s3097 + $0xb1] sm:$0xff]
        %v3178 = vld [vmem:[%s3097 + $0xc1] sm:$0xff]
        %v3179 = vld [vmem:[%s3097 + $0xc9] sm:$0xff]
        %v3180 = vld [vmem:[%s3097 + $0xd9] sm:$0xff]
        %v3181 = vld [vmem:[%s3097 + $0xe1] sm:$0xff]
        %v3182 = vld [vmem:[%s3097 + $0xf1] sm:$0xff]
        %v3183 = vld [vmem:[%s3097 + $0xf9] sm:$0xff]
        %v3184 = vld [vmem:[%s3097 + $0x109] sm:$0xff]
        %v3185 = vld [vmem:[%s3097 + $0x111] sm:$0xff]
        %v3186 = vld [vmem:[%s3097 + $0x121] sm:$0xff]
        %v3187 = vld [vmem:[%s3097 + $0x129] sm:$0xff]
        %v3188 = vld [vmem:[%s3097 + $0x139] sm:$0xff]
        %v3189 = vld [vmem:[%s3097 + $0x141] sm:$0xff]
        %v3190 = vld [vmem:[%s3097 + $0x151] sm:$0xff]
        %v3191 = vld [vmem:[%s3097 + $0x159] sm:$0xff]
        %v3192 = vld [vmem:[%s3097 + $0x169] sm:$0xff]
        %v3193 = vld [vmem:[%s3097 + $0x171] sm:$0xff]
        %3194 = vst [vmem:[#allocation5 + $0x38] sm:$0xff] %v3162
        %3195 = vst [vmem:[#allocation5 + $0x80] sm:$0xff] %v3163
        %3196 = vst [vmem:[#allocation5 + $0xc8] sm:$0xff] %v3164
        %3197 = vst [vmem:[#allocation5 + $0x110] sm:$0xff] %v3165
        %3198 = vst [vmem:[#allocation5 + $0x158] sm:$0xff] %v3166
        %3199 = vst [vmem:[#allocation5 + $0x1a0] sm:$0xff] %v3167
        %3200 = vst [vmem:[#allocation5 + $0x1e8] sm:$0xff] %v3168
        %3201 = vst [vmem:[#allocation5 + $0x230] sm:$0xff] %v3169
        %3202 = vst [vmem:[#allocation5 + $0x278] sm:$0xff] %v3170
        %3203 = vst [vmem:[#allocation5 + $0x2c0] sm:$0xff] %v3171
        %3204 = vst [vmem:[#allocation5 + $0x308] sm:$0xff] %v3172
        %3205 = vst [vmem:[#allocation5 + $0x350] sm:$0xff] %v3173
        %3206 = vst [vmem:[#allocation5 + $0x398] sm:$0xff] %v3174
        %3207 = vst [vmem:[#allocation5 + $0x3e0] sm:$0xff] %v3175
        %3208 = vst [vmem:[#allocation5 + $0x428] sm:$0xff] %v3176
        %3209 = vst [vmem:[#allocation5 + $0x470] sm:$0xff] %v3177
        %3210 = vst [vmem:[#allocation5 + $0x4b8] sm:$0xff] %v3178
        %3211 = vst [vmem:[#allocation5 + $0x500] sm:$0xff] %v3179
        %3212 = vst [vmem:[#allocation5 + $0x548] sm:$0xff] %v3180
        %3213 = vst [vmem:[#allocation5 + $0x590] sm:$0xff] %v3181
        %3214 = vst [vmem:[#allocation5 + $0x5d8] sm:$0xff] %v3182
        %3215 = vst [vmem:[#allocation5 + $0x620] sm:$0xff] %v3183
        %3216 = vst [vmem:[#allocation5 + $0x668] sm:$0xff] %v3184
        %3217 = vst [vmem:[#allocation5 + $0x6b0] sm:$0xff] %v3185
        %3218 = vst [vmem:[#allocation5 + $0x6f8] sm:$0xff] %v3186
        %3219 = vst [vmem:[#allocation5 + $0x740] sm:$0xff] %v3187
        %3220 = vst [vmem:[#allocation5 + $0x788] sm:$0xff] %v3188
        %3221 = vst [vmem:[#allocation5 + $0x7d0] sm:$0xff] %v3189
        %3222 = vst [vmem:[#allocation5 + $0x818] sm:$0xff] %v3190
        %3223 = vst [vmem:[#allocation5 + $0x860] sm:$0xff] %v3191
        %3224 = vst [vmem:[#allocation5 + $0x8a8] sm:$0xff] %v3192
        %3225 = vst [vmem:[#allocation5 + $0x8f0] sm:$0xff] %v3193
        %v3226 = vld [vmem:[%s3097 + $0x2] sm:$0xff]
        %v3227 = vld [vmem:[%s3097 + $0xa] sm:$0xff]
        %v3228 = vld [vmem:[%s3097 + $0x1a] sm:$0xff]
        %v3229 = vld [vmem:[%s3097 + $0x22] sm:$0xff]
        %v3230 = vld [vmem:[%s3097 + $0x32] sm:$0xff]
        %v3231 = vld [vmem:[%s3097 + $0x3a] sm:$0xff]
        %v3232 = vld [vmem:[%s3097 + $0x4a] sm:$0xff]
        %v3233 = vld [vmem:[%s3097 + $0x52] sm:$0xff]
        %v3234 = vld [vmem:[%s3097 + $0x62] sm:$0xff]
        %v3235 = vld [vmem:[%s3097 + $0x6a] sm:$0xff]
        %v3236 = vld [vmem:[%s3097 + $0x7a] sm:$0xff]
        %v3237 = vld [vmem:[%s3097 + $0x82] sm:$0xff]
        %v3238 = vld [vmem:[%s3097 + $0x92] sm:$0xff]
        %v3239 = vld [vmem:[%s3097 + $0x9a] sm:$0xff]
        %v3240 = vld [vmem:[%s3097 + $0xaa] sm:$0xff]
        %v3241 = vld [vmem:[%s3097 + $0xb2] sm:$0xff]
        %v3242 = vld [vmem:[%s3097 + $0xc2] sm:$0xff]
        %v3243 = vld [vmem:[%s3097 + $0xca] sm:$0xff]
        %v3244 = vld [vmem:[%s3097 + $0xda] sm:$0xff]
        %v3245 = vld [vmem:[%s3097 + $0xe2] sm:$0xff]
        %v3246 = vld [vmem:[%s3097 + $0xf2] sm:$0xff]
        %v3247 = vld [vmem:[%s3097 + $0xfa] sm:$0xff]
        %v3248 = vld [vmem:[%s3097 + $0x10a] sm:$0xff]
        %v3249 = vld [vmem:[%s3097 + $0x112] sm:$0xff]
        %v3250 = vld [vmem:[%s3097 + $0x122] sm:$0xff]
        %v3251 = vld [vmem:[%s3097 + $0x12a] sm:$0xff]
        %v3252 = vld [vmem:[%s3097 + $0x13a] sm:$0xff]
        %v3253 = vld [vmem:[%s3097 + $0x142] sm:$0xff]
        %v3254 = vld [vmem:[%s3097 + $0x152] sm:$0xff]
        %v3255 = vld [vmem:[%s3097 + $0x15a] sm:$0xff]
        %v3256 = vld [vmem:[%s3097 + $0x16a] sm:$0xff]
        %v3257 = vld [vmem:[%s3097 + $0x172] sm:$0xff]
        %3258 = vst [vmem:[#allocation5 + $0x40] sm:$0xff] %v3226
        %3259 = vst [vmem:[#allocation5 + $0x88] sm:$0xff] %v3227
        %3260 = vst [vmem:[#allocation5 + $0xd0] sm:$0xff] %v3228
        %3261 = vst [vmem:[#allocation5 + $0x118] sm:$0xff] %v3229
        %3262 = vst [vmem:[#allocation5 + $0x160] sm:$0xff] %v3230
        %3263 = vst [vmem:[#allocation5 + $0x1a8] sm:$0xff] %v3231
        %3264 = vst [vmem:[#allocation5 + $0x1f0] sm:$0xff] %v3232
        %3265 = vst [vmem:[#allocation5 + $0x238] sm:$0xff] %v3233
        %3266 = vst [vmem:[#allocation5 + $0x280] sm:$0xff] %v3234
        %3267 = vst [vmem:[#allocation5 + $0x2c8] sm:$0xff] %v3235
        %3268 = vst [vmem:[#allocation5 + $0x310] sm:$0xff] %v3236
        %3269 = vst [vmem:[#allocation5 + $0x358] sm:$0xff] %v3237
        %3270 = vst [vmem:[#allocation5 + $0x3a0] sm:$0xff] %v3238
        %3271 = vst [vmem:[#allocation5 + $0x3e8] sm:$0xff] %v3239
        %3272 = vst [vmem:[#allocation5 + $0x430] sm:$0xff] %v3240
        %3273 = vst [vmem:[#allocation5 + $0x478] sm:$0xff] %v3241
        %3274 = vst [vmem:[#allocation5 + $0x4c0] sm:$0xff] %v3242
        %3275 = vst [vmem:[#allocation5 + $0x508] sm:$0xff] %v3243
        %3276 = vst [vmem:[#allocation5 + $0x550] sm:$0xff] %v3244
        %3277 = vst [vmem:[#allocation5 + $0x598] sm:$0xff] %v3245
        %3278 = vst [vmem:[#allocation5 + $0x5e0] sm:$0xff] %v3246
        %3279 = vst [vmem:[#allocation5 + $0x628] sm:$0xff] %v3247
        %3280 = vst [vmem:[#allocation5 + $0x670] sm:$0xff] %v3248
        %3281 = vst [vmem:[#allocation5 + $0x6b8] sm:$0xff] %v3249
        %3282 = vst [vmem:[#allocation5 + $0x700] sm:$0xff] %v3250
        %3283 = vst [vmem:[#allocation5 + $0x748] sm:$0xff] %v3251
        %3284 = vst [vmem:[#allocation5 + $0x790] sm:$0xff] %v3252
        %3285 = vst [vmem:[#allocation5 + $0x7d8] sm:$0xff] %v3253
        %3286 = vst [vmem:[#allocation5 + $0x820] sm:$0xff] %v3254
        %3287 = vst [vmem:[#allocation5 + $0x868] sm:$0xff] %v3255
        %3288 = vst [vmem:[#allocation5 + $0x8b0] sm:$0xff] %v3256
        %3289 = vst [vmem:[#allocation5 + $0x8f8] sm:$0xff] %v3257
        %v3290 = vld [vmem:[#allocation5] sm:$0xff]
        %v3291 = vld [vmem:[#allocation5 + $0x8] sm:$0xff]
        %v3292 = vld [vmem:[#allocation5 + $0x10] sm:$0xff]
        %v3293 = vld [vmem:[#allocation5 + $0x18] sm:$0xff]
        %v3294 = vld [vmem:[#allocation5 + $0x20] sm:$0xff]
        %v3295 = vld [vmem:[#allocation5 + $0x28] sm:$0xff]
        %v3296 = vld [vmem:[#allocation5 + $0x30] sm:$0xff]
        %v3297 = vld [vmem:[#allocation5 + $0x38] sm:$0xff]
        %v3298 = vld [vmem:[#allocation5 + $0x40] sm:$0xff]
        %v3299 = vld [vmem:[#allocation5 + $0x48] sm:$0xff]
        %v3300 = vld [vmem:[#allocation5 + $0x50] sm:$0xff]
        %v3301 = vld [vmem:[#allocation5 + $0x58] sm:$0xff]
        %v3302 = vld [vmem:[#allocation5 + $0x60] sm:$0xff]
        %v3303 = vld [vmem:[#allocation5 + $0x68] sm:$0xff]
        %v3304 = vld [vmem:[#allocation5 + $0x70] sm:$0xff]
        %v3305 = vld [vmem:[#allocation5 + $0x78] sm:$0xff]
        %v3306 = vld [vmem:[#allocation5 + $0x80] sm:$0xff]
        %v3307 = vld [vmem:[#allocation5 + $0x88] sm:$0xff]
        %v3308 = vld [vmem:[#allocation5 + $0x90] sm:$0xff]
        %v3309 = vld [vmem:[#allocation5 + $0x98] sm:$0xff]
        %v3310 = vld [vmem:[#allocation5 + $0xa0] sm:$0xff]
        %v3311 = vld [vmem:[#allocation5 + $0xa8] sm:$0xff]
        %v3312 = vld [vmem:[#allocation5 + $0xb0] sm:$0xff]
        %v3313 = vld [vmem:[#allocation5 + $0xb8] sm:$0xff]
        %v3314 = vld [vmem:[#allocation5 + $0xc0] sm:$0xff]
        %v3315 = vld [vmem:[#allocation5 + $0xc8] sm:$0xff]
        %v3316 = vld [vmem:[#allocation5 + $0xd0] sm:$0xff]
        %v3317 = vld [vmem:[#allocation5 + $0xd8] sm:$0xff]
        %v3318 = vld [vmem:[#allocation5 + $0xe0] sm:$0xff]
        %v3319 = vld [vmem:[#allocation5 + $0xe8] sm:$0xff]
        %v3320 = vld [vmem:[#allocation5 + $0xf0] sm:$0xff]
        %v3321 = vld [vmem:[#allocation5 + $0xf8] sm:$0xff]
        %v3322 = vld [vmem:[#allocation5 + $0x100] sm:$0xff]
        %v3323 = vld [vmem:[#allocation5 + $0x108] sm:$0xff]
        %v3324 = vld [vmem:[#allocation5 + $0x110] sm:$0xff]
        %v3325 = vld [vmem:[#allocation5 + $0x118] sm:$0xff]
        %v3326 = vld [vmem:[#allocation5 + $0x120] sm:$0xff]
        %v3327 = vld [vmem:[#allocation5 + $0x128] sm:$0xff]
        %v3328 = vld [vmem:[#allocation5 + $0x130] sm:$0xff]
        %v3329 = vld [vmem:[#allocation5 + $0x138] sm:$0xff]
        %v3330 = vld [vmem:[#allocation5 + $0x140] sm:$0xff]
        %v3331 = vld [vmem:[#allocation5 + $0x148] sm:$0xff]
        %v3332 = vld [vmem:[#allocation5 + $0x150] sm:$0xff]
        %v3333 = vld [vmem:[#allocation5 + $0x158] sm:$0xff]
        %v3334 = vld [vmem:[#allocation5 + $0x160] sm:$0xff]
        %v3335 = vld [vmem:[#allocation5 + $0x168] sm:$0xff]
        %v3336 = vld [vmem:[#allocation5 + $0x170] sm:$0xff]
        %v3337 = vld [vmem:[#allocation5 + $0x178] sm:$0xff]
        %v3338 = vld [vmem:[#allocation5 + $0x180] sm:$0xff]
        %v3339 = vld [vmem:[#allocation5 + $0x188] sm:$0xff]
        %v3340 = vld [vmem:[#allocation5 + $0x190] sm:$0xff]
        %v3341 = vld [vmem:[#allocation5 + $0x198] sm:$0xff]
        %v3342 = vld [vmem:[#allocation5 + $0x1a0] sm:$0xff]
        %v3343 = vld [vmem:[#allocation5 + $0x1a8] sm:$0xff]
        %v3344 = vld [vmem:[#allocation5 + $0x1b0] sm:$0xff]
        %v3345 = vld [vmem:[#allocation5 + $0x1b8] sm:$0xff]
        %v3346 = vld [vmem:[#allocation5 + $0x1c0] sm:$0xff]
        %v3347 = vld [vmem:[#allocation5 + $0x1c8] sm:$0xff]
        %v3348 = vld [vmem:[#allocation5 + $0x1d0] sm:$0xff]
        %v3349 = vld [vmem:[#allocation5 + $0x1d8] sm:$0xff]
        %v3350 = vld [vmem:[#allocation5 + $0x1e0] sm:$0xff]
        %v3351 = vld [vmem:[#allocation5 + $0x1e8] sm:$0xff]
        %v3352 = vld [vmem:[#allocation5 + $0x1f0] sm:$0xff]
        %v3353 = vld [vmem:[#allocation5 + $0x1f8] sm:$0xff]
        %v3354 = vld [vmem:[#allocation5 + $0x200] sm:$0xff]
        %v3355 = vld [vmem:[#allocation5 + $0x208] sm:$0xff]
        %v3356 = vld [vmem:[#allocation5 + $0x210] sm:$0xff]
        %v3357 = vld [vmem:[#allocation5 + $0x218] sm:$0xff]
        %v3358 = vld [vmem:[#allocation5 + $0x220] sm:$0xff]
        %v3359 = vld [vmem:[#allocation5 + $0x228] sm:$0xff]
        %v3360 = vld [vmem:[#allocation5 + $0x230] sm:$0xff]
        %v3361 = vld [vmem:[#allocation5 + $0x238] sm:$0xff]
        %v3362 = vld [vmem:[#allocation5 + $0x240] sm:$0xff]
        %v3363 = vld [vmem:[#allocation5 + $0x248] sm:$0xff]
        %v3364 = vld [vmem:[#allocation5 + $0x250] sm:$0xff]
        %v3365 = vld [vmem:[#allocation5 + $0x258] sm:$0xff]
        %v3366 = vld [vmem:[#allocation5 + $0x260] sm:$0xff]
        %v3367 = vld [vmem:[#allocation5 + $0x268] sm:$0xff]
        %v3368 = vld [vmem:[#allocation5 + $0x270] sm:$0xff]
        %v3369 = vld [vmem:[#allocation5 + $0x278] sm:$0xff]
        %v3370 = vld [vmem:[#allocation5 + $0x280] sm:$0xff]
        %v3371 = vld [vmem:[#allocation5 + $0x288] sm:$0xff]
        %v3372 = vld [vmem:[#allocation5 + $0x290] sm:$0xff]
        %v3373 = vld [vmem:[#allocation5 + $0x298] sm:$0xff]
        %v3374 = vld [vmem:[#allocation5 + $0x2a0] sm:$0xff]
        %v3375 = vld [vmem:[#allocation5 + $0x2a8] sm:$0xff]
        %v3376 = vld [vmem:[#allocation5 + $0x2b0] sm:$0xff]
        %v3377 = vld [vmem:[#allocation5 + $0x2b8] sm:$0xff]
        %v3378 = vld [vmem:[#allocation5 + $0x2c0] sm:$0xff]
        %v3379 = vld [vmem:[#allocation5 + $0x2c8] sm:$0xff]
        %v3380 = vld [vmem:[#allocation5 + $0x2d0] sm:$0xff]
        %v3381 = vld [vmem:[#allocation5 + $0x2d8] sm:$0xff]
        %v3382 = vld [vmem:[#allocation5 + $0x2e0] sm:$0xff]
        %v3383 = vld [vmem:[#allocation5 + $0x2e8] sm:$0xff]
        %v3384 = vld [vmem:[#allocation5 + $0x2f0] sm:$0xff]
        %v3385 = vld [vmem:[#allocation5 + $0x2f8] sm:$0xff]
        %v3386 = vld [vmem:[#allocation5 + $0x300] sm:$0xff]
        %v3387 = vld [vmem:[#allocation5 + $0x308] sm:$0xff]
        %v3388 = vld [vmem:[#allocation5 + $0x310] sm:$0xff]
        %v3389 = vld [vmem:[#allocation5 + $0x318] sm:$0xff]
        %v3390 = vld [vmem:[#allocation5 + $0x320] sm:$0xff]
        %v3391 = vld [vmem:[#allocation5 + $0x328] sm:$0xff]
        %v3392 = vld [vmem:[#allocation5 + $0x330] sm:$0xff]
        %v3393 = vld [vmem:[#allocation5 + $0x338] sm:$0xff]
        %v3394 = vld [vmem:[#allocation5 + $0x340] sm:$0xff]
        %v3395 = vld [vmem:[#allocation5 + $0x348] sm:$0xff]
        %v3396 = vld [vmem:[#allocation5 + $0x350] sm:$0xff]
        %v3397 = vld [vmem:[#allocation5 + $0x358] sm:$0xff]
        %v3398 = vld [vmem:[#allocation5 + $0x360] sm:$0xff]
        %v3399 = vld [vmem:[#allocation5 + $0x368] sm:$0xff]
        %v3400 = vld [vmem:[#allocation5 + $0x370] sm:$0xff]
        %v3401 = vld [vmem:[#allocation5 + $0x378] sm:$0xff]
        %v3402 = vld [vmem:[#allocation5 + $0x380] sm:$0xff]
        %v3403 = vld [vmem:[#allocation5 + $0x388] sm:$0xff]
        %v3404 = vld [vmem:[#allocation5 + $0x390] sm:$0xff]
        %v3405 = vld [vmem:[#allocation5 + $0x398] sm:$0xff]
        %v3406 = vld [vmem:[#allocation5 + $0x3a0] sm:$0xff]
        %v3407 = vld [vmem:[#allocation5 + $0x3a8] sm:$0xff]
        %v3408 = vld [vmem:[#allocation5 + $0x3b0] sm:$0xff]
        %v3409 = vld [vmem:[#allocation5 + $0x3b8] sm:$0xff]
        %v3410 = vld [vmem:[#allocation5 + $0x3c0] sm:$0xff]
        %v3411 = vld [vmem:[#allocation5 + $0x3c8] sm:$0xff]
        %v3412 = vld [vmem:[#allocation5 + $0x3d0] sm:$0xff]
        %v3413 = vld [vmem:[#allocation5 + $0x3d8] sm:$0xff]
        %v3414 = vld [vmem:[#allocation5 + $0x3e0] sm:$0xff]
        %v3415 = vld [vmem:[#allocation5 + $0x3e8] sm:$0xff]
        %v3416 = vld [vmem:[#allocation5 + $0x3f0] sm:$0xff]
        %v3417 = vld [vmem:[#allocation5 + $0x3f8] sm:$0xff]
        %v3418 = vld [vmem:[#allocation5 + $0x400] sm:$0xff]
        %v3419 = vld [vmem:[#allocation5 + $0x408] sm:$0xff]
        %v3420 = vld [vmem:[#allocation5 + $0x410] sm:$0xff]
        %v3421 = vld [vmem:[#allocation5 + $0x418] sm:$0xff]
        %v3422 = vld [vmem:[#allocation5 + $0x420] sm:$0xff]
        %v3423 = vld [vmem:[#allocation5 + $0x428] sm:$0xff]
        %v3424 = vld [vmem:[#allocation5 + $0x430] sm:$0xff]
        %v3425 = vld [vmem:[#allocation5 + $0x438] sm:$0xff]
        %v3426 = vld [vmem:[#allocation5 + $0x440] sm:$0xff]
        %v3427 = vld [vmem:[#allocation5 + $0x448] sm:$0xff]
        %v3428 = vld [vmem:[#allocation5 + $0x450] sm:$0xff]
        %v3429 = vld [vmem:[#allocation5 + $0x458] sm:$0xff]
        %v3430 = vld [vmem:[#allocation5 + $0x460] sm:$0xff]
        %v3431 = vld [vmem:[#allocation5 + $0x468] sm:$0xff]
        %v3432 = vld [vmem:[#allocation5 + $0x470] sm:$0xff]
        %v3433 = vld [vmem:[#allocation5 + $0x478] sm:$0xff]
        %v3434 = vld [vmem:[#allocation5 + $0x480] sm:$0xff]
        %v3435 = vld [vmem:[#allocation5 + $0x488] sm:$0xff]
        %v3436 = vld [vmem:[#allocation5 + $0x490] sm:$0xff]
        %v3437 = vld [vmem:[#allocation5 + $0x498] sm:$0xff]
        %v3438 = vld [vmem:[#allocation5 + $0x4a0] sm:$0xff]
        %v3439 = vld [vmem:[#allocation5 + $0x4a8] sm:$0xff]
        %v3440 = vld [vmem:[#allocation5 + $0x4b0] sm:$0xff]
        %v3441 = vld [vmem:[#allocation5 + $0x4b8] sm:$0xff]
        %v3442 = vld [vmem:[#allocation5 + $0x4c0] sm:$0xff]
        %v3443 = vld [vmem:[#allocation5 + $0x4c8] sm:$0xff]
        %v3444 = vld [vmem:[#allocation5 + $0x4d0] sm:$0xff]
        %v3445 = vld [vmem:[#allocation5 + $0x4d8] sm:$0xff]
        %v3446 = vld [vmem:[#allocation5 + $0x4e0] sm:$0xff]
        %v3447 = vld [vmem:[#allocation5 + $0x4e8] sm:$0xff]
        %v3448 = vld [vmem:[#allocation5 + $0x4f0] sm:$0xff]
        %v3449 = vld [vmem:[#allocation5 + $0x4f8] sm:$0xff]
        %v3450 = vld [vmem:[#allocation5 + $0x500] sm:$0xff]
        %v3451 = vld [vmem:[#allocation5 + $0x508] sm:$0xff]
        %v3452 = vld [vmem:[#allocation5 + $0x510] sm:$0xff]
        %v3453 = vld [vmem:[#allocation5 + $0x518] sm:$0xff]
        %v3454 = vld [vmem:[#allocation5 + $0x520] sm:$0xff]
        %v3455 = vld [vmem:[#allocation5 + $0x528] sm:$0xff]
        %v3456 = vld [vmem:[#allocation5 + $0x530] sm:$0xff]
        %v3457 = vld [vmem:[#allocation5 + $0x538] sm:$0xff]
        %v3458 = vld [vmem:[#allocation5 + $0x540] sm:$0xff]
        %v3459 = vld [vmem:[#allocation5 + $0x548] sm:$0xff]
        %v3460 = vld [vmem:[#allocation5 + $0x550] sm:$0xff]
        %v3461 = vld [vmem:[#allocation5 + $0x558] sm:$0xff]
        %v3462 = vld [vmem:[#allocation5 + $0x560] sm:$0xff]
        %v3463 = vld [vmem:[#allocation5 + $0x568] sm:$0xff]
        %v3464 = vld [vmem:[#allocation5 + $0x570] sm:$0xff]
        %v3465 = vld [vmem:[#allocation5 + $0x578] sm:$0xff]
        %v3466 = vld [vmem:[#allocation5 + $0x580] sm:$0xff]
        %v3467 = vld [vmem:[#allocation5 + $0x588] sm:$0xff]
        %v3468 = vld [vmem:[#allocation5 + $0x590] sm:$0xff]
        %v3469 = vld [vmem:[#allocation5 + $0x598] sm:$0xff]
        %v3470 = vld [vmem:[#allocation5 + $0x5a0] sm:$0xff]
        %v3471 = vld [vmem:[#allocation5 + $0x5a8] sm:$0xff]
        %v3472 = vld [vmem:[#allocation5 + $0x5b0] sm:$0xff]
        %v3473 = vld [vmem:[#allocation5 + $0x5b8] sm:$0xff]
        %v3474 = vld [vmem:[#allocation5 + $0x5c0] sm:$0xff]
        %v3475 = vld [vmem:[#allocation5 + $0x5c8] sm:$0xff]
        %v3476 = vld [vmem:[#allocation5 + $0x5d0] sm:$0xff]
        %v3477 = vld [vmem:[#allocation5 + $0x5d8] sm:$0xff]
        %v3478 = vld [vmem:[#allocation5 + $0x5e0] sm:$0xff]
        %v3479 = vld [vmem:[#allocation5 + $0x5e8] sm:$0xff]
        %v3480 = vld [vmem:[#allocation5 + $0x5f0] sm:$0xff]
        %v3481 = vld [vmem:[#allocation5 + $0x5f8] sm:$0xff]
        %v3482 = vld [vmem:[#allocation5 + $0x600] sm:$0xff]
        %v3483 = vld [vmem:[#allocation5 + $0x608] sm:$0xff]
        %v3484 = vld [vmem:[#allocation5 + $0x610] sm:$0xff]
        %v3485 = vld [vmem:[#allocation5 + $0x618] sm:$0xff]
        %v3486 = vld [vmem:[#allocation5 + $0x620] sm:$0xff]
        %v3487 = vld [vmem:[#allocation5 + $0x628] sm:$0xff]
        %v3488 = vld [vmem:[#allocation5 + $0x630] sm:$0xff]
        %v3489 = vld [vmem:[#allocation5 + $0x638] sm:$0xff]
        %v3490 = vld [vmem:[#allocation5 + $0x640] sm:$0xff]
        %v3491 = vld [vmem:[#allocation5 + $0x648] sm:$0xff]
        %v3492 = vld [vmem:[#allocation5 + $0x650] sm:$0xff]
        %v3493 = vld [vmem:[#allocation5 + $0x658] sm:$0xff]
        %v3494 = vld [vmem:[#allocation5 + $0x660] sm:$0xff]
        %v3495 = vld [vmem:[#allocation5 + $0x668] sm:$0xff]
        %v3496 = vld [vmem:[#allocation5 + $0x670] sm:$0xff]
        %v3497 = vld [vmem:[#allocation5 + $0x678] sm:$0xff]
        %v3498 = vld [vmem:[#allocation5 + $0x680] sm:$0xff]
        %v3499 = vld [vmem:[#allocation5 + $0x688] sm:$0xff]
        %v3500 = vld [vmem:[#allocation5 + $0x690] sm:$0xff]
        %v3501 = vld [vmem:[#allocation5 + $0x698] sm:$0xff]
        %v3502 = vld [vmem:[#allocation5 + $0x6a0] sm:$0xff]
        %v3503 = vld [vmem:[#allocation5 + $0x6a8] sm:$0xff]
        %v3504 = vld [vmem:[#allocation5 + $0x6b0] sm:$0xff]
        %v3505 = vld [vmem:[#allocation5 + $0x6b8] sm:$0xff]
        %v3506 = vld [vmem:[#allocation5 + $0x6c0] sm:$0xff]
        %v3507 = vld [vmem:[#allocation5 + $0x6c8] sm:$0xff]
        %v3508 = vld [vmem:[#allocation5 + $0x6d0] sm:$0xff]
        %v3509 = vld [vmem:[#allocation5 + $0x6d8] sm:$0xff]
        %v3510 = vld [vmem:[#allocation5 + $0x6e0] sm:$0xff]
        %v3511 = vld [vmem:[#allocation5 + $0x6e8] sm:$0xff]
        %v3512 = vld [vmem:[#allocation5 + $0x6f0] sm:$0xff]
        %v3513 = vld [vmem:[#allocation5 + $0x6f8] sm:$0xff]
        %v3514 = vld [vmem:[#allocation5 + $0x700] sm:$0xff]
        %v3515 = vld [vmem:[#allocation5 + $0x708] sm:$0xff]
        %v3516 = vld [vmem:[#allocation5 + $0x710] sm:$0xff]
        %v3517 = vld [vmem:[#allocation5 + $0x718] sm:$0xff]
        %v3518 = vld [vmem:[#allocation5 + $0x720] sm:$0xff]
        %v3519 = vld [vmem:[#allocation5 + $0x728] sm:$0xff]
        %v3520 = vld [vmem:[#allocation5 + $0x730] sm:$0xff]
        %v3521 = vld [vmem:[#allocation5 + $0x738] sm:$0xff]
        %v3522 = vld [vmem:[#allocation5 + $0x740] sm:$0xff]
        %v3523 = vld [vmem:[#allocation5 + $0x748] sm:$0xff]
        %v3524 = vld [vmem:[#allocation5 + $0x750] sm:$0xff]
        %v3525 = vld [vmem:[#allocation5 + $0x758] sm:$0xff]
        %v3526 = vld [vmem:[#allocation5 + $0x760] sm:$0xff]
        %v3527 = vld [vmem:[#allocation5 + $0x768] sm:$0xff]
        %v3528 = vld [vmem:[#allocation5 + $0x770] sm:$0xff]
        %v3529 = vld [vmem:[#allocation5 + $0x778] sm:$0xff]
        %v3530 = vld [vmem:[#allocation5 + $0x780] sm:$0xff]
        %v3531 = vld [vmem:[#allocation5 + $0x788] sm:$0xff]
        %v3532 = vld [vmem:[#allocation5 + $0x790] sm:$0xff]
        %v3533 = vld [vmem:[#allocation5 + $0x798] sm:$0xff]
        %v3534 = vld [vmem:[#allocation5 + $0x7a0] sm:$0xff]
        %v3535 = vld [vmem:[#allocation5 + $0x7a8] sm:$0xff]
        %v3536 = vld [vmem:[#allocation5 + $0x7b0] sm:$0xff]
        %v3537 = vld [vmem:[#allocation5 + $0x7b8] sm:$0xff]
        %v3538 = vld [vmem:[#allocation5 + $0x7c0] sm:$0xff]
        %v3539 = vld [vmem:[#allocation5 + $0x7c8] sm:$0xff]
        %v3540 = vld [vmem:[#allocation5 + $0x7d0] sm:$0xff]
        %v3541 = vld [vmem:[#allocation5 + $0x7d8] sm:$0xff]
        %v3542 = vld [vmem:[#allocation5 + $0x7e0] sm:$0xff]
        %v3543 = vld [vmem:[#allocation5 + $0x7e8] sm:$0xff]
        %v3544 = vld [vmem:[#allocation5 + $0x7f0] sm:$0xff]
        %v3545 = vld [vmem:[#allocation5 + $0x7f8] sm:$0xff]
        %v3546 = vld [vmem:[#allocation5 + $0x800] sm:$0xff]
        %v3547 = vld [vmem:[#allocation5 + $0x808] sm:$0xff]
        %v3548 = vld [vmem:[#allocation5 + $0x810] sm:$0xff]
        %v3549 = vld [vmem:[#allocation5 + $0x818] sm:$0xff]
        %v3550 = vld [vmem:[#allocation5 + $0x820] sm:$0xff]
        %v3551 = vld [vmem:[#allocation5 + $0x828] sm:$0xff]
        %v3552 = vld [vmem:[#allocation5 + $0x830] sm:$0xff]
        %v3553 = vld [vmem:[#allocation5 + $0x838] sm:$0xff]
        %v3554 = vld [vmem:[#allocation5 + $0x840] sm:$0xff]
        %v3555 = vld [vmem:[#allocation5 + $0x848] sm:$0xff]
        %v3556 = vld [vmem:[#allocation5 + $0x850] sm:$0xff]
        %v3557 = vld [vmem:[#allocation5 + $0x858] sm:$0xff]
        %v3558 = vld [vmem:[#allocation5 + $0x860] sm:$0xff]
        %v3559 = vld [vmem:[#allocation5 + $0x868] sm:$0xff]
        %v3560 = vld [vmem:[#allocation5 + $0x870] sm:$0xff]
        %v3561 = vld [vmem:[#allocation5 + $0x878] sm:$0xff]
        %v3562 = vld [vmem:[#allocation5 + $0x880] sm:$0xff]
        %v3563 = vld [vmem:[#allocation5 + $0x888] sm:$0xff]
        %v3564 = vld [vmem:[#allocation5 + $0x890] sm:$0xff]
        %v3565 = vld [vmem:[#allocation5 + $0x898] sm:$0xff]
        %v3566 = vld [vmem:[#allocation5 + $0x8a0] sm:$0xff]
        %v3567 = vld [vmem:[#allocation5 + $0x8a8] sm:$0xff]
        %v3568 = vld [vmem:[#allocation5 + $0x8b0] sm:$0xff]
        %v3569 = vld [vmem:[#allocation5 + $0x8b8] sm:$0xff]
        %v3570 = vld [vmem:[#allocation5 + $0x8c0] sm:$0xff]
        %v3571 = vld [vmem:[#allocation5 + $0x8c8] sm:$0xff]
        %v3572 = vld [vmem:[#allocation5 + $0x8d0] sm:$0xff]
        %v3573 = vld [vmem:[#allocation5 + $0x8d8] sm:$0xff]
        %v3574 = vld [vmem:[#allocation5 + $0x8e0] sm:$0xff]
        %v3575 = vld [vmem:[#allocation5 + $0x8e8] sm:$0xff]
        %v3576 = vld [vmem:[#allocation5 + $0x8f0] sm:$0xff]
        %v3577 = vld [vmem:[#allocation5 + $0x8f8] sm:$0xff]
        %v3578 = vld [vmem:[#allocation12] sm:$0xff]
        %v3579 = vld [vmem:[#allocation12 + $0x8] sm:$0xff]
        %v3580 = vld [vmem:[#allocation12 + $0x10] sm:$0xff]
        %v3581 = vld [vmem:[#allocation12 + $0x18] sm:$0xff]
        %v3582 = vld [vmem:[#allocation12 + $0x20] sm:$0xff]
        %v3583 = vld [vmem:[#allocation12 + $0x28] sm:$0xff]
        %v3584 = vld [vmem:[#allocation12 + $0x30] sm:$0xff]
        %v3585 = vld [vmem:[#allocation12 + $0x38] sm:$0xff]
        %v3586 = vld [vmem:[#allocation12 + $0x40] sm:$0xff]
        %v3587 = vld [vmem:[#allocation12 + $0x48] sm:$0xff]
        %v3588 = vld [vmem:[#allocation12 + $0x50] sm:$0xff]
        %v3589 = vld [vmem:[#allocation12 + $0x58] sm:$0xff]
        %v3590 = vld [vmem:[#allocation12 + $0x60] sm:$0xff]
        %v3591 = vld [vmem:[#allocation12 + $0x68] sm:$0xff]
        %v3592 = vld [vmem:[#allocation12 + $0x70] sm:$0xff]
        %v3593 = vld [vmem:[#allocation12 + $0x78] sm:$0xff]
        %v3594 = vld [vmem:[#allocation12 + $0x80] sm:$0xff]
        %v3595 = vld [vmem:[#allocation12 + $0x88] sm:$0xff]
        %v3596 = vld [vmem:[#allocation12 + $0x90] sm:$0xff]
        %v3597 = vld [vmem:[#allocation12 + $0x98] sm:$0xff]
        %v3598 = vld [vmem:[#allocation12 + $0xa0] sm:$0xff]
        %v3599 = vld [vmem:[#allocation12 + $0xa8] sm:$0xff]
        %v3600 = vld [vmem:[#allocation12 + $0xb0] sm:$0xff]
        %v3601 = vld [vmem:[#allocation12 + $0xb8] sm:$0xff]
        %v3602 = vld [vmem:[#allocation12 + $0xc0] sm:$0xff]
        %v3603 = vld [vmem:[#allocation12 + $0xc8] sm:$0xff]
        %v3604 = vld [vmem:[#allocation12 + $0xd0] sm:$0xff]
        %v3605 = vld [vmem:[#allocation12 + $0xd8] sm:$0xff]
        %v3606 = vld [vmem:[#allocation12 + $0xe0] sm:$0xff]
        %v3607 = vld [vmem:[#allocation12 + $0xe8] sm:$0xff]
        %v3608 = vld [vmem:[#allocation12 + $0xf0] sm:$0xff]
        %v3609 = vld [vmem:[#allocation12 + $0xf8] sm:$0xff]
        %v3610 = vld [vmem:[#allocation12 + $0x100] sm:$0xff]
        %v3611 = vld [vmem:[#allocation12 + $0x108] sm:$0xff]
        %v3612 = vld [vmem:[#allocation12 + $0x110] sm:$0xff]
        %v3613 = vld [vmem:[#allocation12 + $0x118] sm:$0xff]
        %v3614 = vld [vmem:[#allocation12 + $0x120] sm:$0xff]
        %v3615 = vld [vmem:[#allocation12 + $0x128] sm:$0xff]
        %v3616 = vld [vmem:[#allocation12 + $0x130] sm:$0xff]
        %v3617 = vld [vmem:[#allocation12 + $0x138] sm:$0xff]
        %v3618 = vld [vmem:[#allocation12 + $0x140] sm:$0xff]
        %v3619 = vld [vmem:[#allocation12 + $0x148] sm:$0xff]
        %v3620 = vld [vmem:[#allocation12 + $0x150] sm:$0xff]
        %v3621 = vld [vmem:[#allocation12 + $0x158] sm:$0xff]
        %v3622 = vld [vmem:[#allocation12 + $0x160] sm:$0xff]
        %v3623 = vld [vmem:[#allocation12 + $0x168] sm:$0xff]
        %v3624 = vld [vmem:[#allocation12 + $0x170] sm:$0xff]
        %v3625 = vld [vmem:[#allocation12 + $0x178] sm:$0xff]
        %v3626 = vld [vmem:[#allocation12 + $0x180] sm:$0xff]
        %v3627 = vld [vmem:[#allocation12 + $0x188] sm:$0xff]
        %v3628 = vld [vmem:[#allocation12 + $0x190] sm:$0xff]
        %v3629 = vld [vmem:[#allocation12 + $0x198] sm:$0xff]
        %v3630 = vld [vmem:[#allocation12 + $0x1a0] sm:$0xff]
        %v3631 = vld [vmem:[#allocation12 + $0x1a8] sm:$0xff]
        %v3632 = vld [vmem:[#allocation12 + $0x1b0] sm:$0xff]
        %v3633 = vld [vmem:[#allocation12 + $0x1b8] sm:$0xff]
        %v3634 = vld [vmem:[#allocation12 + $0x1c0] sm:$0xff]
        %v3635 = vld [vmem:[#allocation12 + $0x1c8] sm:$0xff]
        %v3636 = vld [vmem:[#allocation12 + $0x1d0] sm:$0xff]
        %v3637 = vld [vmem:[#allocation12 + $0x1d8] sm:$0xff]
        %v3638 = vld [vmem:[#allocation12 + $0x1e0] sm:$0xff]
        %v3639 = vld [vmem:[#allocation12 + $0x1e8] sm:$0xff]
        %v3640 = vld [vmem:[#allocation12 + $0x1f0] sm:$0xff]
        %v3641 = vld [vmem:[#allocation12 + $0x1f8] sm:$0xff]
        %v3642 = vld [vmem:[#allocation12 + $0x200] sm:$0xff]
        %v3643 = vld [vmem:[#allocation12 + $0x208] sm:$0xff]
        %v3644 = vld [vmem:[#allocation12 + $0x210] sm:$0xff]
        %v3645 = vld [vmem:[#allocation12 + $0x218] sm:$0xff]
        %v3646 = vld [vmem:[#allocation12 + $0x220] sm:$0xff]
        %v3647 = vld [vmem:[#allocation12 + $0x228] sm:$0xff]
        %v3648 = vld [vmem:[#allocation12 + $0x230] sm:$0xff]
        %v3649 = vld [vmem:[#allocation12 + $0x238] sm:$0xff]
        %v3650 = vld [vmem:[#allocation12 + $0x240] sm:$0xff]
        %v3651 = vld [vmem:[#allocation12 + $0x248] sm:$0xff]
        %v3652 = vld [vmem:[#allocation12 + $0x250] sm:$0xff]
        %v3653 = vld [vmem:[#allocation12 + $0x258] sm:$0xff]
        %v3654 = vld [vmem:[#allocation12 + $0x260] sm:$0xff]
        %v3655 = vld [vmem:[#allocation12 + $0x268] sm:$0xff]
        %v3656 = vld [vmem:[#allocation12 + $0x270] sm:$0xff]
        %v3657 = vld [vmem:[#allocation12 + $0x278] sm:$0xff]
        %v3658 = vld [vmem:[#allocation12 + $0x280] sm:$0xff]
        %v3659 = vld [vmem:[#allocation12 + $0x288] sm:$0xff]
        %v3660 = vld [vmem:[#allocation12 + $0x290] sm:$0xff]
        %v3661 = vld [vmem:[#allocation12 + $0x298] sm:$0xff]
        %v3662 = vld [vmem:[#allocation12 + $0x2a0] sm:$0xff]
        %v3663 = vld [vmem:[#allocation12 + $0x2a8] sm:$0xff]
        %v3664 = vld [vmem:[#allocation12 + $0x2b0] sm:$0xff]
        %v3665 = vld [vmem:[#allocation12 + $0x2b8] sm:$0xff]
        %v3666 = vld [vmem:[#allocation12 + $0x2c0] sm:$0xff]
        %v3667 = vld [vmem:[#allocation12 + $0x2c8] sm:$0xff]
        %v3668 = vld [vmem:[#allocation12 + $0x2d0] sm:$0xff]
        %v3669 = vld [vmem:[#allocation12 + $0x2d8] sm:$0xff]
        %v3670 = vld [vmem:[#allocation12 + $0x2e0] sm:$0xff]
        %v3671 = vld [vmem:[#allocation12 + $0x2e8] sm:$0xff]
        %v3672 = vld [vmem:[#allocation12 + $0x2f0] sm:$0xff]
        %v3673 = vld [vmem:[#allocation12 + $0x2f8] sm:$0xff]
        %v3674 = vld [vmem:[#allocation12 + $0x300] sm:$0xff]
        %v3675 = vld [vmem:[#allocation12 + $0x308] sm:$0xff]
        %v3676 = vld [vmem:[#allocation12 + $0x310] sm:$0xff]
        %v3677 = vld [vmem:[#allocation12 + $0x318] sm:$0xff]
        %v3678 = vld [vmem:[#allocation12 + $0x320] sm:$0xff]
        %v3679 = vld [vmem:[#allocation12 + $0x328] sm:$0xff]
        %v3680 = vld [vmem:[#allocation12 + $0x330] sm:$0xff]
        %v3681 = vld [vmem:[#allocation12 + $0x338] sm:$0xff]
        %v3682 = vld [vmem:[#allocation12 + $0x340] sm:$0xff]
        %v3683 = vld [vmem:[#allocation12 + $0x348] sm:$0xff]
        %v3684 = vld [vmem:[#allocation12 + $0x350] sm:$0xff]
        %v3685 = vld [vmem:[#allocation12 + $0x358] sm:$0xff]
        %v3686 = vld [vmem:[#allocation12 + $0x360] sm:$0xff]
        %v3687 = vld [vmem:[#allocation12 + $0x368] sm:$0xff]
        %v3688 = vld [vmem:[#allocation12 + $0x370] sm:$0xff]
        %v3689 = vld [vmem:[#allocation12 + $0x378] sm:$0xff]
        %v3690 = vld [vmem:[#allocation12 + $0x380] sm:$0xff]
        %v3691 = vld [vmem:[#allocation12 + $0x388] sm:$0xff]
        %v3692 = vld [vmem:[#allocation12 + $0x390] sm:$0xff]
        %v3693 = vld [vmem:[#allocation12 + $0x398] sm:$0xff]
        %v3694 = vld [vmem:[#allocation12 + $0x3a0] sm:$0xff]
        %v3695 = vld [vmem:[#allocation12 + $0x3a8] sm:$0xff]
        %v3696 = vld [vmem:[#allocation12 + $0x3b0] sm:$0xff]
        %v3697 = vld [vmem:[#allocation12 + $0x3b8] sm:$0xff]
        %v3698 = vld [vmem:[#allocation12 + $0x3c0] sm:$0xff]
        %v3699 = vld [vmem:[#allocation12 + $0x3c8] sm:$0xff]
        %v3700 = vld [vmem:[#allocation12 + $0x3d0] sm:$0xff]
        %v3701 = vld [vmem:[#allocation12 + $0x3d8] sm:$0xff]
        %v3702 = vld [vmem:[#allocation12 + $0x3e0] sm:$0xff]
        %v3703 = vld [vmem:[#allocation12 + $0x3e8] sm:$0xff]
        %v3704 = vld [vmem:[#allocation12 + $0x3f0] sm:$0xff]
        %v3705 = vld [vmem:[#allocation12 + $0x3f8] sm:$0xff]
        %v3706 = vld [vmem:[#allocation12 + $0x400] sm:$0xff]
        %v3707 = vld [vmem:[#allocation12 + $0x408] sm:$0xff]
        %v3708 = vld [vmem:[#allocation12 + $0x410] sm:$0xff]
        %v3709 = vld [vmem:[#allocation12 + $0x418] sm:$0xff]
        %v3710 = vld [vmem:[#allocation12 + $0x420] sm:$0xff]
        %v3711 = vld [vmem:[#allocation12 + $0x428] sm:$0xff]
        %v3712 = vld [vmem:[#allocation12 + $0x430] sm:$0xff]
        %v3713 = vld [vmem:[#allocation12 + $0x438] sm:$0xff]
        %v3714 = vld [vmem:[#allocation12 + $0x440] sm:$0xff]
        %v3715 = vld [vmem:[#allocation12 + $0x448] sm:$0xff]
        %v3716 = vld [vmem:[#allocation12 + $0x450] sm:$0xff]
        %v3717 = vld [vmem:[#allocation12 + $0x458] sm:$0xff]
        %v3718 = vld [vmem:[#allocation12 + $0x460] sm:$0xff]
        %v3719 = vld [vmem:[#allocation12 + $0x468] sm:$0xff]
        %v3720 = vld [vmem:[#allocation12 + $0x470] sm:$0xff]
        %v3721 = vld [vmem:[#allocation12 + $0x478] sm:$0xff]
        %3722 = vmatprep.subr.mxu0 0.0
        %3723 = vmatpush1.msra.mxu0 %v3578
        %3724 = vmatprep.subr.mxu0 0.0
        %3725 = vmatpush1.msra.mxu0 %v3579
        %3726 = vmatprep.subr.mxu0 0.0
        %3727 = vmatpush1.msra.mxu0 %v3580
        %3728 = vmatprep.subr.mxu0 0.0
        %3729 = vmatpush1.msra.mxu0 %v3581
        %3730 = vmatprep.subr.mxu0 0.0
        %3731 = vmatpush1.msra.mxu0 %v3582
        %3732 = vmatprep.subr.mxu0 0.0
        %3733 = vmatpush1.msra.mxu0 %v3583
        %3734 = vmatprep.subr.mxu0 0.0
        %3735 = vmatpush1.msra.mxu0 %v3584
        %3736 = vmatprep.subr.mxu0 0.0
        %3737 = vmatpush1.msra.mxu0 %v3585
        %3738 = vmatprep.subr.mxu0 0.0
        %3739 = vmatpush1.msra.mxu0 %v3586
        %3740 = vmatprep.subr.mxu0 0.0
        %3741 = vmatpush1.msra.mxu0 %v3587
        %3742 = vmatprep.subr.mxu0 0.0
        %3743 = vmatpush1.msra.mxu0 %v3588
        %3744 = vmatprep.subr.mxu0 0.0
        %3745 = vmatpush1.msra.mxu0 %v3589
        %3746 = vmatprep.subr.mxu0 0.0
        %3747 = vmatpush1.msra.mxu0 %v3590
        %3748 = vmatprep.subr.mxu0 0.0
        %3749 = vmatpush1.msra.mxu0 %v3591
        %3750 = vmatprep.subr.mxu0 0.0
        %3751 = vmatpush1.msra.mxu0 %v3592
        %3752 = vmatprep.subr.mxu0 0.0
        %3753 = vmatpush1.msra.mxu0 %v3593
        %3754 = vmatprep.subr.mxu0 0.0
        %3755 = vmatpush1.msra.mxu0 %v3594
        %3756 = vmatprep.subr.mxu0 0.0
        %3757 = vmatpush1.msra.mxu0 %v3595
        %3758 = vmatprep.subr.mxu0 0.0
        %3759 = vmatpush1.msra.mxu0 %v3596
        %3760 = vmatprep.subr.mxu0 0.0
        %3761 = vmatpush1.msra.mxu0 %v3597
        %3762 = vmatprep.subr.mxu0 0.0
        %3763 = vmatpush1.msra.mxu0 %v3598
        %3764 = vmatprep.subr.mxu0 0.0
        %3765 = vmatpush1.msra.mxu0 %v3599
        %3766 = vmatprep.subr.mxu0 0.0
        %3767 = vmatpush1.msra.mxu0 %v3600
        %3768 = vmatprep.subr.mxu0 0.0
        %3769 = vmatpush1.msra.mxu0 %v3601
        %3770 = vmatprep.subr.mxu0 0.0
        %3771 = vmatpush1.msra.mxu0 %v3602
        %3772 = vmatprep.subr.mxu0 0.0
        %3773 = vmatpush1.msra.mxu0 %v3603
        %3774 = vmatprep.subr.mxu0 0.0
        %3775 = vmatpush1.msra.mxu0 %v3604
        %3776 = vmatprep.subr.mxu0 0.0
        %3777 = vmatpush1.msra.mxu0 %v3605
        %3778 = vmatprep.subr.mxu0 0.0
        %3779 = vmatpush1.msra.mxu0 %v3606
        %3780 = vmatprep.subr.mxu0 0.0
        %3781 = vmatpush1.msra.mxu0 %v3607
        %3782 = vmatprep.subr.mxu0 0.0
        %3783 = vmatpush1.msra.mxu0 %v3608
        %3784 = vmatprep.subr.mxu0 0.0
        %3785 = vmatpush1.msra.mxu0 %v3609
        %3786 = vmatprep.mubr.f32.mxu0 %v3291
        %3787 = vmatmul.mubr.f32.gmra.mrb[0].mxu0 %v3290
        %v3788 = vpop.f32.mrb[0].mxu0
        %v3789 = vadd.f32 0.0, %v3788
        %v3790 = vpop.f32.mrb[0].mxu0
        %3791 = vmatprep.mubr.f32.mxu0 %v3300
        %3792 = vmatmul.mubr.f32.gmra.mrb[0].mxu0 %v3299
        %v3793 = vpop.f32.mrb[0].mxu0
        %v3794 = vadd.f32 0.0, %v3793
        %v3795 = vpop.f32.mrb[0].mxu0
        %3796 = vmatprep.mubr.f32.mxu0 %v3309
        %3797 = vmatmul.mubr.f32.gmra.mrb[0].mxu0 %v3308
        %v3798 = vpop.f32.mrb[0].mxu0
        %v3799 = vadd.f32 0.0, %v3798
        %v3800 = vpop.f32.mrb[0].mxu0
        %3801 = vmatprep.mubr.f32.mxu0 %v3318
        %3802 = vmatmul.mubr.f32.gmra.mrb[0].mxu0 %v3317
        %v3803 = vpop.f32.mrb[0].mxu0
        %v3804 = vadd.f32 0.0, %v3803
        %v3805 = vpop.f32.mrb[0].mxu0
        %3806 = vmatprep.mubr.f32.mxu0 %v3327
        %3807 = vmatmul.mubr.f32.gmra.mrb[0].mxu0 %v3326
        %v3808 = vpop.f32.mrb[0].mxu0
        %v3809 = vadd.f32 0.0, %v3808
        %v3810 = vpop.f32.mrb[0].mxu0
        %3811 = vmatprep.mubr.f32.mxu0 %v3336
        %3812 = vmatmul.mubr.f32.gmra.mrb[0].mxu0 %v3335
        %v3813 = vpop.f32.mrb[0].mxu0
        %v3814 = vadd.f32 0.0, %v3813
        %v3815 = vpop.f32.mrb[0].mxu0
        %3816 = vmatprep.mubr.f32.mxu0 %v3345
        %3817 = vmatmul.mubr.f32.gmra.mrb[0].mxu0 %v3344
        %v3818 = vpop.f32.mrb[0].mxu0
        %v3819 = vadd.f32 0.0, %v3818
        %v3820 = vpop.f32.mrb[0].mxu0
        %3821 = vmatprep.mubr.f32.mxu0 %v3354
        %3822 = vmatmul.mubr.f32.gmra.mrb[0].mxu0 %v3353
        %v3823 = vpop.f32.mrb[0].mxu0
        %v3824 = vadd.f32 0.0, %v3823
        %v3825 = vpop.f32.mrb[0].mxu0
        %3826 = vmatprep.mubr.f32.mxu0 %v3363
        %3827 = vmatmul.mubr.f32.gmra.mrb[0].mxu0 %v3362
        %v3828 = vpop.f32.mrb[0].mxu0
        %v3829 = vadd.f32 0.0, %v3828
        %v3830 = vpop.f32.mrb[0].mxu0
        %3831 = vmatprep.mubr.f32.mxu0 %v3372
        %3832 = vmatmul.mubr.f32.gmra.mrb[0].mxu0 %v3371
        %v3833 = vpop.f32.mrb[0].mxu0
        %v3834 = vadd.f32 0.0, %v3833
        %v3835 = vpop.f32.mrb[0].mxu0
        %3836 = vmatprep.mubr.f32.mxu0 %v3381
        %3837 = vmatmul.mubr.f32.gmra.mrb[0].mxu0 %v3380
        %v3838 = vpop.f32.mrb[0].mxu0
        %v3839 = vadd.f32 0.0, %v3838
        %v3840 = vpop.f32.mrb[0].mxu0
        %3841 = vmatprep.mubr.f32.mxu0 %v3390
        %3842 = vmatmul.mubr.f32.gmra.mrb[0].mxu0 %v3389
        %v3843 = vpop.f32.mrb[0].mxu0
        %v3844 = vadd.f32 0.0, %v3843
        %v3845 = vpop.f32.mrb[0].mxu0
        %3846 = vmatprep.mubr.f32.mxu0 %v3399
        %3847 = vmatmul.mubr.f32.gmra.mrb[0].mxu0 %v3398
        %v3848 = vpop.f32.mrb[0].mxu0
        %v3849 = vadd.f32 0.0, %v3848
        %v3850 = vpop.f32.mrb[0].mxu0
        %3851 = vmatprep.mubr.f32.mxu0 %v3408
        %3852 = vmatmul.mubr.f32.gmra.mrb[0].mxu0 %v3407
        %v3853 = vpop.f32.mrb[0].mxu0
        %v3854 = vadd.f32 0.0, %v3853
        %v3855 = vpop.f32.mrb[0].mxu0
        %3856 = vmatprep.mubr.f32.mxu0 %v3417
        %3857 = vmatmul.mubr.f32.gmra.mrb[0].mxu0 %v3416
        %v3858 = vpop.f32.mrb[0].mxu0
        %v3859 = vadd.f32 0.0, %v3858
        %v3860 = vpop.f32.mrb[0].mxu0
        %3861 = vmatprep.mubr.f32.mxu0 %v3426
        %3862 = vmatmul.mubr.f32.gmra.mrb[0].mxu0 %v3425
        %v3863 = vpop.f32.mrb[0].mxu0
        %v3864 = vadd.f32 0.0, %v3863
        %v3865 = vpop.f32.mrb[0].mxu0
        %3866 = vmatprep.mubr.f32.mxu0 %v3435
        %3867 = vmatmul.mubr.f32.gmra.mrb[0].mxu0 %v3434
        %v3868 = vpop.f32.mrb[0].mxu0
        %v3869 = vadd.f32 0.0, %v3868
        %v3870 = vpop.f32.mrb[0].mxu0
        %3871 = vmatprep.mubr.f32.mxu0 %v3444
        %3872 = vmatmul.mubr.f32.gmra.mrb[0].mxu0 %v3443
        %v3873 = vpop.f32.mrb[0].mxu0
        %v3874 = vadd.f32 0.0, %v3873
        %v3875 = vpop.f32.mrb[0].mxu0
        %3876 = vmatprep.mubr.f32.mxu0 %v3453
        %3877 = vmatmul.mubr.f32.gmra.mrb[0].mxu0 %v3452
        %v3878 = vpop.f32.mrb[0].mxu0
        %v3879 = vadd.f32 0.0, %v3878
        %v3880 = vpop.f32.mrb[0].mxu0
        %3881 = vmatprep.mubr.f32.mxu0 %v3462
        %3882 = vmatmul.mubr.f32.gmra.mrb[0].mxu0 %v3461
        %v3883 = vpop.f32.mrb[0].mxu0
        %v3884 = vadd.f32 0.0, %v3883
        %v3885 = vpop.f32.mrb[0].mxu0
        %3886 = vmatprep.mubr.f32.mxu0 %v3471
        %3887 = vmatmul.mubr.f32.gmra.mrb[0].mxu0 %v3470
        %v3888 = vpop.f32.mrb[0].mxu0
        %v3889 = vadd.f32 0.0, %v3888
        %v3890 = vpop.f32.mrb[0].mxu0
        %3891 = vmatprep.mubr.f32.mxu0 %v3480
        %3892 = vmatmul.mubr.f32.gmra.mrb[0].mxu0 %v3479
        %v3893 = vpop.f32.mrb[0].mxu0
        %v3894 = vadd.f32 0.0, %v3893
        %v3895 = vpop.f32.mrb[0].mxu0
        %3896 = vmatprep.mubr.f32.mxu0 %v3489
        %3897 = vmatmul.mubr.f32.gmra.mrb[0].mxu0 %v3488
        %v3898 = vpop.f32.mrb[0].mxu0
        %v3899 = vadd.f32 0.0, %v3898
        %v3900 = vpop.f32.mrb[0].mxu0
        %3901 = vmatprep.mubr.f32.mxu0 %v3498
        %3902 = vmatmul.mubr.f32.gmra.mrb[0].mxu0 %v3497
        %v3903 = vpop.f32.mrb[0].mxu0
        %v3904 = vadd.f32 0.0, %v3903
        %v3905 = vpop.f32.mrb[0].mxu0
        %3906 = vmatprep.mubr.f32.mxu0 %v3507
        %3907 = vmatmul.mubr.f32.gmra.mrb[0].mxu0 %v3506
        %v3908 = vpop.f32.mrb[0].mxu0
        %v3909 = vadd.f32 0.0, %v3908
        %v3910 = vpop.f32.mrb[0].mxu0
        %3911 = vmatprep.mubr.f32.mxu0 %v3516
        %3912 = vmatmul.mubr.f32.gmra.mrb[0].mxu0 %v3515
        %v3913 = vpop.f32.mrb[0].mxu0
        %v3914 = vadd.f32 0.0, %v3913
        %v3915 = vpop.f32.mrb[0].mxu0
        %3916 = vmatprep.mubr.f32.mxu0 %v3525
        %3917 = vmatmul.mubr.f32.gmra.mrb[0].mxu0 %v3524
        %v3918 = vpop.f32.mrb[0].mxu0
        %v3919 = vadd.f32 0.0, %v3918
        %v3920 = vpop.f32.mrb[0].mxu0
        %3921 = vmatprep.mubr.f32.mxu0 %v3534
        %3922 = vmatmul.mubr.f32.gmra.mrb[0].mxu0 %v3533
        %v3923 = vpop.f32.mrb[0].mxu0
        %v3924 = vadd.f32 0.0, %v3923
        %v3925 = vpop.f32.mrb[0].mxu0
        %3926 = vmatprep.mubr.f32.mxu0 %v3543
        %3927 = vmatmul.mubr.f32.gmra.mrb[0].mxu0 %v3542
        %v3928 = vpop.f32.mrb[0].mxu0
        %v3929 = vadd.f32 0.0, %v3928
        %v3930 = vpop.f32.mrb[0].mxu0
        %3931 = vmatprep.mubr.f32.mxu0 %v3552
        %3932 = vmatmul.mubr.f32.gmra.mrb[0].mxu0 %v3551
        %v3933 = vpop.f32.mrb[0].mxu0
        %v3934 = vadd.f32 0.0, %v3933
        %v3935 = vpop.f32.mrb[0].mxu0
        %3936 = vmatprep.mubr.f32.mxu0 %v3561
        %3937 = vmatmul.mubr.f32.gmra.mrb[0].mxu0 %v3560
        %v3938 = vpop.f32.mrb[0].mxu0
        %v3939 = vadd.f32 0.0, %v3938
        %v3940 = vpop.f32.mrb[0].mxu0
        %3941 = vmatprep.mubr.f32.mxu0 %v3570
        %3942 = vmatmul.mubr.f32.gmra.mrb[0].mxu0 %v3569
        %v3943 = vpop.f32.mrb[0].mxu0
        %v3944 = vadd.f32 0.0, %v3943
        %v3945 = vpop.f32.mrb[0].mxu0
        %3946 = vdwg.mxu0
        %3947 = vmatprep.subr.mxu0 0.0
        %3948 = vmatpush1.msra.mxu0 %v3610
        %3949 = vmatprep.subr.mxu0 0.0
        %3950 = vmatpush1.msra.mxu0 %v3611
        %3951 = vmatprep.subr.mxu0 0.0
        %3952 = vmatpush1.msra.mxu0 %v3612
        %3953 = vmatprep.subr.mxu0 0.0
        %3954 = vmatpush1.msra.mxu0 %v3613
        %3955 = vmatprep.subr.mxu0 0.0
        %3956 = vmatpush1.msra.mxu0 %v3614
        %3957 = vmatprep.subr.mxu0 0.0
        %3958 = vmatpush1.msra.mxu0 %v3615
        %3959 = vmatprep.subr.mxu0 0.0
        %3960 = vmatpush1.msra.mxu0 %v3616
        %3961 = vmatprep.subr.mxu0 0.0
        %3962 = vmatpush1.msra.mxu0 %v3617
        %3963 = vmatprep.subr.mxu0 0.0
        %3964 = vmatpush1.msra.mxu0 %v3618
        %3965 = vmatprep.subr.mxu0 0.0
        %3966 = vmatpush1.msra.mxu0 %v3619
        %3967 = vmatprep.subr.mxu0 0.0
        %3968 = vmatpush1.msra.mxu0 %v3620
        %3969 = vmatprep.subr.mxu0 0.0
        %3970 = vmatpush1.msra.mxu0 %v3621
        %3971 = vmatprep.subr.mxu0 0.0
        %3972 = vmatpush1.msra.mxu0 %v3622
        %3973 = vmatprep.subr.mxu0 0.0
        %3974 = vmatpush1.msra.mxu0 %v3623
        %3975 = vmatprep.subr.mxu0 0.0
        %3976 = vmatpush1.msra.mxu0 %v3624
        %3977 = vmatprep.subr.mxu0 0.0
        %3978 = vmatpush1.msra.mxu0 %v3625
        %3979 = vmatprep.subr.mxu0 0.0
        %3980 = vmatpush1.msra.mxu0 %v3626
        %3981 = vmatprep.subr.mxu0 0.0
        %3982 = vmatpush1.msra.mxu0 %v3627
        %3983 = vmatprep.subr.mxu0 0.0
        %3984 = vmatpush1.msra.mxu0 %v3628
        %3985 = vmatprep.subr.mxu0 0.0
        %3986 = vmatpush1.msra.mxu0 %v3629
        %3987 = vmatprep.subr.mxu0 0.0
        %3988 = vmatpush1.msra.mxu0 %v3630
        %3989 = vmatprep.subr.mxu0 0.0
        %3990 = vmatpush1.msra.mxu0 %v3631
        %3991 = vmatprep.subr.mxu0 0.0
        %3992 = vmatpush1.msra.mxu0 %v3632
        %3993 = vmatprep.subr.mxu0 0.0
        %3994 = vmatpush1.msra.mxu0 %v3633
        %3995 = vmatprep.subr.mxu0 0.0
        %3996 = vmatpush1.msra.mxu0 %v3634
        %3997 = vmatprep.subr.mxu0 0.0
        %3998 = vmatpush1.msra.mxu0 %v3635
        %3999 = vmatprep.subr.mxu0 0.0
        %4000 = vmatpush1.msra.mxu0 %v3636
        %4001 = vmatprep.subr.mxu0 0.0
        %4002 = vmatpush1.msra.mxu0 %v3637
        %4003 = vmatprep.subr.mxu0 0.0
        %4004 = vmatpush1.msra.mxu0 %v3638
        %4005 = vmatprep.subr.mxu0 0.0
        %4006 = vmatpush1.msra.mxu0 %v3639
        %4007 = vmatprep.subr.mxu0 0.0
        %4008 = vmatpush1.msra.mxu0 %v3640
        %4009 = vmatprep.subr.mxu0 0.0
        %4010 = vmatpush1.msra.mxu0 %v3641
        %4011 = vmatprep.mubr.f32.mxu0 %v3293
        %4012 = vmatmul.mubr.f32.gmra.mrb[0].mxu0 %v3292
        %v4013 = vpop.f32.mrb[0].mxu0
        %v4014 = vadd.f32 %v3789, %v4013
        %v4015 = vpop.f32.mrb[0].mxu0
        %4016 = vmatprep.mubr.f32.mxu0 %v3302
        %4017 = vmatmul.mubr.f32.gmra.mrb[0].mxu0 %v3301
        %v4018 = vpop.f32.mrb[0].mxu0
        %v4019 = vadd.f32 %v3794, %v4018
        %v4020 = vpop.f32.mrb[0].mxu0
        %4021 = vmatprep.mubr.f32.mxu0 %v3311
        %4022 = vmatmul.mubr.f32.gmra.mrb[0].mxu0 %v3310
        %v4023 = vpop.f32.mrb[0].mxu0
        %v4024 = vadd.f32 %v3799, %v4023
        %v4025 = vpop.f32.mrb[0].mxu0
        %4026 = vmatprep.mubr.f32.mxu0 %v3320
        %4027 = vmatmul.mubr.f32.gmra.mrb[0].mxu0 %v3319
        %v4028 = vpop.f32.mrb[0].mxu0
        %v4029 = vadd.f32 %v3804, %v4028
        %v4030 = vpop.f32.mrb[0].mxu0
        %4031 = vmatprep.mubr.f32.mxu0 %v3329
        %4032 = vmatmul.mubr.f32.gmra.mrb[0].mxu0 %v3328
        %v4033 = vpop.f32.mrb[0].mxu0
        %v4034 = vadd.f32 %v3809, %v4033
        %v4035 = vpop.f32.mrb[0].mxu0
        %4036 = vmatprep.mubr.f32.mxu0 %v3338
        %4037 = vmatmul.mubr.f32.gmra.mrb[0].mxu0 %v3337
        %v4038 = vpop.f32.mrb[0].mxu0
        %v4039 = vadd.f32 %v3814, %v4038
        %v4040 = vpop.f32.mrb[0].mxu0
        %4041 = vmatprep.mubr.f32.mxu0 %v3347
        %4042 = vmatmul.mubr.f32.gmra.mrb[0].mxu0 %v3346
        %v4043 = vpop.f32.mrb[0].mxu0
        %v4044 = vadd.f32 %v3819, %v4043
        %v4045 = vpop.f32.mrb[0].mxu0
        %4046 = vmatprep.mubr.f32.mxu0 %v3356
        %4047 = vmatmul.mubr.f32.gmra.mrb[0].mxu0 %v3355
        %v4048 = vpop.f32.mrb[0].mxu0
        %v4049 = vadd.f32 %v3824, %v4048
        %v4050 = vpop.f32.mrb[0].mxu0
        %4051 = vmatprep.mubr.f32.mxu0 %v3365
        %4052 = vmatmul.mubr.f32.gmra.mrb[0].mxu0 %v3364
        %v4053 = vpop.f32.mrb[0].mxu0
        %v4054 = vadd.f32 %v3829, %v4053
        %v4055 = vpop.f32.mrb[0].mxu0
        %4056 = vmatprep.mubr.f32.mxu0 %v3374
        %4057 = vmatmul.mubr.f32.gmra.mrb[0].mxu0 %v3373
        %v4058 = vpop.f32.mrb[0].mxu0
        %v4059 = vadd.f32 %v3834, %v4058
        %v4060 = vpop.f32.mrb[0].mxu0
        %4061 = vmatprep.mubr.f32.mxu0 %v3383
        %4062 = vmatmul.mubr.f32.gmra.mrb[0].mxu0 %v3382
        %v4063 = vpop.f32.mrb[0].mxu0
        %v4064 = vadd.f32 %v3839, %v4063
        %v4065 = vpop.f32.mrb[0].mxu0
        %4066 = vmatprep.mubr.f32.mxu0 %v3392
        %4067 = vmatmul.mubr.f32.gmra.mrb[0].mxu0 %v3391
        %v4068 = vpop.f32.mrb[0].mxu0
        %v4069 = vadd.f32 %v3844, %v4068
        %v4070 = vpop.f32.mrb[0].mxu0
        %4071 = vmatprep.mubr.f32.mxu0 %v3401
        %4072 = vmatmul.mubr.f32.gmra.mrb[0].mxu0 %v3400
        %v4073 = vpop.f32.mrb[0].mxu0
        %v4074 = vadd.f32 %v3849, %v4073
        %v4075 = vpop.f32.mrb[0].mxu0
        %4076 = vmatprep.mubr.f32.mxu0 %v3410
        %4077 = vmatmul.mubr.f32.gmra.mrb[0].mxu0 %v3409
        %v4078 = vpop.f32.mrb[0].mxu0
        %v4079 = vadd.f32 %v3854, %v4078
        %v4080 = vpop.f32.mrb[0].mxu0
        %4081 = vmatprep.mubr.f32.mxu0 %v3419
        %4082 = vmatmul.mubr.f32.gmra.mrb[0].mxu0 %v3418
        %v4083 = vpop.f32.mrb[0].mxu0
        %v4084 = vadd.f32 %v3859, %v4083
        %v4085 = vpop.f32.mrb[0].mxu0
        %4086 = vmatprep.mubr.f32.mxu0 %v3428
        %4087 = vmatmul.mubr.f32.gmra.mrb[0].mxu0 %v3427
        %v4088 = vpop.f32.mrb[0].mxu0
        %v4089 = vadd.f32 %v3864, %v4088
        %v4090 = vpop.f32.mrb[0].mxu0
        %4091 = vmatprep.mubr.f32.mxu0 %v3437
        %4092 = vmatmul.mubr.f32.gmra.mrb[0].mxu0 %v3436
        %v4093 = vpop.f32.mrb[0].mxu0
        %v4094 = vadd.f32 %v3869, %v4093
        %v4095 = vpop.f32.mrb[0].mxu0
        %4096 = vmatprep.mubr.f32.mxu0 %v3446
        %4097 = vmatmul.mubr.f32.gmra.mrb[0].mxu0 %v3445
        %v4098 = vpop.f32.mrb[0].mxu0
        %v4099 = vadd.f32 %v3874, %v4098
        %v4100 = vpop.f32.mrb[0].mxu0
        %4101 = vmatprep.mubr.f32.mxu0 %v3455
        %4102 = vmatmul.mubr.f32.gmra.mrb[0].mxu0 %v3454
        %v4103 = vpop.f32.mrb[0].mxu0
        %v4104 = vadd.f32 %v3879, %v4103
        %v4105 = vpop.f32.mrb[0].mxu0
        %4106 = vmatprep.mubr.f32.mxu0 %v3464
        %4107 = vmatmul.mubr.f32.gmra.mrb[0].mxu0 %v3463
        %v4108 = vpop.f32.mrb[0].mxu0
        %v4109 = vadd.f32 %v3884, %v4108
        %v4110 = vpop.f32.mrb[0].mxu0
        %4111 = vmatprep.mubr.f32.mxu0 %v3473
        %4112 = vmatmul.mubr.f32.gmra.mrb[0].mxu0 %v3472
        %v4113 = vpop.f32.mrb[0].mxu0
        %v4114 = vadd.f32 %v3889, %v4113
        %v4115 = vpop.f32.mrb[0].mxu0
        %4116 = vmatprep.mubr.f32.mxu0 %v3482
        %4117 = vmatmul.mubr.f32.gmra.mrb[0].mxu0 %v3481
        %v4118 = vpop.f32.mrb[0].mxu0
        %v4119 = vadd.f32 %v3894, %v4118
        %v4120 = vpop.f32.mrb[0].mxu0
        %4121 = vmatprep.mubr.f32.mxu0 %v3491
        %4122 = vmatmul.mubr.f32.gmra.mrb[0].mxu0 %v3490
        %v4123 = vpop.f32.mrb[0].mxu0
        %v4124 = vadd.f32 %v3899, %v4123
        %v4125 = vpop.f32.mrb[0].mxu0
        %4126 = vmatprep.mubr.f32.mxu0 %v3500
        %4127 = vmatmul.mubr.f32.gmra.mrb[0].mxu0 %v3499
        %v4128 = vpop.f32.mrb[0].mxu0
        %v4129 = vadd.f32 %v3904, %v4128
        %v4130 = vpop.f32.mrb[0].mxu0
        %4131 = vmatprep.mubr.f32.mxu0 %v3509
        %4132 = vmatmul.mubr.f32.gmra.mrb[0].mxu0 %v3508
        %v4133 = vpop.f32.mrb[0].mxu0
        %v4134 = vadd.f32 %v3909, %v4133
        %v4135 = vpop.f32.mrb[0].mxu0
        %4136 = vmatprep.mubr.f32.mxu0 %v3518
        %4137 = vmatmul.mubr.f32.gmra.mrb[0].mxu0 %v3517
        %v4138 = vpop.f32.mrb[0].mxu0
        %v4139 = vadd.f32 %v3914, %v4138
        %v4140 = vpop.f32.mrb[0].mxu0
        %4141 = vmatprep.mubr.f32.mxu0 %v3527
        %4142 = vmatmul.mubr.f32.gmra.mrb[0].mxu0 %v3526
        %v4143 = vpop.f32.mrb[0].mxu0
        %v4144 = vadd.f32 %v3919, %v4143
        %v4145 = vpop.f32.mrb[0].mxu0
        %4146 = vmatprep.mubr.f32.mxu0 %v3536
        %4147 = vmatmul.mubr.f32.gmra.mrb[0].mxu0 %v3535
        %v4148 = vpop.f32.mrb[0].mxu0
        %v4149 = vadd.f32 %v3924, %v4148
        %v4150 = vpop.f32.mrb[0].mxu0
        %4151 = vmatprep.mubr.f32.mxu0 %v3545
        %4152 = vmatmul.mubr.f32.gmra.mrb[0].mxu0 %v3544
        %v4153 = vpop.f32.mrb[0].mxu0
        %v4154 = vadd.f32 %v3929, %v4153
        %v4155 = vpop.f32.mrb[0].mxu0
        %4156 = vmatprep.mubr.f32.mxu0 %v3554
        %4157 = vmatmul.mubr.f32.gmra.mrb[0].mxu0 %v3553
        %v4158 = vpop.f32.mrb[0].mxu0
        %v4159 = vadd.f32 %v3934, %v4158
        %v4160 = vpop.f32.mrb[0].mxu0
        %4161 = vmatprep.mubr.f32.mxu0 %v3563
        %4162 = vmatmul.mubr.f32.gmra.mrb[0].mxu0 %v3562
        %v4163 = vpop.f32.mrb[0].mxu0
        %v4164 = vadd.f32 %v3939, %v4163
        %v4165 = vpop.f32.mrb[0].mxu0
        %4166 = vmatprep.mubr.f32.mxu0 %v3572
        %4167 = vmatmul.mubr.f32.gmra.mrb[0].mxu0 %v3571
        %v4168 = vpop.f32.mrb[0].mxu0
        %v4169 = vadd.f32 %v3944, %v4168
        %v4170 = vpop.f32.mrb[0].mxu0
        %4171 = vdwg.mxu0
        %4172 = vmatprep.subr.mxu0 0.0
        %4173 = vmatpush1.msra.mxu0 %v3642
        %4174 = vmatprep.subr.mxu0 0.0
        %4175 = vmatpush1.msra.mxu0 %v3643
        %4176 = vmatprep.subr.mxu0 0.0
        %4177 = vmatpush1.msra.mxu0 %v3644
        %4178 = vmatprep.subr.mxu0 0.0
        %4179 = vmatpush1.msra.mxu0 %v3645
        %4180 = vmatprep.subr.mxu0 0.0
        %4181 = vmatpush1.msra.mxu0 %v3646
        %4182 = vmatprep.subr.mxu0 0.0
        %4183 = vmatpush1.msra.mxu0 %v3647
        %4184 = vmatprep.subr.mxu0 0.0
        %4185 = vmatpush1.msra.mxu0 %v3648
        %4186 = vmatprep.subr.mxu0 0.0
        %4187 = vmatpush1.msra.mxu0 %v3649
        %4188 = vmatprep.subr.mxu0 0.0
        %4189 = vmatpush1.msra.mxu0 %v3650
        %4190 = vmatprep.subr.mxu0 0.0
        %4191 = vmatpush1.msra.mxu0 %v3651
        %4192 = vmatprep.subr.mxu0 0.0
        %4193 = vmatpush1.msra.mxu0 %v3652
        %4194 = vmatprep.subr.mxu0 0.0
        %4195 = vmatpush1.msra.mxu0 %v3653
        %4196 = vmatprep.subr.mxu0 0.0
        %4197 = vmatpush1.msra.mxu0 %v3654
        %4198 = vmatprep.subr.mxu0 0.0
        %4199 = vmatpush1.msra.mxu0 %v3655
        %4200 = vmatprep.subr.mxu0 0.0
        %4201 = vmatpush1.msra.mxu0 %v3656
        %4202 = vmatprep.subr.mxu0 0.0
        %4203 = vmatpush1.msra.mxu0 %v3657
        %4204 = vmatprep.subr.mxu0 0.0
        %4205 = vmatpush1.msra.mxu0 %v3658
        %4206 = vmatprep.subr.mxu0 0.0
        %4207 = vmatpush1.msra.mxu0 %v3659
        %4208 = vmatprep.subr.mxu0 0.0
        %4209 = vmatpush1.msra.mxu0 %v3660
        %4210 = vmatprep.subr.mxu0 0.0
        %4211 = vmatpush1.msra.mxu0 %v3661
        %4212 = vmatprep.subr.mxu0 0.0
        %4213 = vmatpush1.msra.mxu0 %v3662
        %4214 = vmatprep.subr.mxu0 0.0
        %4215 = vmatpush1.msra.mxu0 %v3663
        %4216 = vmatprep.subr.mxu0 0.0
        %4217 = vmatpush1.msra.mxu0 %v3664
        %4218 = vmatprep.subr.mxu0 0.0
        %4219 = vmatpush1.msra.mxu0 %v3665
        %4220 = vmatprep.subr.mxu0 0.0
        %4221 = vmatpush1.msra.mxu0 %v3666
        %4222 = vmatprep.subr.mxu0 0.0
        %4223 = vmatpush1.msra.mxu0 %v3667
        %4224 = vmatprep.subr.mxu0 0.0
        %4225 = vmatpush1.msra.mxu0 %v3668
        %4226 = vmatprep.subr.mxu0 0.0
        %4227 = vmatpush1.msra.mxu0 %v3669
        %4228 = vmatprep.subr.mxu0 0.0
        %4229 = vmatpush1.msra.mxu0 %v3670
        %4230 = vmatprep.subr.mxu0 0.0
        %4231 = vmatpush1.msra.mxu0 %v3671
        %4232 = vmatprep.subr.mxu0 0.0
        %4233 = vmatpush1.msra.mxu0 %v3672
        %4234 = vmatprep.subr.mxu0 0.0
        %4235 = vmatpush1.msra.mxu0 %v3673
        %4236 = vmatprep.mubr.f32.mxu0 %v3295
        %4237 = vmatmul.mubr.f32.gmra.mrb[0].mxu0 %v3294
        %v4238 = vpop.f32.mrb[0].mxu0
        %v4239 = vadd.f32 %v4014, %v4238
        %v4240 = vpop.f32.mrb[0].mxu0
        %4241 = vmatprep.mubr.f32.mxu0 %v3304
        %4242 = vmatmul.mubr.f32.gmra.mrb[0].mxu0 %v3303
        %v4243 = vpop.f32.mrb[0].mxu0
        %v4244 = vadd.f32 %v4019, %v4243
        %v4245 = vpop.f32.mrb[0].mxu0
        %4246 = vmatprep.mubr.f32.mxu0 %v3313
        %4247 = vmatmul.mubr.f32.gmra.mrb[0].mxu0 %v3312
        %v4248 = vpop.f32.mrb[0].mxu0
        %v4249 = vadd.f32 %v4024, %v4248
        %v4250 = vpop.f32.mrb[0].mxu0
        %4251 = vmatprep.mubr.f32.mxu0 %v3322
        %4252 = vmatmul.mubr.f32.gmra.mrb[0].mxu0 %v3321
        %v4253 = vpop.f32.mrb[0].mxu0
        %v4254 = vadd.f32 %v4029, %v4253
        %v4255 = vpop.f32.mrb[0].mxu0
        %4256 = vmatprep.mubr.f32.mxu0 %v3331
        %4257 = vmatmul.mubr.f32.gmra.mrb[0].mxu0 %v3330
        %v4258 = vpop.f32.mrb[0].mxu0
        %v4259 = vadd.f32 %v4034, %v4258
        %v4260 = vpop.f32.mrb[0].mxu0
        %4261 = vmatprep.mubr.f32.mxu0 %v3340
        %4262 = vmatmul.mubr.f32.gmra.mrb[0].mxu0 %v3339
        %v4263 = vpop.f32.mrb[0].mxu0
        %v4264 = vadd.f32 %v4039, %v4263
        %v4265 = vpop.f32.mrb[0].mxu0
        %4266 = vmatprep.mubr.f32.mxu0 %v3349
        %4267 = vmatmul.mubr.f32.gmra.mrb[0].mxu0 %v3348
        %v4268 = vpop.f32.mrb[0].mxu0
        %v4269 = vadd.f32 %v4044, %v4268
        %v4270 = vpop.f32.mrb[0].mxu0
        %4271 = vmatprep.mubr.f32.mxu0 %v3358
        %4272 = vmatmul.mubr.f32.gmra.mrb[0].mxu0 %v3357
        %v4273 = vpop.f32.mrb[0].mxu0
        %v4274 = vadd.f32 %v4049, %v4273
        %v4275 = vpop.f32.mrb[0].mxu0
        %4276 = vmatprep.mubr.f32.mxu0 %v3367
        %4277 = vmatmul.mubr.f32.gmra.mrb[0].mxu0 %v3366
        %v4278 = vpop.f32.mrb[0].mxu0
        %v4279 = vadd.f32 %v4054, %v4278
        %v4280 = vpop.f32.mrb[0].mxu0
        %4281 = vmatprep.mubr.f32.mxu0 %v3376
        %4282 = vmatmul.mubr.f32.gmra.mrb[0].mxu0 %v3375
        %v4283 = vpop.f32.mrb[0].mxu0
        %v4284 = vadd.f32 %v4059, %v4283
        %v4285 = vpop.f32.mrb[0].mxu0
        %4286 = vmatprep.mubr.f32.mxu0 %v3385
        %4287 = vmatmul.mubr.f32.gmra.mrb[0].mxu0 %v3384
        %v4288 = vpop.f32.mrb[0].mxu0
        %v4289 = vadd.f32 %v4064, %v4288
        %v4290 = vpop.f32.mrb[0].mxu0
        %4291 = vmatprep.mubr.f32.mxu0 %v3394
        %4292 = vmatmul.mubr.f32.gmra.mrb[0].mxu0 %v3393
        %v4293 = vpop.f32.mrb[0].mxu0
        %v4294 = vadd.f32 %v4069, %v4293
        %v4295 = vpop.f32.mrb[0].mxu0
        %4296 = vmatprep.mubr.f32.mxu0 %v3403
        %4297 = vmatmul.mubr.f32.gmra.mrb[0].mxu0 %v3402
        %v4298 = vpop.f32.mrb[0].mxu0
        %v4299 = vadd.f32 %v4074, %v4298
        %v4300 = vpop.f32.mrb[0].mxu0
        %4301 = vmatprep.mubr.f32.mxu0 %v3412
        %4302 = vmatmul.mubr.f32.gmra.mrb[0].mxu0 %v3411
        %v4303 = vpop.f32.mrb[0].mxu0
        %v4304 = vadd.f32 %v4079, %v4303
        %v4305 = vpop.f32.mrb[0].mxu0
        %4306 = vmatprep.mubr.f32.mxu0 %v3421
        %4307 = vmatmul.mubr.f32.gmra.mrb[0].mxu0 %v3420
        %v4308 = vpop.f32.mrb[0].mxu0
        %v4309 = vadd.f32 %v4084, %v4308
        %v4310 = vpop.f32.mrb[0].mxu0
        %4311 = vmatprep.mubr.f32.mxu0 %v3430
        %4312 = vmatmul.mubr.f32.gmra.mrb[0].mxu0 %v3429
        %v4313 = vpop.f32.mrb[0].mxu0
        %v4314 = vadd.f32 %v4089, %v4313
        %v4315 = vpop.f32.mrb[0].mxu0
        %4316 = vmatprep.mubr.f32.mxu0 %v3439
        %4317 = vmatmul.mubr.f32.gmra.mrb[0].mxu0 %v3438
        %v4318 = vpop.f32.mrb[0].mxu0
        %v4319 = vadd.f32 %v4094, %v4318
        %v4320 = vpop.f32.mrb[0].mxu0
        %4321 = vmatprep.mubr.f32.mxu0 %v3448
        %4322 = vmatmul.mubr.f32.gmra.mrb[0].mxu0 %v3447
        %v4323 = vpop.f32.mrb[0].mxu0
        %v4324 = vadd.f32 %v4099, %v4323
        %v4325 = vpop.f32.mrb[0].mxu0
        %4326 = vmatprep.mubr.f32.mxu0 %v3457
        %4327 = vmatmul.mubr.f32.gmra.mrb[0].mxu0 %v3456
        %v4328 = vpop.f32.mrb[0].mxu0
        %v4329 = vadd.f32 %v4104, %v4328
        %v4330 = vpop.f32.mrb[0].mxu0
        %4331 = vmatprep.mubr.f32.mxu0 %v3466
        %4332 = vmatmul.mubr.f32.gmra.mrb[0].mxu0 %v3465
        %v4333 = vpop.f32.mrb[0].mxu0
        %v4334 = vadd.f32 %v4109, %v4333
        %v4335 = vpop.f32.mrb[0].mxu0
        %4336 = vmatprep.mubr.f32.mxu0 %v3475
        %4337 = vmatmul.mubr.f32.gmra.mrb[0].mxu0 %v3474
        %v4338 = vpop.f32.mrb[0].mxu0
        %v4339 = vadd.f32 %v4114, %v4338
        %v4340 = vpop.f32.mrb[0].mxu0
        %4341 = vmatprep.mubr.f32.mxu0 %v3484
        %4342 = vmatmul.mubr.f32.gmra.mrb[0].mxu0 %v3483
        %v4343 = vpop.f32.mrb[0].mxu0
        %v4344 = vadd.f32 %v4119, %v4343
        %v4345 = vpop.f32.mrb[0].mxu0
        %4346 = vmatprep.mubr.f32.mxu0 %v3493
        %4347 = vmatmul.mubr.f32.gmra.mrb[0].mxu0 %v3492
        %v4348 = vpop.f32.mrb[0].mxu0
        %v4349 = vadd.f32 %v4124, %v4348
        %v4350 = vpop.f32.mrb[0].mxu0
        %4351 = vmatprep.mubr.f32.mxu0 %v3502
        %4352 = vmatmul.mubr.f32.gmra.mrb[0].mxu0 %v3501
        %v4353 = vpop.f32.mrb[0].mxu0
        %v4354 = vadd.f32 %v4129, %v4353
        %v4355 = vpop.f32.mrb[0].mxu0
        %4356 = vmatprep.mubr.f32.mxu0 %v3511
        %4357 = vmatmul.mubr.f32.gmra.mrb[0].mxu0 %v3510
        %v4358 = vpop.f32.mrb[0].mxu0
        %v4359 = vadd.f32 %v4134, %v4358
        %v4360 = vpop.f32.mrb[0].mxu0
        %4361 = vmatprep.mubr.f32.mxu0 %v3520
        %4362 = vmatmul.mubr.f32.gmra.mrb[0].mxu0 %v3519
        %v4363 = vpop.f32.mrb[0].mxu0
        %v4364 = vadd.f32 %v4139, %v4363
        %v4365 = vpop.f32.mrb[0].mxu0
        %4366 = vmatprep.mubr.f32.mxu0 %v3529
        %4367 = vmatmul.mubr.f32.gmra.mrb[0].mxu0 %v3528
        %v4368 = vpop.f32.mrb[0].mxu0
        %v4369 = vadd.f32 %v4144, %v4368
        %v4370 = vpop.f32.mrb[0].mxu0
        %4371 = vmatprep.mubr.f32.mxu0 %v3538
        %4372 = vmatmul.mubr.f32.gmra.mrb[0].mxu0 %v3537
        %v4373 = vpop.f32.mrb[0].mxu0
        %v4374 = vadd.f32 %v4149, %v4373
        %v4375 = vpop.f32.mrb[0].mxu0
        %4376 = vmatprep.mubr.f32.mxu0 %v3547
        %4377 = vmatmul.mubr.f32.gmra.mrb[0].mxu0 %v3546
        %v4378 = vpop.f32.mrb[0].mxu0
        %v4379 = vadd.f32 %v4154, %v4378
        %v4380 = vpop.f32.mrb[0].mxu0
        %4381 = vmatprep.mubr.f32.mxu0 %v3556
        %4382 = vmatmul.mubr.f32.gmra.mrb[0].mxu0 %v3555
        %v4383 = vpop.f32.mrb[0].mxu0
        %v4384 = vadd.f32 %v4159, %v4383
        %v4385 = vpop.f32.mrb[0].mxu0
        %4386 = vmatprep.mubr.f32.mxu0 %v3565
        %4387 = vmatmul.mubr.f32.gmra.mrb[0].mxu0 %v3564
        %v4388 = vpop.f32.mrb[0].mxu0
        %v4389 = vadd.f32 %v4164, %v4388
        %v4390 = vpop.f32.mrb[0].mxu0
        %4391 = vmatprep.mubr.f32.mxu0 %v3574
        %4392 = vmatmul.mubr.f32.gmra.mrb[0].mxu0 %v3573
        %v4393 = vpop.f32.mrb[0].mxu0
        %v4394 = vadd.f32 %v4169, %v4393
        %v4395 = vpop.f32.mrb[0].mxu0
        %4396 = vdwg.mxu0
        %4397 = vmatprep.subr.mxu0 0.0
        %4398 = vmatpush1.msra.mxu0 %v3674
        %4399 = vmatprep.subr.mxu0 0.0
        %4400 = vmatpush1.msra.mxu0 %v3675
        %4401 = vmatprep.subr.mxu0 0.0
        %4402 = vmatpush1.msra.mxu0 %v3676
        %4403 = vmatprep.subr.mxu0 0.0
        %4404 = vmatpush1.msra.mxu0 %v3677
        %4405 = vmatprep.subr.mxu0 0.0
        %4406 = vmatpush1.msra.mxu0 %v3678
        %4407 = vmatprep.subr.mxu0 0.0
        %4408 = vmatpush1.msra.mxu0 %v3679
        %4409 = vmatprep.subr.mxu0 0.0
        %4410 = vmatpush1.msra.mxu0 %v3680
        %4411 = vmatprep.subr.mxu0 0.0
        %4412 = vmatpush1.msra.mxu0 %v3681
        %4413 = vmatprep.subr.mxu0 0.0
        %4414 = vmatpush1.msra.mxu0 %v3682
        %4415 = vmatprep.subr.mxu0 0.0
        %4416 = vmatpush1.msra.mxu0 %v3683
        %4417 = vmatprep.subr.mxu0 0.0
        %4418 = vmatpush1.msra.mxu0 %v3684
        %4419 = vmatprep.subr.mxu0 0.0
        %4420 = vmatpush1.msra.mxu0 %v3685
        %4421 = vmatprep.subr.mxu0 0.0
        %4422 = vmatpush1.msra.mxu0 %v3686
        %4423 = vmatprep.subr.mxu0 0.0
        %4424 = vmatpush1.msra.mxu0 %v3687
        %4425 = vmatprep.subr.mxu0 0.0
        %4426 = vmatpush1.msra.mxu0 %v3688
        %4427 = vmatprep.subr.mxu0 0.0
        %4428 = vmatpush1.msra.mxu0 %v3689
        %4429 = vmatprep.subr.mxu0 0.0
        %4430 = vmatpush1.msra.mxu0 %v3690
        %4431 = vmatprep.subr.mxu0 0.0
        %4432 = vmatpush1.msra.mxu0 %v3691
        %4433 = vmatprep.subr.mxu0 0.0
        %4434 = vmatpush1.msra.mxu0 %v3692
        %4435 = vmatprep.subr.mxu0 0.0
        %4436 = vmatpush1.msra.mxu0 %v3693
        %4437 = vmatprep.subr.mxu0 0.0
        %4438 = vmatpush1.msra.mxu0 %v3694
        %4439 = vmatprep.subr.mxu0 0.0
        %4440 = vmatpush1.msra.mxu0 %v3695
        %4441 = vmatprep.subr.mxu0 0.0
        %4442 = vmatpush1.msra.mxu0 %v3696
        %4443 = vmatprep.subr.mxu0 0.0
        %4444 = vmatpush1.msra.mxu0 %v3697
        %4445 = vmatprep.subr.mxu0 0.0
        %4446 = vmatpush1.msra.mxu0 %v3698
        %4447 = vmatprep.subr.mxu0 0.0
        %4448 = vmatpush1.msra.mxu0 %v3699
        %4449 = vmatprep.subr.mxu0 0.0
        %4450 = vmatpush1.msra.mxu0 %v3700
        %4451 = vmatprep.subr.mxu0 0.0
        %4452 = vmatpush1.msra.mxu0 %v3701
        %4453 = vmatprep.subr.mxu0 0.0
        %4454 = vmatpush1.msra.mxu0 %v3702
        %4455 = vmatprep.subr.mxu0 0.0
        %4456 = vmatpush1.msra.mxu0 %v3703
        %4457 = vmatprep.subr.mxu0 0.0
        %4458 = vmatpush1.msra.mxu0 %v3704
        %4459 = vmatprep.subr.mxu0 0.0
        %4460 = vmatpush1.msra.mxu0 %v3705
        %4461 = vmatprep.mubr.f32.mxu0 %v3297
        %4462 = vmatmul.mubr.f32.gmra.mrb[0].mxu0 %v3296
        %v4463 = vpop.f32.mrb[0].mxu0
        %v4464 = vadd.f32 %v4239, %v4463
        %v4465 = vpop.f32.mrb[0].mxu0
        %4466 = vmatprep.mubr.f32.mxu0 %v3306
        %4467 = vmatmul.mubr.f32.gmra.mrb[0].mxu0 %v3305
        %v4468 = vpop.f32.mrb[0].mxu0
        %v4469 = vadd.f32 %v4244, %v4468
        %v4470 = vpop.f32.mrb[0].mxu0
        %4471 = vmatprep.mubr.f32.mxu0 %v3315
        %4472 = vmatmul.mubr.f32.gmra.mrb[0].mxu0 %v3314
        %v4473 = vpop.f32.mrb[0].mxu0
        %v4474 = vadd.f32 %v4249, %v4473
        %v4475 = vpop.f32.mrb[0].mxu0
        %4476 = vmatprep.mubr.f32.mxu0 %v3324
        %4477 = vmatmul.mubr.f32.gmra.mrb[0].mxu0 %v3323
        %v4478 = vpop.f32.mrb[0].mxu0
        %v4479 = vadd.f32 %v4254, %v4478
        %v4480 = vpop.f32.mrb[0].mxu0
        %4481 = vmatprep.mubr.f32.mxu0 %v3333
        %4482 = vmatmul.mubr.f32.gmra.mrb[0].mxu0 %v3332
        %v4483 = vpop.f32.mrb[0].mxu0
        %v4484 = vadd.f32 %v4259, %v4483
        %v4485 = vpop.f32.mrb[0].mxu0
        %4486 = vmatprep.mubr.f32.mxu0 %v3342
        %4487 = vmatmul.mubr.f32.gmra.mrb[0].mxu0 %v3341
        %v4488 = vpop.f32.mrb[0].mxu0
        %v4489 = vadd.f32 %v4264, %v4488
        %v4490 = vpop.f32.mrb[0].mxu0
        %4491 = vmatprep.mubr.f32.mxu0 %v3351
        %4492 = vmatmul.mubr.f32.gmra.mrb[0].mxu0 %v3350
        %v4493 = vpop.f32.mrb[0].mxu0
        %v4494 = vadd.f32 %v4269, %v4493
        %v4495 = vpop.f32.mrb[0].mxu0
        %4496 = vmatprep.mubr.f32.mxu0 %v3360
        %4497 = vmatmul.mubr.f32.gmra.mrb[0].mxu0 %v3359
        %v4498 = vpop.f32.mrb[0].mxu0
        %v4499 = vadd.f32 %v4274, %v4498
        %v4500 = vpop.f32.mrb[0].mxu0
        %4501 = vmatprep.mubr.f32.mxu0 %v3369
        %4502 = vmatmul.mubr.f32.gmra.mrb[0].mxu0 %v3368
        %v4503 = vpop.f32.mrb[0].mxu0
        %v4504 = vadd.f32 %v4279, %v4503
        %v4505 = vpop.f32.mrb[0].mxu0
        %4506 = vmatprep.mubr.f32.mxu0 %v3378
        %4507 = vmatmul.mubr.f32.gmra.mrb[0].mxu0 %v3377
        %v4508 = vpop.f32.mrb[0].mxu0
        %v4509 = vadd.f32 %v4284, %v4508
        %v4510 = vpop.f32.mrb[0].mxu0
        %4511 = vmatprep.mubr.f32.mxu0 %v3387
        %4512 = vmatmul.mubr.f32.gmra.mrb[0].mxu0 %v3386
        %v4513 = vpop.f32.mrb[0].mxu0
        %v4514 = vadd.f32 %v4289, %v4513
        %v4515 = vpop.f32.mrb[0].mxu0
        %4516 = vmatprep.mubr.f32.mxu0 %v3396
        %4517 = vmatmul.mubr.f32.gmra.mrb[0].mxu0 %v3395
        %v4518 = vpop.f32.mrb[0].mxu0
        %v4519 = vadd.f32 %v4294, %v4518
        %v4520 = vpop.f32.mrb[0].mxu0
        %4521 = vmatprep.mubr.f32.mxu0 %v3405
        %4522 = vmatmul.mubr.f32.gmra.mrb[0].mxu0 %v3404
        %v4523 = vpop.f32.mrb[0].mxu0
        %v4524 = vadd.f32 %v4299, %v4523
        %v4525 = vpop.f32.mrb[0].mxu0
        %4526 = vmatprep.mubr.f32.mxu0 %v3414
        %4527 = vmatmul.mubr.f32.gmra.mrb[0].mxu0 %v3413
        %v4528 = vpop.f32.mrb[0].mxu0
        %v4529 = vadd.f32 %v4304, %v4528
        %v4530 = vpop.f32.mrb[0].mxu0
        %4531 = vmatprep.mubr.f32.mxu0 %v3423
        %4532 = vmatmul.mubr.f32.gmra.mrb[0].mxu0 %v3422
        %v4533 = vpop.f32.mrb[0].mxu0
        %v4534 = vadd.f32 %v4309, %v4533
        %v4535 = vpop.f32.mrb[0].mxu0
        %4536 = vmatprep.mubr.f32.mxu0 %v3432
        %4537 = vmatmul.mubr.f32.gmra.mrb[0].mxu0 %v3431
        %v4538 = vpop.f32.mrb[0].mxu0
        %v4539 = vadd.f32 %v4314, %v4538
        %v4540 = vpop.f32.mrb[0].mxu0
        %4541 = vmatprep.mubr.f32.mxu0 %v3441
        %4542 = vmatmul.mubr.f32.gmra.mrb[0].mxu0 %v3440
        %v4543 = vpop.f32.mrb[0].mxu0
        %v4544 = vadd.f32 %v4319, %v4543
        %v4545 = vpop.f32.mrb[0].mxu0
        %4546 = vmatprep.mubr.f32.mxu0 %v3450
        %4547 = vmatmul.mubr.f32.gmra.mrb[0].mxu0 %v3449
        %v4548 = vpop.f32.mrb[0].mxu0
        %v4549 = vadd.f32 %v4324, %v4548
        %v4550 = vpop.f32.mrb[0].mxu0
        %4551 = vmatprep.mubr.f32.mxu0 %v3459
        %4552 = vmatmul.mubr.f32.gmra.mrb[0].mxu0 %v3458
        %v4553 = vpop.f32.mrb[0].mxu0
        %v4554 = vadd.f32 %v4329, %v4553
        %v4555 = vpop.f32.mrb[0].mxu0
        %4556 = vmatprep.mubr.f32.mxu0 %v3468
        %4557 = vmatmul.mubr.f32.gmra.mrb[0].mxu0 %v3467
        %v4558 = vpop.f32.mrb[0].mxu0
        %v4559 = vadd.f32 %v4334, %v4558
        %v4560 = vpop.f32.mrb[0].mxu0
        %4561 = vmatprep.mubr.f32.mxu0 %v3477
        %4562 = vmatmul.mubr.f32.gmra.mrb[0].mxu0 %v3476
        %v4563 = vpop.f32.mrb[0].mxu0
        %v4564 = vadd.f32 %v4339, %v4563
        %v4565 = vpop.f32.mrb[0].mxu0
        %4566 = vmatprep.mubr.f32.mxu0 %v3486
        %4567 = vmatmul.mubr.f32.gmra.mrb[0].mxu0 %v3485
        %v4568 = vpop.f32.mrb[0].mxu0
        %v4569 = vadd.f32 %v4344, %v4568
        %v4570 = vpop.f32.mrb[0].mxu0
        %4571 = vmatprep.mubr.f32.mxu0 %v3495
        %4572 = vmatmul.mubr.f32.gmra.mrb[0].mxu0 %v3494
        %v4573 = vpop.f32.mrb[0].mxu0
        %v4574 = vadd.f32 %v4349, %v4573
        %v4575 = vpop.f32.mrb[0].mxu0
        %4576 = vmatprep.mubr.f32.mxu0 %v3504
        %4577 = vmatmul.mubr.f32.gmra.mrb[0].mxu0 %v3503
        %v4578 = vpop.f32.mrb[0].mxu0
        %v4579 = vadd.f32 %v4354, %v4578
        %v4580 = vpop.f32.mrb[0].mxu0
        %4581 = vmatprep.mubr.f32.mxu0 %v3513
        %4582 = vmatmul.mubr.f32.gmra.mrb[0].mxu0 %v3512
        %v4583 = vpop.f32.mrb[0].mxu0
        %v4584 = vadd.f32 %v4359, %v4583
        %v4585 = vpop.f32.mrb[0].mxu0
        %4586 = vmatprep.mubr.f32.mxu0 %v3522
        %4587 = vmatmul.mubr.f32.gmra.mrb[0].mxu0 %v3521
        %v4588 = vpop.f32.mrb[0].mxu0
        %v4589 = vadd.f32 %v4364, %v4588
        %v4590 = vpop.f32.mrb[0].mxu0
        %4591 = vmatprep.mubr.f32.mxu0 %v3531
        %4592 = vmatmul.mubr.f32.gmra.mrb[0].mxu0 %v3530
        %v4593 = vpop.f32.mrb[0].mxu0
        %v4594 = vadd.f32 %v4369, %v4593
        %v4595 = vpop.f32.mrb[0].mxu0
        %4596 = vmatprep.mubr.f32.mxu0 %v3540
        %4597 = vmatmul.mubr.f32.gmra.mrb[0].mxu0 %v3539
        %v4598 = vpop.f32.mrb[0].mxu0
        %v4599 = vadd.f32 %v4374, %v4598
        %v4600 = vpop.f32.mrb[0].mxu0
        %4601 = vmatprep.mubr.f32.mxu0 %v3549
        %4602 = vmatmul.mubr.f32.gmra.mrb[0].mxu0 %v3548
        %v4603 = vpop.f32.mrb[0].mxu0
        %v4604 = vadd.f32 %v4379, %v4603
        %v4605 = vpop.f32.mrb[0].mxu0
        %4606 = vmatprep.mubr.f32.mxu0 %v3558
        %4607 = vmatmul.mubr.f32.gmra.mrb[0].mxu0 %v3557
        %v4608 = vpop.f32.mrb[0].mxu0
        %v4609 = vadd.f32 %v4384, %v4608
        %v4610 = vpop.f32.mrb[0].mxu0
        %4611 = vmatprep.mubr.f32.mxu0 %v3567
        %4612 = vmatmul.mubr.f32.gmra.mrb[0].mxu0 %v3566
        %v4613 = vpop.f32.mrb[0].mxu0
        %v4614 = vadd.f32 %v4389, %v4613
        %v4615 = vpop.f32.mrb[0].mxu0
        %4616 = vmatprep.mubr.f32.mxu0 %v3576
        %4617 = vmatmul.mubr.f32.gmra.mrb[0].mxu0 %v3575
        %v4618 = vpop.f32.mrb[0].mxu0
        %v4619 = vadd.f32 %v4394, %v4618
        %v4620 = vpop.f32.mrb[0].mxu0
        %4621 = vdwg.mxu0
        %4622 = vmatprep.subr.mxu0 0.0
        %4623 = vmatpush1.msra.mxu0 %v3706
        %4624 = vmatprep.subr.mxu0 0.0
        %4625 = vmatpush1.msra.mxu0 %v3707
        %4626 = vmatprep.subr.mxu0 0.0
        %4627 = vmatpush1.msra.mxu0 %v3708
        %4628 = vmatprep.subr.mxu0 0.0
        %4629 = vmatpush1.msra.mxu0 %v3709
        %4630 = vmatprep.subr.mxu0 0.0
        %4631 = vmatpush1.msra.mxu0 %v3710
        %4632 = vmatprep.subr.mxu0 0.0
        %4633 = vmatpush1.msra.mxu0 %v3711
        %4634 = vmatprep.subr.mxu0 0.0
        %4635 = vmatpush1.msra.mxu0 %v3712
        %4636 = vmatprep.subr.mxu0 0.0
        %4637 = vmatpush1.msra.mxu0 %v3713
        %4638 = vmatprep.subr.mxu0 0.0
        %4639 = vmatpush1.msra.mxu0 %v3714
        %4640 = vmatprep.subr.mxu0 0.0
        %4641 = vmatpush1.msra.mxu0 %v3715
        %4642 = vmatprep.subr.mxu0 0.0
        %4643 = vmatpush1.msra.mxu0 %v3716
        %4644 = vmatprep.subr.mxu0 0.0
        %4645 = vmatpush1.msra.mxu0 %v3717
        %4646 = vmatprep.subr.mxu0 0.0
        %4647 = vmatpush1.msra.mxu0 %v3718
        %4648 = vmatprep.subr.mxu0 0.0
        %4649 = vmatpush1.msra.mxu0 %v3719
        %4650 = vmatprep.subr.mxu0 0.0
        %4651 = vmatpush1.msra.mxu0 %v3720
        %4652 = vmatprep.subr.mxu0 0.0
        %4653 = vmatpush1.msra.mxu0 %v3721
        %4654 = vmatprep.subr.mxu0 0.0
        %4655 = vmatpush1.msra.mxu0 0.0
        %4656 = vmatprep.subr.mxu0 0.0
        %4657 = vmatpush1.msra.mxu0 0.0
        %4658 = vmatprep.subr.mxu0 0.0
        %4659 = vmatpush1.msra.mxu0 0.0
        %4660 = vmatprep.subr.mxu0 0.0
        %4661 = vmatpush1.msra.mxu0 0.0
        %4662 = vmatprep.subr.mxu0 0.0
        %4663 = vmatpush1.msra.mxu0 0.0
        %4664 = vmatprep.subr.mxu0 0.0
        %4665 = vmatpush1.msra.mxu0 0.0
        %4666 = vmatprep.subr.mxu0 0.0
        %4667 = vmatpush1.msra.mxu0 0.0
        %4668 = vmatprep.subr.mxu0 0.0
        %4669 = vmatpush1.msra.mxu0 0.0
        %4670 = vmatprep.subr.mxu0 0.0
        %4671 = vmatpush1.msra.mxu0 0.0
        %4672 = vmatprep.subr.mxu0 0.0
        %4673 = vmatpush1.msra.mxu0 0.0
        %4674 = vmatprep.subr.mxu0 0.0
        %4675 = vmatpush1.msra.mxu0 0.0
        %4676 = vmatprep.subr.mxu0 0.0
        %4677 = vmatpush1.msra.mxu0 0.0
        %4678 = vmatprep.subr.mxu0 0.0
        %4679 = vmatpush1.msra.mxu0 0.0
        %4680 = vmatprep.subr.mxu0 0.0
        %4681 = vmatpush1.msra.mxu0 0.0
        %4682 = vmatprep.subr.mxu0 0.0
        %4683 = vmatpush1.msra.mxu0 0.0
        %4684 = vmatprep.subr.mxu0 0.0
        %4685 = vmatpush1.msra.mxu0 0.0
        %4686 = vmatprep.mubr.f32.mxu0 0.0
        %4687 = vmatmul.mubr.f32.gmra.mrb[0].mxu0 %v3298
        %v4688 = vpop.f32.mrb[0].mxu0
        %v4689 = vadd.f32 %v4464, %v4688
        %v4690 = vpop.f32.mrb[0].mxu0
        %4691 = vmatprep.mubr.f32.mxu0 0.0
        %4692 = vmatmul.mubr.f32.gmra.mrb[0].mxu0 %v3307
        %v4693 = vpop.f32.mrb[0].mxu0
        %v4694 = vadd.f32 %v4469, %v4693
        %v4695 = vpop.f32.mrb[0].mxu0
        %4696 = vmatprep.mubr.f32.mxu0 0.0
        %4697 = vmatmul.mubr.f32.gmra.mrb[0].mxu0 %v3316
        %v4698 = vpop.f32.mrb[0].mxu0
        %v4699 = vadd.f32 %v4474, %v4698
        %v4700 = vpop.f32.mrb[0].mxu0
        %4701 = vmatprep.mubr.f32.mxu0 0.0
        %4702 = vmatmul.mubr.f32.gmra.mrb[0].mxu0 %v3325
        %v4703 = vpop.f32.mrb[0].mxu0
        %v4704 = vadd.f32 %v4479, %v4703
        %v4705 = vpop.f32.mrb[0].mxu0
        %4706 = vmatprep.mubr.f32.mxu0 0.0
        %4707 = vmatmul.mubr.f32.gmra.mrb[0].mxu0 %v3334
        %v4708 = vpop.f32.mrb[0].mxu0
        %v4709 = vadd.f32 %v4484, %v4708
        %v4710 = vpop.f32.mrb[0].mxu0
        %4711 = vmatprep.mubr.f32.mxu0 0.0
        %4712 = vmatmul.mubr.f32.gmra.mrb[0].mxu0 %v3343
        %v4713 = vpop.f32.mrb[0].mxu0
        %v4714 = vadd.f32 %v4489, %v4713
        %v4715 = vpop.f32.mrb[0].mxu0
        %4716 = vmatprep.mubr.f32.mxu0 0.0
        %4717 = vmatmul.mubr.f32.gmra.mrb[0].mxu0 %v3352
        %v4718 = vpop.f32.mrb[0].mxu0
        %v4719 = vadd.f32 %v4494, %v4718
        %v4720 = vpop.f32.mrb[0].mxu0
        %4721 = vmatprep.mubr.f32.mxu0 0.0
        %4722 = vmatmul.mubr.f32.gmra.mrb[0].mxu0 %v3361
        %v4723 = vpop.f32.mrb[0].mxu0
        %v4724 = vadd.f32 %v4499, %v4723
        %v4725 = vpop.f32.mrb[0].mxu0
        %4726 = vmatprep.mubr.f32.mxu0 0.0
        %4727 = vmatmul.mubr.f32.gmra.mrb[0].mxu0 %v3370
        %v4728 = vpop.f32.mrb[0].mxu0
        %v4729 = vadd.f32 %v4504, %v4728
        %v4730 = vpop.f32.mrb[0].mxu0
        %4731 = vmatprep.mubr.f32.mxu0 0.0
        %4732 = vmatmul.mubr.f32.gmra.mrb[0].mxu0 %v3379
        %v4733 = vpop.f32.mrb[0].mxu0
        %v4734 = vadd.f32 %v4509, %v4733
        %v4735 = vpop.f32.mrb[0].mxu0
        %4736 = vmatprep.mubr.f32.mxu0 0.0
        %4737 = vmatmul.mubr.f32.gmra.mrb[0].mxu0 %v3388
        %v4738 = vpop.f32.mrb[0].mxu0
        %v4739 = vadd.f32 %v4514, %v4738
        %v4740 = vpop.f32.mrb[0].mxu0
        %4741 = vmatprep.mubr.f32.mxu0 0.0
        %4742 = vmatmul.mubr.f32.gmra.mrb[0].mxu0 %v3397
        %v4743 = vpop.f32.mrb[0].mxu0
        %v4744 = vadd.f32 %v4519, %v4743
        %v4745 = vpop.f32.mrb[0].mxu0
        %4746 = vmatprep.mubr.f32.mxu0 0.0
        %4747 = vmatmul.mubr.f32.gmra.mrb[0].mxu0 %v3406
        %v4748 = vpop.f32.mrb[0].mxu0
        %v4749 = vadd.f32 %v4524, %v4748
        %v4750 = vpop.f32.mrb[0].mxu0
        %4751 = vmatprep.mubr.f32.mxu0 0.0
        %4752 = vmatmul.mubr.f32.gmra.mrb[0].mxu0 %v3415
        %v4753 = vpop.f32.mrb[0].mxu0
        %v4754 = vadd.f32 %v4529, %v4753
        %v4755 = vpop.f32.mrb[0].mxu0
        %4756 = vmatprep.mubr.f32.mxu0 0.0
        %4757 = vmatmul.mubr.f32.gmra.mrb[0].mxu0 %v3424
        %v4758 = vpop.f32.mrb[0].mxu0
        %v4759 = vadd.f32 %v4534, %v4758
        %v4760 = vpop.f32.mrb[0].mxu0
        %4761 = vmatprep.mubr.f32.mxu0 0.0
        %4762 = vmatmul.mubr.f32.gmra.mrb[0].mxu0 %v3433
        %v4763 = vpop.f32.mrb[0].mxu0
        %v4764 = vadd.f32 %v4539, %v4763
        %v4765 = vpop.f32.mrb[0].mxu0
        %4766 = vmatprep.mubr.f32.mxu0 0.0
        %4767 = vmatmul.mubr.f32.gmra.mrb[0].mxu0 %v3442
        %v4768 = vpop.f32.mrb[0].mxu0
        %v4769 = vadd.f32 %v4544, %v4768
        %v4770 = vpop.f32.mrb[0].mxu0
        %4771 = vmatprep.mubr.f32.mxu0 0.0
        %4772 = vmatmul.mubr.f32.gmra.mrb[0].mxu0 %v3451
        %v4773 = vpop.f32.mrb[0].mxu0
        %v4774 = vadd.f32 %v4549, %v4773
        %v4775 = vpop.f32.mrb[0].mxu0
        %4776 = vmatprep.mubr.f32.mxu0 0.0
        %4777 = vmatmul.mubr.f32.gmra.mrb[0].mxu0 %v3460
        %v4778 = vpop.f32.mrb[0].mxu0
        %v4779 = vadd.f32 %v4554, %v4778
        %v4780 = vpop.f32.mrb[0].mxu0
        %4781 = vmatprep.mubr.f32.mxu0 0.0
        %4782 = vmatmul.mubr.f32.gmra.mrb[0].mxu0 %v3469
        %v4783 = vpop.f32.mrb[0].mxu0
        %v4784 = vadd.f32 %v4559, %v4783
        %v4785 = vpop.f32.mrb[0].mxu0
        %4786 = vmatprep.mubr.f32.mxu0 0.0
        %4787 = vmatmul.mubr.f32.gmra.mrb[0].mxu0 %v3478
        %v4788 = vpop.f32.mrb[0].mxu0
        %v4789 = vadd.f32 %v4564, %v4788
        %v4790 = vpop.f32.mrb[0].mxu0
        %4791 = vmatprep.mubr.f32.mxu0 0.0
        %4792 = vmatmul.mubr.f32.gmra.mrb[0].mxu0 %v3487
        %v4793 = vpop.f32.mrb[0].mxu0
        %v4794 = vadd.f32 %v4569, %v4793
        %v4795 = vpop.f32.mrb[0].mxu0
        %4796 = vmatprep.mubr.f32.mxu0 0.0
        %4797 = vmatmul.mubr.f32.gmra.mrb[0].mxu0 %v3496
        %v4798 = vpop.f32.mrb[0].mxu0
        %v4799 = vadd.f32 %v4574, %v4798
        %v4800 = vpop.f32.mrb[0].mxu0
        %4801 = vmatprep.mubr.f32.mxu0 0.0
        %4802 = vmatmul.mubr.f32.gmra.mrb[0].mxu0 %v3505
        %v4803 = vpop.f32.mrb[0].mxu0
        %v4804 = vadd.f32 %v4579, %v4803
        %v4805 = vpop.f32.mrb[0].mxu0
        %4806 = vmatprep.mubr.f32.mxu0 0.0
        %4807 = vmatmul.mubr.f32.gmra.mrb[0].mxu0 %v3514
        %v4808 = vpop.f32.mrb[0].mxu0
        %v4809 = vadd.f32 %v4584, %v4808
        %v4810 = vpop.f32.mrb[0].mxu0
        %4811 = vmatprep.mubr.f32.mxu0 0.0
        %4812 = vmatmul.mubr.f32.gmra.mrb[0].mxu0 %v3523
        %v4813 = vpop.f32.mrb[0].mxu0
        %v4814 = vadd.f32 %v4589, %v4813
        %v4815 = vpop.f32.mrb[0].mxu0
        %4816 = vmatprep.mubr.f32.mxu0 0.0
        %4817 = vmatmul.mubr.f32.gmra.mrb[0].mxu0 %v3532
        %v4818 = vpop.f32.mrb[0].mxu0
        %v4819 = vadd.f32 %v4594, %v4818
        %v4820 = vpop.f32.mrb[0].mxu0
        %4821 = vmatprep.mubr.f32.mxu0 0.0
        %4822 = vmatmul.mubr.f32.gmra.mrb[0].mxu0 %v3541
        %v4823 = vpop.f32.mrb[0].mxu0
        %v4824 = vadd.f32 %v4599, %v4823
        %v4825 = vpop.f32.mrb[0].mxu0
        %4826 = vmatprep.mubr.f32.mxu0 0.0
        %4827 = vmatmul.mubr.f32.gmra.mrb[0].mxu0 %v3550
        %v4828 = vpop.f32.mrb[0].mxu0
        %v4829 = vadd.f32 %v4604, %v4828
        %v4830 = vpop.f32.mrb[0].mxu0
        %4831 = vmatprep.mubr.f32.mxu0 0.0
        %4832 = vmatmul.mubr.f32.gmra.mrb[0].mxu0 %v3559
        %v4833 = vpop.f32.mrb[0].mxu0
        %v4834 = vadd.f32 %v4609, %v4833
        %v4835 = vpop.f32.mrb[0].mxu0
        %4836 = vmatprep.mubr.f32.mxu0 0.0
        %4837 = vmatmul.mubr.f32.gmra.mrb[0].mxu0 %v3568
        %v4838 = vpop.f32.mrb[0].mxu0
        %v4839 = vadd.f32 %v4614, %v4838
        %v4840 = vpop.f32.mrb[0].mxu0
        %4841 = vmatprep.mubr.f32.mxu0 0.0
        %4842 = vmatmul.mubr.f32.gmra.mrb[0].mxu0 %v3577
        %v4843 = vpop.f32.mrb[0].mxu0
        %v4844 = vadd.f32 %v4619, %v4843
        %v4845 = vpop.f32.mrb[0].mxu0
        %4846 = vdwg.mxu0
        %v4847 = vstv %s263
        %v4848 = vmul.f32 %v4689, %v4847
        %v4849 = vmul.f32 %v4694, %v4847
        %v4850 = vmul.f32 %v4699, %v4847
        %v4851 = vmul.f32 %v4704, %v4847
        %v4852 = vmul.f32 %v4709, %v4847
        %v4853 = vmul.f32 %v4714, %v4847
        %v4854 = vmul.f32 %v4719, %v4847
        %v4855 = vmul.f32 %v4724, %v4847
        %v4856 = vmul.f32 %v4729, %v4847
        %v4857 = vmul.f32 %v4734, %v4847
        %v4858 = vmul.f32 %v4739, %v4847
        %v4859 = vmul.f32 %v4744, %v4847
        %v4860 = vmul.f32 %v4749, %v4847
        %v4861 = vmul.f32 %v4754, %v4847
        %v4862 = vmul.f32 %v4759, %v4847
        %v4863 = vmul.f32 %v4764, %v4847
        %v4864 = vmul.f32 %v4769, %v4847
        %v4865 = vmul.f32 %v4774, %v4847
        %v4866 = vmul.f32 %v4779, %v4847
        %v4867 = vmul.f32 %v4784, %v4847
        %v4868 = vmul.f32 %v4789, %v4847
        %v4869 = vmul.f32 %v4794, %v4847
        %v4870 = vmul.f32 %v4799, %v4847
        %v4871 = vmul.f32 %v4804, %v4847
        %v4872 = vmul.f32 %v4809, %v4847
        %v4873 = vmul.f32 %v4814, %v4847
        %v4874 = vmul.f32 %v4819, %v4847
        %v4875 = vmul.f32 %v4824, %v4847
        %v4876 = vmul.f32 %v4829, %v4847
        %v4877 = vmul.f32 %v4834, %v4847
        %v4878 = vmul.f32 %v4839, %v4847
        %v4879 = vmul.f32 %v4844, %v4847
        %v4880 = vstv %s262
        %v4881 = vadd.f32 %v4848, %v4880
        %v4882 = vadd.f32 %v4849, %v4880
        %v4883 = vadd.f32 %v4850, %v4880
        %v4884 = vadd.f32 %v4851, %v4880
        %v4885 = vadd.f32 %v4852, %v4880
        %v4886 = vadd.f32 %v4853, %v4880
        %v4887 = vadd.f32 %v4854, %v4880
        %v4888 = vadd.f32 %v4855, %v4880
        %v4889 = vadd.f32 %v4856, %v4880
        %v4890 = vadd.f32 %v4857, %v4880
        %v4891 = vadd.f32 %v4858, %v4880
        %v4892 = vadd.f32 %v4859, %v4880
        %v4893 = vadd.f32 %v4860, %v4880
        %v4894 = vadd.f32 %v4861, %v4880
        %v4895 = vadd.f32 %v4862, %v4880
        %v4896 = vadd.f32 %v4863, %v4880
        %v4897 = vadd.f32 %v4864, %v4880
        %v4898 = vadd.f32 %v4865, %v4880
        %v4899 = vadd.f32 %v4866, %v4880
        %v4900 = vadd.f32 %v4867, %v4880
        %v4901 = vadd.f32 %v4868, %v4880
        %v4902 = vadd.f32 %v4869, %v4880
        %v4903 = vadd.f32 %v4870, %v4880
        %v4904 = vadd.f32 %v4871, %v4880
        %v4905 = vadd.f32 %v4872, %v4880
        %v4906 = vadd.f32 %v4873, %v4880
        %v4907 = vadd.f32 %v4874, %v4880
        %v4908 = vadd.f32 %v4875, %v4880
        %v4909 = vadd.f32 %v4876, %v4880
        %v4910 = vadd.f32 %v4877, %v4880
        %v4911 = vadd.f32 %v4878, %v4880
        %v4912 = vadd.f32 %v4879, %v4880
        %v4913 = vld [vmem:[%s221] sm:$0xff]
        %v4914 = vld [vmem:[%s221 + $0x8] sm:$0xff]
        %v4915 = vld [vmem:[%s221 + $0x10] sm:$0xff]
        %v4916 = vld [vmem:[%s221 + $0x18] sm:$0xff]
        %v4917 = vld [vmem:[%s221 + $0x20] sm:$0xff]
        %v4918 = vld [vmem:[%s221 + $0x28] sm:$0xff]
        %v4919 = vld [vmem:[%s221 + $0x30] sm:$0xff]
        %v4920 = vld [vmem:[%s221 + $0x38] sm:$0xff]
        %v4921 = vld [vmem:[%s221 + $0x40] sm:$0xff]
        %v4922 = vld [vmem:[%s221 + $0x48] sm:$0xff]
        %v4923 = vld [vmem:[%s221 + $0x50] sm:$0xff]
        %v4924 = vld [vmem:[%s221 + $0x58] sm:$0xff]
        %v4925 = vld [vmem:[%s221 + $0x60] sm:$0xff]
        %v4926 = vld [vmem:[%s221 + $0x68] sm:$0xff]
        %v4927 = vld [vmem:[%s221 + $0x70] sm:$0xff]
        %v4928 = vld [vmem:[%s221 + $0x78] sm:$0xff]
        %v4929 = vld [vmem:[%s221 + $0x80] sm:$0xff]
        %v4930 = vld [vmem:[%s221 + $0x88] sm:$0xff]
        %v4931 = vld [vmem:[%s221 + $0x90] sm:$0xff]
        %v4932 = vld [vmem:[%s221 + $0x98] sm:$0xff]
        %v4933 = vld [vmem:[%s221 + $0xa0] sm:$0xff]
        %v4934 = vld [vmem:[%s221 + $0xa8] sm:$0xff]
        %v4935 = vld [vmem:[%s221 + $0xb0] sm:$0xff]
        %v4936 = vld [vmem:[%s221 + $0xb8] sm:$0xff]
        %v4937 = vld [vmem:[%s221 + $0xc0] sm:$0xff]
        %v4938 = vld [vmem:[%s221 + $0xc8] sm:$0xff]
        %v4939 = vld [vmem:[%s221 + $0xd0] sm:$0xff]
        %v4940 = vld [vmem:[%s221 + $0xd8] sm:$0xff]
        %v4941 = vld [vmem:[%s221 + $0xe0] sm:$0xff]
        %v4942 = vld [vmem:[%s221 + $0xe8] sm:$0xff]
        %v4943 = vld [vmem:[%s221 + $0xf0] sm:$0xff]
        %v4944 = vld [vmem:[%s221 + $0xf8] sm:$0xff]
        %v4945 = vadd.f32 %v4881, %v4913
        %v4946 = vadd.f32 %v4882, %v4914
        %v4947 = vadd.f32 %v4883, %v4915
        %v4948 = vadd.f32 %v4884, %v4916
        %v4949 = vadd.f32 %v4885, %v4917
        %v4950 = vadd.f32 %v4886, %v4918
        %v4951 = vadd.f32 %v4887, %v4919
        %v4952 = vadd.f32 %v4888, %v4920
        %v4953 = vadd.f32 %v4889, %v4921
        %v4954 = vadd.f32 %v4890, %v4922
        %v4955 = vadd.f32 %v4891, %v4923
        %v4956 = vadd.f32 %v4892, %v4924
        %v4957 = vadd.f32 %v4893, %v4925
        %v4958 = vadd.f32 %v4894, %v4926
        %v4959 = vadd.f32 %v4895, %v4927
        %v4960 = vadd.f32 %v4896, %v4928
        %v4961 = vadd.f32 %v4897, %v4929
        %v4962 = vadd.f32 %v4898, %v4930
        %v4963 = vadd.f32 %v4899, %v4931
        %v4964 = vadd.f32 %v4900, %v4932
        %v4965 = vadd.f32 %v4901, %v4933
        %v4966 = vadd.f32 %v4902, %v4934
        %v4967 = vadd.f32 %v4903, %v4935
        %v4968 = vadd.f32 %v4904, %v4936
        %v4969 = vadd.f32 %v4905, %v4937
        %v4970 = vadd.f32 %v4906, %v4938
        %v4971 = vadd.f32 %v4907, %v4939
        %v4972 = vadd.f32 %v4908, %v4940
        %v4973 = vadd.f32 %v4909, %v4941
        %v4974 = vadd.f32 %v4910, %v4942
        %v4975 = vadd.f32 %v4911, %v4943
        %v4976 = vadd.f32 %v4912, %v4944
        %4977 = vst [vmem:[%s258] sm:$0xff] %v4945
        %4978 = vst [vmem:[%s258 + $0x8] sm:$0xff] %v4946
        %4979 = vst [vmem:[%s258 + $0x10] sm:$0xff] %v4947
        %4980 = vst [vmem:[%s258 + $0x18] sm:$0xff] %v4948
        %4981 = vst [vmem:[%s258 + $0x20] sm:$0xff] %v4949
        %4982 = vst [vmem:[%s258 + $0x28] sm:$0xff] %v4950
        %4983 = vst [vmem:[%s258 + $0x30] sm:$0xff] %v4951
        %4984 = vst [vmem:[%s258 + $0x38] sm:$0xff] %v4952
        %4985 = vst [vmem:[%s258 + $0x40] sm:$0xff] %v4953
        %4986 = vst [vmem:[%s258 + $0x48] sm:$0xff] %v4954
        %4987 = vst [vmem:[%s258 + $0x50] sm:$0xff] %v4955
        %4988 = vst [vmem:[%s258 + $0x58] sm:$0xff] %v4956
        %4989 = vst [vmem:[%s258 + $0x60] sm:$0xff] %v4957
        %4990 = vst [vmem:[%s258 + $0x68] sm:$0xff] %v4958
        %4991 = vst [vmem:[%s258 + $0x70] sm:$0xff] %v4959
        %4992 = vst [vmem:[%s258 + $0x78] sm:$0xff] %v4960
        %4993 = vst [vmem:[%s258 + $0x80] sm:$0xff] %v4961
        %4994 = vst [vmem:[%s258 + $0x88] sm:$0xff] %v4962
        %4995 = vst [vmem:[%s258 + $0x90] sm:$0xff] %v4963
        %4996 = vst [vmem:[%s258 + $0x98] sm:$0xff] %v4964
        %4997 = vst [vmem:[%s258 + $0xa0] sm:$0xff] %v4965
        %4998 = vst [vmem:[%s258 + $0xa8] sm:$0xff] %v4966
        %4999 = vst [vmem:[%s258 + $0xb0] sm:$0xff] %v4967
        %5000 = vst [vmem:[%s258 + $0xb8] sm:$0xff] %v4968
        %5001 = vst [vmem:[%s258 + $0xc0] sm:$0xff] %v4969
        %5002 = vst [vmem:[%s258 + $0xc8] sm:$0xff] %v4970
        %5003 = vst [vmem:[%s258 + $0xd0] sm:$0xff] %v4971
        %5004 = vst [vmem:[%s258 + $0xd8] sm:$0xff] %v4972
        %5005 = vst [vmem:[%s258 + $0xe0] sm:$0xff] %v4973
        %5006 = vst [vmem:[%s258 + $0xe8] sm:$0xff] %v4974
        %5007 = vst [vmem:[%s258 + $0xf0] sm:$0xff] %v4975
        %5008 = vst [vmem:[%s258 + $0xf8] sm:$0xff] %v4976
        %s5009 = sand.u32 %s120, 1
        %s5010 = scalar_lea.sflag [#allocation8], %s5009
        %s5011 = sand.u32 %s120, 1
        %s5012 = smul.addr %s5011, 256
        %s5013 = scalar_lea.vmem [#allocation14], %s5012
        // Predicated region
        $region53: #{tpu_custom_call.1} parent=35 // pred_check
          %p5014 = pneg %p130
        $region54: #{tpu_custom_call.1} parent=35 // pred_check_branch
          %5016 = sbr.rel (%p5014) target = $region56
        $region55: #{tpu_custom_call.1} parent=35 // pred_region
          %s5018 = ssub.s32 4096, 4096
          %5019 = vsyncadd %s5010, %s5018
          %s5020 = smul.addr %s23, 32
          %s5021 = smul.addr %s5020, 128
          %s5022 = scalar_lea.hbm %s4, %s5021
          %s5023 = sshll.u32 %s5013, 4
          %s5024 = int_to_ptr.vmem [resolvable:$true] %s5023
          %5029 = dma.vmem_to_hbm [thread:$0]  %s5024, 4096, %s5022, %s5010, 128, 128, 8
        $region56: #{tpu_custom_call.1} parent=35 // pred_fallthru
          _
      $region36: #{tpu_custom_call.1} parent=5 // pred_fallthru
        _
      %p5030 = scmp.le.s32.totalorder 2, %s18
      // Predicated region
      $region57: #{tpu_custom_call.1} parent=5 // pred_check
        %p5031 = pneg %p5030
      $region58: #{tpu_custom_call.1} parent=5 // pred_check_branch
        %5033 = sbr.rel (%p5031) target = $region60
      $region59: #{tpu_custom_call.1} parent=5 // pred_region
        %s5034 = ssub.s32 %s18, 2
        // Predicated region
        $region61: #{tpu_custom_call.1} parent=59 // pred_check
          %p5035 = pneg %p136
        $region62: #{tpu_custom_call.1} parent=59 // pred_check_branch
          %5037 = sbr.rel (%p5035) target = $region64
        $region63: #{tpu_custom_call.1} parent=59 // pred_region
          %s5038 = sand.u32 %s121, 1
          %s5039 = scalar_lea.sflag [#allocation8], %s5038
          %s5040 = sand.u32 %s121, 1
          %s5041 = smul.addr %s5040, 256
          %s5042 = scalar_lea.vmem [#allocation14], %s5041
          %5043 = dma.done %s5039, 4096
        $region64: #{tpu_custom_call.1} parent=59 // pred_fallthru
          _
      $region60: #{tpu_custom_call.1} parent=5 // pred_fallthru
        _
    $region6: #{tpu_custom_call.1} parent=1 // loop_footer
      %s22 = sadd.s32 1, %s18
    $region7: #{tpu_custom_call.1} parent=1 // loop_footer_branch
      %17 = sbr.rel target = $region3
    $region8: #{tpu_custom_call.1} parent=1 // loop_exit
      _
    %5044 = vsyncpa [#allocation7], 1
    %s5045 = scalar_lea.sflag [#allocation7], 1
    %5046 = vsyncpa %s5045, 1
    %5047 = vsyncpa [#allocation11], 1
    %5048 = vsyncpa [#allocation8], 1
    %s5049 = scalar_lea.sflag [#allocation8], 1
    %5050 = vsyncpa %s5049, 1
    %5051 = vsyncpa [#allocation9], 1
    %s5052 = scalar_lea.sflag [#allocation9], 1
    %5053 = vsyncpa %s5052, 1

</llo_original>
